<compile_context>
chip_gen: v7x
topology: tpu7x:2x2x1
jax: 0.10.0
libtpu: 0.0.40
codegen_flags: <defaults>
</compile_context>

<pallas_src>
import functools
import numpy as np
import jax
import jax.numpy as jnp
from jax.experimental import pallas as pl
from jax.experimental.pallas import tpu as pltpu

F32 = jnp.float32
BF16 = jnp.bfloat16


def _round_up(x, m):
    return (x + m - 1) // m * m


# --------------------------------------------------------------------------
# Trace-time 0/1 layout matrices (depend only on the static batch size B).
# --------------------------------------------------------------------------
@functools.lru_cache(maxsize=None)
def _layout_consts(B):
    NP = B * 324                 # flat zero-padded (18x18) pooled-1 pixels
    NV = B * 49                  # valid pooled-2 pixels
    wblk = _round_up(NP + 80, 128)   # per pool-offset block / pad1 width

    # Lane mask keeping only the interior 14x14 of each image's 18x18 block.
    m1 = np.zeros((1, wblk), np.float32)
    for b in range(B):
        for i in range(2, 16):
            m1[0, b * 324 + i * 18 + 2: b * 324 + i * 18 + 16] = 1.0

    # Pool-2 selection: 4 exact 0/1 gathers, one per 2x2 window offset.
    e4 = np.zeros((4, NP, NV), np.float32)
    for b in range(B):
        for h2 in range(7):
            for w2 in range(7):
                col = b * 49 + h2 * 7 + w2
                for dh in range(2):
                    for dw in range(2):
                        n = b * 324 + (2 * h2 + dh) * 18 + (2 * w2 + dw)
                        e4[dh * 2 + dw, n, col] = 1.0

    # (16, B*49) -> (B, 784) relayout realised as matmuls:
    #   zt = spt @ p2          (channel spread; feature order f = s*16 + c)
    #   zt = zt * mkt          (keep only the matching pooled pixel per f)
    #   act = ss @ zt.T        (sum the single surviving term per image)
    spt = np.zeros((784, 16), np.float32)
    for s in range(49):
        for c in range(16):
            spt[s * 16 + c, c] = 1.0
    mkt = np.zeros((784, NV), np.float32)
    for b in range(B):
        for s in range(49):
            mkt[s * 16:(s + 1) * 16, b * 49 + s] = 1.0
    ss = np.zeros((B, NV), np.float32)
    for b in range(B):
        ss[b, b * 49:(b + 1) * 49] = 1.0

    return wblk, m1, e4, spt, mkt, ss


# --------------------------------------------------------------------------
# Fused Pallas kernel
# --------------------------------------------------------------------------
def _make_kernel(B, wblk):
    NP = B * 324

    def kernel(col1_ref, w1_ref, b1_ref, w2_ref, b2_ref, m1_ref,
               e4_ref, spt_ref, mkt_ref, ss_ref,
               fw1_ref, fb1_ref, fw2_ref, fb2_ref,
               o_ref, pad1_ref):
        # ---- conv1 + bias + ReLU : (8, 25) @ (25, 4*wblk) on the MXU ------
        y1 = jnp.dot(w1_ref[...], col1_ref[...], preferred_element_type=F32)
        y1 = jnp.maximum(y1 + b1_ref[...], 0.0)

        # ---- max-pool #1: max over 4 contiguous, 128-aligned lane blocks --
        p1 = jnp.maximum(jnp.maximum(y1[:, 0:wblk], y1[:, wblk:2 * wblk]),
                         jnp.maximum(y1[:, 2 * wblk:3 * wblk],
                                     y1[:, 3 * wblk:4 * wblk]))
        # Zero the pad ring / slack lanes, then ONE aligned full-ref store of
        # the padded (18-stride) pooled map (replaces the old 28-store scatter).
        pad1_ref[...] = (p1 * m1_ref[...]).astype(BF16)

        # ---- conv2 + bias + ReLU: 25 shifted-slice tap matmuls ------------
        # y2 column n = b*324 + h*18 + w (valid for h, w < 14).
        y2 = jnp.zeros((16, NP), F32)
        for kh in range(5):
            for kw in range(5):
                t = kh * 5 + kw
                s = kh * 18 + kw
                y2 = y2 + jnp.dot(w2_ref[:, t * 8:(t + 1) * 8],
                                  pad1_ref[:, s:s + NP],
                                  preferred_element_type=F32)
        y2 = jnp.maximum(y2 + b2_ref[...], 0.0)                   # (16, NP)

        # ---- max-pool #2: gather-then-max with 4 exact 0/1 matmuls --------
        p2 = None
        for d in range(4):
            g = jnp.dot(y2, e4_ref[d], preferred_element_type=F32)
            p2 = g if p2 is None else jnp.maximum(p2, g)
        # p2: (16, B*49), column = b*49 + h2*7 + w2

        # ---- (16, B*49) -> (B, 784) relayout via matmuls (no tiny stores) -
        zt = jnp.dot(spt_ref[...], p2, preferred_element_type=F32)  # (784, B*49)
        zt = zt * mkt_ref[...]
        act = jax.lax.dot_general(ss_ref[...], zt,
                                  (((1,), (1,)), ((), ())),
                                  preferred_element_type=F32)        # (B, 784)

        # ---- fc1 -> ReLU -> fc2  -------------------------------------------
        h = jnp.dot(act.astype(BF16), fw1_ref[...],
                    preferred_element_type=F32)
        h = jnp.maximum(h + fb1_ref[...], 0.0).astype(BF16)          # (B, 512)
        o_ref[...] = (jnp.dot(h, fw2_ref[...], preferred_element_type=F32)
                      + fb2_ref[...])

    return kernel


# --------------------------------------------------------------------------
# One-time weight packing (hoisted out of the per-call path).
# --------------------------------------------------------------------------
def prepare_params(params):
    w1 = params["cw1"].reshape(6, 25)
    w1 = jnp.concatenate([w1, jnp.zeros((2, 25), w1.dtype)], axis=0)  # (8, 25)
    b1 = jnp.concatenate([params["cb1"], jnp.zeros((2,), F32)]).reshape(8, 1)
    w2 = params["cw2"].transpose(0, 2, 3, 1)                    # (16, 5, 5, 6)
    w2 = jnp.pad(w2, ((0, 0), (0, 0), (0, 0), (0, 2)))          # (16, 5, 5, 8)
    w2 = w2.reshape(16, 200)                                    # col = t*8 + c
    # fc1 rows permuted to the kernel's feature order f = s*16 + c.
    fw1p = (params["fw1"].reshape(16, 49, 512)
            .transpose(1, 0, 2).reshape(784, 512))
    return {
        "w1": w1.astype(BF16), "b1": b1.astype(F32),
        "w2": w2.astype(BF16), "b2": params["cb2"].reshape(16, 1).astype(F32),
        "fw1": fw1p.astype(BF16),
        "fb1": params["fb1"].reshape(1, 512).astype(F32),
        "fw2": params["fw2"].astype(BF16),
        "fb2": params["fb2"].reshape(1, 10).astype(F32),
    }


# --------------------------------------------------------------------------
# Wrapper-side input layout plumbing (pure data movement).
# --------------------------------------------------------------------------
def _build_col1(x, wblk):
    """(B,1,28,28) -> (25, 4*wblk) bf16 im2col, columns ordered
    [(w%2), (h%2) | b, padded-18 flat], zeros at pad-ring / slack lanes."""
    B = x.shape[0]
    xp = jnp.pad(x[:, 0], ((0, 0), (2, 2), (2, 2)))              # (B, 32, 32)
    taps = [xp[:, kh:kh + 28, kw:kw + 28]
            for kh in range(5) for kw in range(5)]
    col = jnp.stack(taps, axis=0)                                # (25,B,28,28)
    col = col.reshape(25, B, 14, 2, 14, 2)                       # t,b,h2,eh,w2,ew
    col = col.transpose(0, 5, 3, 1, 2, 4)                        # t,ew,eh,b,h2,w2
    buf = jnp.zeros((25, 2, 2, B, 18, 18), x.dtype)
    buf = buf.at[:, :, :, :, 2:16, 2:16].set(col)
    col1 = buf.reshape(25, 4, B * 324)
    col1 = jnp.pad(col1, ((0, 0), (0, 0), (0, wblk - B * 324)))
    return col1.reshape(25, 4 * wblk).astype(BF16)
    # TODO(synk): at larger batch, build this im2col inside the kernel from
    # the raw padded image to shrink the per-call HBM input ~25x.


def _forward(x, prep):
    B = x.shape[0]
    wblk, m1, e4, spt, mkt, ss = _layout_consts(B)
    col1 = _build_col1(x, wblk)
    kernel = _make_kernel(B, wblk)

    def full(shape):
        nd = len(shape)
        return pl.BlockSpec(shape, lambda i, _nd=nd: (0,) * _nd)

    args = (col1, prep["w1"], prep["b1"], prep["w2"], prep["b2"],
            jnp.asarray(m1), jnp.asarray(e4), jnp.asarray(spt),
            jnp.asarray(mkt), jnp.asarray(ss),
            prep["fw1"], prep["fb1"], prep["fw2"], prep["fb2"])

    return pl.pallas_call(
        kernel,
        out_shape=jax.ShapeDtypeStruct((B, 10), F32),
        grid=(1,),
        in_specs=[full(a.shape) for a in args],
        out_specs=full((B, 10)),
        scratch_shapes=[pltpu.VMEM((8, wblk), BF16)],   # padded pooled-1 map
        compiler_params=pltpu.CompilerParams(
            dimension_semantics=("arbitrary",)),
        # TODO(synk): at B>=64, add a leading "parallel" batch-block grid axis
        # (second TensorCore on v7x) and re-derive the per-step block for
        # v7x's 64 MiB VMEM; at B=2 the single fused launch is right.
    )(*args)


simple_cnn_forward = jax.jit(_forward)


# --------------------------------------------------------------------------
# Model: deterministic synthetic parameters (not a checkpoint load).
# --------------------------------------------------------------------------
def init_params(key):
    ks = jax.random.split(key, 8)
    p = {}
    p["cw1"] = jax.random.normal(ks[0], (6, 1, 5, 5), F32) * 0.20
    p["cb1"] = jax.random.normal(ks[1], (6,), F32) * 0.10
    p["cw2"] = jax.random.normal(ks[2], (16, 6, 5, 5), F32) * 0.08
    p["cb2"] = jax.random.normal(ks[3], (16,), F32) * 0.10
    p["fw1"] = jax.random.normal(ks[4], (16 * 7 * 7, 512), F32) * 0.04
    p["fb1"] = jax.random.normal(ks[5], (512,), F32) * 0.10
    p["fw2"] = jax.random.normal(ks[6], (512, 10), F32) * 0.05
    p["fb2"] = jax.random.normal(ks[7], (10,), F32) * 0.10
    return p


def reference_forward(x, p):
    """Pure-JAX f32 reference (same math, high-precision matmuls)."""
    hp = jax.lax.Precision.HIGHEST

    def conv(x, w, b):
        y = jax.lax.conv_general_dilated(
            x, w, window_strides=(1, 1), padding=((2, 2), (2, 2)),
            dimension_numbers=("NCHW", "OIHW", "NCHW"), precision=hp)
        return y + b.reshape(1, -1, 1, 1)

    def pool(x):
        return jax.lax.reduce_window(x, -jnp.inf, jax.lax.max,
                                     (1, 1, 2, 2), (1, 1, 2, 2), "VALID")

    h = pool(jax.nn.relu(conv(x, p["cw1"], p["cb1"])))
    h = pool(jax.nn.relu(conv(h, p["cw2"], p["cb2"])))
    h = h.reshape(x.shape[0], -1)
    h = jax.nn.relu(jnp.dot(h, p["fw1"], precision=hp) + p["fb1"])
    return jnp.dot(h, p["fw2"], precision=hp) + p["fb2"]


if __name__ == "__main__":
    key = jax.random.PRNGKey(0)
    kx, kp = jax.random.split(key)
    # Input implied by the module: 1-channel 28x28 images (fc1 expects 16*7*7).
    x = jax.random.normal(kx, (2, 1, 28, 28), F32)
    params = init_params(kp)
    prep = prepare_params(params)          # one-time weight packing

    out = jax.block_until_ready(simple_cnn_forward(x, prep))
    assert out.shape == (2, 10), out.shape
    assert bool(jnp.all(jnp.isfinite(out)))

    ref = reference_forward(x, params)
    # bf16 MXU operands with f32 accumulation -> tolerance sized for bf16.
    np.testing.assert_allclose(np.asarray(out), np.asarray(ref),
                               rtol=5e-2, atol=5e-2)
    print("KERNEL_OK")
</pallas_src>

<mosaic_0001>
module attributes {stable_mosaic.version = 11 : i64} {
  func.func @kernel(%arg0: i32, %arg1: memref<25x3072xbf16, #tpu.memory_space<vmem>>, %arg2: memref<8x25xbf16, #tpu.memory_space<vmem>>, %arg3: memref<8x1xf32, #tpu.memory_space<vmem>>, %arg4: memref<16x200xbf16, #tpu.memory_space<vmem>>, %arg5: memref<16x1xf32, #tpu.memory_space<vmem>>, %arg6: memref<1x768xf32, #tpu.memory_space<vmem>>, %arg7: memref<4x648x98xf32, #tpu.memory_space<vmem>>, %arg8: memref<784x16xf32, #tpu.memory_space<vmem>>, %arg9: memref<784x98xf32, #tpu.memory_space<vmem>>, %arg10: memref<2x98xf32, #tpu.memory_space<vmem>>, %arg11: memref<784x512xbf16, #tpu.memory_space<vmem>>, %arg12: memref<1x512xf32, #tpu.memory_space<vmem>>, %arg13: memref<512x10xbf16, #tpu.memory_space<vmem>>, %arg14: memref<1x10xf32, #tpu.memory_space<vmem>>, %arg15: memref<2x10xf32, #tpu.memory_space<vmem>>, %arg16: memref<8x768xbf16, #tpu.memory_space<vmem>>) attributes {dimension_semantics = [#tpu.dimension_semantics<arbitrary>], iteration_bounds = array<i64: 1>, scalar_prefetch = 0 : i64, scratch_operands = 1 : i64, tpu.core_type = #tpu.core_type<tc>, window_params = [{pipeline_mode = #tpu.pipeline_mode<synchronous>, transform_indices = @transform_0, window_bounds = array<i64: 25, 3072>}, {pipeline_mode = #tpu.pipeline_mode<synchronous>, transform_indices = @transform_1, window_bounds = array<i64: 8, 25>}, {pipeline_mode = #tpu.pipeline_mode<synchronous>, transform_indices = @transform_2, window_bounds = array<i64: 8, 1>}, {pipeline_mode = #tpu.pipeline_mode<synchronous>, transform_indices = @transform_3, window_bounds = array<i64: 16, 200>}, {pipeline_mode = #tpu.pipeline_mode<synchronous>, transform_indices = @transform_4, window_bounds = array<i64: 16, 1>}, {pipeline_mode = #tpu.pipeline_mode<synchronous>, transform_indices = @transform_5, window_bounds = array<i64: 1, 768>}, {pipeline_mode = #tpu.pipeline_mode<synchronous>, transform_indices = @transform_6, window_bounds = array<i64: 4, 648, 98>}, {pipeline_mode = #tpu.pipeline_mode<synchronous>, transform_indices = @transform_7, window_bounds = array<i64: 784, 16>}, {pipeline_mode = #tpu.pipeline_mode<synchronous>, transform_indices = @transform_8, window_bounds = array<i64: 784, 98>}, {pipeline_mode = #tpu.pipeline_mode<synchronous>, transform_indices = @transform_9, window_bounds = array<i64: 2, 98>}, {pipeline_mode = #tpu.pipeline_mode<synchronous>, transform_indices = @transform_10, window_bounds = array<i64: 784, 512>}, {pipeline_mode = #tpu.pipeline_mode<synchronous>, transform_indices = @transform_11, window_bounds = array<i64: 1, 512>}, {pipeline_mode = #tpu.pipeline_mode<synchronous>, transform_indices = @transform_12, window_bounds = array<i64: 512, 10>}, {pipeline_mode = #tpu.pipeline_mode<synchronous>, transform_indices = @transform_13, window_bounds = array<i64: 1, 10>}, {pipeline_mode = #tpu.pipeline_mode<synchronous>, transform_indices = @transform_14, window_bounds = array<i64: 2, 10>}]} {
    %c0 = arith.constant 0 : index
    %c0_0 = arith.constant 0 : index
    %0 = vector.load %arg2[%c0, %c0_0] : memref<8x25xbf16, #tpu.memory_space<vmem>>, vector<8x25xbf16>
    %c0_1 = arith.constant 0 : index
    %c0_2 = arith.constant 0 : index
    %1 = vector.load %arg1[%c0_1, %c0_2] : memref<25x3072xbf16, #tpu.memory_space<vmem>>, vector<25x3072xbf16>
    %cst = arith.constant dense<0.000000e+00> : vector<8x3072xf32>
    %2 = tpu.matmul %0, %1, %cst {dimension_numbers = #tpu.dot_dimension_numbers<[1], [0], [0], [1], [0, 0, 1, 1], [], []>} : vector<8x25xbf16>, vector<25x3072xbf16>, vector<8x3072xf32> -> vector<8x3072xf32>
    %c0_3 = arith.constant 0 : index
    %c0_4 = arith.constant 0 : index
    %3 = vector.load %arg3[%c0_3, %c0_4] : memref<8x1xf32, #tpu.memory_space<vmem>>, vector<8x1xf32>
    %4 = vector.broadcast %3 : vector<8x1xf32> to vector<8x3072xf32>
    %5 = arith.addf %2, %4 : vector<8x3072xf32>
    %cst_5 = arith.constant 0.000000e+00 : f32
    %6 = vector.broadcast %cst_5 : f32 to vector<8x3072xf32>
    %7 = arith.maximumf %5, %6 : vector<8x3072xf32>
    %8 = vector.extract_strided_slice %7 {offsets = [0, 0], sizes = [8, 768], strides = [1, 1]} : vector<8x3072xf32> to vector<8x768xf32>
    %9 = vector.extract_strided_slice %7 {offsets = [0, 768], sizes = [8, 768], strides = [1, 1]} : vector<8x3072xf32> to vector<8x768xf32>
    %10 = arith.maximumf %8, %9 : vector<8x768xf32>
    %11 = vector.extract_strided_slice %7 {offsets = [0, 1536], sizes = [8, 768], strides = [1, 1]} : vector<8x3072xf32> to vector<8x768xf32>
    %12 = vector.extract_strided_slice %7 {offsets = [0, 2304], sizes = [8, 768], strides = [1, 1]} : vector<8x3072xf32> to vector<8x768xf32>
    %13 = arith.maximumf %11, %12 : vector<8x768xf32>
    %14 = arith.maximumf %10, %13 : vector<8x768xf32>
    %c0_6 = arith.constant 0 : index
    %c0_7 = arith.constant 0 : index
    %15 = vector.load %arg6[%c0_6, %c0_7] : memref<1x768xf32, #tpu.memory_space<vmem>>, vector<1x768xf32>
    %16 = vector.broadcast %15 : vector<1x768xf32> to vector<8x768xf32>
    %17 = arith.mulf %14, %16 : vector<8x768xf32>
    %18 = arith.truncf %17 : vector<8x768xf32> to vector<8x768xbf16>
    %c0_8 = arith.constant 0 : index
    %c0_9 = arith.constant 0 : index
    %19 = vector.load %arg16[%c0_8, %c0_9] : memref<8x768xbf16, #tpu.memory_space<vmem>>, vector<8x768xbf16>
    tpu.vector_store %arg16[%c0_8, %c0_9], %18 {strides = array<i32>} : memref<8x768xbf16, #tpu.memory_space<vmem>>, vector<8x768xbf16>,
    %cst_10 = arith.constant 0.000000e+00 : f32
    %20 = vector.broadcast %cst_10 : f32 to vector<16x648xf32>
    %c0_11 = arith.constant 0 : index
    %c0_12 = arith.constant 0 : index
    %21 = vector.load %arg4[%c0_11, %c0_12] : memref<16x200xbf16, #tpu.memory_space<vmem>>, vector<16x8xbf16>
    %c0_13 = arith.constant 0 : index
    %c0_14 = arith.constant 0 : index
    %22 = vector.load %arg16[%c0_13, %c0_14] : memref<8x768xbf16, #tpu.memory_space<vmem>>, vector<8x648xbf16>
    %cst_15 = arith.constant dense<0.000000e+00> : vector<16x648xf32>
    %23 = tpu.matmul %21, %22, %cst_15 {dimension_numbers = #tpu.dot_dimension_numbers<[1], [0], [0], [1], [0, 0, 1, 1], [], []>} : vector<16x8xbf16>, vector<8x648xbf16>, vector<16x648xf32> -> vector<16x648xf32>
    %24 = arith.addf %20, %23 : vector<16x648xf32>
    %c0_16 = arith.constant 0 : index
    %c8 = arith.constant 8 : index
    %25 = vector.load %arg4[%c0_16, %c8] : memref<16x200xbf16, #tpu.memory_space<vmem>>, vector<16x8xbf16>
    %c0_17 = arith.constant 0 : index
    %c1 = arith.constant 1 : index
    %26 = vector.load %arg16[%c0_17, %c1] : memref<8x768xbf16, #tpu.memory_space<vmem>>, vector<8x648xbf16>
    %cst_18 = arith.constant dense<0.000000e+00> : vector<16x648xf32>
    %27 = tpu.matmul %25, %26, %cst_18 {dimension_numbers = #tpu.dot_dimension_numbers<[1], [0], [0], [1], [0, 0, 1, 1], [], []>} : vector<16x8xbf16>, vector<8x648xbf16>, vector<16x648xf32> -> vector<16x648xf32>
    %28 = arith.addf %24, %27 : vector<16x648xf32>
    %c0_19 = arith.constant 0 : index
    %c16 = arith.constant 16 : index
    %29 = vector.load %arg4[%c0_19, %c16] : memref<16x200xbf16, #tpu.memory_space<vmem>>, vector<16x8xbf16>
    %c0_20 = arith.constant 0 : index
    %c2 = arith.constant 2 : index
    %30 = vector.load %arg16[%c0_20, %c2] : memref<8x768xbf16, #tpu.memory_space<vmem>>, vector<8x648xbf16>
    %cst_21 = arith.constant dense<0.000000e+00> : vector<16x648xf32>
    %31 = tpu.matmul %29, %30, %cst_21 {dimension_numbers = #tpu.dot_dimension_numbers<[1], [0], [0], [1], [0, 0, 1, 1], [], []>} : vector<16x8xbf16>, vector<8x648xbf16>, vector<16x648xf32> -> vector<16x648xf32>
    %32 = arith.addf %28, %31 : vector<16x648xf32>
    %c0_22 = arith.constant 0 : index
    %c24 = arith.constant 24 : index
    %33 = vector.load %arg4[%c0_22, %c24] : memref<16x200xbf16, #tpu.memory_space<vmem>>, vector<16x8xbf16>
    %c0_23 = arith.constant 0 : index
    %c3 = arith.constant 3 : index
    %34 = vector.load %arg16[%c0_23, %c3] : memref<8x768xbf16, #tpu.memory_space<vmem>>, vector<8x648xbf16>
    %cst_24 = arith.constant dense<0.000000e+00> : vector<16x648xf32>
    %35 = tpu.matmul %33, %34, %cst_24 {dimension_numbers = #tpu.dot_dimension_numbers<[1], [0], [0], [1], [0, 0, 1, 1], [], []>} : vector<16x8xbf16>, vector<8x648xbf16>, vector<16x648xf32> -> vector<16x648xf32>
    %36 = arith.addf %32, %35 : vector<16x648xf32>
    %c0_25 = arith.constant 0 : index
    %c32 = arith.constant 32 : index
    %37 = vector.load %arg4[%c0_25, %c32] : memref<16x200xbf16, #tpu.memory_space<vmem>>, vector<16x8xbf16>
    %c0_26 = arith.constant 0 : index
    %c4 = arith.constant 4 : index
    %38 = vector.load %arg16[%c0_26, %c4] : memref<8x768xbf16, #tpu.memory_space<vmem>>, vector<8x648xbf16>
    %cst_27 = arith.constant dense<0.000000e+00> : vector<16x648xf32>
    %39 = tpu.matmul %37, %38, %cst_27 {dimension_numbers = #tpu.dot_dimension_numbers<[1], [0], [0], [1], [0, 0, 1, 1], [], []>} : vector<16x8xbf16>, vector<8x648xbf16>, vector<16x648xf32> -> vector<16x648xf32>
    %40 = arith.addf %36, %39 : vector<16x648xf32>
    %c0_28 = arith.constant 0 : index
    %c40 = arith.constant 40 : index
    %41 = vector.load %arg4[%c0_28, %c40] : memref<16x200xbf16, #tpu.memory_space<vmem>>, vector<16x8xbf16>
    %c0_29 = arith.constant 0 : index
    %c18 = arith.constant 18 : index
    %42 = vector.load %arg16[%c0_29, %c18] : memref<8x768xbf16, #tpu.memory_space<vmem>>, vector<8x648xbf16>
    %cst_30 = arith.constant dense<0.000000e+00> : vector<16x648xf32>
    %43 = tpu.matmul %41, %42, %cst_30 {dimension_numbers = #tpu.dot_dimension_numbers<[1], [0], [0], [1], [0, 0, 1, 1], [], []>} : vector<16x8xbf16>, vector<8x648xbf16>, vector<16x648xf32> -> vector<16x648xf32>
    %44 = arith.addf %40, %43 : vector<16x648xf32>
    %c0_31 = arith.constant 0 : index
    %c48 = arith.constant 48 : index
    %45 = vector.load %arg4[%c0_31, %c48] : memref<16x200xbf16, #tpu.memory_space<vmem>>, vector<16x8xbf16>
    %c0_32 = arith.constant 0 : index
    %c19 = arith.constant 19 : index
    %46 = vector.load %arg16[%c0_32, %c19] : memref<8x768xbf16, #tpu.memory_space<vmem>>, vector<8x648xbf16>
    %cst_33 = arith.constant dense<0.000000e+00> : vector<16x648xf32>
    %47 = tpu.matmul %45, %46, %cst_33 {dimension_numbers = #tpu.dot_dimension_numbers<[1], [0], [0], [1], [0, 0, 1, 1], [], []>} : vector<16x8xbf16>, vector<8x648xbf16>, vector<16x648xf32> -> vector<16x648xf32>
    %48 = arith.addf %44, %47 : vector<16x648xf32>
    %c0_34 = arith.constant 0 : index
    %c56 = arith.constant 56 : index
    %49 = vector.load %arg4[%c0_34, %c56] : memref<16x200xbf16, #tpu.memory_space<vmem>>, vector<16x8xbf16>
    %c0_35 = arith.constant 0 : index
    %c20 = arith.constant 20 : index
    %50 = vector.load %arg16[%c0_35, %c20] : memref<8x768xbf16, #tpu.memory_space<vmem>>, vector<8x648xbf16>
    %cst_36 = arith.constant dense<0.000000e+00> : vector<16x648xf32>
    %51 = tpu.matmul %49, %50, %cst_36 {dimension_numbers = #tpu.dot_dimension_numbers<[1], [0], [0], [1], [0, 0, 1, 1], [], []>} : vector<16x8xbf16>, vector<8x648xbf16>, vector<16x648xf32> -> vector<16x648xf32>
    %52 = arith.addf %48, %51 : vector<16x648xf32>
    %c0_37 = arith.constant 0 : index
    %c64 = arith.constant 64 : index
    %53 = vector.load %arg4[%c0_37, %c64] : memref<16x200xbf16, #tpu.memory_space<vmem>>, vector<16x8xbf16>
    %c0_38 = arith.constant 0 : index
    %c21 = arith.constant 21 : index
    %54 = vector.load %arg16[%c0_38, %c21] : memref<8x768xbf16, #tpu.memory_space<vmem>>, vector<8x648xbf16>
    %cst_39 = arith.constant dense<0.000000e+00> : vector<16x648xf32>
    %55 = tpu.matmul %53, %54, %cst_39 {dimension_numbers = #tpu.dot_dimension_numbers<[1], [0], [0], [1], [0, 0, 1, 1], [], []>} : vector<16x8xbf16>, vector<8x648xbf16>, vector<16x648xf32> -> vector<16x648xf32>
    %56 = arith.addf %52, %55 : vector<16x648xf32>
    %c0_40 = arith.constant 0 : index
    %c72 = arith.constant 72 : index
    %57 = vector.load %arg4[%c0_40, %c72] : memref<16x200xbf16, #tpu.memory_space<vmem>>, vector<16x8xbf16>
    %c0_41 = arith.constant 0 : index
    %c22 = arith.constant 22 : index
    %58 = vector.load %arg16[%c0_41, %c22] : memref<8x768xbf16, #tpu.memory_space<vmem>>, vector<8x648xbf16>
    %cst_42 = arith.constant dense<0.000000e+00> : vector<16x648xf32>
    %59 = tpu.matmul %57, %58, %cst_42 {dimension_numbers = #tpu.dot_dimension_numbers<[1], [0], [0], [1], [0, 0, 1, 1], [], []>} : vector<16x8xbf16>, vector<8x648xbf16>, vector<16x648xf32> -> vector<16x648xf32>
    %60 = arith.addf %56, %59 : vector<16x648xf32>
    %c0_43 = arith.constant 0 : index
    %c80 = arith.constant 80 : index
    %61 = vector.load %arg4[%c0_43, %c80] : memref<16x200xbf16, #tpu.memory_space<vmem>>, vector<16x8xbf16>
    %c0_44 = arith.constant 0 : index
    %c36 = arith.constant 36 : index
    %62 = vector.load %arg16[%c0_44, %c36] : memref<8x768xbf16, #tpu.memory_space<vmem>>, vector<8x648xbf16>
    %cst_45 = arith.constant dense<0.000000e+00> : vector<16x648xf32>
    %63 = tpu.matmul %61, %62, %cst_45 {dimension_numbers = #tpu.dot_dimension_numbers<[1], [0], [0], [1], [0, 0, 1, 1], [], []>} : vector<16x8xbf16>, vector<8x648xbf16>, vector<16x648xf32> -> vector<16x648xf32>
    %64 = arith.addf %60, %63 : vector<16x648xf32>
    %c0_46 = arith.constant 0 : index
    %c88 = arith.constant 88 : index
    %65 = vector.load %arg4[%c0_46, %c88] : memref<16x200xbf16, #tpu.memory_space<vmem>>, vector<16x8xbf16>
    %c0_47 = arith.constant 0 : index
    %c37 = arith.constant 37 : index
    %66 = vector.load %arg16[%c0_47, %c37] : memref<8x768xbf16, #tpu.memory_space<vmem>>, vector<8x648xbf16>
    %cst_48 = arith.constant dense<0.000000e+00> : vector<16x648xf32>
    %67 = tpu.matmul %65, %66, %cst_48 {dimension_numbers = #tpu.dot_dimension_numbers<[1], [0], [0], [1], [0, 0, 1, 1], [], []>} : vector<16x8xbf16>, vector<8x648xbf16>, vector<16x648xf32> -> vector<16x648xf32>
    %68 = arith.addf %64, %67 : vector<16x648xf32>
    %c0_49 = arith.constant 0 : index
    %c96 = arith.constant 96 : index
    %69 = vector.load %arg4[%c0_49, %c96] : memref<16x200xbf16, #tpu.memory_space<vmem>>, vector<16x8xbf16>
    %c0_50 = arith.constant 0 : index
    %c38 = arith.constant 38 : index
    %70 = vector.load %arg16[%c0_50, %c38] : memref<8x768xbf16, #tpu.memory_space<vmem>>, vector<8x648xbf16>
    %cst_51 = arith.constant dense<0.000000e+00> : vector<16x648xf32>
    %71 = tpu.matmul %69, %70, %cst_51 {dimension_numbers = #tpu.dot_dimension_numbers<[1], [0], [0], [1], [0, 0, 1, 1], [], []>} : vector<16x8xbf16>, vector<8x648xbf16>, vector<16x648xf32> -> vector<16x648xf32>
    %72 = arith.addf %68, %71 : vector<16x648xf32>
    %c0_52 = arith.constant 0 : index
    %c104 = arith.constant 104 : index
    %73 = vector.load %arg4[%c0_52, %c104] : memref<16x200xbf16, #tpu.memory_space<vmem>>, vector<16x8xbf16>
    %c0_53 = arith.constant 0 : index
    %c39 = arith.constant 39 : index
    %74 = vector.load %arg16[%c0_53, %c39] : memref<8x768xbf16, #tpu.memory_space<vmem>>, vector<8x648xbf16>
    %cst_54 = arith.constant dense<0.000000e+00> : vector<16x648xf32>
    %75 = tpu.matmul %73, %74, %cst_54 {dimension_numbers = #tpu.dot_dimension_numbers<[1], [0], [0], [1], [0, 0, 1, 1], [], []>} : vector<16x8xbf16>, vector<8x648xbf16>, vector<16x648xf32> -> vector<16x648xf32>
    %76 = arith.addf %72, %75 : vector<16x648xf32>
    %c0_55 = arith.constant 0 : index
    %c112 = arith.constant 112 : index
    %77 = vector.load %arg4[%c0_55, %c112] : memref<16x200xbf16, #tpu.memory_space<vmem>>, vector<16x8xbf16>
    %c0_56 = arith.constant 0 : index
    %c40_57 = arith.constant 40 : index
    %78 = vector.load %arg16[%c0_56, %c40_57] : memref<8x768xbf16, #tpu.memory_space<vmem>>, vector<8x648xbf16>
    %cst_58 = arith.constant dense<0.000000e+00> : vector<16x648xf32>
    %79 = tpu.matmul %77, %78, %cst_58 {dimension_numbers = #tpu.dot_dimension_numbers<[1], [0], [0], [1], [0, 0, 1, 1], [], []>} : vector<16x8xbf16>, vector<8x648xbf16>, vector<16x648xf32> -> vector<16x648xf32>
    %80 = arith.addf %76, %79 : vector<16x648xf32>
    %c0_59 = arith.constant 0 : index
    %c120 = arith.constant 120 : index
    %81 = vector.load %arg4[%c0_59, %c120] : memref<16x200xbf16, #tpu.memory_space<vmem>>, vector<16x8xbf16>
    %c0_60 = arith.constant 0 : index
    %c54 = arith.constant 54 : index
    %82 = vector.load %arg16[%c0_60, %c54] : memref<8x768xbf16, #tpu.memory_space<vmem>>, vector<8x648xbf16>
    %cst_61 = arith.constant dense<0.000000e+00> : vector<16x648xf32>
    %83 = tpu.matmul %81, %82, %cst_61 {dimension_numbers = #tpu.dot_dimension_numbers<[1], [0], [0], [1], [0, 0, 1, 1], [], []>} : vector<16x8xbf16>, vector<8x648xbf16>, vector<16x648xf32> -> vector<16x648xf32>
    %84 = arith.addf %80, %83 : vector<16x648xf32>
    %c0_62 = arith.constant 0 : index
    %c128 = arith.constant 128 : index
    %85 = vector.load %arg4[%c0_62, %c128] : memref<16x200xbf16, #tpu.memory_space<vmem>>, vector<16x8xbf16>
    %c0_63 = arith.constant 0 : index
    %c55 = arith.constant 55 : index
    %86 = vector.load %arg16[%c0_63, %c55] : memref<8x768xbf16, #tpu.memory_space<vmem>>, vector<8x648xbf16>
    %cst_64 = arith.constant dense<0.000000e+00> : vector<16x648xf32>
    %87 = tpu.matmul %85, %86, %cst_64 {dimension_numbers = #tpu.dot_dimension_numbers<[1], [0], [0], [1], [0, 0, 1, 1], [], []>} : vector<16x8xbf16>, vector<8x648xbf16>, vector<16x648xf32> -> vector<16x648xf32>
    %88 = arith.addf %84, %87 : vector<16x648xf32>
    %c0_65 = arith.constant 0 : index
    %c136 = arith.constant 136 : index
    %89 = vector.load %arg4[%c0_65, %c136] : memref<16x200xbf16, #tpu.memory_space<vmem>>, vector<16x8xbf16>
    %c0_66 = arith.constant 0 : index
    %c56_67 = arith.constant 56 : index
    %90 = vector.load %arg16[%c0_66, %c56_67] : memref<8x768xbf16, #tpu.memory_space<vmem>>, vector<8x648xbf16>
    %cst_68 = arith.constant dense<0.000000e+00> : vector<16x648xf32>
    %91 = tpu.matmul %89, %90, %cst_68 {dimension_numbers = #tpu.dot_dimension_numbers<[1], [0], [0], [1], [0, 0, 1, 1], [], []>} : vector<16x8xbf16>, vector<8x648xbf16>, vector<16x648xf32> -> vector<16x648xf32>
    %92 = arith.addf %88, %91 : vector<16x648xf32>
    %c0_69 = arith.constant 0 : index
    %c144 = arith.constant 144 : index
    %93 = vector.load %arg4[%c0_69, %c144] : memref<16x200xbf16, #tpu.memory_space<vmem>>, vector<16x8xbf16>
    %c0_70 = arith.constant 0 : index
    %c57 = arith.constant 57 : index
    %94 = vector.load %arg16[%c0_70, %c57] : memref<8x768xbf16, #tpu.memory_space<vmem>>, vector<8x648xbf16>
    %cst_71 = arith.constant dense<0.000000e+00> : vector<16x648xf32>
    %95 = tpu.matmul %93, %94, %cst_71 {dimension_numbers = #tpu.dot_dimension_numbers<[1], [0], [0], [1], [0, 0, 1, 1], [], []>} : vector<16x8xbf16>, vector<8x648xbf16>, vector<16x648xf32> -> vector<16x648xf32>
    %96 = arith.addf %92, %95 : vector<16x648xf32>
    %c0_72 = arith.constant 0 : index
    %c152 = arith.constant 152 : index
    %97 = vector.load %arg4[%c0_72, %c152] : memref<16x200xbf16, #tpu.memory_space<vmem>>, vector<16x8xbf16>
    %c0_73 = arith.constant 0 : index
    %c58 = arith.constant 58 : index
    %98 = vector.load %arg16[%c0_73, %c58] : memref<8x768xbf16, #tpu.memory_space<vmem>>, vector<8x648xbf16>
    %cst_74 = arith.constant dense<0.000000e+00> : vector<16x648xf32>
    %99 = tpu.matmul %97, %98, %cst_74 {dimension_numbers = #tpu.dot_dimension_numbers<[1], [0], [0], [1], [0, 0, 1, 1], [], []>} : vector<16x8xbf16>, vector<8x648xbf16>, vector<16x648xf32> -> vector<16x648xf32>
    %100 = arith.addf %96, %99 : vector<16x648xf32>
    %c0_75 = arith.constant 0 : index
    %c160 = arith.constant 160 : index
    %101 = vector.load %arg4[%c0_75, %c160] : memref<16x200xbf16, #tpu.memory_space<vmem>>, vector<16x8xbf16>
    %c0_76 = arith.constant 0 : index
    %c72_77 = arith.constant 72 : index
    %102 = vector.load %arg16[%c0_76, %c72_77] : memref<8x768xbf16, #tpu.memory_space<vmem>>, vector<8x648xbf16>
    %cst_78 = arith.constant dense<0.000000e+00> : vector<16x648xf32>
    %103 = tpu.matmul %101, %102, %cst_78 {dimension_numbers = #tpu.dot_dimension_numbers<[1], [0], [0], [1], [0, 0, 1, 1], [], []>} : vector<16x8xbf16>, vector<8x648xbf16>, vector<16x648xf32> -> vector<16x648xf32>
    %104 = arith.addf %100, %103 : vector<16x648xf32>
    %c0_79 = arith.constant 0 : index
    %c168 = arith.constant 168 : index
    %105 = vector.load %arg4[%c0_79, %c168] : memref<16x200xbf16, #tpu.memory_space<vmem>>, vector<16x8xbf16>
    %c0_80 = arith.constant 0 : index
    %c73 = arith.constant 73 : index
    %106 = vector.load %arg16[%c0_80, %c73] : memref<8x768xbf16, #tpu.memory_space<vmem>>, vector<8x648xbf16>
    %cst_81 = arith.constant dense<0.000000e+00> : vector<16x648xf32>
    %107 = tpu.matmul %105, %106, %cst_81 {dimension_numbers = #tpu.dot_dimension_numbers<[1], [0], [0], [1], [0, 0, 1, 1], [], []>} : vector<16x8xbf16>, vector<8x648xbf16>, vector<16x648xf32> -> vector<16x648xf32>
    %108 = arith.addf %104, %107 : vector<16x648xf32>
    %c0_82 = arith.constant 0 : index
    %c176 = arith.constant 176 : index
    %109 = vector.load %arg4[%c0_82, %c176] : memref<16x200xbf16, #tpu.memory_space<vmem>>, vector<16x8xbf16>
    %c0_83 = arith.constant 0 : index
    %c74 = arith.constant 74 : index
    %110 = vector.load %arg16[%c0_83, %c74] : memref<8x768xbf16, #tpu.memory_space<vmem>>, vector<8x648xbf16>
    %cst_84 = arith.constant dense<0.000000e+00> : vector<16x648xf32>
    %111 = tpu.matmul %109, %110, %cst_84 {dimension_numbers = #tpu.dot_dimension_numbers<[1], [0], [0], [1], [0, 0, 1, 1], [], []>} : vector<16x8xbf16>, vector<8x648xbf16>, vector<16x648xf32> -> vector<16x648xf32>
    %112 = arith.addf %108, %111 : vector<16x648xf32>
    %c0_85 = arith.constant 0 : index
    %c184 = arith.constant 184 : index
    %113 = vector.load %arg4[%c0_85, %c184] : memref<16x200xbf16, #tpu.memory_space<vmem>>, vector<16x8xbf16>
    %c0_86 = arith.constant 0 : index
    %c75 = arith.constant 75 : index
    %114 = vector.load %arg16[%c0_86, %c75] : memref<8x768xbf16, #tpu.memory_space<vmem>>, vector<8x648xbf16>
    %cst_87 = arith.constant dense<0.000000e+00> : vector<16x648xf32>
    %115 = tpu.matmul %113, %114, %cst_87 {dimension_numbers = #tpu.dot_dimension_numbers<[1], [0], [0], [1], [0, 0, 1, 1], [], []>} : vector<16x8xbf16>, vector<8x648xbf16>, vector<16x648xf32> -> vector<16x648xf32>
    %116 = arith.addf %112, %115 : vector<16x648xf32>
    %c0_88 = arith.constant 0 : index
    %c192 = arith.constant 192 : index
    %117 = vector.load %arg4[%c0_88, %c192] : memref<16x200xbf16, #tpu.memory_space<vmem>>, vector<16x8xbf16>
    %c0_89 = arith.constant 0 : index
    %c76 = arith.constant 76 : index
    %118 = vector.load %arg16[%c0_89, %c76] : memref<8x768xbf16, #tpu.memory_space<vmem>>, vector<8x648xbf16>
    %cst_90 = arith.constant dense<0.000000e+00> : vector<16x648xf32>
    %119 = tpu.matmul %117, %118, %cst_90 {dimension_numbers = #tpu.dot_dimension_numbers<[1], [0], [0], [1], [0, 0, 1, 1], [], []>} : vector<16x8xbf16>, vector<8x648xbf16>, vector<16x648xf32> -> vector<16x648xf32>
    %120 = arith.addf %116, %119 : vector<16x648xf32>
    %c0_91 = arith.constant 0 : index
    %c0_92 = arith.constant 0 : index
    %121 = vector.load %arg5[%c0_91, %c0_92] : memref<16x1xf32, #tpu.memory_space<vmem>>, vector<16x1xf32>
    %122 = vector.broadcast %121 : vector<16x1xf32> to vector<16x648xf32>
    %123 = arith.addf %120, %122 : vector<16x648xf32>
    %cst_93 = arith.constant 0.000000e+00 : f32
    %124 = vector.broadcast %cst_93 : f32 to vector<16x648xf32>
    %125 = arith.maximumf %123, %124 : vector<16x648xf32>
    %c0_94 = arith.constant 0 : index
    %c0_95 = arith.constant 0 : index
    %c0_96 = arith.constant 0 : index
    %126 = vector.load %arg7[%c0_94, %c0_95, %c0_96] : memref<4x648x98xf32, #tpu.memory_space<vmem>>, vector<1x648x98xf32>
    %127 = vector.shape_cast %126 : vector<1x648x98xf32> to vector<648x98xf32>
    %cst_97 = arith.constant dense<0.000000e+00> : vector<16x98xf32>
    %128 = tpu.matmul %125, %127, %cst_97 {dimension_numbers = #tpu.dot_dimension_numbers<[1], [0], [0], [1], [0, 0, 1, 1], [], []>} : vector<16x648xf32>, vector<648x98xf32>, vector<16x98xf32> -> vector<16x98xf32>
    %c1_98 = arith.constant 1 : index
    %c0_99 = arith.constant 0 : index
    %c0_100 = arith.constant 0 : index
    %129 = vector.load %arg7[%c1_98, %c0_99, %c0_100] : memref<4x648x98xf32, #tpu.memory_space<vmem>>, vector<1x648x98xf32>
    %130 = vector.shape_cast %129 : vector<1x648x98xf32> to vector<648x98xf32>
    %cst_101 = arith.constant dense<0.000000e+00> : vector<16x98xf32>
    %131 = tpu.matmul %125, %130, %cst_101 {dimension_numbers = #tpu.dot_dimension_numbers<[1], [0], [0], [1], [0, 0, 1, 1], [], []>} : vector<16x648xf32>, vector<648x98xf32>, vector<16x98xf32> -> vector<16x98xf32>
    %132 = arith.maximumf %128, %131 : vector<16x98xf32>
    %c2_102 = arith.constant 2 : index
    %c0_103 = arith.constant 0 : index
    %c0_104 = arith.constant 0 : index
    %133 = vector.load %arg7[%c2_102, %c0_103, %c0_104] : memref<4x648x98xf32, #tpu.memory_space<vmem>>, vector<1x648x98xf32>
    %134 = vector.shape_cast %133 : vector<1x648x98xf32> to vector<648x98xf32>
    %cst_105 = arith.constant dense<0.000000e+00> : vector<16x98xf32>
    %135 = tpu.matmul %125, %134, %cst_105 {dimension_numbers = #tpu.dot_dimension_numbers<[1], [0], [0], [1], [0, 0, 1, 1], [], []>} : vector<16x648xf32>, vector<648x98xf32>, vector<16x98xf32> -> vector<16x98xf32>
    %136 = arith.maximumf %132, %135 : vector<16x98xf32>
    %c3_106 = arith.constant 3 : index
    %c0_107 = arith.constant 0 : index
    %c0_108 = arith.constant 0 : index
    %137 = vector.load %arg7[%c3_106, %c0_107, %c0_108] : memref<4x648x98xf32, #tpu.memory_space<vmem>>, vector<1x648x98xf32>
    %138 = vector.shape_cast %137 : vector<1x648x98xf32> to vector<648x98xf32>
    %cst_109 = arith.constant dense<0.000000e+00> : vector<16x98xf32>
    %139 = tpu.matmul %125, %138, %cst_109 {dimension_numbers = #tpu.dot_dimension_numbers<[1], [0], [0], [1], [0, 0, 1, 1], [], []>} : vector<16x648xf32>, vector<648x98xf32>, vector<16x98xf32> -> vector<16x98xf32>
    %140 = arith.maximumf %136, %139 : vector<16x98xf32>
    %c0_110 = arith.constant 0 : index
    %c0_111 = arith.constant 0 : index
    %141 = vector.load %arg8[%c0_110, %c0_111] : memref<784x16xf32, #tpu.memory_space<vmem>>, vector<784x16xf32>
    %cst_112 = arith.constant dense<0.000000e+00> : vector<784x98xf32>
    %142 = tpu.matmul %141, %140, %cst_112 {dimension_numbers = #tpu.dot_dimension_numbers<[1], [0], [0], [1], [0, 0, 1, 1], [], []>} : vector<784x16xf32>, vector<16x98xf32>, vector<784x98xf32> -> vector<784x98xf32>
    %c0_113 = arith.constant 0 : index
    %c0_114 = arith.constant 0 : index
    %143 = vector.load %arg9[%c0_113, %c0_114] : memref<784x98xf32, #tpu.memory_space<vmem>>, vector<784x98xf32>
    %144 = arith.mulf %142, %143 : vector<784x98xf32>
    %c0_115 = arith.constant 0 : index
    %c0_116 = arith.constant 0 : index
    %145 = vector.load %arg10[%c0_115, %c0_116] : memref<2x98xf32, #tpu.memory_space<vmem>>, vector<2x98xf32>
    %cst_117 = arith.constant dense<0.000000e+00> : vector<2x784xf32>
    %146 = tpu.matmul %145, %144, %cst_117 {dimension_numbers = #tpu.dot_dimension_numbers<[1], [1], [0], [0], [0, 0, 1, 0], [], []>} : vector<2x98xf32>, vector<784x98xf32>, vector<2x784xf32> -> vector<2x784xf32>
    %147 = arith.truncf %146 : vector<2x784xf32> to vector<2x784xbf16>
    %c0_118 = arith.constant 0 : index
    %c0_119 = arith.constant 0 : index
    %148 = vector.load %arg11[%c0_118, %c0_119] : memref<784x512xbf16, #tpu.memory_space<vmem>>, vector<784x512xbf16>
    %cst_120 = arith.constant dense<0.000000e+00> : vector<2x512xf32>
    %149 = tpu.matmul %147, %148, %cst_120 {dimension_numbers = #tpu.dot_dimension_numbers<[1], [0], [0], [1], [0, 0, 1, 1], [], []>} : vector<2x784xbf16>, vector<784x512xbf16>, vector<2x512xf32> -> vector<2x512xf32>
    %c0_121 = arith.constant 0 : index
    %c0_122 = arith.constant 0 : index
    %150 = vector.load %arg12[%c0_121, %c0_122] : memref<1x512xf32, #tpu.memory_space<vmem>>, vector<1x512xf32>
    %151 = vector.broadcast %150 : vector<1x512xf32> to vector<2x512xf32>
    %152 = arith.addf %149, %151 : vector<2x512xf32>
    %cst_123 = arith.constant 0.000000e+00 : f32
    %153 = vector.broadcast %cst_123 : f32 to vector<2x512xf32>
    %154 = arith.maximumf %152, %153 : vector<2x512xf32>
    %155 = arith.truncf %154 : vector<2x512xf32> to vector<2x512xbf16>
    %c0_124 = arith.constant 0 : index
    %c0_125 = arith.constant 0 : index
    %156 = vector.load %arg13[%c0_124, %c0_125] : memref<512x10xbf16, #tpu.memory_space<vmem>>, vector<512x10xbf16>
    %cst_126 = arith.constant dense<0.000000e+00> : vector<2x10xf32>
    %157 = tpu.matmul %155, %156, %cst_126 {dimension_numbers = #tpu.dot_dimension_numbers<[1], [0], [0], [1], [0, 0, 1, 1], [], []>} : vector<2x512xbf16>, vector<512x10xbf16>, vector<2x10xf32> -> vector<2x10xf32>
    %c0_127 = arith.constant 0 : index
    %c0_128 = arith.constant 0 : index
    %158 = vector.load %arg14[%c0_127, %c0_128] : memref<1x10xf32, #tpu.memory_space<vmem>>, vector<1x10xf32>
    %159 = vector.broadcast %158 : vector<1x10xf32> to vector<2x10xf32>
    %160 = arith.addf %157, %159 : vector<2x10xf32>
    %c0_129 = arith.constant 0 : index
    %c0_130 = arith.constant 0 : index
    %161 = vector.load %arg15[%c0_129, %c0_130] : memref<2x10xf32, #tpu.memory_space<vmem>>, vector<2x10xf32>
    tpu.vector_store %arg15[%c0_129, %c0_130], %160 {strides = array<i32>} : memref<2x10xf32, #tpu.memory_space<vmem>>, vector<2x10xf32>,
    return
  }
  func.func @transform_0(%arg0: i32) -> (i32, i32) {
    %c0_i32 = arith.constant 0 : i32
    %c0_i32_0 = arith.constant 0 : i32
    %c0_i32_1 = arith.constant 0 : i32
    return %c0_i32, %c0_i32_0 : i32, i32
  }
  func.func @transform_1(%arg0: i32) -> (i32, i32) {
    %c0_i32 = arith.constant 0 : i32
    %c0_i32_0 = arith.constant 0 : i32
    %c0_i32_1 = arith.constant 0 : i32
    return %c0_i32, %c0_i32_0 : i32, i32
  }
  func.func @transform_2(%arg0: i32) -> (i32, i32) {
    %c0_i32 = arith.constant 0 : i32
    %c0_i32_0 = arith.constant 0 : i32
    %c0_i32_1 = arith.constant 0 : i32
    return %c0_i32, %c0_i32_0 : i32, i32
  }
  func.func @transform_3(%arg0: i32) -> (i32, i32) {
    %c0_i32 = arith.constant 0 : i32
    %c0_i32_0 = arith.constant 0 : i32
    %c0_i32_1 = arith.constant 0 : i32
    return %c0_i32, %c0_i32_0 : i32, i32
  }
  func.func @transform_4(%arg0: i32) -> (i32, i32) {
    %c0_i32 = arith.constant 0 : i32
    %c0_i32_0 = arith.constant 0 : i32
    %c0_i32_1 = arith.constant 0 : i32
    return %c0_i32, %c0_i32_0 : i32, i32
  }
  func.func @transform_5(%arg0: i32) -> (i32, i32) {
    %c0_i32 = arith.constant 0 : i32
    %c0_i32_0 = arith.constant 0 : i32
    %c0_i32_1 = arith.constant 0 : i32
    return %c0_i32, %c0_i32_0 : i32, i32
  }
  func.func @transform_6(%arg0: i32) -> (i32, i32, i32) {
    %c0_i32 = arith.constant 0 : i32
    %c0_i32_0 = arith.constant 0 : i32
    %c0_i32_1 = arith.constant 0 : i32
    %c0_i32_2 = arith.constant 0 : i32
    return %c0_i32, %c0_i32_0, %c0_i32_1 : i32, i32, i32
  }
  func.func @transform_7(%arg0: i32) -> (i32, i32) {
    %c0_i32 = arith.constant 0 : i32
    %c0_i32_0 = arith.constant 0 : i32
    %c0_i32_1 = arith.constant 0 : i32
    return %c0_i32, %c0_i32_0 : i32, i32
  }
  func.func @transform_8(%arg0: i32) -> (i32, i32) {
    %c0_i32 = arith.constant 0 : i32
    %c0_i32_0 = arith.constant 0 : i32
    %c0_i32_1 = arith.constant 0 : i32
    return %c0_i32, %c0_i32_0 : i32, i32
  }
  func.func @transform_9(%arg0: i32) -> (i32, i32) {
    %c0_i32 = arith.constant 0 : i32
    %c0_i32_0 = arith.constant 0 : i32
    %c0_i32_1 = arith.constant 0 : i32
    return %c0_i32, %c0_i32_0 : i32, i32
  }
  func.func @transform_10(%arg0: i32) -> (i32, i32) {
    %c0_i32 = arith.constant 0 : i32
    %c0_i32_0 = arith.constant 0 : i32
    %c0_i32_1 = arith.constant 0 : i32
    return %c0_i32, %c0_i32_0 : i32, i32
  }
  func.func @transform_11(%arg0: i32) -> (i32, i32) {
    %c0_i32 = arith.constant 0 : i32
    %c0_i32_0 = arith.constant 0 : i32
    %c0_i32_1 = arith.constant 0 : i32
    return %c0_i32, %c0_i32_0 : i32, i32
  }
  func.func @transform_12(%arg0: i32) -> (i32, i32) {
    %c0_i32 = arith.constant 0 : i32
    %c0_i32_0 = arith.constant 0 : i32
    %c0_i32_1 = arith.constant 0 : i32
    return %c0_i32, %c0_i32_0 : i32, i32
  }
  func.func @transform_13(%arg0: i32) -> (i32, i32) {
    %c0_i32 = arith.constant 0 : i32
    %c0_i32_0 = arith.constant 0 : i32
    %c0_i32_1 = arith.constant 0 : i32
    return %c0_i32, %c0_i32_0 : i32, i32
  }
  func.func @transform_14(%arg0: i32) -> (i32, i32) {
    %c0_i32 = arith.constant 0 : i32
    %c0_i32_0 = arith.constant 0 : i32
    %c0_i32_1 = arith.constant 0 : i32
    return %c0_i32, %c0_i32_0 : i32, i32
  }
}

</mosaic_0001>

<llo_original>
// kernel: _forward.1
$region0: #{_forward.1}
  #allocation0 [shape = 'u32[]', space=smem, size = 0x4, offset = 0x4, fixed_abs, tag = 'smem constant byte address 0x4 - core index']
  #allocation1 [shape = 'u32[144,128]{1,0:T(1,128)}', space=vmem, size = 0x12000, scoped, tag = 'internal scratch']
  #allocation2 [shape = 'bf16[8,768]{1,0:T(8,128)(2,1)}', space=vmem, size = 0x3000, scoped, tag = 'scratch operand']
  %s0 = inlined_call_operand.vmem [shape: bf16[25,3072], index: 0, kind: input, shape index: {}]
  %s1 = inlined_call_operand.vmem [shape: bf16[8,25], index: 1, kind: input, shape index: {}]
  %s2 = inlined_call_operand.vmem [shape: f32[8,1], index: 2, kind: input, shape index: {}]
  %s3 = inlined_call_operand.vmem [shape: bf16[16,200], index: 3, kind: input, shape index: {}]
  %s4 = inlined_call_operand.vmem [shape: f32[16,1], index: 4, kind: input, shape index: {}]
  %s5 = inlined_call_operand.vmem [shape: f32[1,768], index: 5, kind: input, shape index: {}]
  %s6 = inlined_call_operand.vmem [shape: f32[4,648,98], index: 6, kind: input, shape index: {}]
  %s7 = inlined_call_operand.vmem [shape: f32[784,16], index: 7, kind: input, shape index: {}]
  %s8 = inlined_call_operand.vmem [shape: f32[784,98], index: 8, kind: input, shape index: {}]
  %s9 = inlined_call_operand.vmem [shape: f32[2,98], index: 9, kind: input, shape index: {}]
  %s10 = inlined_call_operand.vmem [shape: bf16[784,512], index: 10, kind: input, shape index: {}]
  %s11 = inlined_call_operand.vmem [shape: f32[1,512], index: 11, kind: input, shape index: {}]
  %s12 = inlined_call_operand.vmem [shape: bf16[512,10], index: 12, kind: input, shape index: {}]
  %s13 = inlined_call_operand.vmem [shape: f32[1,10], index: 13, kind: input, shape index: {}]
  %s14 = inlined_call_operand.hbm [shape: f32[2,10], index: 14, kind: output, shape index: {}]
  %s15 = sld [smem:[#allocation0]]
  $region66: #{_forward.1} parent=0
    _
  %s17 = ssub.s32 1, %s15
  %s18 = scalar_select 0, %s17, %s15
  $region1: #{_forward.1} parent=0
    #allocation3 [shape = 'u8[1024]{0}', space=vmem, size = 0x400, scoped, tag = 'output window, operand 0, single buffered']
    #allocation4 [shape = 's32[1]{0}', space=sflag, size = 0x4, scoped, tag = 'scoped memory for _forward.1']
    %19 = vsyncpa [#allocation4], 0
    // Predicated region
    $region2: #{_forward.1} parent=1 // pred_check
      _
    $region3: #{_forward.1} parent=1 // pred_check_branch
      %21 = sbr.rel (0) target = $region5
    $region4: #{_forward.1} parent=1 // pred_region
      _
    $region5: #{_forward.1} parent=1 // pred_fallthru
      _
    // Predicated region
    $region6: #{_forward.1} parent=1 // pred_check
      _
    $region7: #{_forward.1} parent=1 // pred_check_branch
      %23 = sbr.rel (0) target = $region9
    $region8: #{_forward.1} parent=1 // pred_region
      _
    $region9: #{_forward.1} parent=1 // pred_fallthru
      _
    // Predicated region
    $region10: #{_forward.1} parent=1 // pred_check
      _
    $region11: #{_forward.1} parent=1 // pred_check_branch
      %25 = sbr.rel (0) target = $region13
    $region12: #{_forward.1} parent=1 // pred_region
      _
    $region13: #{_forward.1} parent=1 // pred_fallthru
      _
    // Predicated region
    $region14: #{_forward.1} parent=1 // pred_check
      _
    $region15: #{_forward.1} parent=1 // pred_check_branch
      %27 = sbr.rel (0) target = $region17
    $region16: #{_forward.1} parent=1 // pred_region
      _
    $region17: #{_forward.1} parent=1 // pred_fallthru
      _
    // Predicated region
    $region18: #{_forward.1} parent=1 // pred_check
      _
    $region19: #{_forward.1} parent=1 // pred_check_branch
      %29 = sbr.rel (0) target = $region21
    $region20: #{_forward.1} parent=1 // pred_region
      _
    $region21: #{_forward.1} parent=1 // pred_fallthru
      _
    // Predicated region
    $region22: #{_forward.1} parent=1 // pred_check
      _
    $region23: #{_forward.1} parent=1 // pred_check_branch
      %31 = sbr.rel (0) target = $region25
    $region24: #{_forward.1} parent=1 // pred_region
      _
    $region25: #{_forward.1} parent=1 // pred_fallthru
      _
    // Predicated region
    $region26: #{_forward.1} parent=1 // pred_check
      _
    $region27: #{_forward.1} parent=1 // pred_check_branch
      %33 = sbr.rel (0) target = $region29
    $region28: #{_forward.1} parent=1 // pred_region
      _
    $region29: #{_forward.1} parent=1 // pred_fallthru
      _
    // Predicated region
    $region30: #{_forward.1} parent=1 // pred_check
      _
    $region31: #{_forward.1} parent=1 // pred_check_branch
      %35 = sbr.rel (0) target = $region33
    $region32: #{_forward.1} parent=1 // pred_region
      _
    $region33: #{_forward.1} parent=1 // pred_fallthru
      _
    // Predicated region
    $region34: #{_forward.1} parent=1 // pred_check
      _
    $region35: #{_forward.1} parent=1 // pred_check_branch
      %37 = sbr.rel (0) target = $region37
    $region36: #{_forward.1} parent=1 // pred_region
      _
    $region37: #{_forward.1} parent=1 // pred_fallthru
      _
    // Predicated region
    $region38: #{_forward.1} parent=1 // pred_check
      _
    $region39: #{_forward.1} parent=1 // pred_check_branch
      %39 = sbr.rel (0) target = $region41
    $region40: #{_forward.1} parent=1 // pred_region
      _
    $region41: #{_forward.1} parent=1 // pred_fallthru
      _
    // Predicated region
    $region42: #{_forward.1} parent=1 // pred_check
      _
    $region43: #{_forward.1} parent=1 // pred_check_branch
      %41 = sbr.rel (0) target = $region45
    $region44: #{_forward.1} parent=1 // pred_region
      _
    $region45: #{_forward.1} parent=1 // pred_fallthru
      _
    // Predicated region
    $region46: #{_forward.1} parent=1 // pred_check
      _
    $region47: #{_forward.1} parent=1 // pred_check_branch
      %43 = sbr.rel (0) target = $region49
    $region48: #{_forward.1} parent=1 // pred_region
      _
    $region49: #{_forward.1} parent=1 // pred_fallthru
      _
    // Predicated region
    $region50: #{_forward.1} parent=1 // pred_check
      _
    $region51: #{_forward.1} parent=1 // pred_check_branch
      %45 = sbr.rel (0) target = $region53
    $region52: #{_forward.1} parent=1 // pred_region
      _
    $region53: #{_forward.1} parent=1 // pred_fallthru
      _
    // Predicated region
    $region54: #{_forward.1} parent=1 // pred_check
      _
    $region55: #{_forward.1} parent=1 // pred_check_branch
      %47 = sbr.rel (0) target = $region57
    $region56: #{_forward.1} parent=1 // pred_region
      _
    $region57: #{_forward.1} parent=1 // pred_fallthru
      _
    %v49 = vld [vmem:[%s1] sm:$0xf]
    %v50 = vld [vmem:[%s0] sm:$0xff]
    %v51 = vld [vmem:[%s0 + $0x8] sm:$0xff]
    %v52 = vld [vmem:[%s0 + $0x10] sm:$0xff]
    %v53 = vld [vmem:[%s0 + $0x18] sm:$0xff]
    %v54 = vld [vmem:[%s0 + $0x20] sm:$0xff]
    %v55 = vld [vmem:[%s0 + $0x28] sm:$0xff]
    %v56 = vld [vmem:[%s0 + $0x30] sm:$0xff]
    %v57 = vld [vmem:[%s0 + $0x38] sm:$0xff]
    %v58 = vld [vmem:[%s0 + $0x40] sm:$0xff]
    %v59 = vld [vmem:[%s0 + $0x48] sm:$0xff]
    %v60 = vld [vmem:[%s0 + $0x50] sm:$0xff]
    %v61 = vld [vmem:[%s0 + $0x58] sm:$0xff]
    %v62 = vld [vmem:[%s0 + $0x60] sm:$0xff]
    %v63 = vld [vmem:[%s0 + $0x68] sm:$0xff]
    %v64 = vld [vmem:[%s0 + $0x70] sm:$0xff]
    %v65 = vld [vmem:[%s0 + $0x78] sm:$0xff]
    %v66 = vld [vmem:[%s0 + $0x80] sm:$0xff]
    %v67 = vld [vmem:[%s0 + $0x88] sm:$0xff]
    %v68 = vld [vmem:[%s0 + $0x90] sm:$0xff]
    %v69 = vld [vmem:[%s0 + $0x98] sm:$0xff]
    %v70 = vld [vmem:[%s0 + $0xa0] sm:$0xff]
    %v71 = vld [vmem:[%s0 + $0xa8] sm:$0xff]
    %v72 = vld [vmem:[%s0 + $0xb0] sm:$0xff]
    %v73 = vld [vmem:[%s0 + $0xb8] sm:$0xff]
    %v74 = vld [vmem:[%s0 + $0xc0] sm:$0xff]
    %v75 = vld [vmem:[%s0 + $0xc8] sm:$0xff]
    %v76 = vld [vmem:[%s0 + $0xd0] sm:$0xff]
    %v77 = vld [vmem:[%s0 + $0xd8] sm:$0xff]
    %v78 = vld [vmem:[%s0 + $0xe0] sm:$0xff]
    %v79 = vld [vmem:[%s0 + $0xe8] sm:$0xff]
    %v80 = vld [vmem:[%s0 + $0xf0] sm:$0xff]
    %v81 = vld [vmem:[%s0 + $0xf8] sm:$0xff]
    %v82 = vld [vmem:[%s0 + $0x100] sm:$0xff]
    %v83 = vld [vmem:[%s0 + $0x108] sm:$0xff]
    %v84 = vld [vmem:[%s0 + $0x110] sm:$0xff]
    %v85 = vld [vmem:[%s0 + $0x118] sm:$0xff]
    %v86 = vld [vmem:[%s0 + $0x120] sm:$0x11]
    %v87 = vld [vmem:[%s0 + $0x128] sm:$0x11]
    %v88 = vld [vmem:[%s0 + $0x130] sm:$0x11]
    %v89 = vld [vmem:[%s0 + $0x138] sm:$0x11]
    %v90 = vld [vmem:[%s0 + $0x140] sm:$0x11]
    %v91 = vld [vmem:[%s0 + $0x148] sm:$0x11]
    %v92 = vld [vmem:[%s0 + $0x150] sm:$0x11]
    %v93 = vld [vmem:[%s0 + $0x158] sm:$0x11]
    %v94 = vld [vmem:[%s0 + $0x160] sm:$0x11]
    %v95 = vld [vmem:[%s0 + $0x168] sm:$0x11]
    %v96 = vld [vmem:[%s0 + $0x170] sm:$0x11]
    %v97 = vld [vmem:[%s0 + $0x178] sm:$0x11]
    %v98 = vld [vmem:[%s2] sm:$0xff]
    %100 = vset.pattern.permute.xlu0 0
    %101 = vperm.xlu0 %100, %v98
    %v102 = vpop.permute.xlu0 %101
    %v152 = vunpack.c.l.b16 %v50
    %v153 = vunpack.c.h.b16 %v50
    %v154 = vunpack.c.l.b16 %v51
    %v155 = vunpack.c.h.b16 %v51
    %v156 = vunpack.c.l.b16 %v52
    %v157 = vunpack.c.h.b16 %v52
    %v158 = vunpack.c.l.b16 %v53
    %v159 = vunpack.c.h.b16 %v53
    %v160 = vunpack.c.l.b16 %v54
    %v161 = vunpack.c.h.b16 %v54
    %v162 = vunpack.c.l.b16 %v55
    %v163 = vunpack.c.h.b16 %v55
    %v164 = vunpack.c.l.b16 %v56
    %v165 = vunpack.c.h.b16 %v56
    %v166 = vunpack.c.l.b16 %v57
    %v167 = vunpack.c.h.b16 %v57
    %v168 = vunpack.c.l.b16 %v58
    %v169 = vunpack.c.h.b16 %v58
    %v170 = vunpack.c.l.b16 %v59
    %v171 = vunpack.c.h.b16 %v59
    %v172 = vunpack.c.l.b16 %v60
    %v173 = vunpack.c.h.b16 %v60
    %v174 = vunpack.c.l.b16 %v61
    %v175 = vunpack.c.h.b16 %v61
    %v176 = vunpack.c.l.b16 %v62
    %v177 = vunpack.c.h.b16 %v62
    %v178 = vunpack.c.l.b16 %v63
    %v179 = vunpack.c.h.b16 %v63
    %v180 = vunpack.c.l.b16 %v64
    %v181 = vunpack.c.h.b16 %v64
    %v182 = vunpack.c.l.b16 %v65
    %v183 = vunpack.c.h.b16 %v65
    %v184 = vunpack.c.l.b16 %v66
    %v185 = vunpack.c.h.b16 %v66
    %v186 = vunpack.c.l.b16 %v67
    %v187 = vunpack.c.h.b16 %v67
    %v188 = vunpack.c.l.b16 %v68
    %v189 = vunpack.c.h.b16 %v68
    %v190 = vunpack.c.l.b16 %v69
    %v191 = vunpack.c.h.b16 %v69
    %v192 = vunpack.c.l.b16 %v70
    %v193 = vunpack.c.h.b16 %v70
    %v194 = vunpack.c.l.b16 %v71
    %v195 = vunpack.c.h.b16 %v71
    %v196 = vunpack.c.l.b16 %v72
    %v197 = vunpack.c.h.b16 %v72
    %v198 = vunpack.c.l.b16 %v73
    %v199 = vunpack.c.h.b16 %v73
    %v200 = vunpack.c.l.b16 %v74
    %v201 = vunpack.c.h.b16 %v74
    %v202 = vunpack.c.l.b16 %v75
    %v203 = vunpack.c.h.b16 %v75
    %v204 = vunpack.c.l.b16 %v76
    %v205 = vunpack.c.h.b16 %v76
    %v206 = vunpack.c.l.b16 %v77
    %v207 = vunpack.c.h.b16 %v77
    %v208 = vunpack.c.l.b16 %v78
    %v209 = vunpack.c.h.b16 %v78
    %v210 = vunpack.c.l.b16 %v79
    %v211 = vunpack.c.h.b16 %v79
    %v212 = vunpack.c.l.b16 %v80
    %v213 = vunpack.c.h.b16 %v80
    %v214 = vunpack.c.l.b16 %v81
    %v215 = vunpack.c.h.b16 %v81
    %v216 = vunpack.c.l.b16 %v82
    %v217 = vunpack.c.h.b16 %v82
    %v218 = vunpack.c.l.b16 %v83
    %v219 = vunpack.c.h.b16 %v83
    %v220 = vunpack.c.l.b16 %v84
    %v221 = vunpack.c.h.b16 %v84
    %v222 = vunpack.c.l.b16 %v85
    %v223 = vunpack.c.h.b16 %v85
    %v224 = vunpack.c.l.b16 %v86
    %v225 = vunpack.c.h.b16 %v86
    %v226 = vunpack.c.l.b16 %v87
    %v227 = vunpack.c.h.b16 %v87
    %v228 = vunpack.c.l.b16 %v88
    %v229 = vunpack.c.h.b16 %v88
    %v230 = vunpack.c.l.b16 %v89
    %v231 = vunpack.c.h.b16 %v89
    %v232 = vunpack.c.l.b16 %v90
    %v233 = vunpack.c.h.b16 %v90
    %v234 = vunpack.c.l.b16 %v91
    %v235 = vunpack.c.h.b16 %v91
    %v236 = vunpack.c.l.b16 %v92
    %v237 = vunpack.c.h.b16 %v92
    %v238 = vunpack.c.l.b16 %v93
    %v239 = vunpack.c.h.b16 %v93
    %v240 = vunpack.c.l.b16 %v94
    %v241 = vunpack.c.h.b16 %v94
    %v242 = vunpack.c.l.b16 %v95
    %v243 = vunpack.c.h.b16 %v95
    %v244 = vunpack.c.l.b16 %v96
    %v245 = vunpack.c.h.b16 %v96
    %v246 = vunpack.c.l.b16 %v97
    %v247 = vunpack.c.h.b16 %v97
    %v248 = vpack.c.b16 %v176, %v152
    %v249 = vpack.c.b16 %v177, %v153
    %v250 = vpack.c.b16 %v178, %v154
    %v251 = vpack.c.b16 %v179, %v155
    %v252 = vpack.c.b16 %v180, %v156
    %v253 = vpack.c.b16 %v181, %v157
    %v254 = vpack.c.b16 %v182, %v158
    %v255 = vpack.c.b16 %v183, %v159
    %v256 = vpack.c.b16 %v184, %v160
    %v257 = vpack.c.b16 %v185, %v161
    %v258 = vpack.c.b16 %v186, %v162
    %v259 = vpack.c.b16 %v187, %v163
    %v260 = vpack.c.b16 %v188, %v164
    %v261 = vpack.c.b16 %v189, %v165
    %v262 = vpack.c.b16 %v190, %v166
    %v263 = vpack.c.b16 %v191, %v167
    %v264 = vpack.c.b16 %v192, %v168
    %v265 = vpack.c.b16 %v193, %v169
    %v266 = vpack.c.b16 %v194, %v170
    %v267 = vpack.c.b16 %v195, %v171
    %v268 = vpack.c.b16 %v196, %v172
    %v269 = vpack.c.b16 %v197, %v173
    %v270 = vpack.c.b16 %v198, %v174
    %v271 = vpack.c.b16 %v199, %v175
    %v272 = vpack.c.b16 %v224, %v200
    %v273 = vpack.c.b16 %v225, %v201
    %v274 = vpack.c.b16 %v226, %v202
    %v275 = vpack.c.b16 %v227, %v203
    %v276 = vpack.c.b16 %v228, %v204
    %v277 = vpack.c.b16 %v229, %v205
    %v278 = vpack.c.b16 %v230, %v206
    %v279 = vpack.c.b16 %v231, %v207
    %v280 = vpack.c.b16 %v232, %v208
    %v281 = vpack.c.b16 %v233, %v209
    %v282 = vpack.c.b16 %v234, %v210
    %v283 = vpack.c.b16 %v235, %v211
    %v284 = vpack.c.b16 %v236, %v212
    %v285 = vpack.c.b16 %v237, %v213
    %v286 = vpack.c.b16 %v238, %v214
    %v287 = vpack.c.b16 %v239, %v215
    %v288 = vpack.c.b16 %v240, %v216
    %v289 = vpack.c.b16 %v241, %v217
    %v290 = vpack.c.b16 %v242, %v218
    %v291 = vpack.c.b16 %v243, %v219
    %v292 = vpack.c.b16 %v244, %v220
    %v293 = vpack.c.b16 %v245, %v221
    %v294 = vpack.c.b16 %v246, %v222
    %v295 = vpack.c.b16 %v247, %v223
    %vm320 = vcmask 203776
    %v322 = vsel %vm320, %v49, 0
    %vm324 = vcmask 1043456
    %vm325 = vcmask 1044480
    %v326 = vsel %vm324, 4294967295, 65535
    %v327 = vsel %vm325, %v326, 0
    %v329 = vand.u32 %v272, %v327
    %v332 = vand.u32 %v273, %v327
    %v335 = vand.u32 %v274, %v327
    %v338 = vand.u32 %v275, %v327
    %v341 = vand.u32 %v276, %v327
    %v344 = vand.u32 %v277, %v327
    %v347 = vand.u32 %v278, %v327
    %v350 = vand.u32 %v279, %v327
    %v353 = vand.u32 %v280, %v327
    %v356 = vand.u32 %v281, %v327
    %v359 = vand.u32 %v282, %v327
    %v362 = vand.u32 %v283, %v327
    %v365 = vand.u32 %v284, %v327
    %v368 = vand.u32 %v285, %v327
    %v371 = vand.u32 %v286, %v327
    %v374 = vand.u32 %v287, %v327
    %v377 = vand.u32 %v288, %v327
    %v380 = vand.u32 %v289, %v327
    %v383 = vand.u32 %v290, %v327
    %v386 = vand.u32 %v291, %v327
    %v389 = vand.u32 %v292, %v327
    %v392 = vand.u32 %v293, %v327
    %v395 = vand.u32 %v294, %v327
    %v398 = vand.u32 %v295, %v327
    %400 = vmatprep.subr.bf16.mxu0 %v249
    %401 = vmatpush1.bf16.msra.mxu0 %v248
    %402 = vmatprep.subr.bf16.mxu0 %v332
    %403 = vmatpush1.bf16.msra.mxu0 %v329
    %404 = vmatprep.subr.bf16.mxu0 0
    %405 = vmatpush1.bf16.msra.mxu0 0
    %406 = vmatprep.subr.bf16.mxu0 0
    %407 = vmatpush1.bf16.msra.mxu0 0
    %408 = vmatprep.subr.bf16.mxu0 0
    %409 = vmatpush1.bf16.msra.mxu0 0
    %410 = vmatprep.subr.bf16.mxu0 0
    %411 = vmatpush1.bf16.msra.mxu0 0
    %412 = vmatprep.subr.bf16.mxu0 0
    %413 = vmatpush1.bf16.msra.mxu0 0
    %414 = vmatprep.subr.bf16.mxu0 0
    %415 = vmatpush1.bf16.msra.mxu0 0
    %416 = vmatprep.subr.bf16.mxu0 0
    %417 = vmatpush1.bf16.msra.mxu0 0
    %418 = vmatprep.subr.bf16.mxu0 0
    %419 = vmatpush1.bf16.msra.mxu0 0
    %420 = vmatprep.subr.bf16.mxu0 0
    %421 = vmatpush1.bf16.msra.mxu0 0
    %422 = vmatprep.subr.bf16.mxu0 0
    %423 = vmatpush1.bf16.msra.mxu0 0
    %424 = vmatprep.subr.bf16.mxu0 0
    %425 = vmatpush1.bf16.msra.mxu0 0
    %426 = vmatprep.subr.bf16.mxu0 0
    %427 = vmatpush1.bf16.msra.mxu0 0
    %428 = vmatprep.subr.bf16.mxu0 0
    %429 = vmatpush1.bf16.msra.mxu0 0
    %430 = vmatprep.subr.bf16.mxu0 0
    %431 = vmatpush1.bf16.msra.mxu0 0
    %432 = vmatprep.mubr.bf16.mxu0 0
    %433 = vmatmul.mubr.bf16.gmra.mrb[0].mxu0 %v322
    %v434 = vpop.f32.mrb[0].mxu0
    %v435 = vadd.f32 %v102, %v434
    %v436 = vpop.f32.mrb[0].mxu0
    %v437 = vadd.f32 %v102, %v436
    %v438 = vpop.f32.mrb[0].mxu0
    %v439 = vpop.f32.mrb[0].mxu0
    %440 = vdwg.mxu0
    %441 = vmatprep.subr.bf16.mxu0 %v251
    %442 = vmatpush1.bf16.msra.mxu0 %v250
    %443 = vmatprep.subr.bf16.mxu0 %v338
    %444 = vmatpush1.bf16.msra.mxu0 %v335
    %445 = vmatprep.subr.bf16.mxu0 0
    %446 = vmatpush1.bf16.msra.mxu0 0
    %447 = vmatprep.subr.bf16.mxu0 0
    %448 = vmatpush1.bf16.msra.mxu0 0
    %449 = vmatprep.subr.bf16.mxu0 0
    %450 = vmatpush1.bf16.msra.mxu0 0
    %451 = vmatprep.subr.bf16.mxu0 0
    %452 = vmatpush1.bf16.msra.mxu0 0
    %453 = vmatprep.subr.bf16.mxu0 0
    %454 = vmatpush1.bf16.msra.mxu0 0
    %455 = vmatprep.subr.bf16.mxu0 0
    %456 = vmatpush1.bf16.msra.mxu0 0
    %457 = vmatprep.subr.bf16.mxu0 0
    %458 = vmatpush1.bf16.msra.mxu0 0
    %459 = vmatprep.subr.bf16.mxu0 0
    %460 = vmatpush1.bf16.msra.mxu0 0
    %461 = vmatprep.subr.bf16.mxu0 0
    %462 = vmatpush1.bf16.msra.mxu0 0
    %463 = vmatprep.subr.bf16.mxu0 0
    %464 = vmatpush1.bf16.msra.mxu0 0
    %465 = vmatprep.subr.bf16.mxu0 0
    %466 = vmatpush1.bf16.msra.mxu0 0
    %467 = vmatprep.subr.bf16.mxu0 0
    %468 = vmatpush1.bf16.msra.mxu0 0
    %469 = vmatprep.subr.bf16.mxu0 0
    %470 = vmatpush1.bf16.msra.mxu0 0
    %471 = vmatprep.subr.bf16.mxu0 0
    %472 = vmatpush1.bf16.msra.mxu0 0
    %473 = vmatprep.mubr.bf16.mxu0 0
    %474 = vmatmul.mubr.bf16.gmra.mrb[0].mxu0 %v322
    %v475 = vpop.f32.mrb[0].mxu0
    %v476 = vadd.f32 %v102, %v475
    %v477 = vpop.f32.mrb[0].mxu0
    %v478 = vadd.f32 %v102, %v477
    %v479 = vpop.f32.mrb[0].mxu0
    %v480 = vpop.f32.mrb[0].mxu0
    %481 = vdwg.mxu0
    %482 = vmatprep.subr.bf16.mxu0 %v253
    %483 = vmatpush1.bf16.msra.mxu0 %v252
    %484 = vmatprep.subr.bf16.mxu0 %v344
    %485 = vmatpush1.bf16.msra.mxu0 %v341
    %486 = vmatprep.subr.bf16.mxu0 0
    %487 = vmatpush1.bf16.msra.mxu0 0
    %488 = vmatprep.subr.bf16.mxu0 0
    %489 = vmatpush1.bf16.msra.mxu0 0
    %490 = vmatprep.subr.bf16.mxu0 0
    %491 = vmatpush1.bf16.msra.mxu0 0
    %492 = vmatprep.subr.bf16.mxu0 0
    %493 = vmatpush1.bf16.msra.mxu0 0
    %494 = vmatprep.subr.bf16.mxu0 0
    %495 = vmatpush1.bf16.msra.mxu0 0
    %496 = vmatprep.subr.bf16.mxu0 0
    %497 = vmatpush1.bf16.msra.mxu0 0
    %498 = vmatprep.subr.bf16.mxu0 0
    %499 = vmatpush1.bf16.msra.mxu0 0
    %500 = vmatprep.subr.bf16.mxu0 0
    %501 = vmatpush1.bf16.msra.mxu0 0
    %502 = vmatprep.subr.bf16.mxu0 0
    %503 = vmatpush1.bf16.msra.mxu0 0
    %504 = vmatprep.subr.bf16.mxu0 0
    %505 = vmatpush1.bf16.msra.mxu0 0
    %506 = vmatprep.subr.bf16.mxu0 0
    %507 = vmatpush1.bf16.msra.mxu0 0
    %508 = vmatprep.subr.bf16.mxu0 0
    %509 = vmatpush1.bf16.msra.mxu0 0
    %510 = vmatprep.subr.bf16.mxu0 0
    %511 = vmatpush1.bf16.msra.mxu0 0
    %512 = vmatprep.subr.bf16.mxu0 0
    %513 = vmatpush1.bf16.msra.mxu0 0
    %514 = vmatprep.mubr.bf16.mxu0 0
    %515 = vmatmul.mubr.bf16.gmra.mrb[0].mxu0 %v322
    %v516 = vpop.f32.mrb[0].mxu0
    %v517 = vadd.f32 %v102, %v516
    %v518 = vpop.f32.mrb[0].mxu0
    %v519 = vadd.f32 %v102, %v518
    %v520 = vpop.f32.mrb[0].mxu0
    %v521 = vpop.f32.mrb[0].mxu0
    %522 = vdwg.mxu0
    %523 = vmatprep.subr.bf16.mxu0 %v255
    %524 = vmatpush1.bf16.msra.mxu0 %v254
    %525 = vmatprep.subr.bf16.mxu0 %v350
    %526 = vmatpush1.bf16.msra.mxu0 %v347
    %527 = vmatprep.subr.bf16.mxu0 0
    %528 = vmatpush1.bf16.msra.mxu0 0
    %529 = vmatprep.subr.bf16.mxu0 0
    %530 = vmatpush1.bf16.msra.mxu0 0
    %531 = vmatprep.subr.bf16.mxu0 0
    %532 = vmatpush1.bf16.msra.mxu0 0
    %533 = vmatprep.subr.bf16.mxu0 0
    %534 = vmatpush1.bf16.msra.mxu0 0
    %535 = vmatprep.subr.bf16.mxu0 0
    %536 = vmatpush1.bf16.msra.mxu0 0
    %537 = vmatprep.subr.bf16.mxu0 0
    %538 = vmatpush1.bf16.msra.mxu0 0
    %539 = vmatprep.subr.bf16.mxu0 0
    %540 = vmatpush1.bf16.msra.mxu0 0
    %541 = vmatprep.subr.bf16.mxu0 0
    %542 = vmatpush1.bf16.msra.mxu0 0
    %543 = vmatprep.subr.bf16.mxu0 0
    %544 = vmatpush1.bf16.msra.mxu0 0
    %545 = vmatprep.subr.bf16.mxu0 0
    %546 = vmatpush1.bf16.msra.mxu0 0
    %547 = vmatprep.subr.bf16.mxu0 0
    %548 = vmatpush1.bf16.msra.mxu0 0
    %549 = vmatprep.subr.bf16.mxu0 0
    %550 = vmatpush1.bf16.msra.mxu0 0
    %551 = vmatprep.subr.bf16.mxu0 0
    %552 = vmatpush1.bf16.msra.mxu0 0
    %553 = vmatprep.subr.bf16.mxu0 0
    %554 = vmatpush1.bf16.msra.mxu0 0
    %555 = vmatprep.mubr.bf16.mxu0 0
    %556 = vmatmul.mubr.bf16.gmra.mrb[0].mxu0 %v322
    %v557 = vpop.f32.mrb[0].mxu0
    %v558 = vadd.f32 %v102, %v557
    %v559 = vpop.f32.mrb[0].mxu0
    %v560 = vadd.f32 %v102, %v559
    %v561 = vpop.f32.mrb[0].mxu0
    %v562 = vpop.f32.mrb[0].mxu0
    %563 = vdwg.mxu0
    %564 = vmatprep.subr.bf16.mxu0 %v257
    %565 = vmatpush1.bf16.msra.mxu0 %v256
    %566 = vmatprep.subr.bf16.mxu0 %v356
    %567 = vmatpush1.bf16.msra.mxu0 %v353
    %568 = vmatprep.subr.bf16.mxu0 0
    %569 = vmatpush1.bf16.msra.mxu0 0
    %570 = vmatprep.subr.bf16.mxu0 0
    %571 = vmatpush1.bf16.msra.mxu0 0
    %572 = vmatprep.subr.bf16.mxu0 0
    %573 = vmatpush1.bf16.msra.mxu0 0
    %574 = vmatprep.subr.bf16.mxu0 0
    %575 = vmatpush1.bf16.msra.mxu0 0
    %576 = vmatprep.subr.bf16.mxu0 0
    %577 = vmatpush1.bf16.msra.mxu0 0
    %578 = vmatprep.subr.bf16.mxu0 0
    %579 = vmatpush1.bf16.msra.mxu0 0
    %580 = vmatprep.subr.bf16.mxu0 0
    %581 = vmatpush1.bf16.msra.mxu0 0
    %582 = vmatprep.subr.bf16.mxu0 0
    %583 = vmatpush1.bf16.msra.mxu0 0
    %584 = vmatprep.subr.bf16.mxu0 0
    %585 = vmatpush1.bf16.msra.mxu0 0
    %586 = vmatprep.subr.bf16.mxu0 0
    %587 = vmatpush1.bf16.msra.mxu0 0
    %588 = vmatprep.subr.bf16.mxu0 0
    %589 = vmatpush1.bf16.msra.mxu0 0
    %590 = vmatprep.subr.bf16.mxu0 0
    %591 = vmatpush1.bf16.msra.mxu0 0
    %592 = vmatprep.subr.bf16.mxu0 0
    %593 = vmatpush1.bf16.msra.mxu0 0
    %594 = vmatprep.subr.bf16.mxu0 0
    %595 = vmatpush1.bf16.msra.mxu0 0
    %596 = vmatprep.mubr.bf16.mxu0 0
    %597 = vmatmul.mubr.bf16.gmra.mrb[0].mxu0 %v322
    %v598 = vpop.f32.mrb[0].mxu0
    %v599 = vadd.f32 %v102, %v598
    %v600 = vpop.f32.mrb[0].mxu0
    %v601 = vadd.f32 %v102, %v600
    %v602 = vpop.f32.mrb[0].mxu0
    %v603 = vpop.f32.mrb[0].mxu0
    %604 = vdwg.mxu0
    %605 = vmatprep.subr.bf16.mxu0 %v259
    %606 = vmatpush1.bf16.msra.mxu0 %v258
    %607 = vmatprep.subr.bf16.mxu0 %v362
    %608 = vmatpush1.bf16.msra.mxu0 %v359
    %609 = vmatprep.subr.bf16.mxu0 0
    %610 = vmatpush1.bf16.msra.mxu0 0
    %611 = vmatprep.subr.bf16.mxu0 0
    %612 = vmatpush1.bf16.msra.mxu0 0
    %613 = vmatprep.subr.bf16.mxu0 0
    %614 = vmatpush1.bf16.msra.mxu0 0
    %615 = vmatprep.subr.bf16.mxu0 0
    %616 = vmatpush1.bf16.msra.mxu0 0
    %617 = vmatprep.subr.bf16.mxu0 0
    %618 = vmatpush1.bf16.msra.mxu0 0
    %619 = vmatprep.subr.bf16.mxu0 0
    %620 = vmatpush1.bf16.msra.mxu0 0
    %621 = vmatprep.subr.bf16.mxu0 0
    %622 = vmatpush1.bf16.msra.mxu0 0
    %623 = vmatprep.subr.bf16.mxu0 0
    %624 = vmatpush1.bf16.msra.mxu0 0
    %625 = vmatprep.subr.bf16.mxu0 0
    %626 = vmatpush1.bf16.msra.mxu0 0
    %627 = vmatprep.subr.bf16.mxu0 0
    %628 = vmatpush1.bf16.msra.mxu0 0
    %629 = vmatprep.subr.bf16.mxu0 0
    %630 = vmatpush1.bf16.msra.mxu0 0
    %631 = vmatprep.subr.bf16.mxu0 0
    %632 = vmatpush1.bf16.msra.mxu0 0
    %633 = vmatprep.subr.bf16.mxu0 0
    %634 = vmatpush1.bf16.msra.mxu0 0
    %635 = vmatprep.subr.bf16.mxu0 0
    %636 = vmatpush1.bf16.msra.mxu0 0
    %637 = vmatprep.mubr.bf16.mxu0 0
    %638 = vmatmul.mubr.bf16.gmra.mrb[0].mxu0 %v322
    %v639 = vpop.f32.mrb[0].mxu0
    %v640 = vadd.f32 %v102, %v639
    %v641 = vpop.f32.mrb[0].mxu0
    %v642 = vadd.f32 %v102, %v641
    %v643 = vpop.f32.mrb[0].mxu0
    %v644 = vpop.f32.mrb[0].mxu0
    %645 = vdwg.mxu0
    %646 = vmatprep.subr.bf16.mxu0 %v261
    %647 = vmatpush1.bf16.msra.mxu0 %v260
    %648 = vmatprep.subr.bf16.mxu0 %v368
    %649 = vmatpush1.bf16.msra.mxu0 %v365
    %650 = vmatprep.subr.bf16.mxu0 0
    %651 = vmatpush1.bf16.msra.mxu0 0
    %652 = vmatprep.subr.bf16.mxu0 0
    %653 = vmatpush1.bf16.msra.mxu0 0
    %654 = vmatprep.subr.bf16.mxu0 0
    %655 = vmatpush1.bf16.msra.mxu0 0
    %656 = vmatprep.subr.bf16.mxu0 0
    %657 = vmatpush1.bf16.msra.mxu0 0
    %658 = vmatprep.subr.bf16.mxu0 0
    %659 = vmatpush1.bf16.msra.mxu0 0
    %660 = vmatprep.subr.bf16.mxu0 0
    %661 = vmatpush1.bf16.msra.mxu0 0
    %662 = vmatprep.subr.bf16.mxu0 0
    %663 = vmatpush1.bf16.msra.mxu0 0
    %664 = vmatprep.subr.bf16.mxu0 0
    %665 = vmatpush1.bf16.msra.mxu0 0
    %666 = vmatprep.subr.bf16.mxu0 0
    %667 = vmatpush1.bf16.msra.mxu0 0
    %668 = vmatprep.subr.bf16.mxu0 0
    %669 = vmatpush1.bf16.msra.mxu0 0
    %670 = vmatprep.subr.bf16.mxu0 0
    %671 = vmatpush1.bf16.msra.mxu0 0
    %672 = vmatprep.subr.bf16.mxu0 0
    %673 = vmatpush1.bf16.msra.mxu0 0
    %674 = vmatprep.subr.bf16.mxu0 0
    %675 = vmatpush1.bf16.msra.mxu0 0
    %676 = vmatprep.subr.bf16.mxu0 0
    %677 = vmatpush1.bf16.msra.mxu0 0
    %678 = vmatprep.mubr.bf16.mxu0 0
    %679 = vmatmul.mubr.bf16.gmra.mrb[0].mxu0 %v322
    %v680 = vpop.f32.mrb[0].mxu0
    %v681 = vadd.f32 %v102, %v680
    %v682 = vpop.f32.mrb[0].mxu0
    %v683 = vadd.f32 %v102, %v682
    %v684 = vpop.f32.mrb[0].mxu0
    %v685 = vpop.f32.mrb[0].mxu0
    %686 = vdwg.mxu0
    %687 = vmatprep.subr.bf16.mxu0 %v263
    %688 = vmatpush1.bf16.msra.mxu0 %v262
    %689 = vmatprep.subr.bf16.mxu0 %v374
    %690 = vmatpush1.bf16.msra.mxu0 %v371
    %691 = vmatprep.subr.bf16.mxu0 0
    %692 = vmatpush1.bf16.msra.mxu0 0
    %693 = vmatprep.subr.bf16.mxu0 0
    %694 = vmatpush1.bf16.msra.mxu0 0
    %695 = vmatprep.subr.bf16.mxu0 0
    %696 = vmatpush1.bf16.msra.mxu0 0
    %697 = vmatprep.subr.bf16.mxu0 0
    %698 = vmatpush1.bf16.msra.mxu0 0
    %699 = vmatprep.subr.bf16.mxu0 0
    %700 = vmatpush1.bf16.msra.mxu0 0
    %701 = vmatprep.subr.bf16.mxu0 0
    %702 = vmatpush1.bf16.msra.mxu0 0
    %703 = vmatprep.subr.bf16.mxu0 0
    %704 = vmatpush1.bf16.msra.mxu0 0
    %705 = vmatprep.subr.bf16.mxu0 0
    %706 = vmatpush1.bf16.msra.mxu0 0
    %707 = vmatprep.subr.bf16.mxu0 0
    %708 = vmatpush1.bf16.msra.mxu0 0
    %709 = vmatprep.subr.bf16.mxu0 0
    %710 = vmatpush1.bf16.msra.mxu0 0
    %711 = vmatprep.subr.bf16.mxu0 0
    %712 = vmatpush1.bf16.msra.mxu0 0
    %713 = vmatprep.subr.bf16.mxu0 0
    %714 = vmatpush1.bf16.msra.mxu0 0
    %715 = vmatprep.subr.bf16.mxu0 0
    %716 = vmatpush1.bf16.msra.mxu0 0
    %717 = vmatprep.subr.bf16.mxu0 0
    %718 = vmatpush1.bf16.msra.mxu0 0
    %719 = vmatprep.mubr.bf16.mxu0 0
    %720 = vmatmul.mubr.bf16.gmra.mrb[0].mxu0 %v322
    %v721 = vpop.f32.mrb[0].mxu0
    %v722 = vadd.f32 %v102, %v721
    %v723 = vpop.f32.mrb[0].mxu0
    %v724 = vadd.f32 %v102, %v723
    %v725 = vpop.f32.mrb[0].mxu0
    %v726 = vpop.f32.mrb[0].mxu0
    %727 = vdwg.mxu0
    %728 = vmatprep.subr.bf16.mxu0 %v265
    %729 = vmatpush1.bf16.msra.mxu0 %v264
    %730 = vmatprep.subr.bf16.mxu0 %v380
    %731 = vmatpush1.bf16.msra.mxu0 %v377
    %732 = vmatprep.subr.bf16.mxu0 0
    %733 = vmatpush1.bf16.msra.mxu0 0
    %734 = vmatprep.subr.bf16.mxu0 0
    %735 = vmatpush1.bf16.msra.mxu0 0
    %736 = vmatprep.subr.bf16.mxu0 0
    %737 = vmatpush1.bf16.msra.mxu0 0
    %738 = vmatprep.subr.bf16.mxu0 0
    %739 = vmatpush1.bf16.msra.mxu0 0
    %740 = vmatprep.subr.bf16.mxu0 0
    %741 = vmatpush1.bf16.msra.mxu0 0
    %742 = vmatprep.subr.bf16.mxu0 0
    %743 = vmatpush1.bf16.msra.mxu0 0
    %744 = vmatprep.subr.bf16.mxu0 0
    %745 = vmatpush1.bf16.msra.mxu0 0
    %746 = vmatprep.subr.bf16.mxu0 0
    %747 = vmatpush1.bf16.msra.mxu0 0
    %748 = vmatprep.subr.bf16.mxu0 0
    %749 = vmatpush1.bf16.msra.mxu0 0
    %750 = vmatprep.subr.bf16.mxu0 0
    %751 = vmatpush1.bf16.msra.mxu0 0
    %752 = vmatprep.subr.bf16.mxu0 0
    %753 = vmatpush1.bf16.msra.mxu0 0
    %754 = vmatprep.subr.bf16.mxu0 0
    %755 = vmatpush1.bf16.msra.mxu0 0
    %756 = vmatprep.subr.bf16.mxu0 0
    %757 = vmatpush1.bf16.msra.mxu0 0
    %758 = vmatprep.subr.bf16.mxu0 0
    %759 = vmatpush1.bf16.msra.mxu0 0
    %760 = vmatprep.mubr.bf16.mxu0 0
    %761 = vmatmul.mubr.bf16.gmra.mrb[0].mxu0 %v322
    %v762 = vpop.f32.mrb[0].mxu0
    %v763 = vadd.f32 %v102, %v762
    %v764 = vpop.f32.mrb[0].mxu0
    %v765 = vadd.f32 %v102, %v764
    %v766 = vpop.f32.mrb[0].mxu0
    %v767 = vpop.f32.mrb[0].mxu0
    %768 = vdwg.mxu0
    %769 = vmatprep.subr.bf16.mxu0 %v267
    %770 = vmatpush1.bf16.msra.mxu0 %v266
    %771 = vmatprep.subr.bf16.mxu0 %v386
    %772 = vmatpush1.bf16.msra.mxu0 %v383
    %773 = vmatprep.subr.bf16.mxu0 0
    %774 = vmatpush1.bf16.msra.mxu0 0
    %775 = vmatprep.subr.bf16.mxu0 0
    %776 = vmatpush1.bf16.msra.mxu0 0
    %777 = vmatprep.subr.bf16.mxu0 0
    %778 = vmatpush1.bf16.msra.mxu0 0
    %779 = vmatprep.subr.bf16.mxu0 0
    %780 = vmatpush1.bf16.msra.mxu0 0
    %781 = vmatprep.subr.bf16.mxu0 0
    %782 = vmatpush1.bf16.msra.mxu0 0
    %783 = vmatprep.subr.bf16.mxu0 0
    %784 = vmatpush1.bf16.msra.mxu0 0
    %785 = vmatprep.subr.bf16.mxu0 0
    %786 = vmatpush1.bf16.msra.mxu0 0
    %787 = vmatprep.subr.bf16.mxu0 0
    %788 = vmatpush1.bf16.msra.mxu0 0
    %789 = vmatprep.subr.bf16.mxu0 0
    %790 = vmatpush1.bf16.msra.mxu0 0
    %791 = vmatprep.subr.bf16.mxu0 0
    %792 = vmatpush1.bf16.msra.mxu0 0
    %793 = vmatprep.subr.bf16.mxu0 0
    %794 = vmatpush1.bf16.msra.mxu0 0
    %795 = vmatprep.subr.bf16.mxu0 0
    %796 = vmatpush1.bf16.msra.mxu0 0
    %797 = vmatprep.subr.bf16.mxu0 0
    %798 = vmatpush1.bf16.msra.mxu0 0
    %799 = vmatprep.subr.bf16.mxu0 0
    %800 = vmatpush1.bf16.msra.mxu0 0
    %801 = vmatprep.mubr.bf16.mxu0 0
    %802 = vmatmul.mubr.bf16.gmra.mrb[0].mxu0 %v322
    %v803 = vpop.f32.mrb[0].mxu0
    %v804 = vadd.f32 %v102, %v803
    %v805 = vpop.f32.mrb[0].mxu0
    %v806 = vadd.f32 %v102, %v805
    %v807 = vpop.f32.mrb[0].mxu0
    %v808 = vpop.f32.mrb[0].mxu0
    %809 = vdwg.mxu0
    %810 = vmatprep.subr.bf16.mxu0 %v269
    %811 = vmatpush1.bf16.msra.mxu0 %v268
    %812 = vmatprep.subr.bf16.mxu0 %v392
    %813 = vmatpush1.bf16.msra.mxu0 %v389
    %814 = vmatprep.subr.bf16.mxu0 0
    %815 = vmatpush1.bf16.msra.mxu0 0
    %816 = vmatprep.subr.bf16.mxu0 0
    %817 = vmatpush1.bf16.msra.mxu0 0
    %818 = vmatprep.subr.bf16.mxu0 0
    %819 = vmatpush1.bf16.msra.mxu0 0
    %820 = vmatprep.subr.bf16.mxu0 0
    %821 = vmatpush1.bf16.msra.mxu0 0
    %822 = vmatprep.subr.bf16.mxu0 0
    %823 = vmatpush1.bf16.msra.mxu0 0
    %824 = vmatprep.subr.bf16.mxu0 0
    %825 = vmatpush1.bf16.msra.mxu0 0
    %826 = vmatprep.subr.bf16.mxu0 0
    %827 = vmatpush1.bf16.msra.mxu0 0
    %828 = vmatprep.subr.bf16.mxu0 0
    %829 = vmatpush1.bf16.msra.mxu0 0
    %830 = vmatprep.subr.bf16.mxu0 0
    %831 = vmatpush1.bf16.msra.mxu0 0
    %832 = vmatprep.subr.bf16.mxu0 0
    %833 = vmatpush1.bf16.msra.mxu0 0
    %834 = vmatprep.subr.bf16.mxu0 0
    %835 = vmatpush1.bf16.msra.mxu0 0
    %836 = vmatprep.subr.bf16.mxu0 0
    %837 = vmatpush1.bf16.msra.mxu0 0
    %838 = vmatprep.subr.bf16.mxu0 0
    %839 = vmatpush1.bf16.msra.mxu0 0
    %840 = vmatprep.subr.bf16.mxu0 0
    %841 = vmatpush1.bf16.msra.mxu0 0
    %842 = vmatprep.mubr.bf16.mxu0 0
    %843 = vmatmul.mubr.bf16.gmra.mrb[0].mxu0 %v322
    %v844 = vpop.f32.mrb[0].mxu0
    %v845 = vadd.f32 %v102, %v844
    %v846 = vpop.f32.mrb[0].mxu0
    %v847 = vadd.f32 %v102, %v846
    %v848 = vpop.f32.mrb[0].mxu0
    %v849 = vpop.f32.mrb[0].mxu0
    %850 = vdwg.mxu0
    %851 = vmatprep.subr.bf16.mxu0 %v271
    %852 = vmatpush1.bf16.msra.mxu0 %v270
    %853 = vmatprep.subr.bf16.mxu0 %v398
    %854 = vmatpush1.bf16.msra.mxu0 %v395
    %855 = vmatprep.subr.bf16.mxu0 0
    %856 = vmatpush1.bf16.msra.mxu0 0
    %857 = vmatprep.subr.bf16.mxu0 0
    %858 = vmatpush1.bf16.msra.mxu0 0
    %859 = vmatprep.subr.bf16.mxu0 0
    %860 = vmatpush1.bf16.msra.mxu0 0
    %861 = vmatprep.subr.bf16.mxu0 0
    %862 = vmatpush1.bf16.msra.mxu0 0
    %863 = vmatprep.subr.bf16.mxu0 0
    %864 = vmatpush1.bf16.msra.mxu0 0
    %865 = vmatprep.subr.bf16.mxu0 0
    %866 = vmatpush1.bf16.msra.mxu0 0
    %867 = vmatprep.subr.bf16.mxu0 0
    %868 = vmatpush1.bf16.msra.mxu0 0
    %869 = vmatprep.subr.bf16.mxu0 0
    %870 = vmatpush1.bf16.msra.mxu0 0
    %871 = vmatprep.subr.bf16.mxu0 0
    %872 = vmatpush1.bf16.msra.mxu0 0
    %873 = vmatprep.subr.bf16.mxu0 0
    %874 = vmatpush1.bf16.msra.mxu0 0
    %875 = vmatprep.subr.bf16.mxu0 0
    %876 = vmatpush1.bf16.msra.mxu0 0
    %877 = vmatprep.subr.bf16.mxu0 0
    %878 = vmatpush1.bf16.msra.mxu0 0
    %879 = vmatprep.subr.bf16.mxu0 0
    %880 = vmatpush1.bf16.msra.mxu0 0
    %881 = vmatprep.subr.bf16.mxu0 0
    %882 = vmatpush1.bf16.msra.mxu0 0
    %883 = vmatprep.mubr.bf16.mxu0 0
    %884 = vmatmul.mubr.bf16.gmra.mrb[0].mxu0 %v322
    %v885 = vpop.f32.mrb[0].mxu0
    %v886 = vadd.f32 %v102, %v885
    %v887 = vpop.f32.mrb[0].mxu0
    %v888 = vadd.f32 %v102, %v887
    %v889 = vpop.f32.mrb[0].mxu0
    %v890 = vpop.f32.mrb[0].mxu0
    %891 = vdwg.mxu0
    %v892 = vmax.f32 %v435, 0.0
    %v893 = vmax.f32 %v437, 0.0
    %v894 = vmax.f32 %v476, 0.0
    %v895 = vmax.f32 %v478, 0.0
    %v896 = vmax.f32 %v517, 0.0
    %v897 = vmax.f32 %v519, 0.0
    %v898 = vmax.f32 %v558, 0.0
    %v899 = vmax.f32 %v560, 0.0
    %v900 = vmax.f32 %v599, 0.0
    %v901 = vmax.f32 %v601, 0.0
    %v902 = vmax.f32 %v640, 0.0
    %v903 = vmax.f32 %v642, 0.0
    %v904 = vmax.f32 %v681, 0.0
    %v905 = vmax.f32 %v683, 0.0
    %v906 = vmax.f32 %v722, 0.0
    %v907 = vmax.f32 %v724, 0.0
    %v908 = vmax.f32 %v763, 0.0
    %v909 = vmax.f32 %v765, 0.0
    %v910 = vmax.f32 %v804, 0.0
    %v911 = vmax.f32 %v806, 0.0
    %v912 = vmax.f32 %v845, 0.0
    %v913 = vmax.f32 %v847, 0.0
    %v914 = vmax.f32 %v886, 0.0
    %v915 = vmax.f32 %v888, 0.0
    %v916 = vmax.f32 %v892, %v898
    %v917 = vmax.f32 %v893, %v899
    %v918 = vmax.f32 %v894, %v900
    %v919 = vmax.f32 %v895, %v901
    %v920 = vmax.f32 %v896, %v902
    %v921 = vmax.f32 %v897, %v903
    %v922 = vmax.f32 %v904, %v910
    %v923 = vmax.f32 %v905, %v911
    %v924 = vmax.f32 %v906, %v912
    %v925 = vmax.f32 %v907, %v913
    %v926 = vmax.f32 %v908, %v914
    %v927 = vmax.f32 %v909, %v915
    %v928 = vmax.f32 %v916, %v922
    %v929 = vmax.f32 %v917, %v923
    %v930 = vmax.f32 %v918, %v924
    %v931 = vmax.f32 %v919, %v925
    %v932 = vmax.f32 %v920, %v926
    %v933 = vmax.f32 %v921, %v927
    %v934 = vld [vmem:[%s5] sm:$0x3f]
    %v936 = vlaneseq
    %v937 = vshrl.u32 %v936, 7
    %v938 = vsub.s32 0, %v937
    %v939 = vrot.slane %v934, %v938
    %v940 = vlaneseq
    %v941 = vshrl.u32 %v940, 7
    %v942 = vsub.s32 1, %v941
    %v943 = vrot.slane %v934, %v942
    %v944 = vlaneseq
    %v945 = vshrl.u32 %v944, 7
    %v946 = vsub.s32 2, %v945
    %v947 = vrot.slane %v934, %v946
    %v948 = vlaneseq
    %v949 = vshrl.u32 %v948, 7
    %v950 = vsub.s32 3, %v949
    %v951 = vrot.slane %v934, %v950
    %v952 = vlaneseq
    %v953 = vshrl.u32 %v952, 7
    %v954 = vsub.s32 4, %v953
    %v955 = vrot.slane %v934, %v954
    %v956 = vlaneseq
    %v957 = vshrl.u32 %v956, 7
    %v958 = vsub.s32 5, %v957
    %v959 = vrot.slane %v934, %v958
    %v966 = vmul.f32 %v928, %v939
    %v967 = vmul.f32 %v929, %v943
    %v968 = vmul.f32 %v930, %v947
    %v969 = vmul.f32 %v931, %v951
    %v970 = vmul.f32 %v932, %v955
    %v971 = vmul.f32 %v933, %v959
    %v972 = vpack.c.bf16 %v966, %v966
    %v973 = vpack.c.bf16 %v967, %v967
    %v974 = vpack.c.bf16 %v968, %v968
    %v975 = vpack.c.bf16 %v969, %v969
    %v976 = vpack.c.bf16 %v970, %v970
    %v977 = vpack.c.bf16 %v971, %v971
    %v984 = vunpack.c.l.b16 %v972
    %v985 = vunpack.c.l.b16 %v973
    %v986 = vunpack.c.l.b16 %v974
    %v987 = vunpack.c.l.b16 %v975
    %v988 = vunpack.c.l.b16 %v976
    %v989 = vunpack.c.l.b16 %v977
    %v990 = vpack.c.b16 %v985, %v984
    %v991 = vpack.c.b16 %v987, %v986
    %v992 = vpack.c.b16 %v989, %v988
    %996 = vst [vmem:[#allocation2] sm:$0xff] %v990
    %997 = vst [vmem:[#allocation2 + $0x8] sm:$0xff] %v991
    %998 = vst [vmem:[#allocation2 + $0x10] sm:$0xff] %v992
    %v999 = vld [vmem:[%s3] sm:$0xf]
    %v1000 = vld [vmem:[%s3 + $0x8] sm:$0xf]
    %v1001 = vld [vmem:[#allocation2] sm:$0xff]
    %v1002 = vld [vmem:[#allocation2 + $0x8] sm:$0xff]
    %v1003 = vld [vmem:[#allocation2 + $0x10] sm:$0xff]
    %v1006 = vunpack.c.l.b16 %v999
    %v1007 = vunpack.c.l.b16 %v1000
    %v1008 = vpack.c.b16 %v1007, %v1006
    %1009 = vrot.lane.b32.xlu0 %v1008, 120
    %v1010 = vpop.permute.xlu0 %1009
    %v1014 = vunpack.c.l.b16 %v1001
    %v1015 = vunpack.c.h.b16 %v1001
    %v1016 = vunpack.c.l.b16 %v1002
    %v1017 = vunpack.c.h.b16 %v1002
    %v1018 = vunpack.c.l.b16 %v1003
    %v1019 = vunpack.c.h.b16 %v1003
    %v1020 = vpack.c.b16 %v1014, %v1014
    %v1021 = vpack.c.b16 %v1015, %v1015
    %v1022 = vpack.c.b16 %v1016, %v1016
    %v1023 = vpack.c.b16 %v1017, %v1017
    %v1024 = vpack.c.b16 %v1018, %v1018
    %v1025 = vpack.c.b16 %v1019, %v1019
    %1026 = vrot.lane.b32.xlu0 %v1020, 127
    %v1027 = vpop.permute.xlu0 %1026
    %1028 = vrot.lane.b32.xlu0 %v1021, 127
    %v1029 = vpop.permute.xlu0 %1028
    %1030 = vrot.lane.b32.xlu0 %v1022, 127
    %v1031 = vpop.permute.xlu0 %1030
    %1032 = vrot.lane.b32.xlu0 %v1023, 127
    %v1033 = vpop.permute.xlu0 %1032
    %1034 = vrot.lane.b32.xlu0 %v1024, 127
    %v1035 = vpop.permute.xlu0 %1034
    %1036 = vrot.lane.b32.xlu0 %v1025, 127
    %v1037 = vpop.permute.xlu0 %1036
    %vm1038 = vcmask 1039360
    %v1039 = vsel %vm1038, %v1027, %v1029
    %v1040 = vsel %vm1038, %v1029, %v1031
    %v1041 = vsel %vm1038, %v1031, %v1033
    %v1042 = vsel %vm1038, %v1033, %v1035
    %v1043 = vsel %vm1038, %v1035, %v1037
    %vm1044 = vcmask 64512
    %v1046 = vsel %vm1044, %v1010, 0
    %v1049 = vsel %vm324, %v1039, 0
    %v1052 = vsel %vm324, %v1040, 0
    %v1055 = vsel %vm324, %v1041, 0
    %v1058 = vsel %vm324, %v1042, 0
    %v1061 = vsel %vm324, %v1043, 0
    %v1064 = vsel %vm324, %v1037, 0
    %1066 = vmatprep.subr.bf16.mxu0 %v1052
    %1067 = vmatpush1.bf16.msra.mxu0 %v1049
    %1068 = vmatprep.subr.bf16.mxu0 0
    %1069 = vmatpush1.bf16.msra.mxu0 0
    %1070 = vmatprep.subr.bf16.mxu0 0
    %1071 = vmatpush1.bf16.msra.mxu0 0
    %1072 = vmatprep.subr.bf16.mxu0 0
    %1073 = vmatpush1.bf16.msra.mxu0 0
    %1074 = vmatprep.subr.bf16.mxu0 0
    %1075 = vmatpush1.bf16.msra.mxu0 0
    %1076 = vmatprep.subr.bf16.mxu0 0
    %1077 = vmatpush1.bf16.msra.mxu0 0
    %1078 = vmatprep.subr.bf16.mxu0 0
    %1079 = vmatpush1.bf16.msra.mxu0 0
    %1080 = vmatprep.subr.bf16.mxu0 0
    %1081 = vmatpush1.bf16.msra.mxu0 0
    %1082 = vmatprep.subr.bf16.mxu0 0
    %1083 = vmatpush1.bf16.msra.mxu0 0
    %1084 = vmatprep.subr.bf16.mxu0 0
    %1085 = vmatpush1.bf16.msra.mxu0 0
    %1086 = vmatprep.subr.bf16.mxu0 0
    %1087 = vmatpush1.bf16.msra.mxu0 0
    %1088 = vmatprep.subr.bf16.mxu0 0
    %1089 = vmatpush1.bf16.msra.mxu0 0
    %1090 = vmatprep.subr.bf16.mxu0 0
    %1091 = vmatpush1.bf16.msra.mxu0 0
    %1092 = vmatprep.subr.bf16.mxu0 0
    %1093 = vmatpush1.bf16.msra.mxu0 0
    %1094 = vmatprep.subr.bf16.mxu0 0
    %1095 = vmatpush1.bf16.msra.mxu0 0
    %1096 = vmatprep.subr.bf16.mxu0 0
    %1097 = vmatpush1.bf16.msra.mxu0 0
    %1098 = vmatprep.mubr.bf16.mxu0 0
    %1099 = vmatmul.mubr.bf16.gmra.mrb[0].mxu0 %v1046
    %v1100 = vpop.f32.mrb[0].mxu0
    %v1101 = vadd.f32 0.0, %v1100
    %v1102 = vpop.f32.mrb[0].mxu0
    %v1103 = vadd.f32 0.0, %v1102
    %v1104 = vpop.f32.mrb[0].mxu0
    %v1105 = vadd.f32 0.0, %v1104
    %v1106 = vpop.f32.mrb[0].mxu0
    %v1107 = vadd.f32 0.0, %v1106
    %1108 = vdwg.mxu0
    %1109 = vmatprep.subr.bf16.mxu0 %v1058
    %1110 = vmatpush1.bf16.msra.mxu0 %v1055
    %1111 = vmatprep.subr.bf16.mxu0 0
    %1112 = vmatpush1.bf16.msra.mxu0 0
    %1113 = vmatprep.subr.bf16.mxu0 0
    %1114 = vmatpush1.bf16.msra.mxu0 0
    %1115 = vmatprep.subr.bf16.mxu0 0
    %1116 = vmatpush1.bf16.msra.mxu0 0
    %1117 = vmatprep.subr.bf16.mxu0 0
    %1118 = vmatpush1.bf16.msra.mxu0 0
    %1119 = vmatprep.subr.bf16.mxu0 0
    %1120 = vmatpush1.bf16.msra.mxu0 0
    %1121 = vmatprep.subr.bf16.mxu0 0
    %1122 = vmatpush1.bf16.msra.mxu0 0
    %1123 = vmatprep.subr.bf16.mxu0 0
    %1124 = vmatpush1.bf16.msra.mxu0 0
    %1125 = vmatprep.subr.bf16.mxu0 0
    %1126 = vmatpush1.bf16.msra.mxu0 0
    %1127 = vmatprep.subr.bf16.mxu0 0
    %1128 = vmatpush1.bf16.msra.mxu0 0
    %1129 = vmatprep.subr.bf16.mxu0 0
    %1130 = vmatpush1.bf16.msra.mxu0 0
    %1131 = vmatprep.subr.bf16.mxu0 0
    %1132 = vmatpush1.bf16.msra.mxu0 0
    %1133 = vmatprep.subr.bf16.mxu0 0
    %1134 = vmatpush1.bf16.msra.mxu0 0
    %1135 = vmatprep.subr.bf16.mxu0 0
    %1136 = vmatpush1.bf16.msra.mxu0 0
    %1137 = vmatprep.subr.bf16.mxu0 0
    %1138 = vmatpush1.bf16.msra.mxu0 0
    %1139 = vmatprep.subr.bf16.mxu0 0
    %1140 = vmatpush1.bf16.msra.mxu0 0
    %1141 = vmatprep.mubr.bf16.mxu0 0
    %1142 = vmatmul.mubr.bf16.gmra.mrb[0].mxu0 %v1046
    %v1143 = vpop.f32.mrb[0].mxu0
    %v1144 = vadd.f32 0.0, %v1143
    %v1145 = vpop.f32.mrb[0].mxu0
    %v1146 = vadd.f32 0.0, %v1145
    %v1147 = vpop.f32.mrb[0].mxu0
    %v1148 = vadd.f32 0.0, %v1147
    %v1149 = vpop.f32.mrb[0].mxu0
    %v1150 = vadd.f32 0.0, %v1149
    %1151 = vdwg.mxu0
    %1152 = vmatprep.subr.bf16.mxu0 %v1064
    %1153 = vmatpush1.bf16.msra.mxu0 %v1061
    %1154 = vmatprep.subr.bf16.mxu0 0
    %1155 = vmatpush1.bf16.msra.mxu0 0
    %1156 = vmatprep.subr.bf16.mxu0 0
    %1157 = vmatpush1.bf16.msra.mxu0 0
    %1158 = vmatprep.subr.bf16.mxu0 0
    %1159 = vmatpush1.bf16.msra.mxu0 0
    %1160 = vmatprep.subr.bf16.mxu0 0
    %1161 = vmatpush1.bf16.msra.mxu0 0
    %1162 = vmatprep.subr.bf16.mxu0 0
    %1163 = vmatpush1.bf16.msra.mxu0 0
    %1164 = vmatprep.subr.bf16.mxu0 0
    %1165 = vmatpush1.bf16.msra.mxu0 0
    %1166 = vmatprep.subr.bf16.mxu0 0
    %1167 = vmatpush1.bf16.msra.mxu0 0
    %1168 = vmatprep.subr.bf16.mxu0 0
    %1169 = vmatpush1.bf16.msra.mxu0 0
    %1170 = vmatprep.subr.bf16.mxu0 0
    %1171 = vmatpush1.bf16.msra.mxu0 0
    %1172 = vmatprep.subr.bf16.mxu0 0
    %1173 = vmatpush1.bf16.msra.mxu0 0
    %1174 = vmatprep.subr.bf16.mxu0 0
    %1175 = vmatpush1.bf16.msra.mxu0 0
    %1176 = vmatprep.subr.bf16.mxu0 0
    %1177 = vmatpush1.bf16.msra.mxu0 0
    %1178 = vmatprep.subr.bf16.mxu0 0
    %1179 = vmatpush1.bf16.msra.mxu0 0
    %1180 = vmatprep.subr.bf16.mxu0 0
    %1181 = vmatpush1.bf16.msra.mxu0 0
    %1182 = vmatprep.subr.bf16.mxu0 0
    %1183 = vmatpush1.bf16.msra.mxu0 0
    %1184 = vmatprep.mubr.bf16.mxu0 0
    %1185 = vmatmul.mubr.bf16.gmra.mrb[0].mxu0 %v1046
    %v1186 = vpop.f32.mrb[0].mxu0
    %v1187 = vadd.f32 0.0, %v1186
    %v1188 = vpop.f32.mrb[0].mxu0
    %v1189 = vadd.f32 0.0, %v1188
    %v1190 = vpop.f32.mrb[0].mxu0
    %v1191 = vadd.f32 0.0, %v1190
    %v1192 = vpop.f32.mrb[0].mxu0
    %v1193 = vadd.f32 0.0, %v1192
    %1194 = vdwg.mxu0
    %v1196 = vsel %vm1044, %v1008, 0
    %v1199 = vsel %vm324, %v1020, 0
    %v1202 = vsel %vm324, %v1021, 0
    %v1205 = vsel %vm324, %v1022, 0
    %v1208 = vsel %vm324, %v1023, 0
    %v1211 = vsel %vm324, %v1024, 0
    %v1214 = vsel %vm324, %v1025, 0
    %1216 = vmatprep.subr.bf16.mxu0 %v1202
    %1217 = vmatpush1.bf16.msra.mxu0 %v1199
    %1218 = vmatprep.subr.bf16.mxu0 0
    %1219 = vmatpush1.bf16.msra.mxu0 0
    %1220 = vmatprep.subr.bf16.mxu0 0
    %1221 = vmatpush1.bf16.msra.mxu0 0
    %1222 = vmatprep.subr.bf16.mxu0 0
    %1223 = vmatpush1.bf16.msra.mxu0 0
    %1224 = vmatprep.subr.bf16.mxu0 0
    %1225 = vmatpush1.bf16.msra.mxu0 0
    %1226 = vmatprep.subr.bf16.mxu0 0
    %1227 = vmatpush1.bf16.msra.mxu0 0
    %1228 = vmatprep.subr.bf16.mxu0 0
    %1229 = vmatpush1.bf16.msra.mxu0 0
    %1230 = vmatprep.subr.bf16.mxu0 0
    %1231 = vmatpush1.bf16.msra.mxu0 0
    %1232 = vmatprep.subr.bf16.mxu0 0
    %1233 = vmatpush1.bf16.msra.mxu0 0
    %1234 = vmatprep.subr.bf16.mxu0 0
    %1235 = vmatpush1.bf16.msra.mxu0 0
    %1236 = vmatprep.subr.bf16.mxu0 0
    %1237 = vmatpush1.bf16.msra.mxu0 0
    %1238 = vmatprep.subr.bf16.mxu0 0
    %1239 = vmatpush1.bf16.msra.mxu0 0
    %1240 = vmatprep.subr.bf16.mxu0 0
    %1241 = vmatpush1.bf16.msra.mxu0 0
    %1242 = vmatprep.subr.bf16.mxu0 0
    %1243 = vmatpush1.bf16.msra.mxu0 0
    %1244 = vmatprep.subr.bf16.mxu0 0
    %1245 = vmatpush1.bf16.msra.mxu0 0
    %1246 = vmatprep.subr.bf16.mxu0 0
    %1247 = vmatpush1.bf16.msra.mxu0 0
    %1248 = vmatprep.mubr.bf16.mxu0 0
    %1249 = vmatmul.mubr.bf16.gmra.mrb[0].mxu0 %v1196
    %v1250 = vpop.f32.mrb[0].mxu0
    %v1251 = vadd.f32 %v1101, %v1250
    %v1252 = vpop.f32.mrb[0].mxu0
    %v1253 = vadd.f32 %v1103, %v1252
    %v1254 = vpop.f32.mrb[0].mxu0
    %v1255 = vadd.f32 %v1105, %v1254
    %v1256 = vpop.f32.mrb[0].mxu0
    %v1257 = vadd.f32 %v1107, %v1256
    %1258 = vdwg.mxu0
    %1259 = vmatprep.subr.bf16.mxu0 %v1208
    %1260 = vmatpush1.bf16.msra.mxu0 %v1205
    %1261 = vmatprep.subr.bf16.mxu0 0
    %1262 = vmatpush1.bf16.msra.mxu0 0
    %1263 = vmatprep.subr.bf16.mxu0 0
    %1264 = vmatpush1.bf16.msra.mxu0 0
    %1265 = vmatprep.subr.bf16.mxu0 0
    %1266 = vmatpush1.bf16.msra.mxu0 0
    %1267 = vmatprep.subr.bf16.mxu0 0
    %1268 = vmatpush1.bf16.msra.mxu0 0
    %1269 = vmatprep.subr.bf16.mxu0 0
    %1270 = vmatpush1.bf16.msra.mxu0 0
    %1271 = vmatprep.subr.bf16.mxu0 0
    %1272 = vmatpush1.bf16.msra.mxu0 0
    %1273 = vmatprep.subr.bf16.mxu0 0
    %1274 = vmatpush1.bf16.msra.mxu0 0
    %1275 = vmatprep.subr.bf16.mxu0 0
    %1276 = vmatpush1.bf16.msra.mxu0 0
    %1277 = vmatprep.subr.bf16.mxu0 0
    %1278 = vmatpush1.bf16.msra.mxu0 0
    %1279 = vmatprep.subr.bf16.mxu0 0
    %1280 = vmatpush1.bf16.msra.mxu0 0
    %1281 = vmatprep.subr.bf16.mxu0 0
    %1282 = vmatpush1.bf16.msra.mxu0 0
    %1283 = vmatprep.subr.bf16.mxu0 0
    %1284 = vmatpush1.bf16.msra.mxu0 0
    %1285 = vmatprep.subr.bf16.mxu0 0
    %1286 = vmatpush1.bf16.msra.mxu0 0
    %1287 = vmatprep.subr.bf16.mxu0 0
    %1288 = vmatpush1.bf16.msra.mxu0 0
    %1289 = vmatprep.subr.bf16.mxu0 0
    %1290 = vmatpush1.bf16.msra.mxu0 0
    %1291 = vmatprep.mubr.bf16.mxu0 0
    %1292 = vmatmul.mubr.bf16.gmra.mrb[0].mxu0 %v1196
    %v1293 = vpop.f32.mrb[0].mxu0
    %v1294 = vadd.f32 %v1144, %v1293
    %v1295 = vpop.f32.mrb[0].mxu0
    %v1296 = vadd.f32 %v1146, %v1295
    %v1297 = vpop.f32.mrb[0].mxu0
    %v1298 = vadd.f32 %v1148, %v1297
    %v1299 = vpop.f32.mrb[0].mxu0
    %v1300 = vadd.f32 %v1150, %v1299
    %1301 = vdwg.mxu0
    %1302 = vmatprep.subr.bf16.mxu0 %v1214
    %1303 = vmatpush1.bf16.msra.mxu0 %v1211
    %1304 = vmatprep.subr.bf16.mxu0 0
    %1305 = vmatpush1.bf16.msra.mxu0 0
    %1306 = vmatprep.subr.bf16.mxu0 0
    %1307 = vmatpush1.bf16.msra.mxu0 0
    %1308 = vmatprep.subr.bf16.mxu0 0
    %1309 = vmatpush1.bf16.msra.mxu0 0
    %1310 = vmatprep.subr.bf16.mxu0 0
    %1311 = vmatpush1.bf16.msra.mxu0 0
    %1312 = vmatprep.subr.bf16.mxu0 0
    %1313 = vmatpush1.bf16.msra.mxu0 0
    %1314 = vmatprep.subr.bf16.mxu0 0
    %1315 = vmatpush1.bf16.msra.mxu0 0
    %1316 = vmatprep.subr.bf16.mxu0 0
    %1317 = vmatpush1.bf16.msra.mxu0 0
    %1318 = vmatprep.subr.bf16.mxu0 0
    %1319 = vmatpush1.bf16.msra.mxu0 0
    %1320 = vmatprep.subr.bf16.mxu0 0
    %1321 = vmatpush1.bf16.msra.mxu0 0
    %1322 = vmatprep.subr.bf16.mxu0 0
    %1323 = vmatpush1.bf16.msra.mxu0 0
    %1324 = vmatprep.subr.bf16.mxu0 0
    %1325 = vmatpush1.bf16.msra.mxu0 0
    %1326 = vmatprep.subr.bf16.mxu0 0
    %1327 = vmatpush1.bf16.msra.mxu0 0
    %1328 = vmatprep.subr.bf16.mxu0 0
    %1329 = vmatpush1.bf16.msra.mxu0 0
    %1330 = vmatprep.subr.bf16.mxu0 0
    %1331 = vmatpush1.bf16.msra.mxu0 0
    %1332 = vmatprep.subr.bf16.mxu0 0
    %1333 = vmatpush1.bf16.msra.mxu0 0
    %1334 = vmatprep.mubr.bf16.mxu0 0
    %1335 = vmatmul.mubr.bf16.gmra.mrb[0].mxu0 %v1196
    %v1336 = vpop.f32.mrb[0].mxu0
    %v1337 = vadd.f32 %v1187, %v1336
    %v1338 = vpop.f32.mrb[0].mxu0
    %v1339 = vadd.f32 %v1189, %v1338
    %v1340 = vpop.f32.mrb[0].mxu0
    %v1341 = vadd.f32 %v1191, %v1340
    %v1342 = vpop.f32.mrb[0].mxu0
    %v1343 = vadd.f32 %v1193, %v1342
    %1344 = vdwg.mxu0
    %1345 = vrot.lane.b32.xlu0 %v1008, 112
    %v1346 = vpop.permute.xlu0 %1345
    %1347 = vrot.lane.b32.xlu0 %v1020, 126
    %v1348 = vpop.permute.xlu0 %1347
    %1349 = vrot.lane.b32.xlu0 %v1021, 126
    %v1350 = vpop.permute.xlu0 %1349
    %1351 = vrot.lane.b32.xlu0 %v1022, 126
    %v1352 = vpop.permute.xlu0 %1351
    %1353 = vrot.lane.b32.xlu0 %v1023, 126
    %v1354 = vpop.permute.xlu0 %1353
    %1355 = vrot.lane.b32.xlu0 %v1024, 126
    %v1356 = vpop.permute.xlu0 %1355
    %1357 = vrot.lane.b32.xlu0 %v1025, 126
    %v1358 = vpop.permute.xlu0 %1357
    %vm1359 = vcmask 1031168
    %v1360 = vsel %vm1359, %v1348, %v1350
    %v1361 = vsel %vm1359, %v1350, %v1352
    %v1362 = vsel %vm1359, %v1352, %v1354
    %v1363 = vsel %vm1359, %v1354, %v1356
    %v1364 = vsel %vm1359, %v1356, %v1358
    %v1366 = vsel %vm1044, %v1346, 0
    %v1369 = vsel %vm324, %v1360, 0
    %v1372 = vsel %vm324, %v1361, 0
    %v1375 = vsel %vm324, %v1362, 0
    %v1378 = vsel %vm324, %v1363, 0
    %v1381 = vsel %vm324, %v1364, 0
    %v1384 = vsel %vm324, %v1358, 0
    %1386 = vmatprep.subr.bf16.mxu0 %v1372
    %1387 = vmatpush1.bf16.msra.mxu0 %v1369
    %1388 = vmatprep.subr.bf16.mxu0 0
    %1389 = vmatpush1.bf16.msra.mxu0 0
    %1390 = vmatprep.subr.bf16.mxu0 0
    %1391 = vmatpush1.bf16.msra.mxu0 0
    %1392 = vmatprep.subr.bf16.mxu0 0
    %1393 = vmatpush1.bf16.msra.mxu0 0
    %1394 = vmatprep.subr.bf16.mxu0 0
    %1395 = vmatpush1.bf16.msra.mxu0 0
    %1396 = vmatprep.subr.bf16.mxu0 0
    %1397 = vmatpush1.bf16.msra.mxu0 0
    %1398 = vmatprep.subr.bf16.mxu0 0
    %1399 = vmatpush1.bf16.msra.mxu0 0
    %1400 = vmatprep.subr.bf16.mxu0 0
    %1401 = vmatpush1.bf16.msra.mxu0 0
    %1402 = vmatprep.subr.bf16.mxu0 0
    %1403 = vmatpush1.bf16.msra.mxu0 0
    %1404 = vmatprep.subr.bf16.mxu0 0
    %1405 = vmatpush1.bf16.msra.mxu0 0
    %1406 = vmatprep.subr.bf16.mxu0 0
    %1407 = vmatpush1.bf16.msra.mxu0 0
    %1408 = vmatprep.subr.bf16.mxu0 0
    %1409 = vmatpush1.bf16.msra.mxu0 0
    %1410 = vmatprep.subr.bf16.mxu0 0
    %1411 = vmatpush1.bf16.msra.mxu0 0
    %1412 = vmatprep.subr.bf16.mxu0 0
    %1413 = vmatpush1.bf16.msra.mxu0 0
    %1414 = vmatprep.subr.bf16.mxu0 0
    %1415 = vmatpush1.bf16.msra.mxu0 0
    %1416 = vmatprep.subr.bf16.mxu0 0
    %1417 = vmatpush1.bf16.msra.mxu0 0
    %1418 = vmatprep.mubr.bf16.mxu0 0
    %1419 = vmatmul.mubr.bf16.gmra.mrb[0].mxu0 %v1366
    %v1420 = vpop.f32.mrb[0].mxu0
    %v1421 = vadd.f32 0.0, %v1420
    %v1422 = vpop.f32.mrb[0].mxu0
    %v1423 = vadd.f32 0.0, %v1422
    %v1424 = vpop.f32.mrb[0].mxu0
    %v1425 = vadd.f32 0.0, %v1424
    %v1426 = vpop.f32.mrb[0].mxu0
    %v1427 = vadd.f32 0.0, %v1426
    %1428 = vdwg.mxu0
    %1429 = vmatprep.subr.bf16.mxu0 %v1378
    %1430 = vmatpush1.bf16.msra.mxu0 %v1375
    %1431 = vmatprep.subr.bf16.mxu0 0
    %1432 = vmatpush1.bf16.msra.mxu0 0
    %1433 = vmatprep.subr.bf16.mxu0 0
    %1434 = vmatpush1.bf16.msra.mxu0 0
    %1435 = vmatprep.subr.bf16.mxu0 0
    %1436 = vmatpush1.bf16.msra.mxu0 0
    %1437 = vmatprep.subr.bf16.mxu0 0
    %1438 = vmatpush1.bf16.msra.mxu0 0
    %1439 = vmatprep.subr.bf16.mxu0 0
    %1440 = vmatpush1.bf16.msra.mxu0 0
    %1441 = vmatprep.subr.bf16.mxu0 0
    %1442 = vmatpush1.bf16.msra.mxu0 0
    %1443 = vmatprep.subr.bf16.mxu0 0
    %1444 = vmatpush1.bf16.msra.mxu0 0
    %1445 = vmatprep.subr.bf16.mxu0 0
    %1446 = vmatpush1.bf16.msra.mxu0 0
    %1447 = vmatprep.subr.bf16.mxu0 0
    %1448 = vmatpush1.bf16.msra.mxu0 0
    %1449 = vmatprep.subr.bf16.mxu0 0
    %1450 = vmatpush1.bf16.msra.mxu0 0
    %1451 = vmatprep.subr.bf16.mxu0 0
    %1452 = vmatpush1.bf16.msra.mxu0 0
    %1453 = vmatprep.subr.bf16.mxu0 0
    %1454 = vmatpush1.bf16.msra.mxu0 0
    %1455 = vmatprep.subr.bf16.mxu0 0
    %1456 = vmatpush1.bf16.msra.mxu0 0
    %1457 = vmatprep.subr.bf16.mxu0 0
    %1458 = vmatpush1.bf16.msra.mxu0 0
    %1459 = vmatprep.subr.bf16.mxu0 0
    %1460 = vmatpush1.bf16.msra.mxu0 0
    %1461 = vmatprep.mubr.bf16.mxu0 0
    %1462 = vmatmul.mubr.bf16.gmra.mrb[0].mxu0 %v1366
    %v1463 = vpop.f32.mrb[0].mxu0
    %v1464 = vadd.f32 0.0, %v1463
    %v1465 = vpop.f32.mrb[0].mxu0
    %v1466 = vadd.f32 0.0, %v1465
    %v1467 = vpop.f32.mrb[0].mxu0
    %v1468 = vadd.f32 0.0, %v1467
    %v1469 = vpop.f32.mrb[0].mxu0
    %v1470 = vadd.f32 0.0, %v1469
    %1471 = vdwg.mxu0
    %1472 = vmatprep.subr.bf16.mxu0 %v1384
    %1473 = vmatpush1.bf16.msra.mxu0 %v1381
    %1474 = vmatprep.subr.bf16.mxu0 0
    %1475 = vmatpush1.bf16.msra.mxu0 0
    %1476 = vmatprep.subr.bf16.mxu0 0
    %1477 = vmatpush1.bf16.msra.mxu0 0
    %1478 = vmatprep.subr.bf16.mxu0 0
    %1479 = vmatpush1.bf16.msra.mxu0 0
    %1480 = vmatprep.subr.bf16.mxu0 0
    %1481 = vmatpush1.bf16.msra.mxu0 0
    %1482 = vmatprep.subr.bf16.mxu0 0
    %1483 = vmatpush1.bf16.msra.mxu0 0
    %1484 = vmatprep.subr.bf16.mxu0 0
    %1485 = vmatpush1.bf16.msra.mxu0 0
    %1486 = vmatprep.subr.bf16.mxu0 0
    %1487 = vmatpush1.bf16.msra.mxu0 0
    %1488 = vmatprep.subr.bf16.mxu0 0
    %1489 = vmatpush1.bf16.msra.mxu0 0
    %1490 = vmatprep.subr.bf16.mxu0 0
    %1491 = vmatpush1.bf16.msra.mxu0 0
    %1492 = vmatprep.subr.bf16.mxu0 0
    %1493 = vmatpush1.bf16.msra.mxu0 0
    %1494 = vmatprep.subr.bf16.mxu0 0
    %1495 = vmatpush1.bf16.msra.mxu0 0
    %1496 = vmatprep.subr.bf16.mxu0 0
    %1497 = vmatpush1.bf16.msra.mxu0 0
    %1498 = vmatprep.subr.bf16.mxu0 0
    %1499 = vmatpush1.bf16.msra.mxu0 0
    %1500 = vmatprep.subr.bf16.mxu0 0
    %1501 = vmatpush1.bf16.msra.mxu0 0
    %1502 = vmatprep.subr.bf16.mxu0 0
    %1503 = vmatpush1.bf16.msra.mxu0 0
    %1504 = vmatprep.mubr.bf16.mxu0 0
    %1505 = vmatmul.mubr.bf16.gmra.mrb[0].mxu0 %v1366
    %v1506 = vpop.f32.mrb[0].mxu0
    %v1507 = vadd.f32 0.0, %v1506
    %v1508 = vpop.f32.mrb[0].mxu0
    %v1509 = vadd.f32 0.0, %v1508
    %v1510 = vpop.f32.mrb[0].mxu0
    %v1511 = vadd.f32 0.0, %v1510
    %v1512 = vpop.f32.mrb[0].mxu0
    %v1513 = vadd.f32 0.0, %v1512
    %1514 = vdwg.mxu0
    %v1515 = vadd.f32 %v1251, %v1421
    %v1516 = vadd.f32 %v1253, %v1423
    %v1517 = vadd.f32 %v1294, %v1464
    %v1518 = vadd.f32 %v1296, %v1466
    %v1519 = vadd.f32 %v1337, %v1507
    %v1520 = vadd.f32 %v1339, %v1509
    %v1521 = vadd.f32 %v1255, %v1425
    %v1522 = vadd.f32 %v1257, %v1427
    %v1523 = vadd.f32 %v1298, %v1468
    %v1524 = vadd.f32 %v1300, %v1470
    %v1525 = vadd.f32 %v1341, %v1511
    %v1526 = vadd.f32 %v1343, %v1513
    %1527 = vrot.lane.b32.xlu0 %v1008, 104
    %v1528 = vpop.permute.xlu0 %1527
    %1529 = vrot.lane.b32.xlu0 %v1020, 125
    %v1530 = vpop.permute.xlu0 %1529
    %1531 = vrot.lane.b32.xlu0 %v1021, 125
    %v1532 = vpop.permute.xlu0 %1531
    %1533 = vrot.lane.b32.xlu0 %v1022, 125
    %v1534 = vpop.permute.xlu0 %1533
    %1535 = vrot.lane.b32.xlu0 %v1023, 125
    %v1536 = vpop.permute.xlu0 %1535
    %1537 = vrot.lane.b32.xlu0 %v1024, 125
    %v1538 = vpop.permute.xlu0 %1537
    %1539 = vrot.lane.b32.xlu0 %v1025, 125
    %v1540 = vpop.permute.xlu0 %1539
    %vm1541 = vcmask 1022976
    %v1542 = vsel %vm1541, %v1530, %v1532
    %v1543 = vsel %vm1541, %v1532, %v1534
    %v1544 = vsel %vm1541, %v1534, %v1536
    %v1545 = vsel %vm1541, %v1536, %v1538
    %v1546 = vsel %vm1541, %v1538, %v1540
    %v1548 = vsel %vm1044, %v1528, 0
    %v1551 = vsel %vm324, %v1542, 0
    %v1554 = vsel %vm324, %v1543, 0
    %v1557 = vsel %vm324, %v1544, 0
    %v1560 = vsel %vm324, %v1545, 0
    %v1563 = vsel %vm324, %v1546, 0
    %v1566 = vsel %vm324, %v1540, 0
    %1568 = vmatprep.subr.bf16.mxu0 %v1554
    %1569 = vmatpush1.bf16.msra.mxu0 %v1551
    %1570 = vmatprep.subr.bf16.mxu0 0
    %1571 = vmatpush1.bf16.msra.mxu0 0
    %1572 = vmatprep.subr.bf16.mxu0 0
    %1573 = vmatpush1.bf16.msra.mxu0 0
    %1574 = vmatprep.subr.bf16.mxu0 0
    %1575 = vmatpush1.bf16.msra.mxu0 0
    %1576 = vmatprep.subr.bf16.mxu0 0
    %1577 = vmatpush1.bf16.msra.mxu0 0
    %1578 = vmatprep.subr.bf16.mxu0 0
    %1579 = vmatpush1.bf16.msra.mxu0 0
    %1580 = vmatprep.subr.bf16.mxu0 0
    %1581 = vmatpush1.bf16.msra.mxu0 0
    %1582 = vmatprep.subr.bf16.mxu0 0
    %1583 = vmatpush1.bf16.msra.mxu0 0
    %1584 = vmatprep.subr.bf16.mxu0 0
    %1585 = vmatpush1.bf16.msra.mxu0 0
    %1586 = vmatprep.subr.bf16.mxu0 0
    %1587 = vmatpush1.bf16.msra.mxu0 0
    %1588 = vmatprep.subr.bf16.mxu0 0
    %1589 = vmatpush1.bf16.msra.mxu0 0
    %1590 = vmatprep.subr.bf16.mxu0 0
    %1591 = vmatpush1.bf16.msra.mxu0 0
    %1592 = vmatprep.subr.bf16.mxu0 0
    %1593 = vmatpush1.bf16.msra.mxu0 0
    %1594 = vmatprep.subr.bf16.mxu0 0
    %1595 = vmatpush1.bf16.msra.mxu0 0
    %1596 = vmatprep.subr.bf16.mxu0 0
    %1597 = vmatpush1.bf16.msra.mxu0 0
    %1598 = vmatprep.subr.bf16.mxu0 0
    %1599 = vmatpush1.bf16.msra.mxu0 0
    %1600 = vmatprep.mubr.bf16.mxu0 0
    %1601 = vmatmul.mubr.bf16.gmra.mrb[0].mxu0 %v1548
    %v1602 = vpop.f32.mrb[0].mxu0
    %v1603 = vadd.f32 0.0, %v1602
    %v1604 = vpop.f32.mrb[0].mxu0
    %v1605 = vadd.f32 0.0, %v1604
    %v1606 = vpop.f32.mrb[0].mxu0
    %v1607 = vadd.f32 0.0, %v1606
    %v1608 = vpop.f32.mrb[0].mxu0
    %v1609 = vadd.f32 0.0, %v1608
    %1610 = vdwg.mxu0
    %1611 = vmatprep.subr.bf16.mxu0 %v1560
    %1612 = vmatpush1.bf16.msra.mxu0 %v1557
    %1613 = vmatprep.subr.bf16.mxu0 0
    %1614 = vmatpush1.bf16.msra.mxu0 0
    %1615 = vmatprep.subr.bf16.mxu0 0
    %1616 = vmatpush1.bf16.msra.mxu0 0
    %1617 = vmatprep.subr.bf16.mxu0 0
    %1618 = vmatpush1.bf16.msra.mxu0 0
    %1619 = vmatprep.subr.bf16.mxu0 0
    %1620 = vmatpush1.bf16.msra.mxu0 0
    %1621 = vmatprep.subr.bf16.mxu0 0
    %1622 = vmatpush1.bf16.msra.mxu0 0
    %1623 = vmatprep.subr.bf16.mxu0 0
    %1624 = vmatpush1.bf16.msra.mxu0 0
    %1625 = vmatprep.subr.bf16.mxu0 0
    %1626 = vmatpush1.bf16.msra.mxu0 0
    %1627 = vmatprep.subr.bf16.mxu0 0
    %1628 = vmatpush1.bf16.msra.mxu0 0
    %1629 = vmatprep.subr.bf16.mxu0 0
    %1630 = vmatpush1.bf16.msra.mxu0 0
    %1631 = vmatprep.subr.bf16.mxu0 0
    %1632 = vmatpush1.bf16.msra.mxu0 0
    %1633 = vmatprep.subr.bf16.mxu0 0
    %1634 = vmatpush1.bf16.msra.mxu0 0
    %1635 = vmatprep.subr.bf16.mxu0 0
    %1636 = vmatpush1.bf16.msra.mxu0 0
    %1637 = vmatprep.subr.bf16.mxu0 0
    %1638 = vmatpush1.bf16.msra.mxu0 0
    %1639 = vmatprep.subr.bf16.mxu0 0
    %1640 = vmatpush1.bf16.msra.mxu0 0
    %1641 = vmatprep.subr.bf16.mxu0 0
    %1642 = vmatpush1.bf16.msra.mxu0 0
    %1643 = vmatprep.mubr.bf16.mxu0 0
    %1644 = vmatmul.mubr.bf16.gmra.mrb[0].mxu0 %v1548
    %v1645 = vpop.f32.mrb[0].mxu0
    %v1646 = vadd.f32 0.0, %v1645
    %v1647 = vpop.f32.mrb[0].mxu0
    %v1648 = vadd.f32 0.0, %v1647
    %v1649 = vpop.f32.mrb[0].mxu0
    %v1650 = vadd.f32 0.0, %v1649
    %v1651 = vpop.f32.mrb[0].mxu0
    %v1652 = vadd.f32 0.0, %v1651
    %1653 = vdwg.mxu0
    %1654 = vmatprep.subr.bf16.mxu0 %v1566
    %1655 = vmatpush1.bf16.msra.mxu0 %v1563
    %1656 = vmatprep.subr.bf16.mxu0 0
    %1657 = vmatpush1.bf16.msra.mxu0 0
    %1658 = vmatprep.subr.bf16.mxu0 0
    %1659 = vmatpush1.bf16.msra.mxu0 0
    %1660 = vmatprep.subr.bf16.mxu0 0
    %1661 = vmatpush1.bf16.msra.mxu0 0
    %1662 = vmatprep.subr.bf16.mxu0 0
    %1663 = vmatpush1.bf16.msra.mxu0 0
    %1664 = vmatprep.subr.bf16.mxu0 0
    %1665 = vmatpush1.bf16.msra.mxu0 0
    %1666 = vmatprep.subr.bf16.mxu0 0
    %1667 = vmatpush1.bf16.msra.mxu0 0
    %1668 = vmatprep.subr.bf16.mxu0 0
    %1669 = vmatpush1.bf16.msra.mxu0 0
    %1670 = vmatprep.subr.bf16.mxu0 0
    %1671 = vmatpush1.bf16.msra.mxu0 0
    %1672 = vmatprep.subr.bf16.mxu0 0
    %1673 = vmatpush1.bf16.msra.mxu0 0
    %1674 = vmatprep.subr.bf16.mxu0 0
    %1675 = vmatpush1.bf16.msra.mxu0 0
    %1676 = vmatprep.subr.bf16.mxu0 0
    %1677 = vmatpush1.bf16.msra.mxu0 0
    %1678 = vmatprep.subr.bf16.mxu0 0
    %1679 = vmatpush1.bf16.msra.mxu0 0
    %1680 = vmatprep.subr.bf16.mxu0 0
    %1681 = vmatpush1.bf16.msra.mxu0 0
    %1682 = vmatprep.subr.bf16.mxu0 0
    %1683 = vmatpush1.bf16.msra.mxu0 0
    %1684 = vmatprep.subr.bf16.mxu0 0
    %1685 = vmatpush1.bf16.msra.mxu0 0
    %1686 = vmatprep.mubr.bf16.mxu0 0
    %1687 = vmatmul.mubr.bf16.gmra.mrb[0].mxu0 %v1548
    %v1688 = vpop.f32.mrb[0].mxu0
    %v1689 = vadd.f32 0.0, %v1688
    %v1690 = vpop.f32.mrb[0].mxu0
    %v1691 = vadd.f32 0.0, %v1690
    %v1692 = vpop.f32.mrb[0].mxu0
    %v1693 = vadd.f32 0.0, %v1692
    %v1694 = vpop.f32.mrb[0].mxu0
    %v1695 = vadd.f32 0.0, %v1694
    %1696 = vdwg.mxu0
    %v1697 = vadd.f32 %v1515, %v1603
    %v1698 = vadd.f32 %v1516, %v1605
    %v1699 = vadd.f32 %v1517, %v1646
    %v1700 = vadd.f32 %v1518, %v1648
    %v1701 = vadd.f32 %v1519, %v1689
    %v1702 = vadd.f32 %v1520, %v1691
    %v1703 = vadd.f32 %v1521, %v1607
    %v1704 = vadd.f32 %v1522, %v1609
    %v1705 = vadd.f32 %v1523, %v1650
    %v1706 = vadd.f32 %v1524, %v1652
    %v1707 = vadd.f32 %v1525, %v1693
    %v1708 = vadd.f32 %v1526, %v1695
    %1709 = vrot.lane.b32.xlu0 %v1008, 96
    %v1710 = vpop.permute.xlu0 %1709
    %1711 = vrot.lane.b32.xlu0 %v1020, 124
    %v1712 = vpop.permute.xlu0 %1711
    %1713 = vrot.lane.b32.xlu0 %v1021, 124
    %v1714 = vpop.permute.xlu0 %1713
    %1715 = vrot.lane.b32.xlu0 %v1022, 124
    %v1716 = vpop.permute.xlu0 %1715
    %1717 = vrot.lane.b32.xlu0 %v1023, 124
    %v1718 = vpop.permute.xlu0 %1717
    %1719 = vrot.lane.b32.xlu0 %v1024, 124
    %v1720 = vpop.permute.xlu0 %1719
    %1721 = vrot.lane.b32.xlu0 %v1025, 124
    %v1722 = vpop.permute.xlu0 %1721
    %vm1723 = vcmask 1014784
    %v1724 = vsel %vm1723, %v1712, %v1714
    %v1725 = vsel %vm1723, %v1714, %v1716
    %v1726 = vsel %vm1723, %v1716, %v1718
    %v1727 = vsel %vm1723, %v1718, %v1720
    %v1728 = vsel %vm1723, %v1720, %v1722
    %v1730 = vsel %vm1044, %v1710, 0
    %v1733 = vsel %vm324, %v1724, 0
    %v1736 = vsel %vm324, %v1725, 0
    %v1739 = vsel %vm324, %v1726, 0
    %v1742 = vsel %vm324, %v1727, 0
    %v1745 = vsel %vm324, %v1728, 0
    %v1748 = vsel %vm324, %v1722, 0
    %1750 = vmatprep.subr.bf16.mxu0 %v1736
    %1751 = vmatpush1.bf16.msra.mxu0 %v1733
    %1752 = vmatprep.subr.bf16.mxu0 0
    %1753 = vmatpush1.bf16.msra.mxu0 0
    %1754 = vmatprep.subr.bf16.mxu0 0
    %1755 = vmatpush1.bf16.msra.mxu0 0
    %1756 = vmatprep.subr.bf16.mxu0 0
    %1757 = vmatpush1.bf16.msra.mxu0 0
    %1758 = vmatprep.subr.bf16.mxu0 0
    %1759 = vmatpush1.bf16.msra.mxu0 0
    %1760 = vmatprep.subr.bf16.mxu0 0
    %1761 = vmatpush1.bf16.msra.mxu0 0
    %1762 = vmatprep.subr.bf16.mxu0 0
    %1763 = vmatpush1.bf16.msra.mxu0 0
    %1764 = vmatprep.subr.bf16.mxu0 0
    %1765 = vmatpush1.bf16.msra.mxu0 0
    %1766 = vmatprep.subr.bf16.mxu0 0
    %1767 = vmatpush1.bf16.msra.mxu0 0
    %1768 = vmatprep.subr.bf16.mxu0 0
    %1769 = vmatpush1.bf16.msra.mxu0 0
    %1770 = vmatprep.subr.bf16.mxu0 0
    %1771 = vmatpush1.bf16.msra.mxu0 0
    %1772 = vmatprep.subr.bf16.mxu0 0
    %1773 = vmatpush1.bf16.msra.mxu0 0
    %1774 = vmatprep.subr.bf16.mxu0 0
    %1775 = vmatpush1.bf16.msra.mxu0 0
    %1776 = vmatprep.subr.bf16.mxu0 0
    %1777 = vmatpush1.bf16.msra.mxu0 0
    %1778 = vmatprep.subr.bf16.mxu0 0
    %1779 = vmatpush1.bf16.msra.mxu0 0
    %1780 = vmatprep.subr.bf16.mxu0 0
    %1781 = vmatpush1.bf16.msra.mxu0 0
    %1782 = vmatprep.mubr.bf16.mxu0 0
    %1783 = vmatmul.mubr.bf16.gmra.mrb[0].mxu0 %v1730
    %v1784 = vpop.f32.mrb[0].mxu0
    %v1785 = vadd.f32 0.0, %v1784
    %v1786 = vpop.f32.mrb[0].mxu0
    %v1787 = vadd.f32 0.0, %v1786
    %v1788 = vpop.f32.mrb[0].mxu0
    %v1789 = vadd.f32 0.0, %v1788
    %v1790 = vpop.f32.mrb[0].mxu0
    %v1791 = vadd.f32 0.0, %v1790
    %1792 = vdwg.mxu0
    %1793 = vmatprep.subr.bf16.mxu0 %v1742
    %1794 = vmatpush1.bf16.msra.mxu0 %v1739
    %1795 = vmatprep.subr.bf16.mxu0 0
    %1796 = vmatpush1.bf16.msra.mxu0 0
    %1797 = vmatprep.subr.bf16.mxu0 0
    %1798 = vmatpush1.bf16.msra.mxu0 0
    %1799 = vmatprep.subr.bf16.mxu0 0
    %1800 = vmatpush1.bf16.msra.mxu0 0
    %1801 = vmatprep.subr.bf16.mxu0 0
    %1802 = vmatpush1.bf16.msra.mxu0 0
    %1803 = vmatprep.subr.bf16.mxu0 0
    %1804 = vmatpush1.bf16.msra.mxu0 0
    %1805 = vmatprep.subr.bf16.mxu0 0
    %1806 = vmatpush1.bf16.msra.mxu0 0
    %1807 = vmatprep.subr.bf16.mxu0 0
    %1808 = vmatpush1.bf16.msra.mxu0 0
    %1809 = vmatprep.subr.bf16.mxu0 0
    %1810 = vmatpush1.bf16.msra.mxu0 0
    %1811 = vmatprep.subr.bf16.mxu0 0
    %1812 = vmatpush1.bf16.msra.mxu0 0
    %1813 = vmatprep.subr.bf16.mxu0 0
    %1814 = vmatpush1.bf16.msra.mxu0 0
    %1815 = vmatprep.subr.bf16.mxu0 0
    %1816 = vmatpush1.bf16.msra.mxu0 0
    %1817 = vmatprep.subr.bf16.mxu0 0
    %1818 = vmatpush1.bf16.msra.mxu0 0
    %1819 = vmatprep.subr.bf16.mxu0 0
    %1820 = vmatpush1.bf16.msra.mxu0 0
    %1821 = vmatprep.subr.bf16.mxu0 0
    %1822 = vmatpush1.bf16.msra.mxu0 0
    %1823 = vmatprep.subr.bf16.mxu0 0
    %1824 = vmatpush1.bf16.msra.mxu0 0
    %1825 = vmatprep.mubr.bf16.mxu0 0
    %1826 = vmatmul.mubr.bf16.gmra.mrb[0].mxu0 %v1730
    %v1827 = vpop.f32.mrb[0].mxu0
    %v1828 = vadd.f32 0.0, %v1827
    %v1829 = vpop.f32.mrb[0].mxu0
    %v1830 = vadd.f32 0.0, %v1829
    %v1831 = vpop.f32.mrb[0].mxu0
    %v1832 = vadd.f32 0.0, %v1831
    %v1833 = vpop.f32.mrb[0].mxu0
    %v1834 = vadd.f32 0.0, %v1833
    %1835 = vdwg.mxu0
    %1836 = vmatprep.subr.bf16.mxu0 %v1748
    %1837 = vmatpush1.bf16.msra.mxu0 %v1745
    %1838 = vmatprep.subr.bf16.mxu0 0
    %1839 = vmatpush1.bf16.msra.mxu0 0
    %1840 = vmatprep.subr.bf16.mxu0 0
    %1841 = vmatpush1.bf16.msra.mxu0 0
    %1842 = vmatprep.subr.bf16.mxu0 0
    %1843 = vmatpush1.bf16.msra.mxu0 0
    %1844 = vmatprep.subr.bf16.mxu0 0
    %1845 = vmatpush1.bf16.msra.mxu0 0
    %1846 = vmatprep.subr.bf16.mxu0 0
    %1847 = vmatpush1.bf16.msra.mxu0 0
    %1848 = vmatprep.subr.bf16.mxu0 0
    %1849 = vmatpush1.bf16.msra.mxu0 0
    %1850 = vmatprep.subr.bf16.mxu0 0
    %1851 = vmatpush1.bf16.msra.mxu0 0
    %1852 = vmatprep.subr.bf16.mxu0 0
    %1853 = vmatpush1.bf16.msra.mxu0 0
    %1854 = vmatprep.subr.bf16.mxu0 0
    %1855 = vmatpush1.bf16.msra.mxu0 0
    %1856 = vmatprep.subr.bf16.mxu0 0
    %1857 = vmatpush1.bf16.msra.mxu0 0
    %1858 = vmatprep.subr.bf16.mxu0 0
    %1859 = vmatpush1.bf16.msra.mxu0 0
    %1860 = vmatprep.subr.bf16.mxu0 0
    %1861 = vmatpush1.bf16.msra.mxu0 0
    %1862 = vmatprep.subr.bf16.mxu0 0
    %1863 = vmatpush1.bf16.msra.mxu0 0
    %1864 = vmatprep.subr.bf16.mxu0 0
    %1865 = vmatpush1.bf16.msra.mxu0 0
    %1866 = vmatprep.subr.bf16.mxu0 0
    %1867 = vmatpush1.bf16.msra.mxu0 0
    %1868 = vmatprep.mubr.bf16.mxu0 0
    %1869 = vmatmul.mubr.bf16.gmra.mrb[0].mxu0 %v1730
    %v1870 = vpop.f32.mrb[0].mxu0
    %v1871 = vadd.f32 0.0, %v1870
    %v1872 = vpop.f32.mrb[0].mxu0
    %v1873 = vadd.f32 0.0, %v1872
    %v1874 = vpop.f32.mrb[0].mxu0
    %v1875 = vadd.f32 0.0, %v1874
    %v1876 = vpop.f32.mrb[0].mxu0
    %v1877 = vadd.f32 0.0, %v1876
    %1878 = vdwg.mxu0
    %v1879 = vadd.f32 %v1697, %v1785
    %v1880 = vadd.f32 %v1698, %v1787
    %v1881 = vadd.f32 %v1699, %v1828
    %v1882 = vadd.f32 %v1700, %v1830
    %v1883 = vadd.f32 %v1701, %v1871
    %v1884 = vadd.f32 %v1702, %v1873
    %v1885 = vadd.f32 %v1703, %v1789
    %v1886 = vadd.f32 %v1704, %v1791
    %v1887 = vadd.f32 %v1705, %v1832
    %v1888 = vadd.f32 %v1706, %v1834
    %v1889 = vadd.f32 %v1707, %v1875
    %v1890 = vadd.f32 %v1708, %v1877
    %1891 = vrot.lane.b32.xlu0 %v1008, 88
    %v1892 = vpop.permute.xlu0 %1891
    %1893 = vrot.lane.b32.xlu0 %v1020, 110
    %v1894 = vpop.permute.xlu0 %1893
    %1895 = vrot.lane.b32.xlu0 %v1021, 110
    %v1896 = vpop.permute.xlu0 %1895
    %1897 = vrot.lane.b32.xlu0 %v1022, 110
    %v1898 = vpop.permute.xlu0 %1897
    %1899 = vrot.lane.b32.xlu0 %v1023, 110
    %v1900 = vpop.permute.xlu0 %1899
    %1901 = vrot.lane.b32.xlu0 %v1024, 110
    %v1902 = vpop.permute.xlu0 %1901
    %1903 = vrot.lane.b32.xlu0 %v1025, 110
    %v1904 = vpop.permute.xlu0 %1903
    %vm1905 = vcmask 900096
    %v1906 = vsel %vm1905, %v1894, %v1896
    %v1907 = vsel %vm1905, %v1896, %v1898
    %v1908 = vsel %vm1905, %v1898, %v1900
    %v1909 = vsel %vm1905, %v1900, %v1902
    %v1910 = vsel %vm1905, %v1902, %v1904
    %v1912 = vsel %vm1044, %v1892, 0
    %v1915 = vsel %vm324, %v1906, 0
    %v1918 = vsel %vm324, %v1907, 0
    %v1921 = vsel %vm324, %v1908, 0
    %v1924 = vsel %vm324, %v1909, 0
    %v1927 = vsel %vm324, %v1910, 0
    %v1930 = vsel %vm324, %v1904, 0
    %1932 = vmatprep.subr.bf16.mxu0 %v1918
    %1933 = vmatpush1.bf16.msra.mxu0 %v1915
    %1934 = vmatprep.subr.bf16.mxu0 0
    %1935 = vmatpush1.bf16.msra.mxu0 0
    %1936 = vmatprep.subr.bf16.mxu0 0
    %1937 = vmatpush1.bf16.msra.mxu0 0
    %1938 = vmatprep.subr.bf16.mxu0 0
    %1939 = vmatpush1.bf16.msra.mxu0 0
    %1940 = vmatprep.subr.bf16.mxu0 0
    %1941 = vmatpush1.bf16.msra.mxu0 0
    %1942 = vmatprep.subr.bf16.mxu0 0
    %1943 = vmatpush1.bf16.msra.mxu0 0
    %1944 = vmatprep.subr.bf16.mxu0 0
    %1945 = vmatpush1.bf16.msra.mxu0 0
    %1946 = vmatprep.subr.bf16.mxu0 0
    %1947 = vmatpush1.bf16.msra.mxu0 0
    %1948 = vmatprep.subr.bf16.mxu0 0
    %1949 = vmatpush1.bf16.msra.mxu0 0
    %1950 = vmatprep.subr.bf16.mxu0 0
    %1951 = vmatpush1.bf16.msra.mxu0 0
    %1952 = vmatprep.subr.bf16.mxu0 0
    %1953 = vmatpush1.bf16.msra.mxu0 0
    %1954 = vmatprep.subr.bf16.mxu0 0
    %1955 = vmatpush1.bf16.msra.mxu0 0
    %1956 = vmatprep.subr.bf16.mxu0 0
    %1957 = vmatpush1.bf16.msra.mxu0 0
    %1958 = vmatprep.subr.bf16.mxu0 0
    %1959 = vmatpush1.bf16.msra.mxu0 0
    %1960 = vmatprep.subr.bf16.mxu0 0
    %1961 = vmatpush1.bf16.msra.mxu0 0
    %1962 = vmatprep.subr.bf16.mxu0 0
    %1963 = vmatpush1.bf16.msra.mxu0 0
    %1964 = vmatprep.mubr.bf16.mxu0 0
    %1965 = vmatmul.mubr.bf16.gmra.mrb[0].mxu0 %v1912
    %v1966 = vpop.f32.mrb[0].mxu0
    %v1967 = vadd.f32 0.0, %v1966
    %v1968 = vpop.f32.mrb[0].mxu0
    %v1969 = vadd.f32 0.0, %v1968
    %v1970 = vpop.f32.mrb[0].mxu0
    %v1971 = vadd.f32 0.0, %v1970
    %v1972 = vpop.f32.mrb[0].mxu0
    %v1973 = vadd.f32 0.0, %v1972
    %1974 = vdwg.mxu0
    %1975 = vmatprep.subr.bf16.mxu0 %v1924
    %1976 = vmatpush1.bf16.msra.mxu0 %v1921
    %1977 = vmatprep.subr.bf16.mxu0 0
    %1978 = vmatpush1.bf16.msra.mxu0 0
    %1979 = vmatprep.subr.bf16.mxu0 0
    %1980 = vmatpush1.bf16.msra.mxu0 0
    %1981 = vmatprep.subr.bf16.mxu0 0
    %1982 = vmatpush1.bf16.msra.mxu0 0
    %1983 = vmatprep.subr.bf16.mxu0 0
    %1984 = vmatpush1.bf16.msra.mxu0 0
    %1985 = vmatprep.subr.bf16.mxu0 0
    %1986 = vmatpush1.bf16.msra.mxu0 0
    %1987 = vmatprep.subr.bf16.mxu0 0
    %1988 = vmatpush1.bf16.msra.mxu0 0
    %1989 = vmatprep.subr.bf16.mxu0 0
    %1990 = vmatpush1.bf16.msra.mxu0 0
    %1991 = vmatprep.subr.bf16.mxu0 0
    %1992 = vmatpush1.bf16.msra.mxu0 0
    %1993 = vmatprep.subr.bf16.mxu0 0
    %1994 = vmatpush1.bf16.msra.mxu0 0
    %1995 = vmatprep.subr.bf16.mxu0 0
    %1996 = vmatpush1.bf16.msra.mxu0 0
    %1997 = vmatprep.subr.bf16.mxu0 0
    %1998 = vmatpush1.bf16.msra.mxu0 0
    %1999 = vmatprep.subr.bf16.mxu0 0
    %2000 = vmatpush1.bf16.msra.mxu0 0
    %2001 = vmatprep.subr.bf16.mxu0 0
    %2002 = vmatpush1.bf16.msra.mxu0 0
    %2003 = vmatprep.subr.bf16.mxu0 0
    %2004 = vmatpush1.bf16.msra.mxu0 0
    %2005 = vmatprep.subr.bf16.mxu0 0
    %2006 = vmatpush1.bf16.msra.mxu0 0
    %2007 = vmatprep.mubr.bf16.mxu0 0
    %2008 = vmatmul.mubr.bf16.gmra.mrb[0].mxu0 %v1912
    %v2009 = vpop.f32.mrb[0].mxu0
    %v2010 = vadd.f32 0.0, %v2009
    %v2011 = vpop.f32.mrb[0].mxu0
    %v2012 = vadd.f32 0.0, %v2011
    %v2013 = vpop.f32.mrb[0].mxu0
    %v2014 = vadd.f32 0.0, %v2013
    %v2015 = vpop.f32.mrb[0].mxu0
    %v2016 = vadd.f32 0.0, %v2015
    %2017 = vdwg.mxu0
    %2018 = vmatprep.subr.bf16.mxu0 %v1930
    %2019 = vmatpush1.bf16.msra.mxu0 %v1927
    %2020 = vmatprep.subr.bf16.mxu0 0
    %2021 = vmatpush1.bf16.msra.mxu0 0
    %2022 = vmatprep.subr.bf16.mxu0 0
    %2023 = vmatpush1.bf16.msra.mxu0 0
    %2024 = vmatprep.subr.bf16.mxu0 0
    %2025 = vmatpush1.bf16.msra.mxu0 0
    %2026 = vmatprep.subr.bf16.mxu0 0
    %2027 = vmatpush1.bf16.msra.mxu0 0
    %2028 = vmatprep.subr.bf16.mxu0 0
    %2029 = vmatpush1.bf16.msra.mxu0 0
    %2030 = vmatprep.subr.bf16.mxu0 0
    %2031 = vmatpush1.bf16.msra.mxu0 0
    %2032 = vmatprep.subr.bf16.mxu0 0
    %2033 = vmatpush1.bf16.msra.mxu0 0
    %2034 = vmatprep.subr.bf16.mxu0 0
    %2035 = vmatpush1.bf16.msra.mxu0 0
    %2036 = vmatprep.subr.bf16.mxu0 0
    %2037 = vmatpush1.bf16.msra.mxu0 0
    %2038 = vmatprep.subr.bf16.mxu0 0
    %2039 = vmatpush1.bf16.msra.mxu0 0
    %2040 = vmatprep.subr.bf16.mxu0 0
    %2041 = vmatpush1.bf16.msra.mxu0 0
    %2042 = vmatprep.subr.bf16.mxu0 0
    %2043 = vmatpush1.bf16.msra.mxu0 0
    %2044 = vmatprep.subr.bf16.mxu0 0
    %2045 = vmatpush1.bf16.msra.mxu0 0
    %2046 = vmatprep.subr.bf16.mxu0 0
    %2047 = vmatpush1.bf16.msra.mxu0 0
    %2048 = vmatprep.subr.bf16.mxu0 0
    %2049 = vmatpush1.bf16.msra.mxu0 0
    %2050 = vmatprep.mubr.bf16.mxu0 0
    %2051 = vmatmul.mubr.bf16.gmra.mrb[0].mxu0 %v1912
    %v2052 = vpop.f32.mrb[0].mxu0
    %v2053 = vadd.f32 0.0, %v2052
    %v2054 = vpop.f32.mrb[0].mxu0
    %v2055 = vadd.f32 0.0, %v2054
    %v2056 = vpop.f32.mrb[0].mxu0
    %v2057 = vadd.f32 0.0, %v2056
    %v2058 = vpop.f32.mrb[0].mxu0
    %v2059 = vadd.f32 0.0, %v2058
    %2060 = vdwg.mxu0
    %v2061 = vadd.f32 %v1879, %v1967
    %v2062 = vadd.f32 %v1880, %v1969
    %v2063 = vadd.f32 %v1881, %v2010
    %v2064 = vadd.f32 %v1882, %v2012
    %v2065 = vadd.f32 %v1883, %v2053
    %v2066 = vadd.f32 %v1884, %v2055
    %v2067 = vadd.f32 %v1885, %v1971
    %v2068 = vadd.f32 %v1886, %v1973
    %v2069 = vadd.f32 %v1887, %v2014
    %v2070 = vadd.f32 %v1888, %v2016
    %v2071 = vadd.f32 %v1889, %v2057
    %v2072 = vadd.f32 %v1890, %v2059
    %2073 = vrot.lane.b32.xlu0 %v1008, 80
    %v2074 = vpop.permute.xlu0 %2073
    %2075 = vrot.lane.b32.xlu0 %v1020, 109
    %v2076 = vpop.permute.xlu0 %2075
    %2077 = vrot.lane.b32.xlu0 %v1021, 109
    %v2078 = vpop.permute.xlu0 %2077
    %2079 = vrot.lane.b32.xlu0 %v1022, 109
    %v2080 = vpop.permute.xlu0 %2079
    %2081 = vrot.lane.b32.xlu0 %v1023, 109
    %v2082 = vpop.permute.xlu0 %2081
    %2083 = vrot.lane.b32.xlu0 %v1024, 109
    %v2084 = vpop.permute.xlu0 %2083
    %2085 = vrot.lane.b32.xlu0 %v1025, 109
    %v2086 = vpop.permute.xlu0 %2085
    %vm2087 = vcmask 891904
    %v2088 = vsel %vm2087, %v2076, %v2078
    %v2089 = vsel %vm2087, %v2078, %v2080
    %v2090 = vsel %vm2087, %v2080, %v2082
    %v2091 = vsel %vm2087, %v2082, %v2084
    %v2092 = vsel %vm2087, %v2084, %v2086
    %v2094 = vsel %vm1044, %v2074, 0
    %v2097 = vsel %vm324, %v2088, 0
    %v2100 = vsel %vm324, %v2089, 0
    %v2103 = vsel %vm324, %v2090, 0
    %v2106 = vsel %vm324, %v2091, 0
    %v2109 = vsel %vm324, %v2092, 0
    %v2112 = vsel %vm324, %v2086, 0
    %2114 = vmatprep.subr.bf16.mxu0 %v2100
    %2115 = vmatpush1.bf16.msra.mxu0 %v2097
    %2116 = vmatprep.subr.bf16.mxu0 0
    %2117 = vmatpush1.bf16.msra.mxu0 0
    %2118 = vmatprep.subr.bf16.mxu0 0
    %2119 = vmatpush1.bf16.msra.mxu0 0
    %2120 = vmatprep.subr.bf16.mxu0 0
    %2121 = vmatpush1.bf16.msra.mxu0 0
    %2122 = vmatprep.subr.bf16.mxu0 0
    %2123 = vmatpush1.bf16.msra.mxu0 0
    %2124 = vmatprep.subr.bf16.mxu0 0
    %2125 = vmatpush1.bf16.msra.mxu0 0
    %2126 = vmatprep.subr.bf16.mxu0 0
    %2127 = vmatpush1.bf16.msra.mxu0 0
    %2128 = vmatprep.subr.bf16.mxu0 0
    %2129 = vmatpush1.bf16.msra.mxu0 0
    %2130 = vmatprep.subr.bf16.mxu0 0
    %2131 = vmatpush1.bf16.msra.mxu0 0
    %2132 = vmatprep.subr.bf16.mxu0 0
    %2133 = vmatpush1.bf16.msra.mxu0 0
    %2134 = vmatprep.subr.bf16.mxu0 0
    %2135 = vmatpush1.bf16.msra.mxu0 0
    %2136 = vmatprep.subr.bf16.mxu0 0
    %2137 = vmatpush1.bf16.msra.mxu0 0
    %2138 = vmatprep.subr.bf16.mxu0 0
    %2139 = vmatpush1.bf16.msra.mxu0 0
    %2140 = vmatprep.subr.bf16.mxu0 0
    %2141 = vmatpush1.bf16.msra.mxu0 0
    %2142 = vmatprep.subr.bf16.mxu0 0
    %2143 = vmatpush1.bf16.msra.mxu0 0
    %2144 = vmatprep.subr.bf16.mxu0 0
    %2145 = vmatpush1.bf16.msra.mxu0 0
    %2146 = vmatprep.mubr.bf16.mxu0 0
    %2147 = vmatmul.mubr.bf16.gmra.mrb[0].mxu0 %v2094
    %v2148 = vpop.f32.mrb[0].mxu0
    %v2149 = vadd.f32 0.0, %v2148
    %v2150 = vpop.f32.mrb[0].mxu0
    %v2151 = vadd.f32 0.0, %v2150
    %v2152 = vpop.f32.mrb[0].mxu0
    %v2153 = vadd.f32 0.0, %v2152
    %v2154 = vpop.f32.mrb[0].mxu0
    %v2155 = vadd.f32 0.0, %v2154
    %2156 = vdwg.mxu0
    %2157 = vmatprep.subr.bf16.mxu0 %v2106
    %2158 = vmatpush1.bf16.msra.mxu0 %v2103
    %2159 = vmatprep.subr.bf16.mxu0 0
    %2160 = vmatpush1.bf16.msra.mxu0 0
    %2161 = vmatprep.subr.bf16.mxu0 0
    %2162 = vmatpush1.bf16.msra.mxu0 0
    %2163 = vmatprep.subr.bf16.mxu0 0
    %2164 = vmatpush1.bf16.msra.mxu0 0
    %2165 = vmatprep.subr.bf16.mxu0 0
    %2166 = vmatpush1.bf16.msra.mxu0 0
    %2167 = vmatprep.subr.bf16.mxu0 0
    %2168 = vmatpush1.bf16.msra.mxu0 0
    %2169 = vmatprep.subr.bf16.mxu0 0
    %2170 = vmatpush1.bf16.msra.mxu0 0
    %2171 = vmatprep.subr.bf16.mxu0 0
    %2172 = vmatpush1.bf16.msra.mxu0 0
    %2173 = vmatprep.subr.bf16.mxu0 0
    %2174 = vmatpush1.bf16.msra.mxu0 0
    %2175 = vmatprep.subr.bf16.mxu0 0
    %2176 = vmatpush1.bf16.msra.mxu0 0
    %2177 = vmatprep.subr.bf16.mxu0 0
    %2178 = vmatpush1.bf16.msra.mxu0 0
    %2179 = vmatprep.subr.bf16.mxu0 0
    %2180 = vmatpush1.bf16.msra.mxu0 0
    %2181 = vmatprep.subr.bf16.mxu0 0
    %2182 = vmatpush1.bf16.msra.mxu0 0
    %2183 = vmatprep.subr.bf16.mxu0 0
    %2184 = vmatpush1.bf16.msra.mxu0 0
    %2185 = vmatprep.subr.bf16.mxu0 0
    %2186 = vmatpush1.bf16.msra.mxu0 0
    %2187 = vmatprep.subr.bf16.mxu0 0
    %2188 = vmatpush1.bf16.msra.mxu0 0
    %2189 = vmatprep.mubr.bf16.mxu0 0
    %2190 = vmatmul.mubr.bf16.gmra.mrb[0].mxu0 %v2094
    %v2191 = vpop.f32.mrb[0].mxu0
    %v2192 = vadd.f32 0.0, %v2191
    %v2193 = vpop.f32.mrb[0].mxu0
    %v2194 = vadd.f32 0.0, %v2193
    %v2195 = vpop.f32.mrb[0].mxu0
    %v2196 = vadd.f32 0.0, %v2195
    %v2197 = vpop.f32.mrb[0].mxu0
    %v2198 = vadd.f32 0.0, %v2197
    %2199 = vdwg.mxu0
    %2200 = vmatprep.subr.bf16.mxu0 %v2112
    %2201 = vmatpush1.bf16.msra.mxu0 %v2109
    %2202 = vmatprep.subr.bf16.mxu0 0
    %2203 = vmatpush1.bf16.msra.mxu0 0
    %2204 = vmatprep.subr.bf16.mxu0 0
    %2205 = vmatpush1.bf16.msra.mxu0 0
    %2206 = vmatprep.subr.bf16.mxu0 0
    %2207 = vmatpush1.bf16.msra.mxu0 0
    %2208 = vmatprep.subr.bf16.mxu0 0
    %2209 = vmatpush1.bf16.msra.mxu0 0
    %2210 = vmatprep.subr.bf16.mxu0 0
    %2211 = vmatpush1.bf16.msra.mxu0 0
    %2212 = vmatprep.subr.bf16.mxu0 0
    %2213 = vmatpush1.bf16.msra.mxu0 0
    %2214 = vmatprep.subr.bf16.mxu0 0
    %2215 = vmatpush1.bf16.msra.mxu0 0
    %2216 = vmatprep.subr.bf16.mxu0 0
    %2217 = vmatpush1.bf16.msra.mxu0 0
    %2218 = vmatprep.subr.bf16.mxu0 0
    %2219 = vmatpush1.bf16.msra.mxu0 0
    %2220 = vmatprep.subr.bf16.mxu0 0
    %2221 = vmatpush1.bf16.msra.mxu0 0
    %2222 = vmatprep.subr.bf16.mxu0 0
    %2223 = vmatpush1.bf16.msra.mxu0 0
    %2224 = vmatprep.subr.bf16.mxu0 0
    %2225 = vmatpush1.bf16.msra.mxu0 0
    %2226 = vmatprep.subr.bf16.mxu0 0
    %2227 = vmatpush1.bf16.msra.mxu0 0
    %2228 = vmatprep.subr.bf16.mxu0 0
    %2229 = vmatpush1.bf16.msra.mxu0 0
    %2230 = vmatprep.subr.bf16.mxu0 0
    %2231 = vmatpush1.bf16.msra.mxu0 0
    %2232 = vmatprep.mubr.bf16.mxu0 0
    %2233 = vmatmul.mubr.bf16.gmra.mrb[0].mxu0 %v2094
    %v2234 = vpop.f32.mrb[0].mxu0
    %v2235 = vadd.f32 0.0, %v2234
    %v2236 = vpop.f32.mrb[0].mxu0
    %v2237 = vadd.f32 0.0, %v2236
    %v2238 = vpop.f32.mrb[0].mxu0
    %v2239 = vadd.f32 0.0, %v2238
    %v2240 = vpop.f32.mrb[0].mxu0
    %v2241 = vadd.f32 0.0, %v2240
    %2242 = vdwg.mxu0
    %v2243 = vadd.f32 %v2061, %v2149
    %v2244 = vadd.f32 %v2062, %v2151
    %v2245 = vadd.f32 %v2063, %v2192
    %v2246 = vadd.f32 %v2064, %v2194
    %v2247 = vadd.f32 %v2065, %v2235
    %v2248 = vadd.f32 %v2066, %v2237
    %v2249 = vadd.f32 %v2067, %v2153
    %v2250 = vadd.f32 %v2068, %v2155
    %v2251 = vadd.f32 %v2069, %v2196
    %v2252 = vadd.f32 %v2070, %v2198
    %v2253 = vadd.f32 %v2071, %v2239
    %v2254 = vadd.f32 %v2072, %v2241
    %2255 = vrot.lane.b32.xlu0 %v1008, 72
    %v2256 = vpop.permute.xlu0 %2255
    %2257 = vrot.lane.b32.xlu0 %v1020, 108
    %v2258 = vpop.permute.xlu0 %2257
    %2259 = vrot.lane.b32.xlu0 %v1021, 108
    %v2260 = vpop.permute.xlu0 %2259
    %2261 = vrot.lane.b32.xlu0 %v1022, 108
    %v2262 = vpop.permute.xlu0 %2261
    %2263 = vrot.lane.b32.xlu0 %v1023, 108
    %v2264 = vpop.permute.xlu0 %2263
    %2265 = vrot.lane.b32.xlu0 %v1024, 108
    %v2266 = vpop.permute.xlu0 %2265
    %2267 = vrot.lane.b32.xlu0 %v1025, 108
    %v2268 = vpop.permute.xlu0 %2267
    %vm2269 = vcmask 883712
    %v2270 = vsel %vm2269, %v2258, %v2260
    %v2271 = vsel %vm2269, %v2260, %v2262
    %v2272 = vsel %vm2269, %v2262, %v2264
    %v2273 = vsel %vm2269, %v2264, %v2266
    %v2274 = vsel %vm2269, %v2266, %v2268
    %v2276 = vsel %vm1044, %v2256, 0
    %v2279 = vsel %vm324, %v2270, 0
    %v2282 = vsel %vm324, %v2271, 0
    %v2285 = vsel %vm324, %v2272, 0
    %v2288 = vsel %vm324, %v2273, 0
    %v2291 = vsel %vm324, %v2274, 0
    %v2294 = vsel %vm324, %v2268, 0
    %2296 = vmatprep.subr.bf16.mxu0 %v2282
    %2297 = vmatpush1.bf16.msra.mxu0 %v2279
    %2298 = vmatprep.subr.bf16.mxu0 0
    %2299 = vmatpush1.bf16.msra.mxu0 0
    %2300 = vmatprep.subr.bf16.mxu0 0
    %2301 = vmatpush1.bf16.msra.mxu0 0
    %2302 = vmatprep.subr.bf16.mxu0 0
    %2303 = vmatpush1.bf16.msra.mxu0 0
    %2304 = vmatprep.subr.bf16.mxu0 0
    %2305 = vmatpush1.bf16.msra.mxu0 0
    %2306 = vmatprep.subr.bf16.mxu0 0
    %2307 = vmatpush1.bf16.msra.mxu0 0
    %2308 = vmatprep.subr.bf16.mxu0 0
    %2309 = vmatpush1.bf16.msra.mxu0 0
    %2310 = vmatprep.subr.bf16.mxu0 0
    %2311 = vmatpush1.bf16.msra.mxu0 0
    %2312 = vmatprep.subr.bf16.mxu0 0
    %2313 = vmatpush1.bf16.msra.mxu0 0
    %2314 = vmatprep.subr.bf16.mxu0 0
    %2315 = vmatpush1.bf16.msra.mxu0 0
    %2316 = vmatprep.subr.bf16.mxu0 0
    %2317 = vmatpush1.bf16.msra.mxu0 0
    %2318 = vmatprep.subr.bf16.mxu0 0
    %2319 = vmatpush1.bf16.msra.mxu0 0
    %2320 = vmatprep.subr.bf16.mxu0 0
    %2321 = vmatpush1.bf16.msra.mxu0 0
    %2322 = vmatprep.subr.bf16.mxu0 0
    %2323 = vmatpush1.bf16.msra.mxu0 0
    %2324 = vmatprep.subr.bf16.mxu0 0
    %2325 = vmatpush1.bf16.msra.mxu0 0
    %2326 = vmatprep.subr.bf16.mxu0 0
    %2327 = vmatpush1.bf16.msra.mxu0 0
    %2328 = vmatprep.mubr.bf16.mxu0 0
    %2329 = vmatmul.mubr.bf16.gmra.mrb[0].mxu0 %v2276
    %v2330 = vpop.f32.mrb[0].mxu0
    %v2331 = vadd.f32 0.0, %v2330
    %v2332 = vpop.f32.mrb[0].mxu0
    %v2333 = vadd.f32 0.0, %v2332
    %v2334 = vpop.f32.mrb[0].mxu0
    %v2335 = vadd.f32 0.0, %v2334
    %v2336 = vpop.f32.mrb[0].mxu0
    %v2337 = vadd.f32 0.0, %v2336
    %2338 = vdwg.mxu0
    %2339 = vmatprep.subr.bf16.mxu0 %v2288
    %2340 = vmatpush1.bf16.msra.mxu0 %v2285
    %2341 = vmatprep.subr.bf16.mxu0 0
    %2342 = vmatpush1.bf16.msra.mxu0 0
    %2343 = vmatprep.subr.bf16.mxu0 0
    %2344 = vmatpush1.bf16.msra.mxu0 0
    %2345 = vmatprep.subr.bf16.mxu0 0
    %2346 = vmatpush1.bf16.msra.mxu0 0
    %2347 = vmatprep.subr.bf16.mxu0 0
    %2348 = vmatpush1.bf16.msra.mxu0 0
    %2349 = vmatprep.subr.bf16.mxu0 0
    %2350 = vmatpush1.bf16.msra.mxu0 0
    %2351 = vmatprep.subr.bf16.mxu0 0
    %2352 = vmatpush1.bf16.msra.mxu0 0
    %2353 = vmatprep.subr.bf16.mxu0 0
    %2354 = vmatpush1.bf16.msra.mxu0 0
    %2355 = vmatprep.subr.bf16.mxu0 0
    %2356 = vmatpush1.bf16.msra.mxu0 0
    %2357 = vmatprep.subr.bf16.mxu0 0
    %2358 = vmatpush1.bf16.msra.mxu0 0
    %2359 = vmatprep.subr.bf16.mxu0 0
    %2360 = vmatpush1.bf16.msra.mxu0 0
    %2361 = vmatprep.subr.bf16.mxu0 0
    %2362 = vmatpush1.bf16.msra.mxu0 0
    %2363 = vmatprep.subr.bf16.mxu0 0
    %2364 = vmatpush1.bf16.msra.mxu0 0
    %2365 = vmatprep.subr.bf16.mxu0 0
    %2366 = vmatpush1.bf16.msra.mxu0 0
    %2367 = vmatprep.subr.bf16.mxu0 0
    %2368 = vmatpush1.bf16.msra.mxu0 0
    %2369 = vmatprep.subr.bf16.mxu0 0
    %2370 = vmatpush1.bf16.msra.mxu0 0
    %2371 = vmatprep.mubr.bf16.mxu0 0
    %2372 = vmatmul.mubr.bf16.gmra.mrb[0].mxu0 %v2276
    %v2373 = vpop.f32.mrb[0].mxu0
    %v2374 = vadd.f32 0.0, %v2373
    %v2375 = vpop.f32.mrb[0].mxu0
    %v2376 = vadd.f32 0.0, %v2375
    %v2377 = vpop.f32.mrb[0].mxu0
    %v2378 = vadd.f32 0.0, %v2377
    %v2379 = vpop.f32.mrb[0].mxu0
    %v2380 = vadd.f32 0.0, %v2379
    %2381 = vdwg.mxu0
    %2382 = vmatprep.subr.bf16.mxu0 %v2294
    %2383 = vmatpush1.bf16.msra.mxu0 %v2291
    %2384 = vmatprep.subr.bf16.mxu0 0
    %2385 = vmatpush1.bf16.msra.mxu0 0
    %2386 = vmatprep.subr.bf16.mxu0 0
    %2387 = vmatpush1.bf16.msra.mxu0 0
    %2388 = vmatprep.subr.bf16.mxu0 0
    %2389 = vmatpush1.bf16.msra.mxu0 0
    %2390 = vmatprep.subr.bf16.mxu0 0
    %2391 = vmatpush1.bf16.msra.mxu0 0
    %2392 = vmatprep.subr.bf16.mxu0 0
    %2393 = vmatpush1.bf16.msra.mxu0 0
    %2394 = vmatprep.subr.bf16.mxu0 0
    %2395 = vmatpush1.bf16.msra.mxu0 0
    %2396 = vmatprep.subr.bf16.mxu0 0
    %2397 = vmatpush1.bf16.msra.mxu0 0
    %2398 = vmatprep.subr.bf16.mxu0 0
    %2399 = vmatpush1.bf16.msra.mxu0 0
    %2400 = vmatprep.subr.bf16.mxu0 0
    %2401 = vmatpush1.bf16.msra.mxu0 0
    %2402 = vmatprep.subr.bf16.mxu0 0
    %2403 = vmatpush1.bf16.msra.mxu0 0
    %2404 = vmatprep.subr.bf16.mxu0 0
    %2405 = vmatpush1.bf16.msra.mxu0 0
    %2406 = vmatprep.subr.bf16.mxu0 0
    %2407 = vmatpush1.bf16.msra.mxu0 0
    %2408 = vmatprep.subr.bf16.mxu0 0
    %2409 = vmatpush1.bf16.msra.mxu0 0
    %2410 = vmatprep.subr.bf16.mxu0 0
    %2411 = vmatpush1.bf16.msra.mxu0 0
    %2412 = vmatprep.subr.bf16.mxu0 0
    %2413 = vmatpush1.bf16.msra.mxu0 0
    %2414 = vmatprep.mubr.bf16.mxu0 0
    %2415 = vmatmul.mubr.bf16.gmra.mrb[0].mxu0 %v2276
    %v2416 = vpop.f32.mrb[0].mxu0
    %v2417 = vadd.f32 0.0, %v2416
    %v2418 = vpop.f32.mrb[0].mxu0
    %v2419 = vadd.f32 0.0, %v2418
    %v2420 = vpop.f32.mrb[0].mxu0
    %v2421 = vadd.f32 0.0, %v2420
    %v2422 = vpop.f32.mrb[0].mxu0
    %v2423 = vadd.f32 0.0, %v2422
    %2424 = vdwg.mxu0
    %v2425 = vadd.f32 %v2243, %v2331
    %v2426 = vadd.f32 %v2244, %v2333
    %v2427 = vadd.f32 %v2245, %v2374
    %v2428 = vadd.f32 %v2246, %v2376
    %v2429 = vadd.f32 %v2247, %v2417
    %v2430 = vadd.f32 %v2248, %v2419
    %v2431 = vadd.f32 %v2249, %v2335
    %v2432 = vadd.f32 %v2250, %v2337
    %v2433 = vadd.f32 %v2251, %v2378
    %v2434 = vadd.f32 %v2252, %v2380
    %v2435 = vadd.f32 %v2253, %v2421
    %v2436 = vadd.f32 %v2254, %v2423
    %2437 = vrot.lane.b32.xlu0 %v1008, 64
    %v2438 = vpop.permute.xlu0 %2437
    %2439 = vrot.lane.b32.xlu0 %v1020, 107
    %v2440 = vpop.permute.xlu0 %2439
    %2441 = vrot.lane.b32.xlu0 %v1021, 107
    %v2442 = vpop.permute.xlu0 %2441
    %2443 = vrot.lane.b32.xlu0 %v1022, 107
    %v2444 = vpop.permute.xlu0 %2443
    %2445 = vrot.lane.b32.xlu0 %v1023, 107
    %v2446 = vpop.permute.xlu0 %2445
    %2447 = vrot.lane.b32.xlu0 %v1024, 107
    %v2448 = vpop.permute.xlu0 %2447
    %2449 = vrot.lane.b32.xlu0 %v1025, 107
    %v2450 = vpop.permute.xlu0 %2449
    %vm2451 = vcmask 875520
    %v2452 = vsel %vm2451, %v2440, %v2442
    %v2453 = vsel %vm2451, %v2442, %v2444
    %v2454 = vsel %vm2451, %v2444, %v2446
    %v2455 = vsel %vm2451, %v2446, %v2448
    %v2456 = vsel %vm2451, %v2448, %v2450
    %v2458 = vsel %vm1044, %v2438, 0
    %v2461 = vsel %vm324, %v2452, 0
    %v2464 = vsel %vm324, %v2453, 0
    %v2467 = vsel %vm324, %v2454, 0
    %v2470 = vsel %vm324, %v2455, 0
    %v2473 = vsel %vm324, %v2456, 0
    %v2476 = vsel %vm324, %v2450, 0
    %2478 = vmatprep.subr.bf16.mxu0 %v2464
    %2479 = vmatpush1.bf16.msra.mxu0 %v2461
    %2480 = vmatprep.subr.bf16.mxu0 0
    %2481 = vmatpush1.bf16.msra.mxu0 0
    %2482 = vmatprep.subr.bf16.mxu0 0
    %2483 = vmatpush1.bf16.msra.mxu0 0
    %2484 = vmatprep.subr.bf16.mxu0 0
    %2485 = vmatpush1.bf16.msra.mxu0 0
    %2486 = vmatprep.subr.bf16.mxu0 0
    %2487 = vmatpush1.bf16.msra.mxu0 0
    %2488 = vmatprep.subr.bf16.mxu0 0
    %2489 = vmatpush1.bf16.msra.mxu0 0
    %2490 = vmatprep.subr.bf16.mxu0 0
    %2491 = vmatpush1.bf16.msra.mxu0 0
    %2492 = vmatprep.subr.bf16.mxu0 0
    %2493 = vmatpush1.bf16.msra.mxu0 0
    %2494 = vmatprep.subr.bf16.mxu0 0
    %2495 = vmatpush1.bf16.msra.mxu0 0
    %2496 = vmatprep.subr.bf16.mxu0 0
    %2497 = vmatpush1.bf16.msra.mxu0 0
    %2498 = vmatprep.subr.bf16.mxu0 0
    %2499 = vmatpush1.bf16.msra.mxu0 0
    %2500 = vmatprep.subr.bf16.mxu0 0
    %2501 = vmatpush1.bf16.msra.mxu0 0
    %2502 = vmatprep.subr.bf16.mxu0 0
    %2503 = vmatpush1.bf16.msra.mxu0 0
    %2504 = vmatprep.subr.bf16.mxu0 0
    %2505 = vmatpush1.bf16.msra.mxu0 0
    %2506 = vmatprep.subr.bf16.mxu0 0
    %2507 = vmatpush1.bf16.msra.mxu0 0
    %2508 = vmatprep.subr.bf16.mxu0 0
    %2509 = vmatpush1.bf16.msra.mxu0 0
    %2510 = vmatprep.mubr.bf16.mxu0 0
    %2511 = vmatmul.mubr.bf16.gmra.mrb[0].mxu0 %v2458
    %v2512 = vpop.f32.mrb[0].mxu0
    %v2513 = vadd.f32 0.0, %v2512
    %v2514 = vpop.f32.mrb[0].mxu0
    %v2515 = vadd.f32 0.0, %v2514
    %v2516 = vpop.f32.mrb[0].mxu0
    %v2517 = vadd.f32 0.0, %v2516
    %v2518 = vpop.f32.mrb[0].mxu0
    %v2519 = vadd.f32 0.0, %v2518
    %2520 = vdwg.mxu0
    %2521 = vmatprep.subr.bf16.mxu0 %v2470
    %2522 = vmatpush1.bf16.msra.mxu0 %v2467
    %2523 = vmatprep.subr.bf16.mxu0 0
    %2524 = vmatpush1.bf16.msra.mxu0 0
    %2525 = vmatprep.subr.bf16.mxu0 0
    %2526 = vmatpush1.bf16.msra.mxu0 0
    %2527 = vmatprep.subr.bf16.mxu0 0
    %2528 = vmatpush1.bf16.msra.mxu0 0
    %2529 = vmatprep.subr.bf16.mxu0 0
    %2530 = vmatpush1.bf16.msra.mxu0 0
    %2531 = vmatprep.subr.bf16.mxu0 0
    %2532 = vmatpush1.bf16.msra.mxu0 0
    %2533 = vmatprep.subr.bf16.mxu0 0
    %2534 = vmatpush1.bf16.msra.mxu0 0
    %2535 = vmatprep.subr.bf16.mxu0 0
    %2536 = vmatpush1.bf16.msra.mxu0 0
    %2537 = vmatprep.subr.bf16.mxu0 0
    %2538 = vmatpush1.bf16.msra.mxu0 0
    %2539 = vmatprep.subr.bf16.mxu0 0
    %2540 = vmatpush1.bf16.msra.mxu0 0
    %2541 = vmatprep.subr.bf16.mxu0 0
    %2542 = vmatpush1.bf16.msra.mxu0 0
    %2543 = vmatprep.subr.bf16.mxu0 0
    %2544 = vmatpush1.bf16.msra.mxu0 0
    %2545 = vmatprep.subr.bf16.mxu0 0
    %2546 = vmatpush1.bf16.msra.mxu0 0
    %2547 = vmatprep.subr.bf16.mxu0 0
    %2548 = vmatpush1.bf16.msra.mxu0 0
    %2549 = vmatprep.subr.bf16.mxu0 0
    %2550 = vmatpush1.bf16.msra.mxu0 0
    %2551 = vmatprep.subr.bf16.mxu0 0
    %2552 = vmatpush1.bf16.msra.mxu0 0
    %2553 = vmatprep.mubr.bf16.mxu0 0
    %2554 = vmatmul.mubr.bf16.gmra.mrb[0].mxu0 %v2458
    %v2555 = vpop.f32.mrb[0].mxu0
    %v2556 = vadd.f32 0.0, %v2555
    %v2557 = vpop.f32.mrb[0].mxu0
    %v2558 = vadd.f32 0.0, %v2557
    %v2559 = vpop.f32.mrb[0].mxu0
    %v2560 = vadd.f32 0.0, %v2559
    %v2561 = vpop.f32.mrb[0].mxu0
    %v2562 = vadd.f32 0.0, %v2561
    %2563 = vdwg.mxu0
    %2564 = vmatprep.subr.bf16.mxu0 %v2476
    %2565 = vmatpush1.bf16.msra.mxu0 %v2473
    %2566 = vmatprep.subr.bf16.mxu0 0
    %2567 = vmatpush1.bf16.msra.mxu0 0
    %2568 = vmatprep.subr.bf16.mxu0 0
    %2569 = vmatpush1.bf16.msra.mxu0 0
    %2570 = vmatprep.subr.bf16.mxu0 0
    %2571 = vmatpush1.bf16.msra.mxu0 0
    %2572 = vmatprep.subr.bf16.mxu0 0
    %2573 = vmatpush1.bf16.msra.mxu0 0
    %2574 = vmatprep.subr.bf16.mxu0 0
    %2575 = vmatpush1.bf16.msra.mxu0 0
    %2576 = vmatprep.subr.bf16.mxu0 0
    %2577 = vmatpush1.bf16.msra.mxu0 0
    %2578 = vmatprep.subr.bf16.mxu0 0
    %2579 = vmatpush1.bf16.msra.mxu0 0
    %2580 = vmatprep.subr.bf16.mxu0 0
    %2581 = vmatpush1.bf16.msra.mxu0 0
    %2582 = vmatprep.subr.bf16.mxu0 0
    %2583 = vmatpush1.bf16.msra.mxu0 0
    %2584 = vmatprep.subr.bf16.mxu0 0
    %2585 = vmatpush1.bf16.msra.mxu0 0
    %2586 = vmatprep.subr.bf16.mxu0 0
    %2587 = vmatpush1.bf16.msra.mxu0 0
    %2588 = vmatprep.subr.bf16.mxu0 0
    %2589 = vmatpush1.bf16.msra.mxu0 0
    %2590 = vmatprep.subr.bf16.mxu0 0
    %2591 = vmatpush1.bf16.msra.mxu0 0
    %2592 = vmatprep.subr.bf16.mxu0 0
    %2593 = vmatpush1.bf16.msra.mxu0 0
    %2594 = vmatprep.subr.bf16.mxu0 0
    %2595 = vmatpush1.bf16.msra.mxu0 0
    %2596 = vmatprep.mubr.bf16.mxu0 0
    %2597 = vmatmul.mubr.bf16.gmra.mrb[0].mxu0 %v2458
    %v2598 = vpop.f32.mrb[0].mxu0
    %v2599 = vadd.f32 0.0, %v2598
    %v2600 = vpop.f32.mrb[0].mxu0
    %v2601 = vadd.f32 0.0, %v2600
    %v2602 = vpop.f32.mrb[0].mxu0
    %v2603 = vadd.f32 0.0, %v2602
    %v2604 = vpop.f32.mrb[0].mxu0
    %v2605 = vadd.f32 0.0, %v2604
    %2606 = vdwg.mxu0
    %v2607 = vadd.f32 %v2425, %v2513
    %v2608 = vadd.f32 %v2426, %v2515
    %v2609 = vadd.f32 %v2427, %v2556
    %v2610 = vadd.f32 %v2428, %v2558
    %v2611 = vadd.f32 %v2429, %v2599
    %v2612 = vadd.f32 %v2430, %v2601
    %v2613 = vadd.f32 %v2431, %v2517
    %v2614 = vadd.f32 %v2432, %v2519
    %v2615 = vadd.f32 %v2433, %v2560
    %v2616 = vadd.f32 %v2434, %v2562
    %v2617 = vadd.f32 %v2435, %v2603
    %v2618 = vadd.f32 %v2436, %v2605
    %2619 = vrot.lane.b32.xlu0 %v1008, 56
    %v2620 = vpop.permute.xlu0 %2619
    %2621 = vrot.lane.b32.xlu0 %v1020, 106
    %v2622 = vpop.permute.xlu0 %2621
    %2623 = vrot.lane.b32.xlu0 %v1021, 106
    %v2624 = vpop.permute.xlu0 %2623
    %2625 = vrot.lane.b32.xlu0 %v1022, 106
    %v2626 = vpop.permute.xlu0 %2625
    %2627 = vrot.lane.b32.xlu0 %v1023, 106
    %v2628 = vpop.permute.xlu0 %2627
    %2629 = vrot.lane.b32.xlu0 %v1024, 106
    %v2630 = vpop.permute.xlu0 %2629
    %2631 = vrot.lane.b32.xlu0 %v1025, 106
    %v2632 = vpop.permute.xlu0 %2631
    %vm2633 = vcmask 867328
    %v2634 = vsel %vm2633, %v2622, %v2624
    %v2635 = vsel %vm2633, %v2624, %v2626
    %v2636 = vsel %vm2633, %v2626, %v2628
    %v2637 = vsel %vm2633, %v2628, %v2630
    %v2638 = vsel %vm2633, %v2630, %v2632
    %v2640 = vsel %vm1044, %v2620, 0
    %v2643 = vsel %vm324, %v2634, 0
    %v2646 = vsel %vm324, %v2635, 0
    %v2649 = vsel %vm324, %v2636, 0
    %v2652 = vsel %vm324, %v2637, 0
    %v2655 = vsel %vm324, %v2638, 0
    %v2658 = vsel %vm324, %v2632, 0
    %2660 = vmatprep.subr.bf16.mxu0 %v2646
    %2661 = vmatpush1.bf16.msra.mxu0 %v2643
    %2662 = vmatprep.subr.bf16.mxu0 0
    %2663 = vmatpush1.bf16.msra.mxu0 0
    %2664 = vmatprep.subr.bf16.mxu0 0
    %2665 = vmatpush1.bf16.msra.mxu0 0
    %2666 = vmatprep.subr.bf16.mxu0 0
    %2667 = vmatpush1.bf16.msra.mxu0 0
    %2668 = vmatprep.subr.bf16.mxu0 0
    %2669 = vmatpush1.bf16.msra.mxu0 0
    %2670 = vmatprep.subr.bf16.mxu0 0
    %2671 = vmatpush1.bf16.msra.mxu0 0
    %2672 = vmatprep.subr.bf16.mxu0 0
    %2673 = vmatpush1.bf16.msra.mxu0 0
    %2674 = vmatprep.subr.bf16.mxu0 0
    %2675 = vmatpush1.bf16.msra.mxu0 0
    %2676 = vmatprep.subr.bf16.mxu0 0
    %2677 = vmatpush1.bf16.msra.mxu0 0
    %2678 = vmatprep.subr.bf16.mxu0 0
    %2679 = vmatpush1.bf16.msra.mxu0 0
    %2680 = vmatprep.subr.bf16.mxu0 0
    %2681 = vmatpush1.bf16.msra.mxu0 0
    %2682 = vmatprep.subr.bf16.mxu0 0
    %2683 = vmatpush1.bf16.msra.mxu0 0
    %2684 = vmatprep.subr.bf16.mxu0 0
    %2685 = vmatpush1.bf16.msra.mxu0 0
    %2686 = vmatprep.subr.bf16.mxu0 0
    %2687 = vmatpush1.bf16.msra.mxu0 0
    %2688 = vmatprep.subr.bf16.mxu0 0
    %2689 = vmatpush1.bf16.msra.mxu0 0
    %2690 = vmatprep.subr.bf16.mxu0 0
    %2691 = vmatpush1.bf16.msra.mxu0 0
    %2692 = vmatprep.mubr.bf16.mxu0 0
    %2693 = vmatmul.mubr.bf16.gmra.mrb[0].mxu0 %v2640
    %v2694 = vpop.f32.mrb[0].mxu0
    %v2695 = vadd.f32 0.0, %v2694
    %v2696 = vpop.f32.mrb[0].mxu0
    %v2697 = vadd.f32 0.0, %v2696
    %v2698 = vpop.f32.mrb[0].mxu0
    %v2699 = vadd.f32 0.0, %v2698
    %v2700 = vpop.f32.mrb[0].mxu0
    %v2701 = vadd.f32 0.0, %v2700
    %2702 = vdwg.mxu0
    %2703 = vmatprep.subr.bf16.mxu0 %v2652
    %2704 = vmatpush1.bf16.msra.mxu0 %v2649
    %2705 = vmatprep.subr.bf16.mxu0 0
    %2706 = vmatpush1.bf16.msra.mxu0 0
    %2707 = vmatprep.subr.bf16.mxu0 0
    %2708 = vmatpush1.bf16.msra.mxu0 0
    %2709 = vmatprep.subr.bf16.mxu0 0
    %2710 = vmatpush1.bf16.msra.mxu0 0
    %2711 = vmatprep.subr.bf16.mxu0 0
    %2712 = vmatpush1.bf16.msra.mxu0 0
    %2713 = vmatprep.subr.bf16.mxu0 0
    %2714 = vmatpush1.bf16.msra.mxu0 0
    %2715 = vmatprep.subr.bf16.mxu0 0
    %2716 = vmatpush1.bf16.msra.mxu0 0
    %2717 = vmatprep.subr.bf16.mxu0 0
    %2718 = vmatpush1.bf16.msra.mxu0 0
    %2719 = vmatprep.subr.bf16.mxu0 0
    %2720 = vmatpush1.bf16.msra.mxu0 0
    %2721 = vmatprep.subr.bf16.mxu0 0
    %2722 = vmatpush1.bf16.msra.mxu0 0
    %2723 = vmatprep.subr.bf16.mxu0 0
    %2724 = vmatpush1.bf16.msra.mxu0 0
    %2725 = vmatprep.subr.bf16.mxu0 0
    %2726 = vmatpush1.bf16.msra.mxu0 0
    %2727 = vmatprep.subr.bf16.mxu0 0
    %2728 = vmatpush1.bf16.msra.mxu0 0
    %2729 = vmatprep.subr.bf16.mxu0 0
    %2730 = vmatpush1.bf16.msra.mxu0 0
    %2731 = vmatprep.subr.bf16.mxu0 0
    %2732 = vmatpush1.bf16.msra.mxu0 0
    %2733 = vmatprep.subr.bf16.mxu0 0
    %2734 = vmatpush1.bf16.msra.mxu0 0
    %2735 = vmatprep.mubr.bf16.mxu0 0
    %2736 = vmatmul.mubr.bf16.gmra.mrb[0].mxu0 %v2640
    %v2737 = vpop.f32.mrb[0].mxu0
    %v2738 = vadd.f32 0.0, %v2737
    %v2739 = vpop.f32.mrb[0].mxu0
    %v2740 = vadd.f32 0.0, %v2739
    %v2741 = vpop.f32.mrb[0].mxu0
    %v2742 = vadd.f32 0.0, %v2741
    %v2743 = vpop.f32.mrb[0].mxu0
    %v2744 = vadd.f32 0.0, %v2743
    %2745 = vdwg.mxu0
    %2746 = vmatprep.subr.bf16.mxu0 %v2658
    %2747 = vmatpush1.bf16.msra.mxu0 %v2655
    %2748 = vmatprep.subr.bf16.mxu0 0
    %2749 = vmatpush1.bf16.msra.mxu0 0
    %2750 = vmatprep.subr.bf16.mxu0 0
    %2751 = vmatpush1.bf16.msra.mxu0 0
    %2752 = vmatprep.subr.bf16.mxu0 0
    %2753 = vmatpush1.bf16.msra.mxu0 0
    %2754 = vmatprep.subr.bf16.mxu0 0
    %2755 = vmatpush1.bf16.msra.mxu0 0
    %2756 = vmatprep.subr.bf16.mxu0 0
    %2757 = vmatpush1.bf16.msra.mxu0 0
    %2758 = vmatprep.subr.bf16.mxu0 0
    %2759 = vmatpush1.bf16.msra.mxu0 0
    %2760 = vmatprep.subr.bf16.mxu0 0
    %2761 = vmatpush1.bf16.msra.mxu0 0
    %2762 = vmatprep.subr.bf16.mxu0 0
    %2763 = vmatpush1.bf16.msra.mxu0 0
    %2764 = vmatprep.subr.bf16.mxu0 0
    %2765 = vmatpush1.bf16.msra.mxu0 0
    %2766 = vmatprep.subr.bf16.mxu0 0
    %2767 = vmatpush1.bf16.msra.mxu0 0
    %2768 = vmatprep.subr.bf16.mxu0 0
    %2769 = vmatpush1.bf16.msra.mxu0 0
    %2770 = vmatprep.subr.bf16.mxu0 0
    %2771 = vmatpush1.bf16.msra.mxu0 0
    %2772 = vmatprep.subr.bf16.mxu0 0
    %2773 = vmatpush1.bf16.msra.mxu0 0
    %2774 = vmatprep.subr.bf16.mxu0 0
    %2775 = vmatpush1.bf16.msra.mxu0 0
    %2776 = vmatprep.subr.bf16.mxu0 0
    %2777 = vmatpush1.bf16.msra.mxu0 0
    %2778 = vmatprep.mubr.bf16.mxu0 0
    %2779 = vmatmul.mubr.bf16.gmra.mrb[0].mxu0 %v2640
    %v2780 = vpop.f32.mrb[0].mxu0
    %v2781 = vadd.f32 0.0, %v2780
    %v2782 = vpop.f32.mrb[0].mxu0
    %v2783 = vadd.f32 0.0, %v2782
    %v2784 = vpop.f32.mrb[0].mxu0
    %v2785 = vadd.f32 0.0, %v2784
    %v2786 = vpop.f32.mrb[0].mxu0
    %v2787 = vadd.f32 0.0, %v2786
    %2788 = vdwg.mxu0
    %v2789 = vadd.f32 %v2607, %v2695
    %v2790 = vadd.f32 %v2608, %v2697
    %v2791 = vadd.f32 %v2609, %v2738
    %v2792 = vadd.f32 %v2610, %v2740
    %v2793 = vadd.f32 %v2611, %v2781
    %v2794 = vadd.f32 %v2612, %v2783
    %v2795 = vadd.f32 %v2613, %v2699
    %v2796 = vadd.f32 %v2614, %v2701
    %v2797 = vadd.f32 %v2615, %v2742
    %v2798 = vadd.f32 %v2616, %v2744
    %v2799 = vadd.f32 %v2617, %v2785
    %v2800 = vadd.f32 %v2618, %v2787
    %2801 = vrot.lane.b32.xlu0 %v1008, 48
    %v2802 = vpop.permute.xlu0 %2801
    %2803 = vrot.lane.b32.xlu0 %v1020, 92
    %v2804 = vpop.permute.xlu0 %2803
    %2805 = vrot.lane.b32.xlu0 %v1021, 92
    %v2806 = vpop.permute.xlu0 %2805
    %2807 = vrot.lane.b32.xlu0 %v1022, 92
    %v2808 = vpop.permute.xlu0 %2807
    %2809 = vrot.lane.b32.xlu0 %v1023, 92
    %v2810 = vpop.permute.xlu0 %2809
    %2811 = vrot.lane.b32.xlu0 %v1024, 92
    %v2812 = vpop.permute.xlu0 %2811
    %2813 = vrot.lane.b32.xlu0 %v1025, 92
    %v2814 = vpop.permute.xlu0 %2813
    %vm2815 = vcmask 752640
    %v2816 = vsel %vm2815, %v2804, %v2806
    %v2817 = vsel %vm2815, %v2806, %v2808
    %v2818 = vsel %vm2815, %v2808, %v2810
    %v2819 = vsel %vm2815, %v2810, %v2812
    %v2820 = vsel %vm2815, %v2812, %v2814
    %v2822 = vsel %vm1044, %v2802, 0
    %v2825 = vsel %vm324, %v2816, 0
    %v2828 = vsel %vm324, %v2817, 0
    %v2831 = vsel %vm324, %v2818, 0
    %v2834 = vsel %vm324, %v2819, 0
    %v2837 = vsel %vm324, %v2820, 0
    %v2840 = vsel %vm324, %v2814, 0
    %2842 = vmatprep.subr.bf16.mxu0 %v2828
    %2843 = vmatpush1.bf16.msra.mxu0 %v2825
    %2844 = vmatprep.subr.bf16.mxu0 0
    %2845 = vmatpush1.bf16.msra.mxu0 0
    %2846 = vmatprep.subr.bf16.mxu0 0
    %2847 = vmatpush1.bf16.msra.mxu0 0
    %2848 = vmatprep.subr.bf16.mxu0 0
    %2849 = vmatpush1.bf16.msra.mxu0 0
    %2850 = vmatprep.subr.bf16.mxu0 0
    %2851 = vmatpush1.bf16.msra.mxu0 0
    %2852 = vmatprep.subr.bf16.mxu0 0
    %2853 = vmatpush1.bf16.msra.mxu0 0
    %2854 = vmatprep.subr.bf16.mxu0 0
    %2855 = vmatpush1.bf16.msra.mxu0 0
    %2856 = vmatprep.subr.bf16.mxu0 0
    %2857 = vmatpush1.bf16.msra.mxu0 0
    %2858 = vmatprep.subr.bf16.mxu0 0
    %2859 = vmatpush1.bf16.msra.mxu0 0
    %2860 = vmatprep.subr.bf16.mxu0 0
    %2861 = vmatpush1.bf16.msra.mxu0 0
    %2862 = vmatprep.subr.bf16.mxu0 0
    %2863 = vmatpush1.bf16.msra.mxu0 0
    %2864 = vmatprep.subr.bf16.mxu0 0
    %2865 = vmatpush1.bf16.msra.mxu0 0
    %2866 = vmatprep.subr.bf16.mxu0 0
    %2867 = vmatpush1.bf16.msra.mxu0 0
    %2868 = vmatprep.subr.bf16.mxu0 0
    %2869 = vmatpush1.bf16.msra.mxu0 0
    %2870 = vmatprep.subr.bf16.mxu0 0
    %2871 = vmatpush1.bf16.msra.mxu0 0
    %2872 = vmatprep.subr.bf16.mxu0 0
    %2873 = vmatpush1.bf16.msra.mxu0 0
    %2874 = vmatprep.mubr.bf16.mxu0 0
    %2875 = vmatmul.mubr.bf16.gmra.mrb[0].mxu0 %v2822
    %v2876 = vpop.f32.mrb[0].mxu0
    %v2877 = vadd.f32 0.0, %v2876
    %v2878 = vpop.f32.mrb[0].mxu0
    %v2879 = vadd.f32 0.0, %v2878
    %v2880 = vpop.f32.mrb[0].mxu0
    %v2881 = vadd.f32 0.0, %v2880
    %v2882 = vpop.f32.mrb[0].mxu0
    %v2883 = vadd.f32 0.0, %v2882
    %2884 = vdwg.mxu0
    %2885 = vmatprep.subr.bf16.mxu0 %v2834
    %2886 = vmatpush1.bf16.msra.mxu0 %v2831
    %2887 = vmatprep.subr.bf16.mxu0 0
    %2888 = vmatpush1.bf16.msra.mxu0 0
    %2889 = vmatprep.subr.bf16.mxu0 0
    %2890 = vmatpush1.bf16.msra.mxu0 0
    %2891 = vmatprep.subr.bf16.mxu0 0
    %2892 = vmatpush1.bf16.msra.mxu0 0
    %2893 = vmatprep.subr.bf16.mxu0 0
    %2894 = vmatpush1.bf16.msra.mxu0 0
    %2895 = vmatprep.subr.bf16.mxu0 0
    %2896 = vmatpush1.bf16.msra.mxu0 0
    %2897 = vmatprep.subr.bf16.mxu0 0
    %2898 = vmatpush1.bf16.msra.mxu0 0
    %2899 = vmatprep.subr.bf16.mxu0 0
    %2900 = vmatpush1.bf16.msra.mxu0 0
    %2901 = vmatprep.subr.bf16.mxu0 0
    %2902 = vmatpush1.bf16.msra.mxu0 0
    %2903 = vmatprep.subr.bf16.mxu0 0
    %2904 = vmatpush1.bf16.msra.mxu0 0
    %2905 = vmatprep.subr.bf16.mxu0 0
    %2906 = vmatpush1.bf16.msra.mxu0 0
    %2907 = vmatprep.subr.bf16.mxu0 0
    %2908 = vmatpush1.bf16.msra.mxu0 0
    %2909 = vmatprep.subr.bf16.mxu0 0
    %2910 = vmatpush1.bf16.msra.mxu0 0
    %2911 = vmatprep.subr.bf16.mxu0 0
    %2912 = vmatpush1.bf16.msra.mxu0 0
    %2913 = vmatprep.subr.bf16.mxu0 0
    %2914 = vmatpush1.bf16.msra.mxu0 0
    %2915 = vmatprep.subr.bf16.mxu0 0
    %2916 = vmatpush1.bf16.msra.mxu0 0
    %2917 = vmatprep.mubr.bf16.mxu0 0
    %2918 = vmatmul.mubr.bf16.gmra.mrb[0].mxu0 %v2822
    %v2919 = vpop.f32.mrb[0].mxu0
    %v2920 = vadd.f32 0.0, %v2919
    %v2921 = vpop.f32.mrb[0].mxu0
    %v2922 = vadd.f32 0.0, %v2921
    %v2923 = vpop.f32.mrb[0].mxu0
    %v2924 = vadd.f32 0.0, %v2923
    %v2925 = vpop.f32.mrb[0].mxu0
    %v2926 = vadd.f32 0.0, %v2925
    %2927 = vdwg.mxu0
    %2928 = vmatprep.subr.bf16.mxu0 %v2840
    %2929 = vmatpush1.bf16.msra.mxu0 %v2837
    %2930 = vmatprep.subr.bf16.mxu0 0
    %2931 = vmatpush1.bf16.msra.mxu0 0
    %2932 = vmatprep.subr.bf16.mxu0 0
    %2933 = vmatpush1.bf16.msra.mxu0 0
    %2934 = vmatprep.subr.bf16.mxu0 0
    %2935 = vmatpush1.bf16.msra.mxu0 0
    %2936 = vmatprep.subr.bf16.mxu0 0
    %2937 = vmatpush1.bf16.msra.mxu0 0
    %2938 = vmatprep.subr.bf16.mxu0 0
    %2939 = vmatpush1.bf16.msra.mxu0 0
    %2940 = vmatprep.subr.bf16.mxu0 0
    %2941 = vmatpush1.bf16.msra.mxu0 0
    %2942 = vmatprep.subr.bf16.mxu0 0
    %2943 = vmatpush1.bf16.msra.mxu0 0
    %2944 = vmatprep.subr.bf16.mxu0 0
    %2945 = vmatpush1.bf16.msra.mxu0 0
    %2946 = vmatprep.subr.bf16.mxu0 0
    %2947 = vmatpush1.bf16.msra.mxu0 0
    %2948 = vmatprep.subr.bf16.mxu0 0
    %2949 = vmatpush1.bf16.msra.mxu0 0
    %2950 = vmatprep.subr.bf16.mxu0 0
    %2951 = vmatpush1.bf16.msra.mxu0 0
    %2952 = vmatprep.subr.bf16.mxu0 0
    %2953 = vmatpush1.bf16.msra.mxu0 0
    %2954 = vmatprep.subr.bf16.mxu0 0
    %2955 = vmatpush1.bf16.msra.mxu0 0
    %2956 = vmatprep.subr.bf16.mxu0 0
    %2957 = vmatpush1.bf16.msra.mxu0 0
    %2958 = vmatprep.subr.bf16.mxu0 0
    %2959 = vmatpush1.bf16.msra.mxu0 0
    %2960 = vmatprep.mubr.bf16.mxu0 0
    %2961 = vmatmul.mubr.bf16.gmra.mrb[0].mxu0 %v2822
    %v2962 = vpop.f32.mrb[0].mxu0
    %v2963 = vadd.f32 0.0, %v2962
    %v2964 = vpop.f32.mrb[0].mxu0
    %v2965 = vadd.f32 0.0, %v2964
    %v2966 = vpop.f32.mrb[0].mxu0
    %v2967 = vadd.f32 0.0, %v2966
    %v2968 = vpop.f32.mrb[0].mxu0
    %v2969 = vadd.f32 0.0, %v2968
    %2970 = vdwg.mxu0
    %v2971 = vadd.f32 %v2789, %v2877
    %v2972 = vadd.f32 %v2790, %v2879
    %v2973 = vadd.f32 %v2791, %v2920
    %v2974 = vadd.f32 %v2792, %v2922
    %v2975 = vadd.f32 %v2793, %v2963
    %v2976 = vadd.f32 %v2794, %v2965
    %v2977 = vadd.f32 %v2795, %v2881
    %v2978 = vadd.f32 %v2796, %v2883
    %v2979 = vadd.f32 %v2797, %v2924
    %v2980 = vadd.f32 %v2798, %v2926
    %v2981 = vadd.f32 %v2799, %v2967
    %v2982 = vadd.f32 %v2800, %v2969
    %2983 = vrot.lane.b32.xlu0 %v1008, 40
    %v2984 = vpop.permute.xlu0 %2983
    %2985 = vrot.lane.b32.xlu0 %v1020, 91
    %v2986 = vpop.permute.xlu0 %2985
    %2987 = vrot.lane.b32.xlu0 %v1021, 91
    %v2988 = vpop.permute.xlu0 %2987
    %2989 = vrot.lane.b32.xlu0 %v1022, 91
    %v2990 = vpop.permute.xlu0 %2989
    %2991 = vrot.lane.b32.xlu0 %v1023, 91
    %v2992 = vpop.permute.xlu0 %2991
    %2993 = vrot.lane.b32.xlu0 %v1024, 91
    %v2994 = vpop.permute.xlu0 %2993
    %2995 = vrot.lane.b32.xlu0 %v1025, 91
    %v2996 = vpop.permute.xlu0 %2995
    %vm2997 = vcmask 744448
    %v2998 = vsel %vm2997, %v2986, %v2988
    %v2999 = vsel %vm2997, %v2988, %v2990
    %v3000 = vsel %vm2997, %v2990, %v2992
    %v3001 = vsel %vm2997, %v2992, %v2994
    %v3002 = vsel %vm2997, %v2994, %v2996
    %v3004 = vsel %vm1044, %v2984, 0
    %v3007 = vsel %vm324, %v2998, 0
    %v3010 = vsel %vm324, %v2999, 0
    %v3013 = vsel %vm324, %v3000, 0
    %v3016 = vsel %vm324, %v3001, 0
    %v3019 = vsel %vm324, %v3002, 0
    %v3022 = vsel %vm324, %v2996, 0
    %3024 = vmatprep.subr.bf16.mxu0 %v3010
    %3025 = vmatpush1.bf16.msra.mxu0 %v3007
    %3026 = vmatprep.subr.bf16.mxu0 0
    %3027 = vmatpush1.bf16.msra.mxu0 0
    %3028 = vmatprep.subr.bf16.mxu0 0
    %3029 = vmatpush1.bf16.msra.mxu0 0
    %3030 = vmatprep.subr.bf16.mxu0 0
    %3031 = vmatpush1.bf16.msra.mxu0 0
    %3032 = vmatprep.subr.bf16.mxu0 0
    %3033 = vmatpush1.bf16.msra.mxu0 0
    %3034 = vmatprep.subr.bf16.mxu0 0
    %3035 = vmatpush1.bf16.msra.mxu0 0
    %3036 = vmatprep.subr.bf16.mxu0 0
    %3037 = vmatpush1.bf16.msra.mxu0 0
    %3038 = vmatprep.subr.bf16.mxu0 0
    %3039 = vmatpush1.bf16.msra.mxu0 0
    %3040 = vmatprep.subr.bf16.mxu0 0
    %3041 = vmatpush1.bf16.msra.mxu0 0
    %3042 = vmatprep.subr.bf16.mxu0 0
    %3043 = vmatpush1.bf16.msra.mxu0 0
    %3044 = vmatprep.subr.bf16.mxu0 0
    %3045 = vmatpush1.bf16.msra.mxu0 0
    %3046 = vmatprep.subr.bf16.mxu0 0
    %3047 = vmatpush1.bf16.msra.mxu0 0
    %3048 = vmatprep.subr.bf16.mxu0 0
    %3049 = vmatpush1.bf16.msra.mxu0 0
    %3050 = vmatprep.subr.bf16.mxu0 0
    %3051 = vmatpush1.bf16.msra.mxu0 0
    %3052 = vmatprep.subr.bf16.mxu0 0
    %3053 = vmatpush1.bf16.msra.mxu0 0
    %3054 = vmatprep.subr.bf16.mxu0 0
    %3055 = vmatpush1.bf16.msra.mxu0 0
    %3056 = vmatprep.mubr.bf16.mxu0 0
    %3057 = vmatmul.mubr.bf16.gmra.mrb[0].mxu0 %v3004
    %v3058 = vpop.f32.mrb[0].mxu0
    %v3059 = vadd.f32 0.0, %v3058
    %v3060 = vpop.f32.mrb[0].mxu0
    %v3061 = vadd.f32 0.0, %v3060
    %v3062 = vpop.f32.mrb[0].mxu0
    %v3063 = vadd.f32 0.0, %v3062
    %v3064 = vpop.f32.mrb[0].mxu0
    %v3065 = vadd.f32 0.0, %v3064
    %3066 = vdwg.mxu0
    %3067 = vmatprep.subr.bf16.mxu0 %v3016
    %3068 = vmatpush1.bf16.msra.mxu0 %v3013
    %3069 = vmatprep.subr.bf16.mxu0 0
    %3070 = vmatpush1.bf16.msra.mxu0 0
    %3071 = vmatprep.subr.bf16.mxu0 0
    %3072 = vmatpush1.bf16.msra.mxu0 0
    %3073 = vmatprep.subr.bf16.mxu0 0
    %3074 = vmatpush1.bf16.msra.mxu0 0
    %3075 = vmatprep.subr.bf16.mxu0 0
    %3076 = vmatpush1.bf16.msra.mxu0 0
    %3077 = vmatprep.subr.bf16.mxu0 0
    %3078 = vmatpush1.bf16.msra.mxu0 0
    %3079 = vmatprep.subr.bf16.mxu0 0
    %3080 = vmatpush1.bf16.msra.mxu0 0
    %3081 = vmatprep.subr.bf16.mxu0 0
    %3082 = vmatpush1.bf16.msra.mxu0 0
    %3083 = vmatprep.subr.bf16.mxu0 0
    %3084 = vmatpush1.bf16.msra.mxu0 0
    %3085 = vmatprep.subr.bf16.mxu0 0
    %3086 = vmatpush1.bf16.msra.mxu0 0
    %3087 = vmatprep.subr.bf16.mxu0 0
    %3088 = vmatpush1.bf16.msra.mxu0 0
    %3089 = vmatprep.subr.bf16.mxu0 0
    %3090 = vmatpush1.bf16.msra.mxu0 0
    %3091 = vmatprep.subr.bf16.mxu0 0
    %3092 = vmatpush1.bf16.msra.mxu0 0
    %3093 = vmatprep.subr.bf16.mxu0 0
    %3094 = vmatpush1.bf16.msra.mxu0 0
    %3095 = vmatprep.subr.bf16.mxu0 0
    %3096 = vmatpush1.bf16.msra.mxu0 0
    %3097 = vmatprep.subr.bf16.mxu0 0
    %3098 = vmatpush1.bf16.msra.mxu0 0
    %3099 = vmatprep.mubr.bf16.mxu0 0
    %3100 = vmatmul.mubr.bf16.gmra.mrb[0].mxu0 %v3004
    %v3101 = vpop.f32.mrb[0].mxu0
    %v3102 = vadd.f32 0.0, %v3101
    %v3103 = vpop.f32.mrb[0].mxu0
    %v3104 = vadd.f32 0.0, %v3103
    %v3105 = vpop.f32.mrb[0].mxu0
    %v3106 = vadd.f32 0.0, %v3105
    %v3107 = vpop.f32.mrb[0].mxu0
    %v3108 = vadd.f32 0.0, %v3107
    %3109 = vdwg.mxu0
    %3110 = vmatprep.subr.bf16.mxu0 %v3022
    %3111 = vmatpush1.bf16.msra.mxu0 %v3019
    %3112 = vmatprep.subr.bf16.mxu0 0
    %3113 = vmatpush1.bf16.msra.mxu0 0
    %3114 = vmatprep.subr.bf16.mxu0 0
    %3115 = vmatpush1.bf16.msra.mxu0 0
    %3116 = vmatprep.subr.bf16.mxu0 0
    %3117 = vmatpush1.bf16.msra.mxu0 0
    %3118 = vmatprep.subr.bf16.mxu0 0
    %3119 = vmatpush1.bf16.msra.mxu0 0
    %3120 = vmatprep.subr.bf16.mxu0 0
    %3121 = vmatpush1.bf16.msra.mxu0 0
    %3122 = vmatprep.subr.bf16.mxu0 0
    %3123 = vmatpush1.bf16.msra.mxu0 0
    %3124 = vmatprep.subr.bf16.mxu0 0
    %3125 = vmatpush1.bf16.msra.mxu0 0
    %3126 = vmatprep.subr.bf16.mxu0 0
    %3127 = vmatpush1.bf16.msra.mxu0 0
    %3128 = vmatprep.subr.bf16.mxu0 0
    %3129 = vmatpush1.bf16.msra.mxu0 0
    %3130 = vmatprep.subr.bf16.mxu0 0
    %3131 = vmatpush1.bf16.msra.mxu0 0
    %3132 = vmatprep.subr.bf16.mxu0 0
    %3133 = vmatpush1.bf16.msra.mxu0 0
    %3134 = vmatprep.subr.bf16.mxu0 0
    %3135 = vmatpush1.bf16.msra.mxu0 0
    %3136 = vmatprep.subr.bf16.mxu0 0
    %3137 = vmatpush1.bf16.msra.mxu0 0
    %3138 = vmatprep.subr.bf16.mxu0 0
    %3139 = vmatpush1.bf16.msra.mxu0 0
    %3140 = vmatprep.subr.bf16.mxu0 0
    %3141 = vmatpush1.bf16.msra.mxu0 0
    %3142 = vmatprep.mubr.bf16.mxu0 0
    %3143 = vmatmul.mubr.bf16.gmra.mrb[0].mxu0 %v3004
    %v3144 = vpop.f32.mrb[0].mxu0
    %v3145 = vadd.f32 0.0, %v3144
    %v3146 = vpop.f32.mrb[0].mxu0
    %v3147 = vadd.f32 0.0, %v3146
    %v3148 = vpop.f32.mrb[0].mxu0
    %v3149 = vadd.f32 0.0, %v3148
    %v3150 = vpop.f32.mrb[0].mxu0
    %v3151 = vadd.f32 0.0, %v3150
    %3152 = vdwg.mxu0
    %v3153 = vadd.f32 %v2971, %v3059
    %v3154 = vadd.f32 %v2972, %v3061
    %v3155 = vadd.f32 %v2973, %v3102
    %v3156 = vadd.f32 %v2974, %v3104
    %v3157 = vadd.f32 %v2975, %v3145
    %v3158 = vadd.f32 %v2976, %v3147
    %v3159 = vadd.f32 %v2977, %v3063
    %v3160 = vadd.f32 %v2978, %v3065
    %v3161 = vadd.f32 %v2979, %v3106
    %v3162 = vadd.f32 %v2980, %v3108
    %v3163 = vadd.f32 %v2981, %v3149
    %v3164 = vadd.f32 %v2982, %v3151
    %3165 = vrot.lane.b32.xlu0 %v1008, 32
    %v3166 = vpop.permute.xlu0 %3165
    %3167 = vrot.lane.b32.xlu0 %v1020, 90
    %v3168 = vpop.permute.xlu0 %3167
    %3169 = vrot.lane.b32.xlu0 %v1021, 90
    %v3170 = vpop.permute.xlu0 %3169
    %3171 = vrot.lane.b32.xlu0 %v1022, 90
    %v3172 = vpop.permute.xlu0 %3171
    %3173 = vrot.lane.b32.xlu0 %v1023, 90
    %v3174 = vpop.permute.xlu0 %3173
    %3175 = vrot.lane.b32.xlu0 %v1024, 90
    %v3176 = vpop.permute.xlu0 %3175
    %3177 = vrot.lane.b32.xlu0 %v1025, 90
    %v3178 = vpop.permute.xlu0 %3177
    %vm3179 = vcmask 736256
    %v3180 = vsel %vm3179, %v3168, %v3170
    %v3181 = vsel %vm3179, %v3170, %v3172
    %v3182 = vsel %vm3179, %v3172, %v3174
    %v3183 = vsel %vm3179, %v3174, %v3176
    %v3184 = vsel %vm3179, %v3176, %v3178
    %v3186 = vsel %vm1044, %v3166, 0
    %v3189 = vsel %vm324, %v3180, 0
    %v3192 = vsel %vm324, %v3181, 0
    %v3195 = vsel %vm324, %v3182, 0
    %v3198 = vsel %vm324, %v3183, 0
    %v3201 = vsel %vm324, %v3184, 0
    %v3204 = vsel %vm324, %v3178, 0
    %3206 = vmatprep.subr.bf16.mxu0 %v3192
    %3207 = vmatpush1.bf16.msra.mxu0 %v3189
    %3208 = vmatprep.subr.bf16.mxu0 0
    %3209 = vmatpush1.bf16.msra.mxu0 0
    %3210 = vmatprep.subr.bf16.mxu0 0
    %3211 = vmatpush1.bf16.msra.mxu0 0
    %3212 = vmatprep.subr.bf16.mxu0 0
    %3213 = vmatpush1.bf16.msra.mxu0 0
    %3214 = vmatprep.subr.bf16.mxu0 0
    %3215 = vmatpush1.bf16.msra.mxu0 0
    %3216 = vmatprep.subr.bf16.mxu0 0
    %3217 = vmatpush1.bf16.msra.mxu0 0
    %3218 = vmatprep.subr.bf16.mxu0 0
    %3219 = vmatpush1.bf16.msra.mxu0 0
    %3220 = vmatprep.subr.bf16.mxu0 0
    %3221 = vmatpush1.bf16.msra.mxu0 0
    %3222 = vmatprep.subr.bf16.mxu0 0
    %3223 = vmatpush1.bf16.msra.mxu0 0
    %3224 = vmatprep.subr.bf16.mxu0 0
    %3225 = vmatpush1.bf16.msra.mxu0 0
    %3226 = vmatprep.subr.bf16.mxu0 0
    %3227 = vmatpush1.bf16.msra.mxu0 0
    %3228 = vmatprep.subr.bf16.mxu0 0
    %3229 = vmatpush1.bf16.msra.mxu0 0
    %3230 = vmatprep.subr.bf16.mxu0 0
    %3231 = vmatpush1.bf16.msra.mxu0 0
    %3232 = vmatprep.subr.bf16.mxu0 0
    %3233 = vmatpush1.bf16.msra.mxu0 0
    %3234 = vmatprep.subr.bf16.mxu0 0
    %3235 = vmatpush1.bf16.msra.mxu0 0
    %3236 = vmatprep.subr.bf16.mxu0 0
    %3237 = vmatpush1.bf16.msra.mxu0 0
    %3238 = vmatprep.mubr.bf16.mxu0 0
    %3239 = vmatmul.mubr.bf16.gmra.mrb[0].mxu0 %v3186
    %v3240 = vpop.f32.mrb[0].mxu0
    %v3241 = vadd.f32 0.0, %v3240
    %v3242 = vpop.f32.mrb[0].mxu0
    %v3243 = vadd.f32 0.0, %v3242
    %v3244 = vpop.f32.mrb[0].mxu0
    %v3245 = vadd.f32 0.0, %v3244
    %v3246 = vpop.f32.mrb[0].mxu0
    %v3247 = vadd.f32 0.0, %v3246
    %3248 = vdwg.mxu0
    %3249 = vmatprep.subr.bf16.mxu0 %v3198
    %3250 = vmatpush1.bf16.msra.mxu0 %v3195
    %3251 = vmatprep.subr.bf16.mxu0 0
    %3252 = vmatpush1.bf16.msra.mxu0 0
    %3253 = vmatprep.subr.bf16.mxu0 0
    %3254 = vmatpush1.bf16.msra.mxu0 0
    %3255 = vmatprep.subr.bf16.mxu0 0
    %3256 = vmatpush1.bf16.msra.mxu0 0
    %3257 = vmatprep.subr.bf16.mxu0 0
    %3258 = vmatpush1.bf16.msra.mxu0 0
    %3259 = vmatprep.subr.bf16.mxu0 0
    %3260 = vmatpush1.bf16.msra.mxu0 0
    %3261 = vmatprep.subr.bf16.mxu0 0
    %3262 = vmatpush1.bf16.msra.mxu0 0
    %3263 = vmatprep.subr.bf16.mxu0 0
    %3264 = vmatpush1.bf16.msra.mxu0 0
    %3265 = vmatprep.subr.bf16.mxu0 0
    %3266 = vmatpush1.bf16.msra.mxu0 0
    %3267 = vmatprep.subr.bf16.mxu0 0
    %3268 = vmatpush1.bf16.msra.mxu0 0
    %3269 = vmatprep.subr.bf16.mxu0 0
    %3270 = vmatpush1.bf16.msra.mxu0 0
    %3271 = vmatprep.subr.bf16.mxu0 0
    %3272 = vmatpush1.bf16.msra.mxu0 0
    %3273 = vmatprep.subr.bf16.mxu0 0
    %3274 = vmatpush1.bf16.msra.mxu0 0
    %3275 = vmatprep.subr.bf16.mxu0 0
    %3276 = vmatpush1.bf16.msra.mxu0 0
    %3277 = vmatprep.subr.bf16.mxu0 0
    %3278 = vmatpush1.bf16.msra.mxu0 0
    %3279 = vmatprep.subr.bf16.mxu0 0
    %3280 = vmatpush1.bf16.msra.mxu0 0
    %3281 = vmatprep.mubr.bf16.mxu0 0
    %3282 = vmatmul.mubr.bf16.gmra.mrb[0].mxu0 %v3186
    %v3283 = vpop.f32.mrb[0].mxu0
    %v3284 = vadd.f32 0.0, %v3283
    %v3285 = vpop.f32.mrb[0].mxu0
    %v3286 = vadd.f32 0.0, %v3285
    %v3287 = vpop.f32.mrb[0].mxu0
    %v3288 = vadd.f32 0.0, %v3287
    %v3289 = vpop.f32.mrb[0].mxu0
    %v3290 = vadd.f32 0.0, %v3289
    %3291 = vdwg.mxu0
    %3292 = vmatprep.subr.bf16.mxu0 %v3204
    %3293 = vmatpush1.bf16.msra.mxu0 %v3201
    %3294 = vmatprep.subr.bf16.mxu0 0
    %3295 = vmatpush1.bf16.msra.mxu0 0
    %3296 = vmatprep.subr.bf16.mxu0 0
    %3297 = vmatpush1.bf16.msra.mxu0 0
    %3298 = vmatprep.subr.bf16.mxu0 0
    %3299 = vmatpush1.bf16.msra.mxu0 0
    %3300 = vmatprep.subr.bf16.mxu0 0
    %3301 = vmatpush1.bf16.msra.mxu0 0
    %3302 = vmatprep.subr.bf16.mxu0 0
    %3303 = vmatpush1.bf16.msra.mxu0 0
    %3304 = vmatprep.subr.bf16.mxu0 0
    %3305 = vmatpush1.bf16.msra.mxu0 0
    %3306 = vmatprep.subr.bf16.mxu0 0
    %3307 = vmatpush1.bf16.msra.mxu0 0
    %3308 = vmatprep.subr.bf16.mxu0 0
    %3309 = vmatpush1.bf16.msra.mxu0 0
    %3310 = vmatprep.subr.bf16.mxu0 0
    %3311 = vmatpush1.bf16.msra.mxu0 0
    %3312 = vmatprep.subr.bf16.mxu0 0
    %3313 = vmatpush1.bf16.msra.mxu0 0
    %3314 = vmatprep.subr.bf16.mxu0 0
    %3315 = vmatpush1.bf16.msra.mxu0 0
    %3316 = vmatprep.subr.bf16.mxu0 0
    %3317 = vmatpush1.bf16.msra.mxu0 0
    %3318 = vmatprep.subr.bf16.mxu0 0
    %3319 = vmatpush1.bf16.msra.mxu0 0
    %3320 = vmatprep.subr.bf16.mxu0 0
    %3321 = vmatpush1.bf16.msra.mxu0 0
    %3322 = vmatprep.subr.bf16.mxu0 0
    %3323 = vmatpush1.bf16.msra.mxu0 0
    %3324 = vmatprep.mubr.bf16.mxu0 0
    %3325 = vmatmul.mubr.bf16.gmra.mrb[0].mxu0 %v3186
    %v3326 = vpop.f32.mrb[0].mxu0
    %v3327 = vadd.f32 0.0, %v3326
    %v3328 = vpop.f32.mrb[0].mxu0
    %v3329 = vadd.f32 0.0, %v3328
    %v3330 = vpop.f32.mrb[0].mxu0
    %v3331 = vadd.f32 0.0, %v3330
    %v3332 = vpop.f32.mrb[0].mxu0
    %v3333 = vadd.f32 0.0, %v3332
    %3334 = vdwg.mxu0
    %v3335 = vadd.f32 %v3153, %v3241
    %v3336 = vadd.f32 %v3154, %v3243
    %v3337 = vadd.f32 %v3155, %v3284
    %v3338 = vadd.f32 %v3156, %v3286
    %v3339 = vadd.f32 %v3157, %v3327
    %v3340 = vadd.f32 %v3158, %v3329
    %v3341 = vadd.f32 %v3159, %v3245
    %v3342 = vadd.f32 %v3160, %v3247
    %v3343 = vadd.f32 %v3161, %v3288
    %v3344 = vadd.f32 %v3162, %v3290
    %v3345 = vadd.f32 %v3163, %v3331
    %v3346 = vadd.f32 %v3164, %v3333
    %3347 = vrot.lane.b32.xlu0 %v1008, 24
    %v3348 = vpop.permute.xlu0 %3347
    %3349 = vrot.lane.b32.xlu0 %v1020, 89
    %v3350 = vpop.permute.xlu0 %3349
    %3351 = vrot.lane.b32.xlu0 %v1021, 89
    %v3352 = vpop.permute.xlu0 %3351
    %3353 = vrot.lane.b32.xlu0 %v1022, 89
    %v3354 = vpop.permute.xlu0 %3353
    %3355 = vrot.lane.b32.xlu0 %v1023, 89
    %v3356 = vpop.permute.xlu0 %3355
    %3357 = vrot.lane.b32.xlu0 %v1024, 89
    %v3358 = vpop.permute.xlu0 %3357
    %3359 = vrot.lane.b32.xlu0 %v1025, 89
    %v3360 = vpop.permute.xlu0 %3359
    %vm3361 = vcmask 728064
    %v3362 = vsel %vm3361, %v3350, %v3352
    %v3363 = vsel %vm3361, %v3352, %v3354
    %v3364 = vsel %vm3361, %v3354, %v3356
    %v3365 = vsel %vm3361, %v3356, %v3358
    %v3366 = vsel %vm3361, %v3358, %v3360
    %v3368 = vsel %vm1044, %v3348, 0
    %v3371 = vsel %vm324, %v3362, 0
    %v3374 = vsel %vm324, %v3363, 0
    %v3377 = vsel %vm324, %v3364, 0
    %v3380 = vsel %vm324, %v3365, 0
    %v3383 = vsel %vm324, %v3366, 0
    %v3386 = vsel %vm324, %v3360, 0
    %3388 = vmatprep.subr.bf16.mxu0 %v3374
    %3389 = vmatpush1.bf16.msra.mxu0 %v3371
    %3390 = vmatprep.subr.bf16.mxu0 0
    %3391 = vmatpush1.bf16.msra.mxu0 0
    %3392 = vmatprep.subr.bf16.mxu0 0
    %3393 = vmatpush1.bf16.msra.mxu0 0
    %3394 = vmatprep.subr.bf16.mxu0 0
    %3395 = vmatpush1.bf16.msra.mxu0 0
    %3396 = vmatprep.subr.bf16.mxu0 0
    %3397 = vmatpush1.bf16.msra.mxu0 0
    %3398 = vmatprep.subr.bf16.mxu0 0
    %3399 = vmatpush1.bf16.msra.mxu0 0
    %3400 = vmatprep.subr.bf16.mxu0 0
    %3401 = vmatpush1.bf16.msra.mxu0 0
    %3402 = vmatprep.subr.bf16.mxu0 0
    %3403 = vmatpush1.bf16.msra.mxu0 0
    %3404 = vmatprep.subr.bf16.mxu0 0
    %3405 = vmatpush1.bf16.msra.mxu0 0
    %3406 = vmatprep.subr.bf16.mxu0 0
    %3407 = vmatpush1.bf16.msra.mxu0 0
    %3408 = vmatprep.subr.bf16.mxu0 0
    %3409 = vmatpush1.bf16.msra.mxu0 0
    %3410 = vmatprep.subr.bf16.mxu0 0
    %3411 = vmatpush1.bf16.msra.mxu0 0
    %3412 = vmatprep.subr.bf16.mxu0 0
    %3413 = vmatpush1.bf16.msra.mxu0 0
    %3414 = vmatprep.subr.bf16.mxu0 0
    %3415 = vmatpush1.bf16.msra.mxu0 0
    %3416 = vmatprep.subr.bf16.mxu0 0
    %3417 = vmatpush1.bf16.msra.mxu0 0
    %3418 = vmatprep.subr.bf16.mxu0 0
    %3419 = vmatpush1.bf16.msra.mxu0 0
    %3420 = vmatprep.mubr.bf16.mxu0 0
    %3421 = vmatmul.mubr.bf16.gmra.mrb[0].mxu0 %v3368
    %v3422 = vpop.f32.mrb[0].mxu0
    %v3423 = vadd.f32 0.0, %v3422
    %v3424 = vpop.f32.mrb[0].mxu0
    %v3425 = vadd.f32 0.0, %v3424
    %v3426 = vpop.f32.mrb[0].mxu0
    %v3427 = vadd.f32 0.0, %v3426
    %v3428 = vpop.f32.mrb[0].mxu0
    %v3429 = vadd.f32 0.0, %v3428
    %3430 = vdwg.mxu0
    %3431 = vmatprep.subr.bf16.mxu0 %v3380
    %3432 = vmatpush1.bf16.msra.mxu0 %v3377
    %3433 = vmatprep.subr.bf16.mxu0 0
    %3434 = vmatpush1.bf16.msra.mxu0 0
    %3435 = vmatprep.subr.bf16.mxu0 0
    %3436 = vmatpush1.bf16.msra.mxu0 0
    %3437 = vmatprep.subr.bf16.mxu0 0
    %3438 = vmatpush1.bf16.msra.mxu0 0
    %3439 = vmatprep.subr.bf16.mxu0 0
    %3440 = vmatpush1.bf16.msra.mxu0 0
    %3441 = vmatprep.subr.bf16.mxu0 0
    %3442 = vmatpush1.bf16.msra.mxu0 0
    %3443 = vmatprep.subr.bf16.mxu0 0
    %3444 = vmatpush1.bf16.msra.mxu0 0
    %3445 = vmatprep.subr.bf16.mxu0 0
    %3446 = vmatpush1.bf16.msra.mxu0 0
    %3447 = vmatprep.subr.bf16.mxu0 0
    %3448 = vmatpush1.bf16.msra.mxu0 0
    %3449 = vmatprep.subr.bf16.mxu0 0
    %3450 = vmatpush1.bf16.msra.mxu0 0
    %3451 = vmatprep.subr.bf16.mxu0 0
    %3452 = vmatpush1.bf16.msra.mxu0 0
    %3453 = vmatprep.subr.bf16.mxu0 0
    %3454 = vmatpush1.bf16.msra.mxu0 0
    %3455 = vmatprep.subr.bf16.mxu0 0
    %3456 = vmatpush1.bf16.msra.mxu0 0
    %3457 = vmatprep.subr.bf16.mxu0 0
    %3458 = vmatpush1.bf16.msra.mxu0 0
    %3459 = vmatprep.subr.bf16.mxu0 0
    %3460 = vmatpush1.bf16.msra.mxu0 0
    %3461 = vmatprep.subr.bf16.mxu0 0
    %3462 = vmatpush1.bf16.msra.mxu0 0
    %3463 = vmatprep.mubr.bf16.mxu0 0
    %3464 = vmatmul.mubr.bf16.gmra.mrb[0].mxu0 %v3368
    %v3465 = vpop.f32.mrb[0].mxu0
    %v3466 = vadd.f32 0.0, %v3465
    %v3467 = vpop.f32.mrb[0].mxu0
    %v3468 = vadd.f32 0.0, %v3467
    %v3469 = vpop.f32.mrb[0].mxu0
    %v3470 = vadd.f32 0.0, %v3469
    %v3471 = vpop.f32.mrb[0].mxu0
    %v3472 = vadd.f32 0.0, %v3471
    %3473 = vdwg.mxu0
    %3474 = vmatprep.subr.bf16.mxu0 %v3386
    %3475 = vmatpush1.bf16.msra.mxu0 %v3383
    %3476 = vmatprep.subr.bf16.mxu0 0
    %3477 = vmatpush1.bf16.msra.mxu0 0
    %3478 = vmatprep.subr.bf16.mxu0 0
    %3479 = vmatpush1.bf16.msra.mxu0 0
    %3480 = vmatprep.subr.bf16.mxu0 0
    %3481 = vmatpush1.bf16.msra.mxu0 0
    %3482 = vmatprep.subr.bf16.mxu0 0
    %3483 = vmatpush1.bf16.msra.mxu0 0
    %3484 = vmatprep.subr.bf16.mxu0 0
    %3485 = vmatpush1.bf16.msra.mxu0 0
    %3486 = vmatprep.subr.bf16.mxu0 0
    %3487 = vmatpush1.bf16.msra.mxu0 0
    %3488 = vmatprep.subr.bf16.mxu0 0
    %3489 = vmatpush1.bf16.msra.mxu0 0
    %3490 = vmatprep.subr.bf16.mxu0 0
    %3491 = vmatpush1.bf16.msra.mxu0 0
    %3492 = vmatprep.subr.bf16.mxu0 0
    %3493 = vmatpush1.bf16.msra.mxu0 0
    %3494 = vmatprep.subr.bf16.mxu0 0
    %3495 = vmatpush1.bf16.msra.mxu0 0
    %3496 = vmatprep.subr.bf16.mxu0 0
    %3497 = vmatpush1.bf16.msra.mxu0 0
    %3498 = vmatprep.subr.bf16.mxu0 0
    %3499 = vmatpush1.bf16.msra.mxu0 0
    %3500 = vmatprep.subr.bf16.mxu0 0
    %3501 = vmatpush1.bf16.msra.mxu0 0
    %3502 = vmatprep.subr.bf16.mxu0 0
    %3503 = vmatpush1.bf16.msra.mxu0 0
    %3504 = vmatprep.subr.bf16.mxu0 0
    %3505 = vmatpush1.bf16.msra.mxu0 0
    %3506 = vmatprep.mubr.bf16.mxu0 0
    %3507 = vmatmul.mubr.bf16.gmra.mrb[0].mxu0 %v3368
    %v3508 = vpop.f32.mrb[0].mxu0
    %v3509 = vadd.f32 0.0, %v3508
    %v3510 = vpop.f32.mrb[0].mxu0
    %v3511 = vadd.f32 0.0, %v3510
    %v3512 = vpop.f32.mrb[0].mxu0
    %v3513 = vadd.f32 0.0, %v3512
    %v3514 = vpop.f32.mrb[0].mxu0
    %v3515 = vadd.f32 0.0, %v3514
    %3516 = vdwg.mxu0
    %v3517 = vadd.f32 %v3335, %v3423
    %v3518 = vadd.f32 %v3336, %v3425
    %v3519 = vadd.f32 %v3337, %v3466
    %v3520 = vadd.f32 %v3338, %v3468
    %v3521 = vadd.f32 %v3339, %v3509
    %v3522 = vadd.f32 %v3340, %v3511
    %v3523 = vadd.f32 %v3341, %v3427
    %v3524 = vadd.f32 %v3342, %v3429
    %v3525 = vadd.f32 %v3343, %v3470
    %v3526 = vadd.f32 %v3344, %v3472
    %v3527 = vadd.f32 %v3345, %v3513
    %v3528 = vadd.f32 %v3346, %v3515
    %3529 = vrot.lane.b32.xlu0 %v1008, 16
    %v3530 = vpop.permute.xlu0 %3529
    %3531 = vrot.lane.b32.xlu0 %v1020, 88
    %v3532 = vpop.permute.xlu0 %3531
    %3533 = vrot.lane.b32.xlu0 %v1021, 88
    %v3534 = vpop.permute.xlu0 %3533
    %3535 = vrot.lane.b32.xlu0 %v1022, 88
    %v3536 = vpop.permute.xlu0 %3535
    %3537 = vrot.lane.b32.xlu0 %v1023, 88
    %v3538 = vpop.permute.xlu0 %3537
    %3539 = vrot.lane.b32.xlu0 %v1024, 88
    %v3540 = vpop.permute.xlu0 %3539
    %3541 = vrot.lane.b32.xlu0 %v1025, 88
    %v3542 = vpop.permute.xlu0 %3541
    %vm3543 = vcmask 719872
    %v3544 = vsel %vm3543, %v3532, %v3534
    %v3545 = vsel %vm3543, %v3534, %v3536
    %v3546 = vsel %vm3543, %v3536, %v3538
    %v3547 = vsel %vm3543, %v3538, %v3540
    %v3548 = vsel %vm3543, %v3540, %v3542
    %v3550 = vsel %vm1044, %v3530, 0
    %v3553 = vsel %vm324, %v3544, 0
    %v3556 = vsel %vm324, %v3545, 0
    %v3559 = vsel %vm324, %v3546, 0
    %v3562 = vsel %vm324, %v3547, 0
    %v3565 = vsel %vm324, %v3548, 0
    %v3568 = vsel %vm324, %v3542, 0
    %3570 = vmatprep.subr.bf16.mxu0 %v3556
    %3571 = vmatpush1.bf16.msra.mxu0 %v3553
    %3572 = vmatprep.subr.bf16.mxu0 0
    %3573 = vmatpush1.bf16.msra.mxu0 0
    %3574 = vmatprep.subr.bf16.mxu0 0
    %3575 = vmatpush1.bf16.msra.mxu0 0
    %3576 = vmatprep.subr.bf16.mxu0 0
    %3577 = vmatpush1.bf16.msra.mxu0 0
    %3578 = vmatprep.subr.bf16.mxu0 0
    %3579 = vmatpush1.bf16.msra.mxu0 0
    %3580 = vmatprep.subr.bf16.mxu0 0
    %3581 = vmatpush1.bf16.msra.mxu0 0
    %3582 = vmatprep.subr.bf16.mxu0 0
    %3583 = vmatpush1.bf16.msra.mxu0 0
    %3584 = vmatprep.subr.bf16.mxu0 0
    %3585 = vmatpush1.bf16.msra.mxu0 0
    %3586 = vmatprep.subr.bf16.mxu0 0
    %3587 = vmatpush1.bf16.msra.mxu0 0
    %3588 = vmatprep.subr.bf16.mxu0 0
    %3589 = vmatpush1.bf16.msra.mxu0 0
    %3590 = vmatprep.subr.bf16.mxu0 0
    %3591 = vmatpush1.bf16.msra.mxu0 0
    %3592 = vmatprep.subr.bf16.mxu0 0
    %3593 = vmatpush1.bf16.msra.mxu0 0
    %3594 = vmatprep.subr.bf16.mxu0 0
    %3595 = vmatpush1.bf16.msra.mxu0 0
    %3596 = vmatprep.subr.bf16.mxu0 0
    %3597 = vmatpush1.bf16.msra.mxu0 0
    %3598 = vmatprep.subr.bf16.mxu0 0
    %3599 = vmatpush1.bf16.msra.mxu0 0
    %3600 = vmatprep.subr.bf16.mxu0 0
    %3601 = vmatpush1.bf16.msra.mxu0 0
    %3602 = vmatprep.mubr.bf16.mxu0 0
    %3603 = vmatmul.mubr.bf16.gmra.mrb[0].mxu0 %v3550
    %v3604 = vpop.f32.mrb[0].mxu0
    %v3605 = vadd.f32 0.0, %v3604
    %v3606 = vpop.f32.mrb[0].mxu0
    %v3607 = vadd.f32 0.0, %v3606
    %v3608 = vpop.f32.mrb[0].mxu0
    %v3609 = vadd.f32 0.0, %v3608
    %v3610 = vpop.f32.mrb[0].mxu0
    %v3611 = vadd.f32 0.0, %v3610
    %3612 = vdwg.mxu0
    %3613 = vmatprep.subr.bf16.mxu0 %v3562
    %3614 = vmatpush1.bf16.msra.mxu0 %v3559
    %3615 = vmatprep.subr.bf16.mxu0 0
    %3616 = vmatpush1.bf16.msra.mxu0 0
    %3617 = vmatprep.subr.bf16.mxu0 0
    %3618 = vmatpush1.bf16.msra.mxu0 0
    %3619 = vmatprep.subr.bf16.mxu0 0
    %3620 = vmatpush1.bf16.msra.mxu0 0
    %3621 = vmatprep.subr.bf16.mxu0 0
    %3622 = vmatpush1.bf16.msra.mxu0 0
    %3623 = vmatprep.subr.bf16.mxu0 0
    %3624 = vmatpush1.bf16.msra.mxu0 0
    %3625 = vmatprep.subr.bf16.mxu0 0
    %3626 = vmatpush1.bf16.msra.mxu0 0
    %3627 = vmatprep.subr.bf16.mxu0 0
    %3628 = vmatpush1.bf16.msra.mxu0 0
    %3629 = vmatprep.subr.bf16.mxu0 0
    %3630 = vmatpush1.bf16.msra.mxu0 0
    %3631 = vmatprep.subr.bf16.mxu0 0
    %3632 = vmatpush1.bf16.msra.mxu0 0
    %3633 = vmatprep.subr.bf16.mxu0 0
    %3634 = vmatpush1.bf16.msra.mxu0 0
    %3635 = vmatprep.subr.bf16.mxu0 0
    %3636 = vmatpush1.bf16.msra.mxu0 0
    %3637 = vmatprep.subr.bf16.mxu0 0
    %3638 = vmatpush1.bf16.msra.mxu0 0
    %3639 = vmatprep.subr.bf16.mxu0 0
    %3640 = vmatpush1.bf16.msra.mxu0 0
    %3641 = vmatprep.subr.bf16.mxu0 0
    %3642 = vmatpush1.bf16.msra.mxu0 0
    %3643 = vmatprep.subr.bf16.mxu0 0
    %3644 = vmatpush1.bf16.msra.mxu0 0
    %3645 = vmatprep.mubr.bf16.mxu0 0
    %3646 = vmatmul.mubr.bf16.gmra.mrb[0].mxu0 %v3550
    %v3647 = vpop.f32.mrb[0].mxu0
    %v3648 = vadd.f32 0.0, %v3647
    %v3649 = vpop.f32.mrb[0].mxu0
    %v3650 = vadd.f32 0.0, %v3649
    %v3651 = vpop.f32.mrb[0].mxu0
    %v3652 = vadd.f32 0.0, %v3651
    %v3653 = vpop.f32.mrb[0].mxu0
    %v3654 = vadd.f32 0.0, %v3653
    %3655 = vdwg.mxu0
    %3656 = vmatprep.subr.bf16.mxu0 %v3568
    %3657 = vmatpush1.bf16.msra.mxu0 %v3565
    %3658 = vmatprep.subr.bf16.mxu0 0
    %3659 = vmatpush1.bf16.msra.mxu0 0
    %3660 = vmatprep.subr.bf16.mxu0 0
    %3661 = vmatpush1.bf16.msra.mxu0 0
    %3662 = vmatprep.subr.bf16.mxu0 0
    %3663 = vmatpush1.bf16.msra.mxu0 0
    %3664 = vmatprep.subr.bf16.mxu0 0
    %3665 = vmatpush1.bf16.msra.mxu0 0
    %3666 = vmatprep.subr.bf16.mxu0 0
    %3667 = vmatpush1.bf16.msra.mxu0 0
    %3668 = vmatprep.subr.bf16.mxu0 0
    %3669 = vmatpush1.bf16.msra.mxu0 0
    %3670 = vmatprep.subr.bf16.mxu0 0
    %3671 = vmatpush1.bf16.msra.mxu0 0
    %3672 = vmatprep.subr.bf16.mxu0 0
    %3673 = vmatpush1.bf16.msra.mxu0 0
    %3674 = vmatprep.subr.bf16.mxu0 0
    %3675 = vmatpush1.bf16.msra.mxu0 0
    %3676 = vmatprep.subr.bf16.mxu0 0
    %3677 = vmatpush1.bf16.msra.mxu0 0
    %3678 = vmatprep.subr.bf16.mxu0 0
    %3679 = vmatpush1.bf16.msra.mxu0 0
    %3680 = vmatprep.subr.bf16.mxu0 0
    %3681 = vmatpush1.bf16.msra.mxu0 0
    %3682 = vmatprep.subr.bf16.mxu0 0
    %3683 = vmatpush1.bf16.msra.mxu0 0
    %3684 = vmatprep.subr.bf16.mxu0 0
    %3685 = vmatpush1.bf16.msra.mxu0 0
    %3686 = vmatprep.subr.bf16.mxu0 0
    %3687 = vmatpush1.bf16.msra.mxu0 0
    %3688 = vmatprep.mubr.bf16.mxu0 0
    %3689 = vmatmul.mubr.bf16.gmra.mrb[0].mxu0 %v3550
    %v3690 = vpop.f32.mrb[0].mxu0
    %v3691 = vadd.f32 0.0, %v3690
    %v3692 = vpop.f32.mrb[0].mxu0
    %v3693 = vadd.f32 0.0, %v3692
    %v3694 = vpop.f32.mrb[0].mxu0
    %v3695 = vadd.f32 0.0, %v3694
    %v3696 = vpop.f32.mrb[0].mxu0
    %v3697 = vadd.f32 0.0, %v3696
    %3698 = vdwg.mxu0
    %v3699 = vadd.f32 %v3517, %v3605
    %v3700 = vadd.f32 %v3518, %v3607
    %v3701 = vadd.f32 %v3519, %v3648
    %v3702 = vadd.f32 %v3520, %v3650
    %v3703 = vadd.f32 %v3521, %v3691
    %v3704 = vadd.f32 %v3522, %v3693
    %v3705 = vadd.f32 %v3523, %v3609
    %v3706 = vadd.f32 %v3524, %v3611
    %v3707 = vadd.f32 %v3525, %v3652
    %v3708 = vadd.f32 %v3526, %v3654
    %v3709 = vadd.f32 %v3527, %v3695
    %v3710 = vadd.f32 %v3528, %v3697
    %3711 = vrot.lane.b32.xlu0 %v1008, 8
    %v3712 = vpop.permute.xlu0 %3711
    %3713 = vrot.lane.b32.xlu0 %v1020, 74
    %v3714 = vpop.permute.xlu0 %3713
    %3715 = vrot.lane.b32.xlu0 %v1021, 74
    %v3716 = vpop.permute.xlu0 %3715
    %3717 = vrot.lane.b32.xlu0 %v1022, 74
    %v3718 = vpop.permute.xlu0 %3717
    %3719 = vrot.lane.b32.xlu0 %v1023, 74
    %v3720 = vpop.permute.xlu0 %3719
    %3721 = vrot.lane.b32.xlu0 %v1024, 74
    %v3722 = vpop.permute.xlu0 %3721
    %3723 = vrot.lane.b32.xlu0 %v1025, 74
    %v3724 = vpop.permute.xlu0 %3723
    %vm3725 = vcmask 605184
    %v3726 = vsel %vm3725, %v3714, %v3716
    %v3727 = vsel %vm3725, %v3716, %v3718
    %v3728 = vsel %vm3725, %v3718, %v3720
    %v3729 = vsel %vm3725, %v3720, %v3722
    %v3730 = vsel %vm3725, %v3722, %v3724
    %v3732 = vsel %vm1044, %v3712, 0
    %v3735 = vsel %vm324, %v3726, 0
    %v3738 = vsel %vm324, %v3727, 0
    %v3741 = vsel %vm324, %v3728, 0
    %v3744 = vsel %vm324, %v3729, 0
    %v3747 = vsel %vm324, %v3730, 0
    %v3750 = vsel %vm324, %v3724, 0
    %3752 = vmatprep.subr.bf16.mxu0 %v3738
    %3753 = vmatpush1.bf16.msra.mxu0 %v3735
    %3754 = vmatprep.subr.bf16.mxu0 0
    %3755 = vmatpush1.bf16.msra.mxu0 0
    %3756 = vmatprep.subr.bf16.mxu0 0
    %3757 = vmatpush1.bf16.msra.mxu0 0
    %3758 = vmatprep.subr.bf16.mxu0 0
    %3759 = vmatpush1.bf16.msra.mxu0 0
    %3760 = vmatprep.subr.bf16.mxu0 0
    %3761 = vmatpush1.bf16.msra.mxu0 0
    %3762 = vmatprep.subr.bf16.mxu0 0
    %3763 = vmatpush1.bf16.msra.mxu0 0
    %3764 = vmatprep.subr.bf16.mxu0 0
    %3765 = vmatpush1.bf16.msra.mxu0 0
    %3766 = vmatprep.subr.bf16.mxu0 0
    %3767 = vmatpush1.bf16.msra.mxu0 0
    %3768 = vmatprep.subr.bf16.mxu0 0
    %3769 = vmatpush1.bf16.msra.mxu0 0
    %3770 = vmatprep.subr.bf16.mxu0 0
    %3771 = vmatpush1.bf16.msra.mxu0 0
    %3772 = vmatprep.subr.bf16.mxu0 0
    %3773 = vmatpush1.bf16.msra.mxu0 0
    %3774 = vmatprep.subr.bf16.mxu0 0
    %3775 = vmatpush1.bf16.msra.mxu0 0
    %3776 = vmatprep.subr.bf16.mxu0 0
    %3777 = vmatpush1.bf16.msra.mxu0 0
    %3778 = vmatprep.subr.bf16.mxu0 0
    %3779 = vmatpush1.bf16.msra.mxu0 0
    %3780 = vmatprep.subr.bf16.mxu0 0
    %3781 = vmatpush1.bf16.msra.mxu0 0
    %3782 = vmatprep.subr.bf16.mxu0 0
    %3783 = vmatpush1.bf16.msra.mxu0 0
    %3784 = vmatprep.mubr.bf16.mxu0 0
    %3785 = vmatmul.mubr.bf16.gmra.mrb[0].mxu0 %v3732
    %v3786 = vpop.f32.mrb[0].mxu0
    %v3787 = vadd.f32 0.0, %v3786
    %v3788 = vpop.f32.mrb[0].mxu0
    %v3789 = vadd.f32 0.0, %v3788
    %v3790 = vpop.f32.mrb[0].mxu0
    %v3791 = vadd.f32 0.0, %v3790
    %v3792 = vpop.f32.mrb[0].mxu0
    %v3793 = vadd.f32 0.0, %v3792
    %3794 = vdwg.mxu0
    %3795 = vmatprep.subr.bf16.mxu0 %v3744
    %3796 = vmatpush1.bf16.msra.mxu0 %v3741
    %3797 = vmatprep.subr.bf16.mxu0 0
    %3798 = vmatpush1.bf16.msra.mxu0 0
    %3799 = vmatprep.subr.bf16.mxu0 0
    %3800 = vmatpush1.bf16.msra.mxu0 0
    %3801 = vmatprep.subr.bf16.mxu0 0
    %3802 = vmatpush1.bf16.msra.mxu0 0
    %3803 = vmatprep.subr.bf16.mxu0 0
    %3804 = vmatpush1.bf16.msra.mxu0 0
    %3805 = vmatprep.subr.bf16.mxu0 0
    %3806 = vmatpush1.bf16.msra.mxu0 0
    %3807 = vmatprep.subr.bf16.mxu0 0
    %3808 = vmatpush1.bf16.msra.mxu0 0
    %3809 = vmatprep.subr.bf16.mxu0 0
    %3810 = vmatpush1.bf16.msra.mxu0 0
    %3811 = vmatprep.subr.bf16.mxu0 0
    %3812 = vmatpush1.bf16.msra.mxu0 0
    %3813 = vmatprep.subr.bf16.mxu0 0
    %3814 = vmatpush1.bf16.msra.mxu0 0
    %3815 = vmatprep.subr.bf16.mxu0 0
    %3816 = vmatpush1.bf16.msra.mxu0 0
    %3817 = vmatprep.subr.bf16.mxu0 0
    %3818 = vmatpush1.bf16.msra.mxu0 0
    %3819 = vmatprep.subr.bf16.mxu0 0
    %3820 = vmatpush1.bf16.msra.mxu0 0
    %3821 = vmatprep.subr.bf16.mxu0 0
    %3822 = vmatpush1.bf16.msra.mxu0 0
    %3823 = vmatprep.subr.bf16.mxu0 0
    %3824 = vmatpush1.bf16.msra.mxu0 0
    %3825 = vmatprep.subr.bf16.mxu0 0
    %3826 = vmatpush1.bf16.msra.mxu0 0
    %3827 = vmatprep.mubr.bf16.mxu0 0
    %3828 = vmatmul.mubr.bf16.gmra.mrb[0].mxu0 %v3732
    %v3829 = vpop.f32.mrb[0].mxu0
    %v3830 = vadd.f32 0.0, %v3829
    %v3831 = vpop.f32.mrb[0].mxu0
    %v3832 = vadd.f32 0.0, %v3831
    %v3833 = vpop.f32.mrb[0].mxu0
    %v3834 = vadd.f32 0.0, %v3833
    %v3835 = vpop.f32.mrb[0].mxu0
    %v3836 = vadd.f32 0.0, %v3835
    %3837 = vdwg.mxu0
    %3838 = vmatprep.subr.bf16.mxu0 %v3750
    %3839 = vmatpush1.bf16.msra.mxu0 %v3747
    %3840 = vmatprep.subr.bf16.mxu0 0
    %3841 = vmatpush1.bf16.msra.mxu0 0
    %3842 = vmatprep.subr.bf16.mxu0 0
    %3843 = vmatpush1.bf16.msra.mxu0 0
    %3844 = vmatprep.subr.bf16.mxu0 0
    %3845 = vmatpush1.bf16.msra.mxu0 0
    %3846 = vmatprep.subr.bf16.mxu0 0
    %3847 = vmatpush1.bf16.msra.mxu0 0
    %3848 = vmatprep.subr.bf16.mxu0 0
    %3849 = vmatpush1.bf16.msra.mxu0 0
    %3850 = vmatprep.subr.bf16.mxu0 0
    %3851 = vmatpush1.bf16.msra.mxu0 0
    %3852 = vmatprep.subr.bf16.mxu0 0
    %3853 = vmatpush1.bf16.msra.mxu0 0
    %3854 = vmatprep.subr.bf16.mxu0 0
    %3855 = vmatpush1.bf16.msra.mxu0 0
    %3856 = vmatprep.subr.bf16.mxu0 0
    %3857 = vmatpush1.bf16.msra.mxu0 0
    %3858 = vmatprep.subr.bf16.mxu0 0
    %3859 = vmatpush1.bf16.msra.mxu0 0
    %3860 = vmatprep.subr.bf16.mxu0 0
    %3861 = vmatpush1.bf16.msra.mxu0 0
    %3862 = vmatprep.subr.bf16.mxu0 0
    %3863 = vmatpush1.bf16.msra.mxu0 0
    %3864 = vmatprep.subr.bf16.mxu0 0
    %3865 = vmatpush1.bf16.msra.mxu0 0
    %3866 = vmatprep.subr.bf16.mxu0 0
    %3867 = vmatpush1.bf16.msra.mxu0 0
    %3868 = vmatprep.subr.bf16.mxu0 0
    %3869 = vmatpush1.bf16.msra.mxu0 0
    %3870 = vmatprep.mubr.bf16.mxu0 0
    %3871 = vmatmul.mubr.bf16.gmra.mrb[0].mxu0 %v3732
    %v3872 = vpop.f32.mrb[0].mxu0
    %v3873 = vadd.f32 0.0, %v3872
    %v3874 = vpop.f32.mrb[0].mxu0
    %v3875 = vadd.f32 0.0, %v3874
    %v3876 = vpop.f32.mrb[0].mxu0
    %v3877 = vadd.f32 0.0, %v3876
    %v3878 = vpop.f32.mrb[0].mxu0
    %v3879 = vadd.f32 0.0, %v3878
    %3880 = vdwg.mxu0
    %v3881 = vadd.f32 %v3699, %v3787
    %v3882 = vadd.f32 %v3700, %v3789
    %v3883 = vadd.f32 %v3701, %v3830
    %v3884 = vadd.f32 %v3702, %v3832
    %v3885 = vadd.f32 %v3703, %v3873
    %v3886 = vadd.f32 %v3704, %v3875
    %v3887 = vadd.f32 %v3705, %v3791
    %v3888 = vadd.f32 %v3706, %v3793
    %v3889 = vadd.f32 %v3707, %v3834
    %v3890 = vadd.f32 %v3708, %v3836
    %v3891 = vadd.f32 %v3709, %v3877
    %v3892 = vadd.f32 %v3710, %v3879
    %v3893 = vld [vmem:[%s3 + $0x4] sm:$0xf]
    %v3894 = vld [vmem:[%s3 + $0xc] sm:$0xf]
    %v3897 = vunpack.c.l.b16 %v3893
    %v3898 = vunpack.c.l.b16 %v3894
    %v3899 = vpack.c.b16 %v3898, %v3897
    %3900 = vrot.lane.b32.xlu0 %v1020, 73
    %v3901 = vpop.permute.xlu0 %3900
    %3902 = vrot.lane.b32.xlu0 %v1021, 73
    %v3903 = vpop.permute.xlu0 %3902
    %3904 = vrot.lane.b32.xlu0 %v1022, 73
    %v3905 = vpop.permute.xlu0 %3904
    %3906 = vrot.lane.b32.xlu0 %v1023, 73
    %v3907 = vpop.permute.xlu0 %3906
    %3908 = vrot.lane.b32.xlu0 %v1024, 73
    %v3909 = vpop.permute.xlu0 %3908
    %3910 = vrot.lane.b32.xlu0 %v1025, 73
    %v3911 = vpop.permute.xlu0 %3910
    %vm3912 = vcmask 596992
    %v3913 = vsel %vm3912, %v3901, %v3903
    %v3914 = vsel %vm3912, %v3903, %v3905
    %v3915 = vsel %vm3912, %v3905, %v3907
    %v3916 = vsel %vm3912, %v3907, %v3909
    %v3917 = vsel %vm3912, %v3909, %v3911
    %v3919 = vsel %vm1044, %v3899, 0
    %v3922 = vsel %vm324, %v3913, 0
    %v3925 = vsel %vm324, %v3914, 0
    %v3928 = vsel %vm324, %v3915, 0
    %v3931 = vsel %vm324, %v3916, 0
    %v3934 = vsel %vm324, %v3917, 0
    %v3937 = vsel %vm324, %v3911, 0
    %3939 = vmatprep.subr.bf16.mxu0 %v3925
    %3940 = vmatpush1.bf16.msra.mxu0 %v3922
    %3941 = vmatprep.subr.bf16.mxu0 0
    %3942 = vmatpush1.bf16.msra.mxu0 0
    %3943 = vmatprep.subr.bf16.mxu0 0
    %3944 = vmatpush1.bf16.msra.mxu0 0
    %3945 = vmatprep.subr.bf16.mxu0 0
    %3946 = vmatpush1.bf16.msra.mxu0 0
    %3947 = vmatprep.subr.bf16.mxu0 0
    %3948 = vmatpush1.bf16.msra.mxu0 0
    %3949 = vmatprep.subr.bf16.mxu0 0
    %3950 = vmatpush1.bf16.msra.mxu0 0
    %3951 = vmatprep.subr.bf16.mxu0 0
    %3952 = vmatpush1.bf16.msra.mxu0 0
    %3953 = vmatprep.subr.bf16.mxu0 0
    %3954 = vmatpush1.bf16.msra.mxu0 0
    %3955 = vmatprep.subr.bf16.mxu0 0
    %3956 = vmatpush1.bf16.msra.mxu0 0
    %3957 = vmatprep.subr.bf16.mxu0 0
    %3958 = vmatpush1.bf16.msra.mxu0 0
    %3959 = vmatprep.subr.bf16.mxu0 0
    %3960 = vmatpush1.bf16.msra.mxu0 0
    %3961 = vmatprep.subr.bf16.mxu0 0
    %3962 = vmatpush1.bf16.msra.mxu0 0
    %3963 = vmatprep.subr.bf16.mxu0 0
    %3964 = vmatpush1.bf16.msra.mxu0 0
    %3965 = vmatprep.subr.bf16.mxu0 0
    %3966 = vmatpush1.bf16.msra.mxu0 0
    %3967 = vmatprep.subr.bf16.mxu0 0
    %3968 = vmatpush1.bf16.msra.mxu0 0
    %3969 = vmatprep.subr.bf16.mxu0 0
    %3970 = vmatpush1.bf16.msra.mxu0 0
    %3971 = vmatprep.mubr.bf16.mxu0 0
    %3972 = vmatmul.mubr.bf16.gmra.mrb[0].mxu0 %v3919
    %v3973 = vpop.f32.mrb[0].mxu0
    %v3974 = vadd.f32 0.0, %v3973
    %v3975 = vpop.f32.mrb[0].mxu0
    %v3976 = vadd.f32 0.0, %v3975
    %v3977 = vpop.f32.mrb[0].mxu0
    %v3978 = vadd.f32 0.0, %v3977
    %v3979 = vpop.f32.mrb[0].mxu0
    %v3980 = vadd.f32 0.0, %v3979
    %3981 = vdwg.mxu0
    %3982 = vmatprep.subr.bf16.mxu0 %v3931
    %3983 = vmatpush1.bf16.msra.mxu0 %v3928
    %3984 = vmatprep.subr.bf16.mxu0 0
    %3985 = vmatpush1.bf16.msra.mxu0 0
    %3986 = vmatprep.subr.bf16.mxu0 0
    %3987 = vmatpush1.bf16.msra.mxu0 0
    %3988 = vmatprep.subr.bf16.mxu0 0
    %3989 = vmatpush1.bf16.msra.mxu0 0
    %3990 = vmatprep.subr.bf16.mxu0 0
    %3991 = vmatpush1.bf16.msra.mxu0 0
    %3992 = vmatprep.subr.bf16.mxu0 0
    %3993 = vmatpush1.bf16.msra.mxu0 0
    %3994 = vmatprep.subr.bf16.mxu0 0
    %3995 = vmatpush1.bf16.msra.mxu0 0
    %3996 = vmatprep.subr.bf16.mxu0 0
    %3997 = vmatpush1.bf16.msra.mxu0 0
    %3998 = vmatprep.subr.bf16.mxu0 0
    %3999 = vmatpush1.bf16.msra.mxu0 0
    %4000 = vmatprep.subr.bf16.mxu0 0
    %4001 = vmatpush1.bf16.msra.mxu0 0
    %4002 = vmatprep.subr.bf16.mxu0 0
    %4003 = vmatpush1.bf16.msra.mxu0 0
    %4004 = vmatprep.subr.bf16.mxu0 0
    %4005 = vmatpush1.bf16.msra.mxu0 0
    %4006 = vmatprep.subr.bf16.mxu0 0
    %4007 = vmatpush1.bf16.msra.mxu0 0
    %4008 = vmatprep.subr.bf16.mxu0 0
    %4009 = vmatpush1.bf16.msra.mxu0 0
    %4010 = vmatprep.subr.bf16.mxu0 0
    %4011 = vmatpush1.bf16.msra.mxu0 0
    %4012 = vmatprep.subr.bf16.mxu0 0
    %4013 = vmatpush1.bf16.msra.mxu0 0
    %4014 = vmatprep.mubr.bf16.mxu0 0
    %4015 = vmatmul.mubr.bf16.gmra.mrb[0].mxu0 %v3919
    %v4016 = vpop.f32.mrb[0].mxu0
    %v4017 = vadd.f32 0.0, %v4016
    %v4018 = vpop.f32.mrb[0].mxu0
    %v4019 = vadd.f32 0.0, %v4018
    %v4020 = vpop.f32.mrb[0].mxu0
    %v4021 = vadd.f32 0.0, %v4020
    %v4022 = vpop.f32.mrb[0].mxu0
    %v4023 = vadd.f32 0.0, %v4022
    %4024 = vdwg.mxu0
    %4025 = vmatprep.subr.bf16.mxu0 %v3937
    %4026 = vmatpush1.bf16.msra.mxu0 %v3934
    %4027 = vmatprep.subr.bf16.mxu0 0
    %4028 = vmatpush1.bf16.msra.mxu0 0
    %4029 = vmatprep.subr.bf16.mxu0 0
    %4030 = vmatpush1.bf16.msra.mxu0 0
    %4031 = vmatprep.subr.bf16.mxu0 0
    %4032 = vmatpush1.bf16.msra.mxu0 0
    %4033 = vmatprep.subr.bf16.mxu0 0
    %4034 = vmatpush1.bf16.msra.mxu0 0
    %4035 = vmatprep.subr.bf16.mxu0 0
    %4036 = vmatpush1.bf16.msra.mxu0 0
    %4037 = vmatprep.subr.bf16.mxu0 0
    %4038 = vmatpush1.bf16.msra.mxu0 0
    %4039 = vmatprep.subr.bf16.mxu0 0
    %4040 = vmatpush1.bf16.msra.mxu0 0
    %4041 = vmatprep.subr.bf16.mxu0 0
    %4042 = vmatpush1.bf16.msra.mxu0 0
    %4043 = vmatprep.subr.bf16.mxu0 0
    %4044 = vmatpush1.bf16.msra.mxu0 0
    %4045 = vmatprep.subr.bf16.mxu0 0
    %4046 = vmatpush1.bf16.msra.mxu0 0
    %4047 = vmatprep.subr.bf16.mxu0 0
    %4048 = vmatpush1.bf16.msra.mxu0 0
    %4049 = vmatprep.subr.bf16.mxu0 0
    %4050 = vmatpush1.bf16.msra.mxu0 0
    %4051 = vmatprep.subr.bf16.mxu0 0
    %4052 = vmatpush1.bf16.msra.mxu0 0
    %4053 = vmatprep.subr.bf16.mxu0 0
    %4054 = vmatpush1.bf16.msra.mxu0 0
    %4055 = vmatprep.subr.bf16.mxu0 0
    %4056 = vmatpush1.bf16.msra.mxu0 0
    %4057 = vmatprep.mubr.bf16.mxu0 0
    %4058 = vmatmul.mubr.bf16.gmra.mrb[0].mxu0 %v3919
    %v4059 = vpop.f32.mrb[0].mxu0
    %v4060 = vadd.f32 0.0, %v4059
    %v4061 = vpop.f32.mrb[0].mxu0
    %v4062 = vadd.f32 0.0, %v4061
    %v4063 = vpop.f32.mrb[0].mxu0
    %v4064 = vadd.f32 0.0, %v4063
    %v4065 = vpop.f32.mrb[0].mxu0
    %v4066 = vadd.f32 0.0, %v4065
    %4067 = vdwg.mxu0
    %v4068 = vadd.f32 %v3881, %v3974
    %v4069 = vadd.f32 %v3882, %v3976
    %v4070 = vadd.f32 %v3883, %v4017
    %v4071 = vadd.f32 %v3884, %v4019
    %v4072 = vadd.f32 %v3885, %v4060
    %v4073 = vadd.f32 %v3886, %v4062
    %v4074 = vadd.f32 %v3887, %v3978
    %v4075 = vadd.f32 %v3888, %v3980
    %v4076 = vadd.f32 %v3889, %v4021
    %v4077 = vadd.f32 %v3890, %v4023
    %v4078 = vadd.f32 %v3891, %v4064
    %v4079 = vadd.f32 %v3892, %v4066
    %4080 = vrot.lane.b32.xlu0 %v3899, 120
    %v4081 = vpop.permute.xlu0 %4080
    %4082 = vrot.lane.b32.xlu0 %v1020, 72
    %v4083 = vpop.permute.xlu0 %4082
    %4084 = vrot.lane.b32.xlu0 %v1021, 72
    %v4085 = vpop.permute.xlu0 %4084
    %4086 = vrot.lane.b32.xlu0 %v1022, 72
    %v4087 = vpop.permute.xlu0 %4086
    %4088 = vrot.lane.b32.xlu0 %v1023, 72
    %v4089 = vpop.permute.xlu0 %4088
    %4090 = vrot.lane.b32.xlu0 %v1024, 72
    %v4091 = vpop.permute.xlu0 %4090
    %4092 = vrot.lane.b32.xlu0 %v1025, 72
    %v4093 = vpop.permute.xlu0 %4092
    %vm4094 = vcmask 588800
    %v4095 = vsel %vm4094, %v4083, %v4085
    %v4096 = vsel %vm4094, %v4085, %v4087
    %v4097 = vsel %vm4094, %v4087, %v4089
    %v4098 = vsel %vm4094, %v4089, %v4091
    %v4099 = vsel %vm4094, %v4091, %v4093
    %v4101 = vsel %vm1044, %v4081, 0
    %v4104 = vsel %vm324, %v4095, 0
    %v4107 = vsel %vm324, %v4096, 0
    %v4110 = vsel %vm324, %v4097, 0
    %v4113 = vsel %vm324, %v4098, 0
    %v4116 = vsel %vm324, %v4099, 0
    %v4119 = vsel %vm324, %v4093, 0
    %4121 = vmatprep.subr.bf16.mxu0 %v4107
    %4122 = vmatpush1.bf16.msra.mxu0 %v4104
    %4123 = vmatprep.subr.bf16.mxu0 0
    %4124 = vmatpush1.bf16.msra.mxu0 0
    %4125 = vmatprep.subr.bf16.mxu0 0
    %4126 = vmatpush1.bf16.msra.mxu0 0
    %4127 = vmatprep.subr.bf16.mxu0 0
    %4128 = vmatpush1.bf16.msra.mxu0 0
    %4129 = vmatprep.subr.bf16.mxu0 0
    %4130 = vmatpush1.bf16.msra.mxu0 0
    %4131 = vmatprep.subr.bf16.mxu0 0
    %4132 = vmatpush1.bf16.msra.mxu0 0
    %4133 = vmatprep.subr.bf16.mxu0 0
    %4134 = vmatpush1.bf16.msra.mxu0 0
    %4135 = vmatprep.subr.bf16.mxu0 0
    %4136 = vmatpush1.bf16.msra.mxu0 0
    %4137 = vmatprep.subr.bf16.mxu0 0
    %4138 = vmatpush1.bf16.msra.mxu0 0
    %4139 = vmatprep.subr.bf16.mxu0 0
    %4140 = vmatpush1.bf16.msra.mxu0 0
    %4141 = vmatprep.subr.bf16.mxu0 0
    %4142 = vmatpush1.bf16.msra.mxu0 0
    %4143 = vmatprep.subr.bf16.mxu0 0
    %4144 = vmatpush1.bf16.msra.mxu0 0
    %4145 = vmatprep.subr.bf16.mxu0 0
    %4146 = vmatpush1.bf16.msra.mxu0 0
    %4147 = vmatprep.subr.bf16.mxu0 0
    %4148 = vmatpush1.bf16.msra.mxu0 0
    %4149 = vmatprep.subr.bf16.mxu0 0
    %4150 = vmatpush1.bf16.msra.mxu0 0
    %4151 = vmatprep.subr.bf16.mxu0 0
    %4152 = vmatpush1.bf16.msra.mxu0 0
    %4153 = vmatprep.mubr.bf16.mxu0 0
    %4154 = vmatmul.mubr.bf16.gmra.mrb[0].mxu0 %v4101
    %v4155 = vpop.f32.mrb[0].mxu0
    %v4156 = vadd.f32 0.0, %v4155
    %v4157 = vpop.f32.mrb[0].mxu0
    %v4158 = vadd.f32 0.0, %v4157
    %v4159 = vpop.f32.mrb[0].mxu0
    %v4160 = vadd.f32 0.0, %v4159
    %v4161 = vpop.f32.mrb[0].mxu0
    %v4162 = vadd.f32 0.0, %v4161
    %4163 = vdwg.mxu0
    %4164 = vmatprep.subr.bf16.mxu0 %v4113
    %4165 = vmatpush1.bf16.msra.mxu0 %v4110
    %4166 = vmatprep.subr.bf16.mxu0 0
    %4167 = vmatpush1.bf16.msra.mxu0 0
    %4168 = vmatprep.subr.bf16.mxu0 0
    %4169 = vmatpush1.bf16.msra.mxu0 0
    %4170 = vmatprep.subr.bf16.mxu0 0
    %4171 = vmatpush1.bf16.msra.mxu0 0
    %4172 = vmatprep.subr.bf16.mxu0 0
    %4173 = vmatpush1.bf16.msra.mxu0 0
    %4174 = vmatprep.subr.bf16.mxu0 0
    %4175 = vmatpush1.bf16.msra.mxu0 0
    %4176 = vmatprep.subr.bf16.mxu0 0
    %4177 = vmatpush1.bf16.msra.mxu0 0
    %4178 = vmatprep.subr.bf16.mxu0 0
    %4179 = vmatpush1.bf16.msra.mxu0 0
    %4180 = vmatprep.subr.bf16.mxu0 0
    %4181 = vmatpush1.bf16.msra.mxu0 0
    %4182 = vmatprep.subr.bf16.mxu0 0
    %4183 = vmatpush1.bf16.msra.mxu0 0
    %4184 = vmatprep.subr.bf16.mxu0 0
    %4185 = vmatpush1.bf16.msra.mxu0 0
    %4186 = vmatprep.subr.bf16.mxu0 0
    %4187 = vmatpush1.bf16.msra.mxu0 0
    %4188 = vmatprep.subr.bf16.mxu0 0
    %4189 = vmatpush1.bf16.msra.mxu0 0
    %4190 = vmatprep.subr.bf16.mxu0 0
    %4191 = vmatpush1.bf16.msra.mxu0 0
    %4192 = vmatprep.subr.bf16.mxu0 0
    %4193 = vmatpush1.bf16.msra.mxu0 0
    %4194 = vmatprep.subr.bf16.mxu0 0
    %4195 = vmatpush1.bf16.msra.mxu0 0
    %4196 = vmatprep.mubr.bf16.mxu0 0
    %4197 = vmatmul.mubr.bf16.gmra.mrb[0].mxu0 %v4101
    %v4198 = vpop.f32.mrb[0].mxu0
    %v4199 = vadd.f32 0.0, %v4198
    %v4200 = vpop.f32.mrb[0].mxu0
    %v4201 = vadd.f32 0.0, %v4200
    %v4202 = vpop.f32.mrb[0].mxu0
    %v4203 = vadd.f32 0.0, %v4202
    %v4204 = vpop.f32.mrb[0].mxu0
    %v4205 = vadd.f32 0.0, %v4204
    %4206 = vdwg.mxu0
    %4207 = vmatprep.subr.bf16.mxu0 %v4119
    %4208 = vmatpush1.bf16.msra.mxu0 %v4116
    %4209 = vmatprep.subr.bf16.mxu0 0
    %4210 = vmatpush1.bf16.msra.mxu0 0
    %4211 = vmatprep.subr.bf16.mxu0 0
    %4212 = vmatpush1.bf16.msra.mxu0 0
    %4213 = vmatprep.subr.bf16.mxu0 0
    %4214 = vmatpush1.bf16.msra.mxu0 0
    %4215 = vmatprep.subr.bf16.mxu0 0
    %4216 = vmatpush1.bf16.msra.mxu0 0
    %4217 = vmatprep.subr.bf16.mxu0 0
    %4218 = vmatpush1.bf16.msra.mxu0 0
    %4219 = vmatprep.subr.bf16.mxu0 0
    %4220 = vmatpush1.bf16.msra.mxu0 0
    %4221 = vmatprep.subr.bf16.mxu0 0
    %4222 = vmatpush1.bf16.msra.mxu0 0
    %4223 = vmatprep.subr.bf16.mxu0 0
    %4224 = vmatpush1.bf16.msra.mxu0 0
    %4225 = vmatprep.subr.bf16.mxu0 0
    %4226 = vmatpush1.bf16.msra.mxu0 0
    %4227 = vmatprep.subr.bf16.mxu0 0
    %4228 = vmatpush1.bf16.msra.mxu0 0
    %4229 = vmatprep.subr.bf16.mxu0 0
    %4230 = vmatpush1.bf16.msra.mxu0 0
    %4231 = vmatprep.subr.bf16.mxu0 0
    %4232 = vmatpush1.bf16.msra.mxu0 0
    %4233 = vmatprep.subr.bf16.mxu0 0
    %4234 = vmatpush1.bf16.msra.mxu0 0
    %4235 = vmatprep.subr.bf16.mxu0 0
    %4236 = vmatpush1.bf16.msra.mxu0 0
    %4237 = vmatprep.subr.bf16.mxu0 0
    %4238 = vmatpush1.bf16.msra.mxu0 0
    %4239 = vmatprep.mubr.bf16.mxu0 0
    %4240 = vmatmul.mubr.bf16.gmra.mrb[0].mxu0 %v4101
    %v4241 = vpop.f32.mrb[0].mxu0
    %v4242 = vadd.f32 0.0, %v4241
    %v4243 = vpop.f32.mrb[0].mxu0
    %v4244 = vadd.f32 0.0, %v4243
    %v4245 = vpop.f32.mrb[0].mxu0
    %v4246 = vadd.f32 0.0, %v4245
    %v4247 = vpop.f32.mrb[0].mxu0
    %v4248 = vadd.f32 0.0, %v4247
    %4249 = vdwg.mxu0
    %v4250 = vadd.f32 %v4068, %v4156
    %v4251 = vadd.f32 %v4069, %v4158
    %v4252 = vadd.f32 %v4070, %v4199
    %v4253 = vadd.f32 %v4071, %v4201
    %v4254 = vadd.f32 %v4072, %v4242
    %v4255 = vadd.f32 %v4073, %v4244
    %v4256 = vadd.f32 %v4074, %v4160
    %v4257 = vadd.f32 %v4075, %v4162
    %v4258 = vadd.f32 %v4076, %v4203
    %v4259 = vadd.f32 %v4077, %v4205
    %v4260 = vadd.f32 %v4078, %v4246
    %v4261 = vadd.f32 %v4079, %v4248
    %4262 = vrot.lane.b32.xlu0 %v3899, 112
    %v4263 = vpop.permute.xlu0 %4262
    %4264 = vrot.lane.b32.xlu0 %v1020, 71
    %v4265 = vpop.permute.xlu0 %4264
    %4266 = vrot.lane.b32.xlu0 %v1021, 71
    %v4267 = vpop.permute.xlu0 %4266
    %4268 = vrot.lane.b32.xlu0 %v1022, 71
    %v4269 = vpop.permute.xlu0 %4268
    %4270 = vrot.lane.b32.xlu0 %v1023, 71
    %v4271 = vpop.permute.xlu0 %4270
    %4272 = vrot.lane.b32.xlu0 %v1024, 71
    %v4273 = vpop.permute.xlu0 %4272
    %4274 = vrot.lane.b32.xlu0 %v1025, 71
    %v4275 = vpop.permute.xlu0 %4274
    %vm4276 = vcmask 580608
    %v4277 = vsel %vm4276, %v4265, %v4267
    %v4278 = vsel %vm4276, %v4267, %v4269
    %v4279 = vsel %vm4276, %v4269, %v4271
    %v4280 = vsel %vm4276, %v4271, %v4273
    %v4281 = vsel %vm4276, %v4273, %v4275
    %v4283 = vsel %vm1044, %v4263, 0
    %v4286 = vsel %vm324, %v4277, 0
    %v4289 = vsel %vm324, %v4278, 0
    %v4292 = vsel %vm324, %v4279, 0
    %v4295 = vsel %vm324, %v4280, 0
    %v4298 = vsel %vm324, %v4281, 0
    %v4301 = vsel %vm324, %v4275, 0
    %4303 = vmatprep.subr.bf16.mxu0 %v4289
    %4304 = vmatpush1.bf16.msra.mxu0 %v4286
    %4305 = vmatprep.subr.bf16.mxu0 0
    %4306 = vmatpush1.bf16.msra.mxu0 0
    %4307 = vmatprep.subr.bf16.mxu0 0
    %4308 = vmatpush1.bf16.msra.mxu0 0
    %4309 = vmatprep.subr.bf16.mxu0 0
    %4310 = vmatpush1.bf16.msra.mxu0 0
    %4311 = vmatprep.subr.bf16.mxu0 0
    %4312 = vmatpush1.bf16.msra.mxu0 0
    %4313 = vmatprep.subr.bf16.mxu0 0
    %4314 = vmatpush1.bf16.msra.mxu0 0
    %4315 = vmatprep.subr.bf16.mxu0 0
    %4316 = vmatpush1.bf16.msra.mxu0 0
    %4317 = vmatprep.subr.bf16.mxu0 0
    %4318 = vmatpush1.bf16.msra.mxu0 0
    %4319 = vmatprep.subr.bf16.mxu0 0
    %4320 = vmatpush1.bf16.msra.mxu0 0
    %4321 = vmatprep.subr.bf16.mxu0 0
    %4322 = vmatpush1.bf16.msra.mxu0 0
    %4323 = vmatprep.subr.bf16.mxu0 0
    %4324 = vmatpush1.bf16.msra.mxu0 0
    %4325 = vmatprep.subr.bf16.mxu0 0
    %4326 = vmatpush1.bf16.msra.mxu0 0
    %4327 = vmatprep.subr.bf16.mxu0 0
    %4328 = vmatpush1.bf16.msra.mxu0 0
    %4329 = vmatprep.subr.bf16.mxu0 0
    %4330 = vmatpush1.bf16.msra.mxu0 0
    %4331 = vmatprep.subr.bf16.mxu0 0
    %4332 = vmatpush1.bf16.msra.mxu0 0
    %4333 = vmatprep.subr.bf16.mxu0 0
    %4334 = vmatpush1.bf16.msra.mxu0 0
    %4335 = vmatprep.mubr.bf16.mxu0 0
    %4336 = vmatmul.mubr.bf16.gmra.mrb[0].mxu0 %v4283
    %v4337 = vpop.f32.mrb[0].mxu0
    %v4338 = vadd.f32 0.0, %v4337
    %v4339 = vpop.f32.mrb[0].mxu0
    %v4340 = vadd.f32 0.0, %v4339
    %v4341 = vpop.f32.mrb[0].mxu0
    %v4342 = vadd.f32 0.0, %v4341
    %v4343 = vpop.f32.mrb[0].mxu0
    %v4344 = vadd.f32 0.0, %v4343
    %4345 = vdwg.mxu0
    %4346 = vmatprep.subr.bf16.mxu0 %v4295
    %4347 = vmatpush1.bf16.msra.mxu0 %v4292
    %4348 = vmatprep.subr.bf16.mxu0 0
    %4349 = vmatpush1.bf16.msra.mxu0 0
    %4350 = vmatprep.subr.bf16.mxu0 0
    %4351 = vmatpush1.bf16.msra.mxu0 0
    %4352 = vmatprep.subr.bf16.mxu0 0
    %4353 = vmatpush1.bf16.msra.mxu0 0
    %4354 = vmatprep.subr.bf16.mxu0 0
    %4355 = vmatpush1.bf16.msra.mxu0 0
    %4356 = vmatprep.subr.bf16.mxu0 0
    %4357 = vmatpush1.bf16.msra.mxu0 0
    %4358 = vmatprep.subr.bf16.mxu0 0
    %4359 = vmatpush1.bf16.msra.mxu0 0
    %4360 = vmatprep.subr.bf16.mxu0 0
    %4361 = vmatpush1.bf16.msra.mxu0 0
    %4362 = vmatprep.subr.bf16.mxu0 0
    %4363 = vmatpush1.bf16.msra.mxu0 0
    %4364 = vmatprep.subr.bf16.mxu0 0
    %4365 = vmatpush1.bf16.msra.mxu0 0
    %4366 = vmatprep.subr.bf16.mxu0 0
    %4367 = vmatpush1.bf16.msra.mxu0 0
    %4368 = vmatprep.subr.bf16.mxu0 0
    %4369 = vmatpush1.bf16.msra.mxu0 0
    %4370 = vmatprep.subr.bf16.mxu0 0
    %4371 = vmatpush1.bf16.msra.mxu0 0
    %4372 = vmatprep.subr.bf16.mxu0 0
    %4373 = vmatpush1.bf16.msra.mxu0 0
    %4374 = vmatprep.subr.bf16.mxu0 0
    %4375 = vmatpush1.bf16.msra.mxu0 0
    %4376 = vmatprep.subr.bf16.mxu0 0
    %4377 = vmatpush1.bf16.msra.mxu0 0
    %4378 = vmatprep.mubr.bf16.mxu0 0
    %4379 = vmatmul.mubr.bf16.gmra.mrb[0].mxu0 %v4283
    %v4380 = vpop.f32.mrb[0].mxu0
    %v4381 = vadd.f32 0.0, %v4380
    %v4382 = vpop.f32.mrb[0].mxu0
    %v4383 = vadd.f32 0.0, %v4382
    %v4384 = vpop.f32.mrb[0].mxu0
    %v4385 = vadd.f32 0.0, %v4384
    %v4386 = vpop.f32.mrb[0].mxu0
    %v4387 = vadd.f32 0.0, %v4386
    %4388 = vdwg.mxu0
    %4389 = vmatprep.subr.bf16.mxu0 %v4301
    %4390 = vmatpush1.bf16.msra.mxu0 %v4298
    %4391 = vmatprep.subr.bf16.mxu0 0
    %4392 = vmatpush1.bf16.msra.mxu0 0
    %4393 = vmatprep.subr.bf16.mxu0 0
    %4394 = vmatpush1.bf16.msra.mxu0 0
    %4395 = vmatprep.subr.bf16.mxu0 0
    %4396 = vmatpush1.bf16.msra.mxu0 0
    %4397 = vmatprep.subr.bf16.mxu0 0
    %4398 = vmatpush1.bf16.msra.mxu0 0
    %4399 = vmatprep.subr.bf16.mxu0 0
    %4400 = vmatpush1.bf16.msra.mxu0 0
    %4401 = vmatprep.subr.bf16.mxu0 0
    %4402 = vmatpush1.bf16.msra.mxu0 0
    %4403 = vmatprep.subr.bf16.mxu0 0
    %4404 = vmatpush1.bf16.msra.mxu0 0
    %4405 = vmatprep.subr.bf16.mxu0 0
    %4406 = vmatpush1.bf16.msra.mxu0 0
    %4407 = vmatprep.subr.bf16.mxu0 0
    %4408 = vmatpush1.bf16.msra.mxu0 0
    %4409 = vmatprep.subr.bf16.mxu0 0
    %4410 = vmatpush1.bf16.msra.mxu0 0
    %4411 = vmatprep.subr.bf16.mxu0 0
    %4412 = vmatpush1.bf16.msra.mxu0 0
    %4413 = vmatprep.subr.bf16.mxu0 0
    %4414 = vmatpush1.bf16.msra.mxu0 0
    %4415 = vmatprep.subr.bf16.mxu0 0
    %4416 = vmatpush1.bf16.msra.mxu0 0
    %4417 = vmatprep.subr.bf16.mxu0 0
    %4418 = vmatpush1.bf16.msra.mxu0 0
    %4419 = vmatprep.subr.bf16.mxu0 0
    %4420 = vmatpush1.bf16.msra.mxu0 0
    %4421 = vmatprep.mubr.bf16.mxu0 0
    %4422 = vmatmul.mubr.bf16.gmra.mrb[0].mxu0 %v4283
    %v4423 = vpop.f32.mrb[0].mxu0
    %v4424 = vadd.f32 0.0, %v4423
    %v4425 = vpop.f32.mrb[0].mxu0
    %v4426 = vadd.f32 0.0, %v4425
    %v4427 = vpop.f32.mrb[0].mxu0
    %v4428 = vadd.f32 0.0, %v4427
    %v4429 = vpop.f32.mrb[0].mxu0
    %v4430 = vadd.f32 0.0, %v4429
    %4431 = vdwg.mxu0
    %v4432 = vadd.f32 %v4250, %v4338
    %v4433 = vadd.f32 %v4251, %v4340
    %v4434 = vadd.f32 %v4252, %v4381
    %v4435 = vadd.f32 %v4253, %v4383
    %v4436 = vadd.f32 %v4254, %v4424
    %v4437 = vadd.f32 %v4255, %v4426
    %v4438 = vadd.f32 %v4256, %v4342
    %v4439 = vadd.f32 %v4257, %v4344
    %v4440 = vadd.f32 %v4258, %v4385
    %v4441 = vadd.f32 %v4259, %v4387
    %v4442 = vadd.f32 %v4260, %v4428
    %v4443 = vadd.f32 %v4261, %v4430
    %4444 = vrot.lane.b32.xlu0 %v3899, 104
    %v4445 = vpop.permute.xlu0 %4444
    %4446 = vrot.lane.b32.xlu0 %v1020, 70
    %v4447 = vpop.permute.xlu0 %4446
    %4448 = vrot.lane.b32.xlu0 %v1021, 70
    %v4449 = vpop.permute.xlu0 %4448
    %4450 = vrot.lane.b32.xlu0 %v1022, 70
    %v4451 = vpop.permute.xlu0 %4450
    %4452 = vrot.lane.b32.xlu0 %v1023, 70
    %v4453 = vpop.permute.xlu0 %4452
    %4454 = vrot.lane.b32.xlu0 %v1024, 70
    %v4455 = vpop.permute.xlu0 %4454
    %4456 = vrot.lane.b32.xlu0 %v1025, 70
    %v4457 = vpop.permute.xlu0 %4456
    %vm4458 = vcmask 572416
    %v4459 = vsel %vm4458, %v4447, %v4449
    %v4460 = vsel %vm4458, %v4449, %v4451
    %v4461 = vsel %vm4458, %v4451, %v4453
    %v4462 = vsel %vm4458, %v4453, %v4455
    %v4463 = vsel %vm4458, %v4455, %v4457
    %v4465 = vsel %vm1044, %v4445, 0
    %v4468 = vsel %vm324, %v4459, 0
    %v4471 = vsel %vm324, %v4460, 0
    %v4474 = vsel %vm324, %v4461, 0
    %v4477 = vsel %vm324, %v4462, 0
    %v4480 = vsel %vm324, %v4463, 0
    %v4483 = vsel %vm324, %v4457, 0
    %4485 = vmatprep.subr.bf16.mxu0 %v4471
    %4486 = vmatpush1.bf16.msra.mxu0 %v4468
    %4487 = vmatprep.subr.bf16.mxu0 0
    %4488 = vmatpush1.bf16.msra.mxu0 0
    %4489 = vmatprep.subr.bf16.mxu0 0
    %4490 = vmatpush1.bf16.msra.mxu0 0
    %4491 = vmatprep.subr.bf16.mxu0 0
    %4492 = vmatpush1.bf16.msra.mxu0 0
    %4493 = vmatprep.subr.bf16.mxu0 0
    %4494 = vmatpush1.bf16.msra.mxu0 0
    %4495 = vmatprep.subr.bf16.mxu0 0
    %4496 = vmatpush1.bf16.msra.mxu0 0
    %4497 = vmatprep.subr.bf16.mxu0 0
    %4498 = vmatpush1.bf16.msra.mxu0 0
    %4499 = vmatprep.subr.bf16.mxu0 0
    %4500 = vmatpush1.bf16.msra.mxu0 0
    %4501 = vmatprep.subr.bf16.mxu0 0
    %4502 = vmatpush1.bf16.msra.mxu0 0
    %4503 = vmatprep.subr.bf16.mxu0 0
    %4504 = vmatpush1.bf16.msra.mxu0 0
    %4505 = vmatprep.subr.bf16.mxu0 0
    %4506 = vmatpush1.bf16.msra.mxu0 0
    %4507 = vmatprep.subr.bf16.mxu0 0
    %4508 = vmatpush1.bf16.msra.mxu0 0
    %4509 = vmatprep.subr.bf16.mxu0 0
    %4510 = vmatpush1.bf16.msra.mxu0 0
    %4511 = vmatprep.subr.bf16.mxu0 0
    %4512 = vmatpush1.bf16.msra.mxu0 0
    %4513 = vmatprep.subr.bf16.mxu0 0
    %4514 = vmatpush1.bf16.msra.mxu0 0
    %4515 = vmatprep.subr.bf16.mxu0 0
    %4516 = vmatpush1.bf16.msra.mxu0 0
    %4517 = vmatprep.mubr.bf16.mxu0 0
    %4518 = vmatmul.mubr.bf16.gmra.mrb[0].mxu0 %v4465
    %v4519 = vpop.f32.mrb[0].mxu0
    %v4520 = vadd.f32 0.0, %v4519
    %v4521 = vpop.f32.mrb[0].mxu0
    %v4522 = vadd.f32 0.0, %v4521
    %v4523 = vpop.f32.mrb[0].mxu0
    %v4524 = vadd.f32 0.0, %v4523
    %v4525 = vpop.f32.mrb[0].mxu0
    %v4526 = vadd.f32 0.0, %v4525
    %4527 = vdwg.mxu0
    %4528 = vmatprep.subr.bf16.mxu0 %v4477
    %4529 = vmatpush1.bf16.msra.mxu0 %v4474
    %4530 = vmatprep.subr.bf16.mxu0 0
    %4531 = vmatpush1.bf16.msra.mxu0 0
    %4532 = vmatprep.subr.bf16.mxu0 0
    %4533 = vmatpush1.bf16.msra.mxu0 0
    %4534 = vmatprep.subr.bf16.mxu0 0
    %4535 = vmatpush1.bf16.msra.mxu0 0
    %4536 = vmatprep.subr.bf16.mxu0 0
    %4537 = vmatpush1.bf16.msra.mxu0 0
    %4538 = vmatprep.subr.bf16.mxu0 0
    %4539 = vmatpush1.bf16.msra.mxu0 0
    %4540 = vmatprep.subr.bf16.mxu0 0
    %4541 = vmatpush1.bf16.msra.mxu0 0
    %4542 = vmatprep.subr.bf16.mxu0 0
    %4543 = vmatpush1.bf16.msra.mxu0 0
    %4544 = vmatprep.subr.bf16.mxu0 0
    %4545 = vmatpush1.bf16.msra.mxu0 0
    %4546 = vmatprep.subr.bf16.mxu0 0
    %4547 = vmatpush1.bf16.msra.mxu0 0
    %4548 = vmatprep.subr.bf16.mxu0 0
    %4549 = vmatpush1.bf16.msra.mxu0 0
    %4550 = vmatprep.subr.bf16.mxu0 0
    %4551 = vmatpush1.bf16.msra.mxu0 0
    %4552 = vmatprep.subr.bf16.mxu0 0
    %4553 = vmatpush1.bf16.msra.mxu0 0
    %4554 = vmatprep.subr.bf16.mxu0 0
    %4555 = vmatpush1.bf16.msra.mxu0 0
    %4556 = vmatprep.subr.bf16.mxu0 0
    %4557 = vmatpush1.bf16.msra.mxu0 0
    %4558 = vmatprep.subr.bf16.mxu0 0
    %4559 = vmatpush1.bf16.msra.mxu0 0
    %4560 = vmatprep.mubr.bf16.mxu0 0
    %4561 = vmatmul.mubr.bf16.gmra.mrb[0].mxu0 %v4465
    %v4562 = vpop.f32.mrb[0].mxu0
    %v4563 = vadd.f32 0.0, %v4562
    %v4564 = vpop.f32.mrb[0].mxu0
    %v4565 = vadd.f32 0.0, %v4564
    %v4566 = vpop.f32.mrb[0].mxu0
    %v4567 = vadd.f32 0.0, %v4566
    %v4568 = vpop.f32.mrb[0].mxu0
    %v4569 = vadd.f32 0.0, %v4568
    %4570 = vdwg.mxu0
    %4571 = vmatprep.subr.bf16.mxu0 %v4483
    %4572 = vmatpush1.bf16.msra.mxu0 %v4480
    %4573 = vmatprep.subr.bf16.mxu0 0
    %4574 = vmatpush1.bf16.msra.mxu0 0
    %4575 = vmatprep.subr.bf16.mxu0 0
    %4576 = vmatpush1.bf16.msra.mxu0 0
    %4577 = vmatprep.subr.bf16.mxu0 0
    %4578 = vmatpush1.bf16.msra.mxu0 0
    %4579 = vmatprep.subr.bf16.mxu0 0
    %4580 = vmatpush1.bf16.msra.mxu0 0
    %4581 = vmatprep.subr.bf16.mxu0 0
    %4582 = vmatpush1.bf16.msra.mxu0 0
    %4583 = vmatprep.subr.bf16.mxu0 0
    %4584 = vmatpush1.bf16.msra.mxu0 0
    %4585 = vmatprep.subr.bf16.mxu0 0
    %4586 = vmatpush1.bf16.msra.mxu0 0
    %4587 = vmatprep.subr.bf16.mxu0 0
    %4588 = vmatpush1.bf16.msra.mxu0 0
    %4589 = vmatprep.subr.bf16.mxu0 0
    %4590 = vmatpush1.bf16.msra.mxu0 0
    %4591 = vmatprep.subr.bf16.mxu0 0
    %4592 = vmatpush1.bf16.msra.mxu0 0
    %4593 = vmatprep.subr.bf16.mxu0 0
    %4594 = vmatpush1.bf16.msra.mxu0 0
    %4595 = vmatprep.subr.bf16.mxu0 0
    %4596 = vmatpush1.bf16.msra.mxu0 0
    %4597 = vmatprep.subr.bf16.mxu0 0
    %4598 = vmatpush1.bf16.msra.mxu0 0
    %4599 = vmatprep.subr.bf16.mxu0 0
    %4600 = vmatpush1.bf16.msra.mxu0 0
    %4601 = vmatprep.subr.bf16.mxu0 0
    %4602 = vmatpush1.bf16.msra.mxu0 0
    %4603 = vmatprep.mubr.bf16.mxu0 0
    %4604 = vmatmul.mubr.bf16.gmra.mrb[0].mxu0 %v4465
    %v4605 = vpop.f32.mrb[0].mxu0
    %v4606 = vadd.f32 0.0, %v4605
    %v4607 = vpop.f32.mrb[0].mxu0
    %v4608 = vadd.f32 0.0, %v4607
    %v4609 = vpop.f32.mrb[0].mxu0
    %v4610 = vadd.f32 0.0, %v4609
    %v4611 = vpop.f32.mrb[0].mxu0
    %v4612 = vadd.f32 0.0, %v4611
    %4613 = vdwg.mxu0
    %v4614 = vadd.f32 %v4432, %v4520
    %v4615 = vadd.f32 %v4433, %v4522
    %v4616 = vadd.f32 %v4434, %v4563
    %v4617 = vadd.f32 %v4435, %v4565
    %v4618 = vadd.f32 %v4436, %v4606
    %v4619 = vadd.f32 %v4437, %v4608
    %v4620 = vadd.f32 %v4438, %v4524
    %v4621 = vadd.f32 %v4439, %v4526
    %v4622 = vadd.f32 %v4440, %v4567
    %v4623 = vadd.f32 %v4441, %v4569
    %v4624 = vadd.f32 %v4442, %v4610
    %v4625 = vadd.f32 %v4443, %v4612
    %4626 = vrot.lane.b32.xlu0 %v3899, 96
    %v4627 = vpop.permute.xlu0 %4626
    %4628 = vrot.lane.b32.xlu0 %v1020, 56
    %v4629 = vpop.permute.xlu0 %4628
    %4630 = vrot.lane.b32.xlu0 %v1021, 56
    %v4631 = vpop.permute.xlu0 %4630
    %4632 = vrot.lane.b32.xlu0 %v1022, 56
    %v4633 = vpop.permute.xlu0 %4632
    %4634 = vrot.lane.b32.xlu0 %v1023, 56
    %v4635 = vpop.permute.xlu0 %4634
    %4636 = vrot.lane.b32.xlu0 %v1024, 56
    %v4637 = vpop.permute.xlu0 %4636
    %4638 = vrot.lane.b32.xlu0 %v1025, 56
    %v4639 = vpop.permute.xlu0 %4638
    %vm4640 = vcmask 457728
    %v4641 = vsel %vm4640, %v4629, %v4631
    %v4642 = vsel %vm4640, %v4631, %v4633
    %v4643 = vsel %vm4640, %v4633, %v4635
    %v4644 = vsel %vm4640, %v4635, %v4637
    %v4645 = vsel %vm4640, %v4637, %v4639
    %v4647 = vsel %vm1044, %v4627, 0
    %v4650 = vsel %vm324, %v4641, 0
    %v4653 = vsel %vm324, %v4642, 0
    %v4656 = vsel %vm324, %v4643, 0
    %v4659 = vsel %vm324, %v4644, 0
    %v4662 = vsel %vm324, %v4645, 0
    %v4665 = vsel %vm324, %v4639, 0
    %4667 = vmatprep.subr.bf16.mxu0 %v4653
    %4668 = vmatpush1.bf16.msra.mxu0 %v4650
    %4669 = vmatprep.subr.bf16.mxu0 0
    %4670 = vmatpush1.bf16.msra.mxu0 0
    %4671 = vmatprep.subr.bf16.mxu0 0
    %4672 = vmatpush1.bf16.msra.mxu0 0
    %4673 = vmatprep.subr.bf16.mxu0 0
    %4674 = vmatpush1.bf16.msra.mxu0 0
    %4675 = vmatprep.subr.bf16.mxu0 0
    %4676 = vmatpush1.bf16.msra.mxu0 0
    %4677 = vmatprep.subr.bf16.mxu0 0
    %4678 = vmatpush1.bf16.msra.mxu0 0
    %4679 = vmatprep.subr.bf16.mxu0 0
    %4680 = vmatpush1.bf16.msra.mxu0 0
    %4681 = vmatprep.subr.bf16.mxu0 0
    %4682 = vmatpush1.bf16.msra.mxu0 0
    %4683 = vmatprep.subr.bf16.mxu0 0
    %4684 = vmatpush1.bf16.msra.mxu0 0
    %4685 = vmatprep.subr.bf16.mxu0 0
    %4686 = vmatpush1.bf16.msra.mxu0 0
    %4687 = vmatprep.subr.bf16.mxu0 0
    %4688 = vmatpush1.bf16.msra.mxu0 0
    %4689 = vmatprep.subr.bf16.mxu0 0
    %4690 = vmatpush1.bf16.msra.mxu0 0
    %4691 = vmatprep.subr.bf16.mxu0 0
    %4692 = vmatpush1.bf16.msra.mxu0 0
    %4693 = vmatprep.subr.bf16.mxu0 0
    %4694 = vmatpush1.bf16.msra.mxu0 0
    %4695 = vmatprep.subr.bf16.mxu0 0
    %4696 = vmatpush1.bf16.msra.mxu0 0
    %4697 = vmatprep.subr.bf16.mxu0 0
    %4698 = vmatpush1.bf16.msra.mxu0 0
    %4699 = vmatprep.mubr.bf16.mxu0 0
    %4700 = vmatmul.mubr.bf16.gmra.mrb[0].mxu0 %v4647
    %v4701 = vpop.f32.mrb[0].mxu0
    %v4702 = vadd.f32 0.0, %v4701
    %v4703 = vpop.f32.mrb[0].mxu0
    %v4704 = vadd.f32 0.0, %v4703
    %v4705 = vpop.f32.mrb[0].mxu0
    %v4706 = vadd.f32 0.0, %v4705
    %v4707 = vpop.f32.mrb[0].mxu0
    %v4708 = vadd.f32 0.0, %v4707
    %4709 = vdwg.mxu0
    %4710 = vmatprep.subr.bf16.mxu0 %v4659
    %4711 = vmatpush1.bf16.msra.mxu0 %v4656
    %4712 = vmatprep.subr.bf16.mxu0 0
    %4713 = vmatpush1.bf16.msra.mxu0 0
    %4714 = vmatprep.subr.bf16.mxu0 0
    %4715 = vmatpush1.bf16.msra.mxu0 0
    %4716 = vmatprep.subr.bf16.mxu0 0
    %4717 = vmatpush1.bf16.msra.mxu0 0
    %4718 = vmatprep.subr.bf16.mxu0 0
    %4719 = vmatpush1.bf16.msra.mxu0 0
    %4720 = vmatprep.subr.bf16.mxu0 0
    %4721 = vmatpush1.bf16.msra.mxu0 0
    %4722 = vmatprep.subr.bf16.mxu0 0
    %4723 = vmatpush1.bf16.msra.mxu0 0
    %4724 = vmatprep.subr.bf16.mxu0 0
    %4725 = vmatpush1.bf16.msra.mxu0 0
    %4726 = vmatprep.subr.bf16.mxu0 0
    %4727 = vmatpush1.bf16.msra.mxu0 0
    %4728 = vmatprep.subr.bf16.mxu0 0
    %4729 = vmatpush1.bf16.msra.mxu0 0
    %4730 = vmatprep.subr.bf16.mxu0 0
    %4731 = vmatpush1.bf16.msra.mxu0 0
    %4732 = vmatprep.subr.bf16.mxu0 0
    %4733 = vmatpush1.bf16.msra.mxu0 0
    %4734 = vmatprep.subr.bf16.mxu0 0
    %4735 = vmatpush1.bf16.msra.mxu0 0
    %4736 = vmatprep.subr.bf16.mxu0 0
    %4737 = vmatpush1.bf16.msra.mxu0 0
    %4738 = vmatprep.subr.bf16.mxu0 0
    %4739 = vmatpush1.bf16.msra.mxu0 0
    %4740 = vmatprep.subr.bf16.mxu0 0
    %4741 = vmatpush1.bf16.msra.mxu0 0
    %4742 = vmatprep.mubr.bf16.mxu0 0
    %4743 = vmatmul.mubr.bf16.gmra.mrb[0].mxu0 %v4647
    %v4744 = vpop.f32.mrb[0].mxu0
    %v4745 = vadd.f32 0.0, %v4744
    %v4746 = vpop.f32.mrb[0].mxu0
    %v4747 = vadd.f32 0.0, %v4746
    %v4748 = vpop.f32.mrb[0].mxu0
    %v4749 = vadd.f32 0.0, %v4748
    %v4750 = vpop.f32.mrb[0].mxu0
    %v4751 = vadd.f32 0.0, %v4750
    %4752 = vdwg.mxu0
    %4753 = vmatprep.subr.bf16.mxu0 %v4665
    %4754 = vmatpush1.bf16.msra.mxu0 %v4662
    %4755 = vmatprep.subr.bf16.mxu0 0
    %4756 = vmatpush1.bf16.msra.mxu0 0
    %4757 = vmatprep.subr.bf16.mxu0 0
    %4758 = vmatpush1.bf16.msra.mxu0 0
    %4759 = vmatprep.subr.bf16.mxu0 0
    %4760 = vmatpush1.bf16.msra.mxu0 0
    %4761 = vmatprep.subr.bf16.mxu0 0
    %4762 = vmatpush1.bf16.msra.mxu0 0
    %4763 = vmatprep.subr.bf16.mxu0 0
    %4764 = vmatpush1.bf16.msra.mxu0 0
    %4765 = vmatprep.subr.bf16.mxu0 0
    %4766 = vmatpush1.bf16.msra.mxu0 0
    %4767 = vmatprep.subr.bf16.mxu0 0
    %4768 = vmatpush1.bf16.msra.mxu0 0
    %4769 = vmatprep.subr.bf16.mxu0 0
    %4770 = vmatpush1.bf16.msra.mxu0 0
    %4771 = vmatprep.subr.bf16.mxu0 0
    %4772 = vmatpush1.bf16.msra.mxu0 0
    %4773 = vmatprep.subr.bf16.mxu0 0
    %4774 = vmatpush1.bf16.msra.mxu0 0
    %4775 = vmatprep.subr.bf16.mxu0 0
    %4776 = vmatpush1.bf16.msra.mxu0 0
    %4777 = vmatprep.subr.bf16.mxu0 0
    %4778 = vmatpush1.bf16.msra.mxu0 0
    %4779 = vmatprep.subr.bf16.mxu0 0
    %4780 = vmatpush1.bf16.msra.mxu0 0
    %4781 = vmatprep.subr.bf16.mxu0 0
    %4782 = vmatpush1.bf16.msra.mxu0 0
    %4783 = vmatprep.subr.bf16.mxu0 0
    %4784 = vmatpush1.bf16.msra.mxu0 0
    %4785 = vmatprep.mubr.bf16.mxu0 0
    %4786 = vmatmul.mubr.bf16.gmra.mrb[0].mxu0 %v4647
    %v4787 = vpop.f32.mrb[0].mxu0
    %v4788 = vadd.f32 0.0, %v4787
    %v4789 = vpop.f32.mrb[0].mxu0
    %v4790 = vadd.f32 0.0, %v4789
    %v4791 = vpop.f32.mrb[0].mxu0
    %v4792 = vadd.f32 0.0, %v4791
    %v4793 = vpop.f32.mrb[0].mxu0
    %v4794 = vadd.f32 0.0, %v4793
    %4795 = vdwg.mxu0
    %v4796 = vadd.f32 %v4614, %v4702
    %v4797 = vadd.f32 %v4615, %v4704
    %v4798 = vadd.f32 %v4616, %v4745
    %v4799 = vadd.f32 %v4617, %v4747
    %v4800 = vadd.f32 %v4618, %v4788
    %v4801 = vadd.f32 %v4619, %v4790
    %v4802 = vadd.f32 %v4620, %v4706
    %v4803 = vadd.f32 %v4621, %v4708
    %v4804 = vadd.f32 %v4622, %v4749
    %v4805 = vadd.f32 %v4623, %v4751
    %v4806 = vadd.f32 %v4624, %v4792
    %v4807 = vadd.f32 %v4625, %v4794
    %4808 = vrot.lane.b32.xlu0 %v3899, 88
    %v4809 = vpop.permute.xlu0 %4808
    %4810 = vrot.lane.b32.xlu0 %v1020, 55
    %v4811 = vpop.permute.xlu0 %4810
    %4812 = vrot.lane.b32.xlu0 %v1021, 55
    %v4813 = vpop.permute.xlu0 %4812
    %4814 = vrot.lane.b32.xlu0 %v1022, 55
    %v4815 = vpop.permute.xlu0 %4814
    %4816 = vrot.lane.b32.xlu0 %v1023, 55
    %v4817 = vpop.permute.xlu0 %4816
    %4818 = vrot.lane.b32.xlu0 %v1024, 55
    %v4819 = vpop.permute.xlu0 %4818
    %4820 = vrot.lane.b32.xlu0 %v1025, 55
    %v4821 = vpop.permute.xlu0 %4820
    %vm4822 = vcmask 449536
    %v4823 = vsel %vm4822, %v4811, %v4813
    %v4824 = vsel %vm4822, %v4813, %v4815
    %v4825 = vsel %vm4822, %v4815, %v4817
    %v4826 = vsel %vm4822, %v4817, %v4819
    %v4827 = vsel %vm4822, %v4819, %v4821
    %v4829 = vsel %vm1044, %v4809, 0
    %v4832 = vsel %vm324, %v4823, 0
    %v4835 = vsel %vm324, %v4824, 0
    %v4838 = vsel %vm324, %v4825, 0
    %v4841 = vsel %vm324, %v4826, 0
    %v4844 = vsel %vm324, %v4827, 0
    %v4847 = vsel %vm324, %v4821, 0
    %4849 = vmatprep.subr.bf16.mxu0 %v4835
    %4850 = vmatpush1.bf16.msra.mxu0 %v4832
    %4851 = vmatprep.subr.bf16.mxu0 0
    %4852 = vmatpush1.bf16.msra.mxu0 0
    %4853 = vmatprep.subr.bf16.mxu0 0
    %4854 = vmatpush1.bf16.msra.mxu0 0
    %4855 = vmatprep.subr.bf16.mxu0 0
    %4856 = vmatpush1.bf16.msra.mxu0 0
    %4857 = vmatprep.subr.bf16.mxu0 0
    %4858 = vmatpush1.bf16.msra.mxu0 0
    %4859 = vmatprep.subr.bf16.mxu0 0
    %4860 = vmatpush1.bf16.msra.mxu0 0
    %4861 = vmatprep.subr.bf16.mxu0 0
    %4862 = vmatpush1.bf16.msra.mxu0 0
    %4863 = vmatprep.subr.bf16.mxu0 0
    %4864 = vmatpush1.bf16.msra.mxu0 0
    %4865 = vmatprep.subr.bf16.mxu0 0
    %4866 = vmatpush1.bf16.msra.mxu0 0
    %4867 = vmatprep.subr.bf16.mxu0 0
    %4868 = vmatpush1.bf16.msra.mxu0 0
    %4869 = vmatprep.subr.bf16.mxu0 0
    %4870 = vmatpush1.bf16.msra.mxu0 0
    %4871 = vmatprep.subr.bf16.mxu0 0
    %4872 = vmatpush1.bf16.msra.mxu0 0
    %4873 = vmatprep.subr.bf16.mxu0 0
    %4874 = vmatpush1.bf16.msra.mxu0 0
    %4875 = vmatprep.subr.bf16.mxu0 0
    %4876 = vmatpush1.bf16.msra.mxu0 0
    %4877 = vmatprep.subr.bf16.mxu0 0
    %4878 = vmatpush1.bf16.msra.mxu0 0
    %4879 = vmatprep.subr.bf16.mxu0 0
    %4880 = vmatpush1.bf16.msra.mxu0 0
    %4881 = vmatprep.mubr.bf16.mxu0 0
    %4882 = vmatmul.mubr.bf16.gmra.mrb[0].mxu0 %v4829
    %v4883 = vpop.f32.mrb[0].mxu0
    %v4884 = vadd.f32 0.0, %v4883
    %v4885 = vpop.f32.mrb[0].mxu0
    %v4886 = vadd.f32 0.0, %v4885
    %v4887 = vpop.f32.mrb[0].mxu0
    %v4888 = vadd.f32 0.0, %v4887
    %v4889 = vpop.f32.mrb[0].mxu0
    %v4890 = vadd.f32 0.0, %v4889
    %4891 = vdwg.mxu0
    %4892 = vmatprep.subr.bf16.mxu0 %v4841
    %4893 = vmatpush1.bf16.msra.mxu0 %v4838
    %4894 = vmatprep.subr.bf16.mxu0 0
    %4895 = vmatpush1.bf16.msra.mxu0 0
    %4896 = vmatprep.subr.bf16.mxu0 0
    %4897 = vmatpush1.bf16.msra.mxu0 0
    %4898 = vmatprep.subr.bf16.mxu0 0
    %4899 = vmatpush1.bf16.msra.mxu0 0
    %4900 = vmatprep.subr.bf16.mxu0 0
    %4901 = vmatpush1.bf16.msra.mxu0 0
    %4902 = vmatprep.subr.bf16.mxu0 0
    %4903 = vmatpush1.bf16.msra.mxu0 0
    %4904 = vmatprep.subr.bf16.mxu0 0
    %4905 = vmatpush1.bf16.msra.mxu0 0
    %4906 = vmatprep.subr.bf16.mxu0 0
    %4907 = vmatpush1.bf16.msra.mxu0 0
    %4908 = vmatprep.subr.bf16.mxu0 0
    %4909 = vmatpush1.bf16.msra.mxu0 0
    %4910 = vmatprep.subr.bf16.mxu0 0
    %4911 = vmatpush1.bf16.msra.mxu0 0
    %4912 = vmatprep.subr.bf16.mxu0 0
    %4913 = vmatpush1.bf16.msra.mxu0 0
    %4914 = vmatprep.subr.bf16.mxu0 0
    %4915 = vmatpush1.bf16.msra.mxu0 0
    %4916 = vmatprep.subr.bf16.mxu0 0
    %4917 = vmatpush1.bf16.msra.mxu0 0
    %4918 = vmatprep.subr.bf16.mxu0 0
    %4919 = vmatpush1.bf16.msra.mxu0 0
    %4920 = vmatprep.subr.bf16.mxu0 0
    %4921 = vmatpush1.bf16.msra.mxu0 0
    %4922 = vmatprep.subr.bf16.mxu0 0
    %4923 = vmatpush1.bf16.msra.mxu0 0
    %4924 = vmatprep.mubr.bf16.mxu0 0
    %4925 = vmatmul.mubr.bf16.gmra.mrb[0].mxu0 %v4829
    %v4926 = vpop.f32.mrb[0].mxu0
    %v4927 = vadd.f32 0.0, %v4926
    %v4928 = vpop.f32.mrb[0].mxu0
    %v4929 = vadd.f32 0.0, %v4928
    %v4930 = vpop.f32.mrb[0].mxu0
    %v4931 = vadd.f32 0.0, %v4930
    %v4932 = vpop.f32.mrb[0].mxu0
    %v4933 = vadd.f32 0.0, %v4932
    %4934 = vdwg.mxu0
    %4935 = vmatprep.subr.bf16.mxu0 %v4847
    %4936 = vmatpush1.bf16.msra.mxu0 %v4844
    %4937 = vmatprep.subr.bf16.mxu0 0
    %4938 = vmatpush1.bf16.msra.mxu0 0
    %4939 = vmatprep.subr.bf16.mxu0 0
    %4940 = vmatpush1.bf16.msra.mxu0 0
    %4941 = vmatprep.subr.bf16.mxu0 0
    %4942 = vmatpush1.bf16.msra.mxu0 0
    %4943 = vmatprep.subr.bf16.mxu0 0
    %4944 = vmatpush1.bf16.msra.mxu0 0
    %4945 = vmatprep.subr.bf16.mxu0 0
    %4946 = vmatpush1.bf16.msra.mxu0 0
    %4947 = vmatprep.subr.bf16.mxu0 0
    %4948 = vmatpush1.bf16.msra.mxu0 0
    %4949 = vmatprep.subr.bf16.mxu0 0
    %4950 = vmatpush1.bf16.msra.mxu0 0
    %4951 = vmatprep.subr.bf16.mxu0 0
    %4952 = vmatpush1.bf16.msra.mxu0 0
    %4953 = vmatprep.subr.bf16.mxu0 0
    %4954 = vmatpush1.bf16.msra.mxu0 0
    %4955 = vmatprep.subr.bf16.mxu0 0
    %4956 = vmatpush1.bf16.msra.mxu0 0
    %4957 = vmatprep.subr.bf16.mxu0 0
    %4958 = vmatpush1.bf16.msra.mxu0 0
    %4959 = vmatprep.subr.bf16.mxu0 0
    %4960 = vmatpush1.bf16.msra.mxu0 0
    %4961 = vmatprep.subr.bf16.mxu0 0
    %4962 = vmatpush1.bf16.msra.mxu0 0
    %4963 = vmatprep.subr.bf16.mxu0 0
    %4964 = vmatpush1.bf16.msra.mxu0 0
    %4965 = vmatprep.subr.bf16.mxu0 0
    %4966 = vmatpush1.bf16.msra.mxu0 0
    %4967 = vmatprep.mubr.bf16.mxu0 0
    %4968 = vmatmul.mubr.bf16.gmra.mrb[0].mxu0 %v4829
    %v4969 = vpop.f32.mrb[0].mxu0
    %v4970 = vadd.f32 0.0, %v4969
    %v4971 = vpop.f32.mrb[0].mxu0
    %v4972 = vadd.f32 0.0, %v4971
    %v4973 = vpop.f32.mrb[0].mxu0
    %v4974 = vadd.f32 0.0, %v4973
    %v4975 = vpop.f32.mrb[0].mxu0
    %v4976 = vadd.f32 0.0, %v4975
    %4977 = vdwg.mxu0
    %v4978 = vadd.f32 %v4796, %v4884
    %v4979 = vadd.f32 %v4797, %v4886
    %v4980 = vadd.f32 %v4798, %v4927
    %v4981 = vadd.f32 %v4799, %v4929
    %v4982 = vadd.f32 %v4800, %v4970
    %v4983 = vadd.f32 %v4801, %v4972
    %v4984 = vadd.f32 %v4802, %v4888
    %v4985 = vadd.f32 %v4803, %v4890
    %v4986 = vadd.f32 %v4804, %v4931
    %v4987 = vadd.f32 %v4805, %v4933
    %v4988 = vadd.f32 %v4806, %v4974
    %v4989 = vadd.f32 %v4807, %v4976
    %4990 = vrot.lane.b32.xlu0 %v3899, 80
    %v4991 = vpop.permute.xlu0 %4990
    %4992 = vrot.lane.b32.xlu0 %v1020, 54
    %v4993 = vpop.permute.xlu0 %4992
    %4994 = vrot.lane.b32.xlu0 %v1021, 54
    %v4995 = vpop.permute.xlu0 %4994
    %4996 = vrot.lane.b32.xlu0 %v1022, 54
    %v4997 = vpop.permute.xlu0 %4996
    %4998 = vrot.lane.b32.xlu0 %v1023, 54
    %v4999 = vpop.permute.xlu0 %4998
    %5000 = vrot.lane.b32.xlu0 %v1024, 54
    %v5001 = vpop.permute.xlu0 %5000
    %5002 = vrot.lane.b32.xlu0 %v1025, 54
    %v5003 = vpop.permute.xlu0 %5002
    %vm5004 = vcmask 441344
    %v5005 = vsel %vm5004, %v4993, %v4995
    %v5006 = vsel %vm5004, %v4995, %v4997
    %v5007 = vsel %vm5004, %v4997, %v4999
    %v5008 = vsel %vm5004, %v4999, %v5001
    %v5009 = vsel %vm5004, %v5001, %v5003
    %v5011 = vsel %vm1044, %v4991, 0
    %v5014 = vsel %vm324, %v5005, 0
    %v5017 = vsel %vm324, %v5006, 0
    %v5020 = vsel %vm324, %v5007, 0
    %v5023 = vsel %vm324, %v5008, 0
    %v5026 = vsel %vm324, %v5009, 0
    %v5029 = vsel %vm324, %v5003, 0
    %5031 = vmatprep.subr.bf16.mxu0 %v5017
    %5032 = vmatpush1.bf16.msra.mxu0 %v5014
    %5033 = vmatprep.subr.bf16.mxu0 0
    %5034 = vmatpush1.bf16.msra.mxu0 0
    %5035 = vmatprep.subr.bf16.mxu0 0
    %5036 = vmatpush1.bf16.msra.mxu0 0
    %5037 = vmatprep.subr.bf16.mxu0 0
    %5038 = vmatpush1.bf16.msra.mxu0 0
    %5039 = vmatprep.subr.bf16.mxu0 0
    %5040 = vmatpush1.bf16.msra.mxu0 0
    %5041 = vmatprep.subr.bf16.mxu0 0
    %5042 = vmatpush1.bf16.msra.mxu0 0
    %5043 = vmatprep.subr.bf16.mxu0 0
    %5044 = vmatpush1.bf16.msra.mxu0 0
    %5045 = vmatprep.subr.bf16.mxu0 0
    %5046 = vmatpush1.bf16.msra.mxu0 0
    %5047 = vmatprep.subr.bf16.mxu0 0
    %5048 = vmatpush1.bf16.msra.mxu0 0
    %5049 = vmatprep.subr.bf16.mxu0 0
    %5050 = vmatpush1.bf16.msra.mxu0 0
    %5051 = vmatprep.subr.bf16.mxu0 0
    %5052 = vmatpush1.bf16.msra.mxu0 0
    %5053 = vmatprep.subr.bf16.mxu0 0
    %5054 = vmatpush1.bf16.msra.mxu0 0
    %5055 = vmatprep.subr.bf16.mxu0 0
    %5056 = vmatpush1.bf16.msra.mxu0 0
    %5057 = vmatprep.subr.bf16.mxu0 0
    %5058 = vmatpush1.bf16.msra.mxu0 0
    %5059 = vmatprep.subr.bf16.mxu0 0
    %5060 = vmatpush1.bf16.msra.mxu0 0
    %5061 = vmatprep.subr.bf16.mxu0 0
    %5062 = vmatpush1.bf16.msra.mxu0 0
    %5063 = vmatprep.mubr.bf16.mxu0 0
    %5064 = vmatmul.mubr.bf16.gmra.mrb[0].mxu0 %v5011
    %v5065 = vpop.f32.mrb[0].mxu0
    %v5066 = vadd.f32 0.0, %v5065
    %v5067 = vpop.f32.mrb[0].mxu0
    %v5068 = vadd.f32 0.0, %v5067
    %v5069 = vpop.f32.mrb[0].mxu0
    %v5070 = vadd.f32 0.0, %v5069
    %v5071 = vpop.f32.mrb[0].mxu0
    %v5072 = vadd.f32 0.0, %v5071
    %5073 = vdwg.mxu0
    %5074 = vmatprep.subr.bf16.mxu0 %v5023
    %5075 = vmatpush1.bf16.msra.mxu0 %v5020
    %5076 = vmatprep.subr.bf16.mxu0 0
    %5077 = vmatpush1.bf16.msra.mxu0 0
    %5078 = vmatprep.subr.bf16.mxu0 0
    %5079 = vmatpush1.bf16.msra.mxu0 0
    %5080 = vmatprep.subr.bf16.mxu0 0
    %5081 = vmatpush1.bf16.msra.mxu0 0
    %5082 = vmatprep.subr.bf16.mxu0 0
    %5083 = vmatpush1.bf16.msra.mxu0 0
    %5084 = vmatprep.subr.bf16.mxu0 0
    %5085 = vmatpush1.bf16.msra.mxu0 0
    %5086 = vmatprep.subr.bf16.mxu0 0
    %5087 = vmatpush1.bf16.msra.mxu0 0
    %5088 = vmatprep.subr.bf16.mxu0 0
    %5089 = vmatpush1.bf16.msra.mxu0 0
    %5090 = vmatprep.subr.bf16.mxu0 0
    %5091 = vmatpush1.bf16.msra.mxu0 0
    %5092 = vmatprep.subr.bf16.mxu0 0
    %5093 = vmatpush1.bf16.msra.mxu0 0
    %5094 = vmatprep.subr.bf16.mxu0 0
    %5095 = vmatpush1.bf16.msra.mxu0 0
    %5096 = vmatprep.subr.bf16.mxu0 0
    %5097 = vmatpush1.bf16.msra.mxu0 0
    %5098 = vmatprep.subr.bf16.mxu0 0
    %5099 = vmatpush1.bf16.msra.mxu0 0
    %5100 = vmatprep.subr.bf16.mxu0 0
    %5101 = vmatpush1.bf16.msra.mxu0 0
    %5102 = vmatprep.subr.bf16.mxu0 0
    %5103 = vmatpush1.bf16.msra.mxu0 0
    %5104 = vmatprep.subr.bf16.mxu0 0
    %5105 = vmatpush1.bf16.msra.mxu0 0
    %5106 = vmatprep.mubr.bf16.mxu0 0
    %5107 = vmatmul.mubr.bf16.gmra.mrb[0].mxu0 %v5011
    %v5108 = vpop.f32.mrb[0].mxu0
    %v5109 = vadd.f32 0.0, %v5108
    %v5110 = vpop.f32.mrb[0].mxu0
    %v5111 = vadd.f32 0.0, %v5110
    %v5112 = vpop.f32.mrb[0].mxu0
    %v5113 = vadd.f32 0.0, %v5112
    %v5114 = vpop.f32.mrb[0].mxu0
    %v5115 = vadd.f32 0.0, %v5114
    %5116 = vdwg.mxu0
    %5117 = vmatprep.subr.bf16.mxu0 %v5029
    %5118 = vmatpush1.bf16.msra.mxu0 %v5026
    %5119 = vmatprep.subr.bf16.mxu0 0
    %5120 = vmatpush1.bf16.msra.mxu0 0
    %5121 = vmatprep.subr.bf16.mxu0 0
    %5122 = vmatpush1.bf16.msra.mxu0 0
    %5123 = vmatprep.subr.bf16.mxu0 0
    %5124 = vmatpush1.bf16.msra.mxu0 0
    %5125 = vmatprep.subr.bf16.mxu0 0
    %5126 = vmatpush1.bf16.msra.mxu0 0
    %5127 = vmatprep.subr.bf16.mxu0 0
    %5128 = vmatpush1.bf16.msra.mxu0 0
    %5129 = vmatprep.subr.bf16.mxu0 0
    %5130 = vmatpush1.bf16.msra.mxu0 0
    %5131 = vmatprep.subr.bf16.mxu0 0
    %5132 = vmatpush1.bf16.msra.mxu0 0
    %5133 = vmatprep.subr.bf16.mxu0 0
    %5134 = vmatpush1.bf16.msra.mxu0 0
    %5135 = vmatprep.subr.bf16.mxu0 0
    %5136 = vmatpush1.bf16.msra.mxu0 0
    %5137 = vmatprep.subr.bf16.mxu0 0
    %5138 = vmatpush1.bf16.msra.mxu0 0
    %5139 = vmatprep.subr.bf16.mxu0 0
    %5140 = vmatpush1.bf16.msra.mxu0 0
    %5141 = vmatprep.subr.bf16.mxu0 0
    %5142 = vmatpush1.bf16.msra.mxu0 0
    %5143 = vmatprep.subr.bf16.mxu0 0
    %5144 = vmatpush1.bf16.msra.mxu0 0
    %5145 = vmatprep.subr.bf16.mxu0 0
    %5146 = vmatpush1.bf16.msra.mxu0 0
    %5147 = vmatprep.subr.bf16.mxu0 0
    %5148 = vmatpush1.bf16.msra.mxu0 0
    %5149 = vmatprep.mubr.bf16.mxu0 0
    %5150 = vmatmul.mubr.bf16.gmra.mrb[0].mxu0 %v5011
    %v5151 = vpop.f32.mrb[0].mxu0
    %v5152 = vadd.f32 0.0, %v5151
    %v5153 = vpop.f32.mrb[0].mxu0
    %v5154 = vadd.f32 0.0, %v5153
    %v5155 = vpop.f32.mrb[0].mxu0
    %v5156 = vadd.f32 0.0, %v5155
    %v5157 = vpop.f32.mrb[0].mxu0
    %v5158 = vadd.f32 0.0, %v5157
    %5159 = vdwg.mxu0
    %v5160 = vadd.f32 %v4978, %v5066
    %v5161 = vadd.f32 %v4979, %v5068
    %v5162 = vadd.f32 %v4980, %v5109
    %v5163 = vadd.f32 %v4981, %v5111
    %v5164 = vadd.f32 %v4982, %v5152
    %v5165 = vadd.f32 %v4983, %v5154
    %v5166 = vadd.f32 %v4984, %v5070
    %v5167 = vadd.f32 %v4985, %v5072
    %v5168 = vadd.f32 %v4986, %v5113
    %v5169 = vadd.f32 %v4987, %v5115
    %v5170 = vadd.f32 %v4988, %v5156
    %v5171 = vadd.f32 %v4989, %v5158
    %5172 = vrot.lane.b32.xlu0 %v3899, 72
    %v5173 = vpop.permute.xlu0 %5172
    %5174 = vrot.lane.b32.xlu0 %v1020, 53
    %v5175 = vpop.permute.xlu0 %5174
    %5176 = vrot.lane.b32.xlu0 %v1021, 53
    %v5177 = vpop.permute.xlu0 %5176
    %5178 = vrot.lane.b32.xlu0 %v1022, 53
    %v5179 = vpop.permute.xlu0 %5178
    %5180 = vrot.lane.b32.xlu0 %v1023, 53
    %v5181 = vpop.permute.xlu0 %5180
    %5182 = vrot.lane.b32.xlu0 %v1024, 53
    %v5183 = vpop.permute.xlu0 %5182
    %5184 = vrot.lane.b32.xlu0 %v1025, 53
    %v5185 = vpop.permute.xlu0 %5184
    %vm5186 = vcmask 433152
    %v5187 = vsel %vm5186, %v5175, %v5177
    %v5188 = vsel %vm5186, %v5177, %v5179
    %v5189 = vsel %vm5186, %v5179, %v5181
    %v5190 = vsel %vm5186, %v5181, %v5183
    %v5191 = vsel %vm5186, %v5183, %v5185
    %v5193 = vsel %vm1044, %v5173, 0
    %v5196 = vsel %vm324, %v5187, 0
    %v5199 = vsel %vm324, %v5188, 0
    %v5202 = vsel %vm324, %v5189, 0
    %v5205 = vsel %vm324, %v5190, 0
    %v5208 = vsel %vm324, %v5191, 0
    %v5211 = vsel %vm324, %v5185, 0
    %5213 = vmatprep.subr.bf16.mxu0 %v5199
    %5214 = vmatpush1.bf16.msra.mxu0 %v5196
    %5215 = vmatprep.subr.bf16.mxu0 0
    %5216 = vmatpush1.bf16.msra.mxu0 0
    %5217 = vmatprep.subr.bf16.mxu0 0
    %5218 = vmatpush1.bf16.msra.mxu0 0
    %5219 = vmatprep.subr.bf16.mxu0 0
    %5220 = vmatpush1.bf16.msra.mxu0 0
    %5221 = vmatprep.subr.bf16.mxu0 0
    %5222 = vmatpush1.bf16.msra.mxu0 0
    %5223 = vmatprep.subr.bf16.mxu0 0
    %5224 = vmatpush1.bf16.msra.mxu0 0
    %5225 = vmatprep.subr.bf16.mxu0 0
    %5226 = vmatpush1.bf16.msra.mxu0 0
    %5227 = vmatprep.subr.bf16.mxu0 0
    %5228 = vmatpush1.bf16.msra.mxu0 0
    %5229 = vmatprep.subr.bf16.mxu0 0
    %5230 = vmatpush1.bf16.msra.mxu0 0
    %5231 = vmatprep.subr.bf16.mxu0 0
    %5232 = vmatpush1.bf16.msra.mxu0 0
    %5233 = vmatprep.subr.bf16.mxu0 0
    %5234 = vmatpush1.bf16.msra.mxu0 0
    %5235 = vmatprep.subr.bf16.mxu0 0
    %5236 = vmatpush1.bf16.msra.mxu0 0
    %5237 = vmatprep.subr.bf16.mxu0 0
    %5238 = vmatpush1.bf16.msra.mxu0 0
    %5239 = vmatprep.subr.bf16.mxu0 0
    %5240 = vmatpush1.bf16.msra.mxu0 0
    %5241 = vmatprep.subr.bf16.mxu0 0
    %5242 = vmatpush1.bf16.msra.mxu0 0
    %5243 = vmatprep.subr.bf16.mxu0 0
    %5244 = vmatpush1.bf16.msra.mxu0 0
    %5245 = vmatprep.mubr.bf16.mxu0 0
    %5246 = vmatmul.mubr.bf16.gmra.mrb[0].mxu0 %v5193
    %v5247 = vpop.f32.mrb[0].mxu0
    %v5248 = vadd.f32 0.0, %v5247
    %v5249 = vpop.f32.mrb[0].mxu0
    %v5250 = vadd.f32 0.0, %v5249
    %v5251 = vpop.f32.mrb[0].mxu0
    %v5252 = vadd.f32 0.0, %v5251
    %v5253 = vpop.f32.mrb[0].mxu0
    %v5254 = vadd.f32 0.0, %v5253
    %5255 = vdwg.mxu0
    %5256 = vmatprep.subr.bf16.mxu0 %v5205
    %5257 = vmatpush1.bf16.msra.mxu0 %v5202
    %5258 = vmatprep.subr.bf16.mxu0 0
    %5259 = vmatpush1.bf16.msra.mxu0 0
    %5260 = vmatprep.subr.bf16.mxu0 0
    %5261 = vmatpush1.bf16.msra.mxu0 0
    %5262 = vmatprep.subr.bf16.mxu0 0
    %5263 = vmatpush1.bf16.msra.mxu0 0
    %5264 = vmatprep.subr.bf16.mxu0 0
    %5265 = vmatpush1.bf16.msra.mxu0 0
    %5266 = vmatprep.subr.bf16.mxu0 0
    %5267 = vmatpush1.bf16.msra.mxu0 0
    %5268 = vmatprep.subr.bf16.mxu0 0
    %5269 = vmatpush1.bf16.msra.mxu0 0
    %5270 = vmatprep.subr.bf16.mxu0 0
    %5271 = vmatpush1.bf16.msra.mxu0 0
    %5272 = vmatprep.subr.bf16.mxu0 0
    %5273 = vmatpush1.bf16.msra.mxu0 0
    %5274 = vmatprep.subr.bf16.mxu0 0
    %5275 = vmatpush1.bf16.msra.mxu0 0
    %5276 = vmatprep.subr.bf16.mxu0 0
    %5277 = vmatpush1.bf16.msra.mxu0 0
    %5278 = vmatprep.subr.bf16.mxu0 0
    %5279 = vmatpush1.bf16.msra.mxu0 0
    %5280 = vmatprep.subr.bf16.mxu0 0
    %5281 = vmatpush1.bf16.msra.mxu0 0
    %5282 = vmatprep.subr.bf16.mxu0 0
    %5283 = vmatpush1.bf16.msra.mxu0 0
    %5284 = vmatprep.subr.bf16.mxu0 0
    %5285 = vmatpush1.bf16.msra.mxu0 0
    %5286 = vmatprep.subr.bf16.mxu0 0
    %5287 = vmatpush1.bf16.msra.mxu0 0
    %5288 = vmatprep.mubr.bf16.mxu0 0
    %5289 = vmatmul.mubr.bf16.gmra.mrb[0].mxu0 %v5193
    %v5290 = vpop.f32.mrb[0].mxu0
    %v5291 = vadd.f32 0.0, %v5290
    %v5292 = vpop.f32.mrb[0].mxu0
    %v5293 = vadd.f32 0.0, %v5292
    %v5294 = vpop.f32.mrb[0].mxu0
    %v5295 = vadd.f32 0.0, %v5294
    %v5296 = vpop.f32.mrb[0].mxu0
    %v5297 = vadd.f32 0.0, %v5296
    %5298 = vdwg.mxu0
    %5299 = vmatprep.subr.bf16.mxu0 %v5211
    %5300 = vmatpush1.bf16.msra.mxu0 %v5208
    %5301 = vmatprep.subr.bf16.mxu0 0
    %5302 = vmatpush1.bf16.msra.mxu0 0
    %5303 = vmatprep.subr.bf16.mxu0 0
    %5304 = vmatpush1.bf16.msra.mxu0 0
    %5305 = vmatprep.subr.bf16.mxu0 0
    %5306 = vmatpush1.bf16.msra.mxu0 0
    %5307 = vmatprep.subr.bf16.mxu0 0
    %5308 = vmatpush1.bf16.msra.mxu0 0
    %5309 = vmatprep.subr.bf16.mxu0 0
    %5310 = vmatpush1.bf16.msra.mxu0 0
    %5311 = vmatprep.subr.bf16.mxu0 0
    %5312 = vmatpush1.bf16.msra.mxu0 0
    %5313 = vmatprep.subr.bf16.mxu0 0
    %5314 = vmatpush1.bf16.msra.mxu0 0
    %5315 = vmatprep.subr.bf16.mxu0 0
    %5316 = vmatpush1.bf16.msra.mxu0 0
    %5317 = vmatprep.subr.bf16.mxu0 0
    %5318 = vmatpush1.bf16.msra.mxu0 0
    %5319 = vmatprep.subr.bf16.mxu0 0
    %5320 = vmatpush1.bf16.msra.mxu0 0
    %5321 = vmatprep.subr.bf16.mxu0 0
    %5322 = vmatpush1.bf16.msra.mxu0 0
    %5323 = vmatprep.subr.bf16.mxu0 0
    %5324 = vmatpush1.bf16.msra.mxu0 0
    %5325 = vmatprep.subr.bf16.mxu0 0
    %5326 = vmatpush1.bf16.msra.mxu0 0
    %5327 = vmatprep.subr.bf16.mxu0 0
    %5328 = vmatpush1.bf16.msra.mxu0 0
    %5329 = vmatprep.subr.bf16.mxu0 0
    %5330 = vmatpush1.bf16.msra.mxu0 0
    %5331 = vmatprep.mubr.bf16.mxu0 0
    %5332 = vmatmul.mubr.bf16.gmra.mrb[0].mxu0 %v5193
    %v5333 = vpop.f32.mrb[0].mxu0
    %v5334 = vadd.f32 0.0, %v5333
    %v5335 = vpop.f32.mrb[0].mxu0
    %v5336 = vadd.f32 0.0, %v5335
    %v5337 = vpop.f32.mrb[0].mxu0
    %v5338 = vadd.f32 0.0, %v5337
    %v5339 = vpop.f32.mrb[0].mxu0
    %v5340 = vadd.f32 0.0, %v5339
    %5341 = vdwg.mxu0
    %v5342 = vadd.f32 %v5160, %v5248
    %v5343 = vadd.f32 %v5161, %v5250
    %v5344 = vadd.f32 %v5162, %v5291
    %v5345 = vadd.f32 %v5163, %v5293
    %v5346 = vadd.f32 %v5164, %v5334
    %v5347 = vadd.f32 %v5165, %v5336
    %v5348 = vadd.f32 %v5166, %v5252
    %v5349 = vadd.f32 %v5167, %v5254
    %v5350 = vadd.f32 %v5168, %v5295
    %v5351 = vadd.f32 %v5169, %v5297
    %v5352 = vadd.f32 %v5170, %v5338
    %v5353 = vadd.f32 %v5171, %v5340
    %5354 = vrot.lane.b32.xlu0 %v3899, 64
    %v5355 = vpop.permute.xlu0 %5354
    %5356 = vrot.lane.b32.xlu0 %v1020, 52
    %v5357 = vpop.permute.xlu0 %5356
    %5358 = vrot.lane.b32.xlu0 %v1021, 52
    %v5359 = vpop.permute.xlu0 %5358
    %5360 = vrot.lane.b32.xlu0 %v1022, 52
    %v5361 = vpop.permute.xlu0 %5360
    %5362 = vrot.lane.b32.xlu0 %v1023, 52
    %v5363 = vpop.permute.xlu0 %5362
    %5364 = vrot.lane.b32.xlu0 %v1024, 52
    %v5365 = vpop.permute.xlu0 %5364
    %5366 = vrot.lane.b32.xlu0 %v1025, 52
    %v5367 = vpop.permute.xlu0 %5366
    %vm5368 = vcmask 424960
    %v5369 = vsel %vm5368, %v5357, %v5359
    %v5370 = vsel %vm5368, %v5359, %v5361
    %v5371 = vsel %vm5368, %v5361, %v5363
    %v5372 = vsel %vm5368, %v5363, %v5365
    %v5373 = vsel %vm5368, %v5365, %v5367
    %v5375 = vsel %vm1044, %v5355, 0
    %v5378 = vsel %vm324, %v5369, 0
    %v5381 = vsel %vm324, %v5370, 0
    %v5384 = vsel %vm324, %v5371, 0
    %v5387 = vsel %vm324, %v5372, 0
    %v5390 = vsel %vm324, %v5373, 0
    %v5393 = vsel %vm324, %v5367, 0
    %5395 = vmatprep.subr.bf16.mxu0 %v5381
    %5396 = vmatpush1.bf16.msra.mxu0 %v5378
    %5397 = vmatprep.subr.bf16.mxu0 0
    %5398 = vmatpush1.bf16.msra.mxu0 0
    %5399 = vmatprep.subr.bf16.mxu0 0
    %5400 = vmatpush1.bf16.msra.mxu0 0
    %5401 = vmatprep.subr.bf16.mxu0 0
    %5402 = vmatpush1.bf16.msra.mxu0 0
    %5403 = vmatprep.subr.bf16.mxu0 0
    %5404 = vmatpush1.bf16.msra.mxu0 0
    %5405 = vmatprep.subr.bf16.mxu0 0
    %5406 = vmatpush1.bf16.msra.mxu0 0
    %5407 = vmatprep.subr.bf16.mxu0 0
    %5408 = vmatpush1.bf16.msra.mxu0 0
    %5409 = vmatprep.subr.bf16.mxu0 0
    %5410 = vmatpush1.bf16.msra.mxu0 0
    %5411 = vmatprep.subr.bf16.mxu0 0
    %5412 = vmatpush1.bf16.msra.mxu0 0
    %5413 = vmatprep.subr.bf16.mxu0 0
    %5414 = vmatpush1.bf16.msra.mxu0 0
    %5415 = vmatprep.subr.bf16.mxu0 0
    %5416 = vmatpush1.bf16.msra.mxu0 0
    %5417 = vmatprep.subr.bf16.mxu0 0
    %5418 = vmatpush1.bf16.msra.mxu0 0
    %5419 = vmatprep.subr.bf16.mxu0 0
    %5420 = vmatpush1.bf16.msra.mxu0 0
    %5421 = vmatprep.subr.bf16.mxu0 0
    %5422 = vmatpush1.bf16.msra.mxu0 0
    %5423 = vmatprep.subr.bf16.mxu0 0
    %5424 = vmatpush1.bf16.msra.mxu0 0
    %5425 = vmatprep.subr.bf16.mxu0 0
    %5426 = vmatpush1.bf16.msra.mxu0 0
    %5427 = vmatprep.mubr.bf16.mxu0 0
    %5428 = vmatmul.mubr.bf16.gmra.mrb[0].mxu0 %v5375
    %v5429 = vpop.f32.mrb[0].mxu0
    %v5430 = vadd.f32 0.0, %v5429
    %v5431 = vpop.f32.mrb[0].mxu0
    %v5432 = vadd.f32 0.0, %v5431
    %v5433 = vpop.f32.mrb[0].mxu0
    %v5434 = vadd.f32 0.0, %v5433
    %v5435 = vpop.f32.mrb[0].mxu0
    %v5436 = vadd.f32 0.0, %v5435
    %5437 = vdwg.mxu0
    %5438 = vmatprep.subr.bf16.mxu0 %v5387
    %5439 = vmatpush1.bf16.msra.mxu0 %v5384
    %5440 = vmatprep.subr.bf16.mxu0 0
    %5441 = vmatpush1.bf16.msra.mxu0 0
    %5442 = vmatprep.subr.bf16.mxu0 0
    %5443 = vmatpush1.bf16.msra.mxu0 0
    %5444 = vmatprep.subr.bf16.mxu0 0
    %5445 = vmatpush1.bf16.msra.mxu0 0
    %5446 = vmatprep.subr.bf16.mxu0 0
    %5447 = vmatpush1.bf16.msra.mxu0 0
    %5448 = vmatprep.subr.bf16.mxu0 0
    %5449 = vmatpush1.bf16.msra.mxu0 0
    %5450 = vmatprep.subr.bf16.mxu0 0
    %5451 = vmatpush1.bf16.msra.mxu0 0
    %5452 = vmatprep.subr.bf16.mxu0 0
    %5453 = vmatpush1.bf16.msra.mxu0 0
    %5454 = vmatprep.subr.bf16.mxu0 0
    %5455 = vmatpush1.bf16.msra.mxu0 0
    %5456 = vmatprep.subr.bf16.mxu0 0
    %5457 = vmatpush1.bf16.msra.mxu0 0
    %5458 = vmatprep.subr.bf16.mxu0 0
    %5459 = vmatpush1.bf16.msra.mxu0 0
    %5460 = vmatprep.subr.bf16.mxu0 0
    %5461 = vmatpush1.bf16.msra.mxu0 0
    %5462 = vmatprep.subr.bf16.mxu0 0
    %5463 = vmatpush1.bf16.msra.mxu0 0
    %5464 = vmatprep.subr.bf16.mxu0 0
    %5465 = vmatpush1.bf16.msra.mxu0 0
    %5466 = vmatprep.subr.bf16.mxu0 0
    %5467 = vmatpush1.bf16.msra.mxu0 0
    %5468 = vmatprep.subr.bf16.mxu0 0
    %5469 = vmatpush1.bf16.msra.mxu0 0
    %5470 = vmatprep.mubr.bf16.mxu0 0
    %5471 = vmatmul.mubr.bf16.gmra.mrb[0].mxu0 %v5375
    %v5472 = vpop.f32.mrb[0].mxu0
    %v5473 = vadd.f32 0.0, %v5472
    %v5474 = vpop.f32.mrb[0].mxu0
    %v5475 = vadd.f32 0.0, %v5474
    %v5476 = vpop.f32.mrb[0].mxu0
    %v5477 = vadd.f32 0.0, %v5476
    %v5478 = vpop.f32.mrb[0].mxu0
    %v5479 = vadd.f32 0.0, %v5478
    %5480 = vdwg.mxu0
    %5481 = vmatprep.subr.bf16.mxu0 %v5393
    %5482 = vmatpush1.bf16.msra.mxu0 %v5390
    %5483 = vmatprep.subr.bf16.mxu0 0
    %5484 = vmatpush1.bf16.msra.mxu0 0
    %5485 = vmatprep.subr.bf16.mxu0 0
    %5486 = vmatpush1.bf16.msra.mxu0 0
    %5487 = vmatprep.subr.bf16.mxu0 0
    %5488 = vmatpush1.bf16.msra.mxu0 0
    %5489 = vmatprep.subr.bf16.mxu0 0
    %5490 = vmatpush1.bf16.msra.mxu0 0
    %5491 = vmatprep.subr.bf16.mxu0 0
    %5492 = vmatpush1.bf16.msra.mxu0 0
    %5493 = vmatprep.subr.bf16.mxu0 0
    %5494 = vmatpush1.bf16.msra.mxu0 0
    %5495 = vmatprep.subr.bf16.mxu0 0
    %5496 = vmatpush1.bf16.msra.mxu0 0
    %5497 = vmatprep.subr.bf16.mxu0 0
    %5498 = vmatpush1.bf16.msra.mxu0 0
    %5499 = vmatprep.subr.bf16.mxu0 0
    %5500 = vmatpush1.bf16.msra.mxu0 0
    %5501 = vmatprep.subr.bf16.mxu0 0
    %5502 = vmatpush1.bf16.msra.mxu0 0
    %5503 = vmatprep.subr.bf16.mxu0 0
    %5504 = vmatpush1.bf16.msra.mxu0 0
    %5505 = vmatprep.subr.bf16.mxu0 0
    %5506 = vmatpush1.bf16.msra.mxu0 0
    %5507 = vmatprep.subr.bf16.mxu0 0
    %5508 = vmatpush1.bf16.msra.mxu0 0
    %5509 = vmatprep.subr.bf16.mxu0 0
    %5510 = vmatpush1.bf16.msra.mxu0 0
    %5511 = vmatprep.subr.bf16.mxu0 0
    %5512 = vmatpush1.bf16.msra.mxu0 0
    %5513 = vmatprep.mubr.bf16.mxu0 0
    %5514 = vmatmul.mubr.bf16.gmra.mrb[0].mxu0 %v5375
    %v5515 = vpop.f32.mrb[0].mxu0
    %v5516 = vadd.f32 0.0, %v5515
    %v5517 = vpop.f32.mrb[0].mxu0
    %v5518 = vadd.f32 0.0, %v5517
    %v5519 = vpop.f32.mrb[0].mxu0
    %v5520 = vadd.f32 0.0, %v5519
    %v5521 = vpop.f32.mrb[0].mxu0
    %v5522 = vadd.f32 0.0, %v5521
    %5523 = vdwg.mxu0
    %v5524 = vadd.f32 %v5342, %v5430
    %v5525 = vadd.f32 %v5343, %v5432
    %v5526 = vadd.f32 %v5344, %v5473
    %v5527 = vadd.f32 %v5345, %v5475
    %v5528 = vadd.f32 %v5346, %v5516
    %v5529 = vadd.f32 %v5347, %v5518
    %v5530 = vadd.f32 %v5348, %v5434
    %v5531 = vadd.f32 %v5349, %v5436
    %v5532 = vadd.f32 %v5350, %v5477
    %v5533 = vadd.f32 %v5351, %v5479
    %v5534 = vadd.f32 %v5352, %v5520
    %v5535 = vadd.f32 %v5353, %v5522
    %v5536 = vld [vmem:[%s4] sm:$0xff]
    %v5537 = vld [vmem:[%s4 + $0x8] sm:$0xff]
    %5539 = vset.pattern.permute.xlu0 0
    %5540 = vperm.xlu0 %5539, %v5536
    %v5541 = vpop.permute.xlu0 %5540
    %5544 = vset.pattern.permute.xlu0 0
    %5545 = vperm.xlu0 %5544, %v5537
    %v5546 = vpop.permute.xlu0 %5545
    %v5548 = vadd.f32 %v5524, %v5541
    %v5549 = vadd.f32 %v5525, %v5541
    %v5550 = vadd.f32 %v5526, %v5541
    %v5551 = vadd.f32 %v5527, %v5541
    %v5552 = vadd.f32 %v5528, %v5541
    %v5553 = vadd.f32 %v5529, %v5541
    %v5554 = vadd.f32 %v5530, %v5546
    %v5555 = vadd.f32 %v5531, %v5546
    %v5556 = vadd.f32 %v5532, %v5546
    %v5557 = vadd.f32 %v5533, %v5546
    %v5558 = vadd.f32 %v5534, %v5546
    %v5559 = vadd.f32 %v5535, %v5546
    %v5560 = vmax.f32 %v5548, 0.0
    %v5561 = vmax.f32 %v5549, 0.0
    %v5562 = vmax.f32 %v5550, 0.0
    %v5563 = vmax.f32 %v5551, 0.0
    %v5564 = vmax.f32 %v5552, 0.0
    %v5565 = vmax.f32 %v5553, 0.0
    %v5566 = vmax.f32 %v5554, 0.0
    %v5567 = vmax.f32 %v5555, 0.0
    %v5568 = vmax.f32 %v5556, 0.0
    %v5569 = vmax.f32 %v5557, 0.0
    %v5570 = vmax.f32 %v5558, 0.0
    %v5571 = vmax.f32 %v5559, 0.0
    %v5572 = vld [vmem:[%s6] sm:$0xff]
    %v5573 = vld [vmem:[%s6 + $0x8] sm:$0xff]
    %v5574 = vld [vmem:[%s6 + $0x10] sm:$0xff]
    %v5575 = vld [vmem:[%s6 + $0x18] sm:$0xff]
    %v5576 = vld [vmem:[%s6 + $0x20] sm:$0xff]
    %v5577 = vld [vmem:[%s6 + $0x28] sm:$0xff]
    %v5578 = vld [vmem:[%s6 + $0x30] sm:$0xff]
    %v5579 = vld [vmem:[%s6 + $0x38] sm:$0xff]
    %v5580 = vld [vmem:[%s6 + $0x40] sm:$0xff]
    %v5581 = vld [vmem:[%s6 + $0x48] sm:$0xff]
    %v5582 = vld [vmem:[%s6 + $0x50] sm:$0xff]
    %v5583 = vld [vmem:[%s6 + $0x58] sm:$0xff]
    %v5584 = vld [vmem:[%s6 + $0x60] sm:$0xff]
    %v5585 = vld [vmem:[%s6 + $0x68] sm:$0xff]
    %v5586 = vld [vmem:[%s6 + $0x70] sm:$0xff]
    %v5587 = vld [vmem:[%s6 + $0x78] sm:$0xff]
    %v5588 = vld [vmem:[%s6 + $0x80] sm:$0xff]
    %v5589 = vld [vmem:[%s6 + $0x88] sm:$0xff]
    %v5590 = vld [vmem:[%s6 + $0x90] sm:$0xff]
    %v5591 = vld [vmem:[%s6 + $0x98] sm:$0xff]
    %v5592 = vld [vmem:[%s6 + $0xa0] sm:$0xff]
    %v5593 = vld [vmem:[%s6 + $0xa8] sm:$0xff]
    %v5594 = vld [vmem:[%s6 + $0xb0] sm:$0xff]
    %v5595 = vld [vmem:[%s6 + $0xb8] sm:$0xff]
    %v5596 = vld [vmem:[%s6 + $0xc0] sm:$0xff]
    %v5597 = vld [vmem:[%s6 + $0xc8] sm:$0xff]
    %v5598 = vld [vmem:[%s6 + $0xd0] sm:$0xff]
    %v5599 = vld [vmem:[%s6 + $0xd8] sm:$0xff]
    %v5600 = vld [vmem:[%s6 + $0xe0] sm:$0xff]
    %v5601 = vld [vmem:[%s6 + $0xe8] sm:$0xff]
    %v5602 = vld [vmem:[%s6 + $0xf0] sm:$0xff]
    %v5603 = vld [vmem:[%s6 + $0xf8] sm:$0xff]
    %v5604 = vld [vmem:[%s6 + $0x100] sm:$0xff]
    %v5605 = vld [vmem:[%s6 + $0x108] sm:$0xff]
    %v5606 = vld [vmem:[%s6 + $0x110] sm:$0xff]
    %v5607 = vld [vmem:[%s6 + $0x118] sm:$0xff]
    %v5608 = vld [vmem:[%s6 + $0x120] sm:$0xff]
    %v5609 = vld [vmem:[%s6 + $0x128] sm:$0xff]
    %v5610 = vld [vmem:[%s6 + $0x130] sm:$0xff]
    %v5611 = vld [vmem:[%s6 + $0x138] sm:$0xff]
    %v5612 = vld [vmem:[%s6 + $0x140] sm:$0xff]
    %v5613 = vld [vmem:[%s6 + $0x148] sm:$0xff]
    %v5614 = vld [vmem:[%s6 + $0x150] sm:$0xff]
    %v5615 = vld [vmem:[%s6 + $0x158] sm:$0xff]
    %v5616 = vld [vmem:[%s6 + $0x160] sm:$0xff]
    %v5617 = vld [vmem:[%s6 + $0x168] sm:$0xff]
    %v5618 = vld [vmem:[%s6 + $0x170] sm:$0xff]
    %v5619 = vld [vmem:[%s6 + $0x178] sm:$0xff]
    %v5620 = vld [vmem:[%s6 + $0x180] sm:$0xff]
    %v5621 = vld [vmem:[%s6 + $0x188] sm:$0xff]
    %v5622 = vld [vmem:[%s6 + $0x190] sm:$0xff]
    %v5623 = vld [vmem:[%s6 + $0x198] sm:$0xff]
    %v5624 = vld [vmem:[%s6 + $0x1a0] sm:$0xff]
    %v5625 = vld [vmem:[%s6 + $0x1a8] sm:$0xff]
    %v5626 = vld [vmem:[%s6 + $0x1b0] sm:$0xff]
    %v5627 = vld [vmem:[%s6 + $0x1b8] sm:$0xff]
    %v5628 = vld [vmem:[%s6 + $0x1c0] sm:$0xff]
    %v5629 = vld [vmem:[%s6 + $0x1c8] sm:$0xff]
    %v5630 = vld [vmem:[%s6 + $0x1d0] sm:$0xff]
    %v5631 = vld [vmem:[%s6 + $0x1d8] sm:$0xff]
    %v5632 = vld [vmem:[%s6 + $0x1e0] sm:$0xff]
    %v5633 = vld [vmem:[%s6 + $0x1e8] sm:$0xff]
    %v5634 = vld [vmem:[%s6 + $0x1f0] sm:$0xff]
    %v5635 = vld [vmem:[%s6 + $0x1f8] sm:$0xff]
    %v5636 = vld [vmem:[%s6 + $0x200] sm:$0xff]
    %v5637 = vld [vmem:[%s6 + $0x208] sm:$0xff]
    %v5638 = vld [vmem:[%s6 + $0x210] sm:$0xff]
    %v5639 = vld [vmem:[%s6 + $0x218] sm:$0xff]
    %v5640 = vld [vmem:[%s6 + $0x220] sm:$0xff]
    %v5641 = vld [vmem:[%s6 + $0x228] sm:$0xff]
    %v5642 = vld [vmem:[%s6 + $0x230] sm:$0xff]
    %v5643 = vld [vmem:[%s6 + $0x238] sm:$0xff]
    %v5644 = vld [vmem:[%s6 + $0x240] sm:$0xff]
    %v5645 = vld [vmem:[%s6 + $0x248] sm:$0xff]
    %v5646 = vld [vmem:[%s6 + $0x250] sm:$0xff]
    %v5647 = vld [vmem:[%s6 + $0x258] sm:$0xff]
    %v5648 = vld [vmem:[%s6 + $0x260] sm:$0xff]
    %v5649 = vld [vmem:[%s6 + $0x268] sm:$0xff]
    %v5650 = vld [vmem:[%s6 + $0x270] sm:$0xff]
    %v5651 = vld [vmem:[%s6 + $0x278] sm:$0xff]
    %v5652 = vld [vmem:[%s6 + $0x280] sm:$0xff]
    %v5654 = vsel %vm1044, %v5565, 0
    %v5657 = vsel %vm1044, %v5571, 0
    %5659 = vmatprep.subr.mxu0 0.0
    %5660 = vmatpush1.msra.mxu0 %v5572
    %5661 = vmatprep.subr.mxu0 0.0
    %5662 = vmatpush1.msra.mxu0 %v5573
    %5663 = vmatprep.subr.mxu0 0.0
    %5664 = vmatpush1.msra.mxu0 %v5574
    %5665 = vmatprep.subr.mxu0 0.0
    %5666 = vmatpush1.msra.mxu0 %v5575
    %5667 = vmatprep.subr.mxu0 0.0
    %5668 = vmatpush1.msra.mxu0 %v5576
    %5669 = vmatprep.subr.mxu0 0.0
    %5670 = vmatpush1.msra.mxu0 %v5577
    %5671 = vmatprep.subr.mxu0 0.0
    %5672 = vmatpush1.msra.mxu0 %v5578
    %5673 = vmatprep.subr.mxu0 0.0
    %5674 = vmatpush1.msra.mxu0 %v5579
    %5675 = vmatprep.subr.mxu0 0.0
    %5676 = vmatpush1.msra.mxu0 %v5580
    %5677 = vmatprep.subr.mxu0 0.0
    %5678 = vmatpush1.msra.mxu0 %v5581
    %5679 = vmatprep.subr.mxu0 0.0
    %5680 = vmatpush1.msra.mxu0 %v5582
    %5681 = vmatprep.subr.mxu0 0.0
    %5682 = vmatpush1.msra.mxu0 %v5583
    %5683 = vmatprep.subr.mxu0 0.0
    %5684 = vmatpush1.msra.mxu0 %v5584
    %5685 = vmatprep.subr.mxu0 0.0
    %5686 = vmatpush1.msra.mxu0 %v5585
    %5687 = vmatprep.subr.mxu0 0.0
    %5688 = vmatpush1.msra.mxu0 %v5586
    %5689 = vmatprep.subr.mxu0 0.0
    %5690 = vmatpush1.msra.mxu0 %v5587
    %5691 = vmatprep.subr.mxu0 0.0
    %5692 = vmatpush1.msra.mxu0 %v5588
    %5693 = vmatprep.subr.mxu0 0.0
    %5694 = vmatpush1.msra.mxu0 %v5589
    %5695 = vmatprep.subr.mxu0 0.0
    %5696 = vmatpush1.msra.mxu0 %v5590
    %5697 = vmatprep.subr.mxu0 0.0
    %5698 = vmatpush1.msra.mxu0 %v5591
    %5699 = vmatprep.subr.mxu0 0.0
    %5700 = vmatpush1.msra.mxu0 %v5592
    %5701 = vmatprep.subr.mxu0 0.0
    %5702 = vmatpush1.msra.mxu0 %v5593
    %5703 = vmatprep.subr.mxu0 0.0
    %5704 = vmatpush1.msra.mxu0 %v5594
    %5705 = vmatprep.subr.mxu0 0.0
    %5706 = vmatpush1.msra.mxu0 %v5595
    %5707 = vmatprep.subr.mxu0 0.0
    %5708 = vmatpush1.msra.mxu0 %v5596
    %5709 = vmatprep.subr.mxu0 0.0
    %5710 = vmatpush1.msra.mxu0 %v5597
    %5711 = vmatprep.subr.mxu0 0.0
    %5712 = vmatpush1.msra.mxu0 %v5598
    %5713 = vmatprep.subr.mxu0 0.0
    %5714 = vmatpush1.msra.mxu0 %v5599
    %5715 = vmatprep.subr.mxu0 0.0
    %5716 = vmatpush1.msra.mxu0 %v5600
    %5717 = vmatprep.subr.mxu0 0.0
    %5718 = vmatpush1.msra.mxu0 %v5601
    %5719 = vmatprep.subr.mxu0 0.0
    %5720 = vmatpush1.msra.mxu0 %v5602
    %5721 = vmatprep.subr.mxu0 0.0
    %5722 = vmatpush1.msra.mxu0 %v5603
    %5723 = vmatprep.mubr.f32.mxu0 %v5561
    %5724 = vmatmul.mubr.f32.gmra.mrb[0].mxu0 %v5560
    %v5725 = vpop.f32.mrb[0].mxu0
    %v5726 = vadd.f32 0.0, %v5725
    %v5727 = vpop.f32.mrb[0].mxu0
    %5728 = vmatprep.mubr.f32.mxu0 %v5567
    %5729 = vmatmul.mubr.f32.gmra.mrb[0].mxu0 %v5566
    %v5730 = vpop.f32.mrb[0].mxu0
    %v5731 = vadd.f32 0.0, %v5730
    %v5732 = vpop.f32.mrb[0].mxu0
    %5733 = vdwg.mxu0
    %5734 = vmatprep.subr.mxu0 0.0
    %5735 = vmatpush1.msra.mxu0 %v5604
    %5736 = vmatprep.subr.mxu0 0.0
    %5737 = vmatpush1.msra.mxu0 %v5605
    %5738 = vmatprep.subr.mxu0 0.0
    %5739 = vmatpush1.msra.mxu0 %v5606
    %5740 = vmatprep.subr.mxu0 0.0
    %5741 = vmatpush1.msra.mxu0 %v5607
    %5742 = vmatprep.subr.mxu0 0.0
    %5743 = vmatpush1.msra.mxu0 %v5608
    %5744 = vmatprep.subr.mxu0 0.0
    %5745 = vmatpush1.msra.mxu0 %v5609
    %5746 = vmatprep.subr.mxu0 0.0
    %5747 = vmatpush1.msra.mxu0 %v5610
    %5748 = vmatprep.subr.mxu0 0.0
    %5749 = vmatpush1.msra.mxu0 %v5611
    %5750 = vmatprep.subr.mxu0 0.0
    %5751 = vmatpush1.msra.mxu0 %v5612
    %5752 = vmatprep.subr.mxu0 0.0
    %5753 = vmatpush1.msra.mxu0 %v5613
    %5754 = vmatprep.subr.mxu0 0.0
    %5755 = vmatpush1.msra.mxu0 %v5614
    %5756 = vmatprep.subr.mxu0 0.0
    %5757 = vmatpush1.msra.mxu0 %v5615
    %5758 = vmatprep.subr.mxu0 0.0
    %5759 = vmatpush1.msra.mxu0 %v5616
    %5760 = vmatprep.subr.mxu0 0.0
    %5761 = vmatpush1.msra.mxu0 %v5617
    %5762 = vmatprep.subr.mxu0 0.0
    %5763 = vmatpush1.msra.mxu0 %v5618
    %5764 = vmatprep.subr.mxu0 0.0
    %5765 = vmatpush1.msra.mxu0 %v5619
    %5766 = vmatprep.subr.mxu0 0.0
    %5767 = vmatpush1.msra.mxu0 %v5620
    %5768 = vmatprep.subr.mxu0 0.0
    %5769 = vmatpush1.msra.mxu0 %v5621
    %5770 = vmatprep.subr.mxu0 0.0
    %5771 = vmatpush1.msra.mxu0 %v5622
    %5772 = vmatprep.subr.mxu0 0.0
    %5773 = vmatpush1.msra.mxu0 %v5623
    %5774 = vmatprep.subr.mxu0 0.0
    %5775 = vmatpush1.msra.mxu0 %v5624
    %5776 = vmatprep.subr.mxu0 0.0
    %5777 = vmatpush1.msra.mxu0 %v5625
    %5778 = vmatprep.subr.mxu0 0.0
    %5779 = vmatpush1.msra.mxu0 %v5626
    %5780 = vmatprep.subr.mxu0 0.0
    %5781 = vmatpush1.msra.mxu0 %v5627
    %5782 = vmatprep.subr.mxu0 0.0
    %5783 = vmatpush1.msra.mxu0 %v5628
    %5784 = vmatprep.subr.mxu0 0.0
    %5785 = vmatpush1.msra.mxu0 %v5629
    %5786 = vmatprep.subr.mxu0 0.0
    %5787 = vmatpush1.msra.mxu0 %v5630
    %5788 = vmatprep.subr.mxu0 0.0
    %5789 = vmatpush1.msra.mxu0 %v5631
    %5790 = vmatprep.subr.mxu0 0.0
    %5791 = vmatpush1.msra.mxu0 %v5632
    %5792 = vmatprep.subr.mxu0 0.0
    %5793 = vmatpush1.msra.mxu0 %v5633
    %5794 = vmatprep.subr.mxu0 0.0
    %5795 = vmatpush1.msra.mxu0 %v5634
    %5796 = vmatprep.subr.mxu0 0.0
    %5797 = vmatpush1.msra.mxu0 %v5635
    %5798 = vmatprep.mubr.f32.mxu0 %v5563
    %5799 = vmatmul.mubr.f32.gmra.mrb[0].mxu0 %v5562
    %v5800 = vpop.f32.mrb[0].mxu0
    %v5801 = vadd.f32 %v5726, %v5800
    %v5802 = vpop.f32.mrb[0].mxu0
    %5803 = vmatprep.mubr.f32.mxu0 %v5569
    %5804 = vmatmul.mubr.f32.gmra.mrb[0].mxu0 %v5568
    %v5805 = vpop.f32.mrb[0].mxu0
    %v5806 = vadd.f32 %v5731, %v5805
    %v5807 = vpop.f32.mrb[0].mxu0
    %5808 = vdwg.mxu0
    %5809 = vmatprep.subr.mxu0 0.0
    %5810 = vmatpush1.msra.mxu0 %v5636
    %5811 = vmatprep.subr.mxu0 0.0
    %5812 = vmatpush1.msra.mxu0 %v5637
    %5813 = vmatprep.subr.mxu0 0.0
    %5814 = vmatpush1.msra.mxu0 %v5638
    %5815 = vmatprep.subr.mxu0 0.0
    %5816 = vmatpush1.msra.mxu0 %v5639
    %5817 = vmatprep.subr.mxu0 0.0
    %5818 = vmatpush1.msra.mxu0 %v5640
    %5819 = vmatprep.subr.mxu0 0.0
    %5820 = vmatpush1.msra.mxu0 %v5641
    %5821 = vmatprep.subr.mxu0 0.0
    %5822 = vmatpush1.msra.mxu0 %v5642
    %5823 = vmatprep.subr.mxu0 0.0
    %5824 = vmatpush1.msra.mxu0 %v5643
    %5825 = vmatprep.subr.mxu0 0.0
    %5826 = vmatpush1.msra.mxu0 %v5644
    %5827 = vmatprep.subr.mxu0 0.0
    %5828 = vmatpush1.msra.mxu0 %v5645
    %5829 = vmatprep.subr.mxu0 0.0
    %5830 = vmatpush1.msra.mxu0 %v5646
    %5831 = vmatprep.subr.mxu0 0.0
    %5832 = vmatpush1.msra.mxu0 %v5647
    %5833 = vmatprep.subr.mxu0 0.0
    %5834 = vmatpush1.msra.mxu0 %v5648
    %5835 = vmatprep.subr.mxu0 0.0
    %5836 = vmatpush1.msra.mxu0 %v5649
    %5837 = vmatprep.subr.mxu0 0.0
    %5838 = vmatpush1.msra.mxu0 %v5650
    %5839 = vmatprep.subr.mxu0 0.0
    %5840 = vmatpush1.msra.mxu0 %v5651
    %5841 = vmatprep.subr.mxu0 0.0
    %5842 = vmatpush1.msra.mxu0 %v5652
    %5843 = vmatprep.subr.mxu0 0.0
    %5844 = vmatpush1.msra.mxu0 0.0
    %5845 = vmatprep.subr.mxu0 0.0
    %5846 = vmatpush1.msra.mxu0 0.0
    %5847 = vmatprep.subr.mxu0 0.0
    %5848 = vmatpush1.msra.mxu0 0.0
    %5849 = vmatprep.subr.mxu0 0.0
    %5850 = vmatpush1.msra.mxu0 0.0
    %5851 = vmatprep.subr.mxu0 0.0
    %5852 = vmatpush1.msra.mxu0 0.0
    %5853 = vmatprep.subr.mxu0 0.0
    %5854 = vmatpush1.msra.mxu0 0.0
    %5855 = vmatprep.subr.mxu0 0.0
    %5856 = vmatpush1.msra.mxu0 0.0
    %5857 = vmatprep.subr.mxu0 0.0
    %5858 = vmatpush1.msra.mxu0 0.0
    %5859 = vmatprep.subr.mxu0 0.0
    %5860 = vmatpush1.msra.mxu0 0.0
    %5861 = vmatprep.subr.mxu0 0.0
    %5862 = vmatpush1.msra.mxu0 0.0
    %5863 = vmatprep.subr.mxu0 0.0
    %5864 = vmatpush1.msra.mxu0 0.0
    %5865 = vmatprep.subr.mxu0 0.0
    %5866 = vmatpush1.msra.mxu0 0.0
    %5867 = vmatprep.subr.mxu0 0.0
    %5868 = vmatpush1.msra.mxu0 0.0
    %5869 = vmatprep.subr.mxu0 0.0
    %5870 = vmatpush1.msra.mxu0 0.0
    %5871 = vmatprep.subr.mxu0 0.0
    %5872 = vmatpush1.msra.mxu0 0.0
    %5873 = vmatprep.mubr.f32.mxu0 %v5654
    %5874 = vmatmul.mubr.f32.gmra.mrb[0].mxu0 %v5564
    %v5875 = vpop.f32.mrb[0].mxu0
    %v5876 = vadd.f32 %v5801, %v5875
    %v5877 = vpop.f32.mrb[0].mxu0
    %5878 = vmatprep.mubr.f32.mxu0 %v5657
    %5879 = vmatmul.mubr.f32.gmra.mrb[0].mxu0 %v5570
    %v5880 = vpop.f32.mrb[0].mxu0
    %v5881 = vadd.f32 %v5806, %v5880
    %v5882 = vpop.f32.mrb[0].mxu0
    %5883 = vdwg.mxu0
    %s5884 = scalar_lea.vmem %s6, 648
    %v5885 = vld [vmem:[%s5884] sm:$0xff]
    %v5886 = vld [vmem:[%s5884 + $0x8] sm:$0xff]
    %v5887 = vld [vmem:[%s5884 + $0x10] sm:$0xff]
    %v5888 = vld [vmem:[%s5884 + $0x18] sm:$0xff]
    %v5889 = vld [vmem:[%s5884 + $0x20] sm:$0xff]
    %v5890 = vld [vmem:[%s5884 + $0x28] sm:$0xff]
    %v5891 = vld [vmem:[%s5884 + $0x30] sm:$0xff]
    %v5892 = vld [vmem:[%s5884 + $0x38] sm:$0xff]
    %v5893 = vld [vmem:[%s5884 + $0x40] sm:$0xff]
    %v5894 = vld [vmem:[%s5884 + $0x48] sm:$0xff]
    %v5895 = vld [vmem:[%s5884 + $0x50] sm:$0xff]
    %v5896 = vld [vmem:[%s5884 + $0x58] sm:$0xff]
    %v5897 = vld [vmem:[%s5884 + $0x60] sm:$0xff]
    %v5898 = vld [vmem:[%s5884 + $0x68] sm:$0xff]
    %v5899 = vld [vmem:[%s5884 + $0x70] sm:$0xff]
    %v5900 = vld [vmem:[%s5884 + $0x78] sm:$0xff]
    %v5901 = vld [vmem:[%s5884 + $0x80] sm:$0xff]
    %v5902 = vld [vmem:[%s5884 + $0x88] sm:$0xff]
    %v5903 = vld [vmem:[%s5884 + $0x90] sm:$0xff]
    %v5904 = vld [vmem:[%s5884 + $0x98] sm:$0xff]
    %v5905 = vld [vmem:[%s5884 + $0xa0] sm:$0xff]
    %v5906 = vld [vmem:[%s5884 + $0xa8] sm:$0xff]
    %v5907 = vld [vmem:[%s5884 + $0xb0] sm:$0xff]
    %v5908 = vld [vmem:[%s5884 + $0xb8] sm:$0xff]
    %v5909 = vld [vmem:[%s5884 + $0xc0] sm:$0xff]
    %v5910 = vld [vmem:[%s5884 + $0xc8] sm:$0xff]
    %v5911 = vld [vmem:[%s5884 + $0xd0] sm:$0xff]
    %v5912 = vld [vmem:[%s5884 + $0xd8] sm:$0xff]
    %v5913 = vld [vmem:[%s5884 + $0xe0] sm:$0xff]
    %v5914 = vld [vmem:[%s5884 + $0xe8] sm:$0xff]
    %v5915 = vld [vmem:[%s5884 + $0xf0] sm:$0xff]
    %v5916 = vld [vmem:[%s5884 + $0xf8] sm:$0xff]
    %v5917 = vld [vmem:[%s5884 + $0x100] sm:$0xff]
    %v5918 = vld [vmem:[%s5884 + $0x108] sm:$0xff]
    %v5919 = vld [vmem:[%s5884 + $0x110] sm:$0xff]
    %v5920 = vld [vmem:[%s5884 + $0x118] sm:$0xff]
    %v5921 = vld [vmem:[%s5884 + $0x120] sm:$0xff]
    %v5922 = vld [vmem:[%s5884 + $0x128] sm:$0xff]
    %v5923 = vld [vmem:[%s5884 + $0x130] sm:$0xff]
    %v5924 = vld [vmem:[%s5884 + $0x138] sm:$0xff]
    %v5925 = vld [vmem:[%s5884 + $0x140] sm:$0xff]
    %v5926 = vld [vmem:[%s5884 + $0x148] sm:$0xff]
    %v5927 = vld [vmem:[%s5884 + $0x150] sm:$0xff]
    %v5928 = vld [vmem:[%s5884 + $0x158] sm:$0xff]
    %v5929 = vld [vmem:[%s5884 + $0x160] sm:$0xff]
    %v5930 = vld [vmem:[%s5884 + $0x168] sm:$0xff]
    %v5931 = vld [vmem:[%s5884 + $0x170] sm:$0xff]
    %v5932 = vld [vmem:[%s5884 + $0x178] sm:$0xff]
    %v5933 = vld [vmem:[%s5884 + $0x180] sm:$0xff]
    %v5934 = vld [vmem:[%s5884 + $0x188] sm:$0xff]
    %v5935 = vld [vmem:[%s5884 + $0x190] sm:$0xff]
    %v5936 = vld [vmem:[%s5884 + $0x198] sm:$0xff]
    %v5937 = vld [vmem:[%s5884 + $0x1a0] sm:$0xff]
    %v5938 = vld [vmem:[%s5884 + $0x1a8] sm:$0xff]
    %v5939 = vld [vmem:[%s5884 + $0x1b0] sm:$0xff]
    %v5940 = vld [vmem:[%s5884 + $0x1b8] sm:$0xff]
    %v5941 = vld [vmem:[%s5884 + $0x1c0] sm:$0xff]
    %v5942 = vld [vmem:[%s5884 + $0x1c8] sm:$0xff]
    %v5943 = vld [vmem:[%s5884 + $0x1d0] sm:$0xff]
    %v5944 = vld [vmem:[%s5884 + $0x1d8] sm:$0xff]
    %v5945 = vld [vmem:[%s5884 + $0x1e0] sm:$0xff]
    %v5946 = vld [vmem:[%s5884 + $0x1e8] sm:$0xff]
    %v5947 = vld [vmem:[%s5884 + $0x1f0] sm:$0xff]
    %v5948 = vld [vmem:[%s5884 + $0x1f8] sm:$0xff]
    %v5949 = vld [vmem:[%s5884 + $0x200] sm:$0xff]
    %v5950 = vld [vmem:[%s5884 + $0x208] sm:$0xff]
    %v5951 = vld [vmem:[%s5884 + $0x210] sm:$0xff]
    %v5952 = vld [vmem:[%s5884 + $0x218] sm:$0xff]
    %v5953 = vld [vmem:[%s5884 + $0x220] sm:$0xff]
    %v5954 = vld [vmem:[%s5884 + $0x228] sm:$0xff]
    %v5955 = vld [vmem:[%s5884 + $0x230] sm:$0xff]
    %v5956 = vld [vmem:[%s5884 + $0x238] sm:$0xff]
    %v5957 = vld [vmem:[%s5884 + $0x240] sm:$0xff]
    %v5958 = vld [vmem:[%s5884 + $0x248] sm:$0xff]
    %v5959 = vld [vmem:[%s5884 + $0x250] sm:$0xff]
    %v5960 = vld [vmem:[%s5884 + $0x258] sm:$0xff]
    %v5961 = vld [vmem:[%s5884 + $0x260] sm:$0xff]
    %v5962 = vld [vmem:[%s5884 + $0x268] sm:$0xff]
    %v5963 = vld [vmem:[%s5884 + $0x270] sm:$0xff]
    %v5964 = vld [vmem:[%s5884 + $0x278] sm:$0xff]
    %v5965 = vld [vmem:[%s5884 + $0x280] sm:$0xff]
    %5966 = vmatprep.subr.mxu0 0.0
    %5967 = vmatpush1.msra.mxu0 %v5885
    %5968 = vmatprep.subr.mxu0 0.0
    %5969 = vmatpush1.msra.mxu0 %v5886
    %5970 = vmatprep.subr.mxu0 0.0
    %5971 = vmatpush1.msra.mxu0 %v5887
    %5972 = vmatprep.subr.mxu0 0.0
    %5973 = vmatpush1.msra.mxu0 %v5888
    %5974 = vmatprep.subr.mxu0 0.0
    %5975 = vmatpush1.msra.mxu0 %v5889
    %5976 = vmatprep.subr.mxu0 0.0
    %5977 = vmatpush1.msra.mxu0 %v5890
    %5978 = vmatprep.subr.mxu0 0.0
    %5979 = vmatpush1.msra.mxu0 %v5891
    %5980 = vmatprep.subr.mxu0 0.0
    %5981 = vmatpush1.msra.mxu0 %v5892
    %5982 = vmatprep.subr.mxu0 0.0
    %5983 = vmatpush1.msra.mxu0 %v5893
    %5984 = vmatprep.subr.mxu0 0.0
    %5985 = vmatpush1.msra.mxu0 %v5894
    %5986 = vmatprep.subr.mxu0 0.0
    %5987 = vmatpush1.msra.mxu0 %v5895
    %5988 = vmatprep.subr.mxu0 0.0
    %5989 = vmatpush1.msra.mxu0 %v5896
    %5990 = vmatprep.subr.mxu0 0.0
    %5991 = vmatpush1.msra.mxu0 %v5897
    %5992 = vmatprep.subr.mxu0 0.0
    %5993 = vmatpush1.msra.mxu0 %v5898
    %5994 = vmatprep.subr.mxu0 0.0
    %5995 = vmatpush1.msra.mxu0 %v5899
    %5996 = vmatprep.subr.mxu0 0.0
    %5997 = vmatpush1.msra.mxu0 %v5900
    %5998 = vmatprep.subr.mxu0 0.0
    %5999 = vmatpush1.msra.mxu0 %v5901
    %6000 = vmatprep.subr.mxu0 0.0
    %6001 = vmatpush1.msra.mxu0 %v5902
    %6002 = vmatprep.subr.mxu0 0.0
    %6003 = vmatpush1.msra.mxu0 %v5903
    %6004 = vmatprep.subr.mxu0 0.0
    %6005 = vmatpush1.msra.mxu0 %v5904
    %6006 = vmatprep.subr.mxu0 0.0
    %6007 = vmatpush1.msra.mxu0 %v5905
    %6008 = vmatprep.subr.mxu0 0.0
    %6009 = vmatpush1.msra.mxu0 %v5906
    %6010 = vmatprep.subr.mxu0 0.0
    %6011 = vmatpush1.msra.mxu0 %v5907
    %6012 = vmatprep.subr.mxu0 0.0
    %6013 = vmatpush1.msra.mxu0 %v5908
    %6014 = vmatprep.subr.mxu0 0.0
    %6015 = vmatpush1.msra.mxu0 %v5909
    %6016 = vmatprep.subr.mxu0 0.0
    %6017 = vmatpush1.msra.mxu0 %v5910
    %6018 = vmatprep.subr.mxu0 0.0
    %6019 = vmatpush1.msra.mxu0 %v5911
    %6020 = vmatprep.subr.mxu0 0.0
    %6021 = vmatpush1.msra.mxu0 %v5912
    %6022 = vmatprep.subr.mxu0 0.0
    %6023 = vmatpush1.msra.mxu0 %v5913
    %6024 = vmatprep.subr.mxu0 0.0
    %6025 = vmatpush1.msra.mxu0 %v5914
    %6026 = vmatprep.subr.mxu0 0.0
    %6027 = vmatpush1.msra.mxu0 %v5915
    %6028 = vmatprep.subr.mxu0 0.0
    %6029 = vmatpush1.msra.mxu0 %v5916
    %6030 = vmatprep.mubr.f32.mxu0 %v5561
    %6031 = vmatmul.mubr.f32.gmra.mrb[0].mxu0 %v5560
    %v6032 = vpop.f32.mrb[0].mxu0
    %v6033 = vadd.f32 0.0, %v6032
    %v6034 = vpop.f32.mrb[0].mxu0
    %6035 = vmatprep.mubr.f32.mxu0 %v5567
    %6036 = vmatmul.mubr.f32.gmra.mrb[0].mxu0 %v5566
    %v6037 = vpop.f32.mrb[0].mxu0
    %v6038 = vadd.f32 0.0, %v6037
    %v6039 = vpop.f32.mrb[0].mxu0
    %6040 = vdwg.mxu0
    %6041 = vmatprep.subr.mxu0 0.0
    %6042 = vmatpush1.msra.mxu0 %v5917
    %6043 = vmatprep.subr.mxu0 0.0
    %6044 = vmatpush1.msra.mxu0 %v5918
    %6045 = vmatprep.subr.mxu0 0.0
    %6046 = vmatpush1.msra.mxu0 %v5919
    %6047 = vmatprep.subr.mxu0 0.0
    %6048 = vmatpush1.msra.mxu0 %v5920
    %6049 = vmatprep.subr.mxu0 0.0
    %6050 = vmatpush1.msra.mxu0 %v5921
    %6051 = vmatprep.subr.mxu0 0.0
    %6052 = vmatpush1.msra.mxu0 %v5922
    %6053 = vmatprep.subr.mxu0 0.0
    %6054 = vmatpush1.msra.mxu0 %v5923
    %6055 = vmatprep.subr.mxu0 0.0
    %6056 = vmatpush1.msra.mxu0 %v5924
    %6057 = vmatprep.subr.mxu0 0.0
    %6058 = vmatpush1.msra.mxu0 %v5925
    %6059 = vmatprep.subr.mxu0 0.0
    %6060 = vmatpush1.msra.mxu0 %v5926
    %6061 = vmatprep.subr.mxu0 0.0
    %6062 = vmatpush1.msra.mxu0 %v5927
    %6063 = vmatprep.subr.mxu0 0.0
    %6064 = vmatpush1.msra.mxu0 %v5928
    %6065 = vmatprep.subr.mxu0 0.0
    %6066 = vmatpush1.msra.mxu0 %v5929
    %6067 = vmatprep.subr.mxu0 0.0
    %6068 = vmatpush1.msra.mxu0 %v5930
    %6069 = vmatprep.subr.mxu0 0.0
    %6070 = vmatpush1.msra.mxu0 %v5931
    %6071 = vmatprep.subr.mxu0 0.0
    %6072 = vmatpush1.msra.mxu0 %v5932
    %6073 = vmatprep.subr.mxu0 0.0
    %6074 = vmatpush1.msra.mxu0 %v5933
    %6075 = vmatprep.subr.mxu0 0.0
    %6076 = vmatpush1.msra.mxu0 %v5934
    %6077 = vmatprep.subr.mxu0 0.0
    %6078 = vmatpush1.msra.mxu0 %v5935
    %6079 = vmatprep.subr.mxu0 0.0
    %6080 = vmatpush1.msra.mxu0 %v5936
    %6081 = vmatprep.subr.mxu0 0.0
    %6082 = vmatpush1.msra.mxu0 %v5937
    %6083 = vmatprep.subr.mxu0 0.0
    %6084 = vmatpush1.msra.mxu0 %v5938
    %6085 = vmatprep.subr.mxu0 0.0
    %6086 = vmatpush1.msra.mxu0 %v5939
    %6087 = vmatprep.subr.mxu0 0.0
    %6088 = vmatpush1.msra.mxu0 %v5940
    %6089 = vmatprep.subr.mxu0 0.0
    %6090 = vmatpush1.msra.mxu0 %v5941
    %6091 = vmatprep.subr.mxu0 0.0
    %6092 = vmatpush1.msra.mxu0 %v5942
    %6093 = vmatprep.subr.mxu0 0.0
    %6094 = vmatpush1.msra.mxu0 %v5943
    %6095 = vmatprep.subr.mxu0 0.0
    %6096 = vmatpush1.msra.mxu0 %v5944
    %6097 = vmatprep.subr.mxu0 0.0
    %6098 = vmatpush1.msra.mxu0 %v5945
    %6099 = vmatprep.subr.mxu0 0.0
    %6100 = vmatpush1.msra.mxu0 %v5946
    %6101 = vmatprep.subr.mxu0 0.0
    %6102 = vmatpush1.msra.mxu0 %v5947
    %6103 = vmatprep.subr.mxu0 0.0
    %6104 = vmatpush1.msra.mxu0 %v5948
    %6105 = vmatprep.mubr.f32.mxu0 %v5563
    %6106 = vmatmul.mubr.f32.gmra.mrb[0].mxu0 %v5562
    %v6107 = vpop.f32.mrb[0].mxu0
    %v6108 = vadd.f32 %v6033, %v6107
    %v6109 = vpop.f32.mrb[0].mxu0
    %6110 = vmatprep.mubr.f32.mxu0 %v5569
    %6111 = vmatmul.mubr.f32.gmra.mrb[0].mxu0 %v5568
    %v6112 = vpop.f32.mrb[0].mxu0
    %v6113 = vadd.f32 %v6038, %v6112
    %v6114 = vpop.f32.mrb[0].mxu0
    %6115 = vdwg.mxu0
    %6116 = vmatprep.subr.mxu0 0.0
    %6117 = vmatpush1.msra.mxu0 %v5949
    %6118 = vmatprep.subr.mxu0 0.0
    %6119 = vmatpush1.msra.mxu0 %v5950
    %6120 = vmatprep.subr.mxu0 0.0
    %6121 = vmatpush1.msra.mxu0 %v5951
    %6122 = vmatprep.subr.mxu0 0.0
    %6123 = vmatpush1.msra.mxu0 %v5952
    %6124 = vmatprep.subr.mxu0 0.0
    %6125 = vmatpush1.msra.mxu0 %v5953
    %6126 = vmatprep.subr.mxu0 0.0
    %6127 = vmatpush1.msra.mxu0 %v5954
    %6128 = vmatprep.subr.mxu0 0.0
    %6129 = vmatpush1.msra.mxu0 %v5955
    %6130 = vmatprep.subr.mxu0 0.0
    %6131 = vmatpush1.msra.mxu0 %v5956
    %6132 = vmatprep.subr.mxu0 0.0
    %6133 = vmatpush1.msra.mxu0 %v5957
    %6134 = vmatprep.subr.mxu0 0.0
    %6135 = vmatpush1.msra.mxu0 %v5958
    %6136 = vmatprep.subr.mxu0 0.0
    %6137 = vmatpush1.msra.mxu0 %v5959
    %6138 = vmatprep.subr.mxu0 0.0
    %6139 = vmatpush1.msra.mxu0 %v5960
    %6140 = vmatprep.subr.mxu0 0.0
    %6141 = vmatpush1.msra.mxu0 %v5961
    %6142 = vmatprep.subr.mxu0 0.0
    %6143 = vmatpush1.msra.mxu0 %v5962
    %6144 = vmatprep.subr.mxu0 0.0
    %6145 = vmatpush1.msra.mxu0 %v5963
    %6146 = vmatprep.subr.mxu0 0.0
    %6147 = vmatpush1.msra.mxu0 %v5964
    %6148 = vmatprep.subr.mxu0 0.0
    %6149 = vmatpush1.msra.mxu0 %v5965
    %6150 = vmatprep.subr.mxu0 0.0
    %6151 = vmatpush1.msra.mxu0 0.0
    %6152 = vmatprep.subr.mxu0 0.0
    %6153 = vmatpush1.msra.mxu0 0.0
    %6154 = vmatprep.subr.mxu0 0.0
    %6155 = vmatpush1.msra.mxu0 0.0
    %6156 = vmatprep.subr.mxu0 0.0
    %6157 = vmatpush1.msra.mxu0 0.0
    %6158 = vmatprep.subr.mxu0 0.0
    %6159 = vmatpush1.msra.mxu0 0.0
    %6160 = vmatprep.subr.mxu0 0.0
    %6161 = vmatpush1.msra.mxu0 0.0
    %6162 = vmatprep.subr.mxu0 0.0
    %6163 = vmatpush1.msra.mxu0 0.0
    %6164 = vmatprep.subr.mxu0 0.0
    %6165 = vmatpush1.msra.mxu0 0.0
    %6166 = vmatprep.subr.mxu0 0.0
    %6167 = vmatpush1.msra.mxu0 0.0
    %6168 = vmatprep.subr.mxu0 0.0
    %6169 = vmatpush1.msra.mxu0 0.0
    %6170 = vmatprep.subr.mxu0 0.0
    %6171 = vmatpush1.msra.mxu0 0.0
    %6172 = vmatprep.subr.mxu0 0.0
    %6173 = vmatpush1.msra.mxu0 0.0
    %6174 = vmatprep.subr.mxu0 0.0
    %6175 = vmatpush1.msra.mxu0 0.0
    %6176 = vmatprep.subr.mxu0 0.0
    %6177 = vmatpush1.msra.mxu0 0.0
    %6178 = vmatprep.subr.mxu0 0.0
    %6179 = vmatpush1.msra.mxu0 0.0
    %6180 = vmatprep.mubr.f32.mxu0 %v5654
    %6181 = vmatmul.mubr.f32.gmra.mrb[0].mxu0 %v5564
    %v6182 = vpop.f32.mrb[0].mxu0
    %v6183 = vadd.f32 %v6108, %v6182
    %v6184 = vpop.f32.mrb[0].mxu0
    %6185 = vmatprep.mubr.f32.mxu0 %v5657
    %6186 = vmatmul.mubr.f32.gmra.mrb[0].mxu0 %v5570
    %v6187 = vpop.f32.mrb[0].mxu0
    %v6188 = vadd.f32 %v6113, %v6187
    %v6189 = vpop.f32.mrb[0].mxu0
    %6190 = vdwg.mxu0
    %v6191 = vmax.f32 %v5876, %v6183
    %v6192 = vmax.f32 %v5881, %v6188
    %s6193 = scalar_lea.vmem %s6, 1296
    %v6194 = vld [vmem:[%s6193] sm:$0xff]
    %v6195 = vld [vmem:[%s6193 + $0x8] sm:$0xff]
    %v6196 = vld [vmem:[%s6193 + $0x10] sm:$0xff]
    %v6197 = vld [vmem:[%s6193 + $0x18] sm:$0xff]
    %v6198 = vld [vmem:[%s6193 + $0x20] sm:$0xff]
    %v6199 = vld [vmem:[%s6193 + $0x28] sm:$0xff]
    %v6200 = vld [vmem:[%s6193 + $0x30] sm:$0xff]
    %v6201 = vld [vmem:[%s6193 + $0x38] sm:$0xff]
    %v6202 = vld [vmem:[%s6193 + $0x40] sm:$0xff]
    %v6203 = vld [vmem:[%s6193 + $0x48] sm:$0xff]
    %v6204 = vld [vmem:[%s6193 + $0x50] sm:$0xff]
    %v6205 = vld [vmem:[%s6193 + $0x58] sm:$0xff]
    %v6206 = vld [vmem:[%s6193 + $0x60] sm:$0xff]
    %v6207 = vld [vmem:[%s6193 + $0x68] sm:$0xff]
    %v6208 = vld [vmem:[%s6193 + $0x70] sm:$0xff]
    %v6209 = vld [vmem:[%s6193 + $0x78] sm:$0xff]
    %v6210 = vld [vmem:[%s6193 + $0x80] sm:$0xff]
    %v6211 = vld [vmem:[%s6193 + $0x88] sm:$0xff]
    %v6212 = vld [vmem:[%s6193 + $0x90] sm:$0xff]
    %v6213 = vld [vmem:[%s6193 + $0x98] sm:$0xff]
    %v6214 = vld [vmem:[%s6193 + $0xa0] sm:$0xff]
    %v6215 = vld [vmem:[%s6193 + $0xa8] sm:$0xff]
    %v6216 = vld [vmem:[%s6193 + $0xb0] sm:$0xff]
    %v6217 = vld [vmem:[%s6193 + $0xb8] sm:$0xff]
    %v6218 = vld [vmem:[%s6193 + $0xc0] sm:$0xff]
    %v6219 = vld [vmem:[%s6193 + $0xc8] sm:$0xff]
    %v6220 = vld [vmem:[%s6193 + $0xd0] sm:$0xff]
    %v6221 = vld [vmem:[%s6193 + $0xd8] sm:$0xff]
    %v6222 = vld [vmem:[%s6193 + $0xe0] sm:$0xff]
    %v6223 = vld [vmem:[%s6193 + $0xe8] sm:$0xff]
    %v6224 = vld [vmem:[%s6193 + $0xf0] sm:$0xff]
    %v6225 = vld [vmem:[%s6193 + $0xf8] sm:$0xff]
    %v6226 = vld [vmem:[%s6193 + $0x100] sm:$0xff]
    %v6227 = vld [vmem:[%s6193 + $0x108] sm:$0xff]
    %v6228 = vld [vmem:[%s6193 + $0x110] sm:$0xff]
    %v6229 = vld [vmem:[%s6193 + $0x118] sm:$0xff]
    %v6230 = vld [vmem:[%s6193 + $0x120] sm:$0xff]
    %v6231 = vld [vmem:[%s6193 + $0x128] sm:$0xff]
    %v6232 = vld [vmem:[%s6193 + $0x130] sm:$0xff]
    %v6233 = vld [vmem:[%s6193 + $0x138] sm:$0xff]
    %v6234 = vld [vmem:[%s6193 + $0x140] sm:$0xff]
    %v6235 = vld [vmem:[%s6193 + $0x148] sm:$0xff]
    %v6236 = vld [vmem:[%s6193 + $0x150] sm:$0xff]
    %v6237 = vld [vmem:[%s6193 + $0x158] sm:$0xff]
    %v6238 = vld [vmem:[%s6193 + $0x160] sm:$0xff]
    %v6239 = vld [vmem:[%s6193 + $0x168] sm:$0xff]
    %v6240 = vld [vmem:[%s6193 + $0x170] sm:$0xff]
    %v6241 = vld [vmem:[%s6193 + $0x178] sm:$0xff]
    %v6242 = vld [vmem:[%s6193 + $0x180] sm:$0xff]
    %v6243 = vld [vmem:[%s6193 + $0x188] sm:$0xff]
    %v6244 = vld [vmem:[%s6193 + $0x190] sm:$0xff]
    %v6245 = vld [vmem:[%s6193 + $0x198] sm:$0xff]
    %v6246 = vld [vmem:[%s6193 + $0x1a0] sm:$0xff]
    %v6247 = vld [vmem:[%s6193 + $0x1a8] sm:$0xff]
    %v6248 = vld [vmem:[%s6193 + $0x1b0] sm:$0xff]
    %v6249 = vld [vmem:[%s6193 + $0x1b8] sm:$0xff]
    %v6250 = vld [vmem:[%s6193 + $0x1c0] sm:$0xff]
    %v6251 = vld [vmem:[%s6193 + $0x1c8] sm:$0xff]
    %v6252 = vld [vmem:[%s6193 + $0x1d0] sm:$0xff]
    %v6253 = vld [vmem:[%s6193 + $0x1d8] sm:$0xff]
    %v6254 = vld [vmem:[%s6193 + $0x1e0] sm:$0xff]
    %v6255 = vld [vmem:[%s6193 + $0x1e8] sm:$0xff]
    %v6256 = vld [vmem:[%s6193 + $0x1f0] sm:$0xff]
    %v6257 = vld [vmem:[%s6193 + $0x1f8] sm:$0xff]
    %v6258 = vld [vmem:[%s6193 + $0x200] sm:$0xff]
    %v6259 = vld [vmem:[%s6193 + $0x208] sm:$0xff]
    %v6260 = vld [vmem:[%s6193 + $0x210] sm:$0xff]
    %v6261 = vld [vmem:[%s6193 + $0x218] sm:$0xff]
    %v6262 = vld [vmem:[%s6193 + $0x220] sm:$0xff]
    %v6263 = vld [vmem:[%s6193 + $0x228] sm:$0xff]
    %v6264 = vld [vmem:[%s6193 + $0x230] sm:$0xff]
    %v6265 = vld [vmem:[%s6193 + $0x238] sm:$0xff]
    %v6266 = vld [vmem:[%s6193 + $0x240] sm:$0xff]
    %v6267 = vld [vmem:[%s6193 + $0x248] sm:$0xff]
    %v6268 = vld [vmem:[%s6193 + $0x250] sm:$0xff]
    %v6269 = vld [vmem:[%s6193 + $0x258] sm:$0xff]
    %v6270 = vld [vmem:[%s6193 + $0x260] sm:$0xff]
    %v6271 = vld [vmem:[%s6193 + $0x268] sm:$0xff]
    %v6272 = vld [vmem:[%s6193 + $0x270] sm:$0xff]
    %v6273 = vld [vmem:[%s6193 + $0x278] sm:$0xff]
    %v6274 = vld [vmem:[%s6193 + $0x280] sm:$0xff]
    %6275 = vmatprep.subr.mxu0 0.0
    %6276 = vmatpush1.msra.mxu0 %v6194
    %6277 = vmatprep.subr.mxu0 0.0
    %6278 = vmatpush1.msra.mxu0 %v6195
    %6279 = vmatprep.subr.mxu0 0.0
    %6280 = vmatpush1.msra.mxu0 %v6196
    %6281 = vmatprep.subr.mxu0 0.0
    %6282 = vmatpush1.msra.mxu0 %v6197
    %6283 = vmatprep.subr.mxu0 0.0
    %6284 = vmatpush1.msra.mxu0 %v6198
    %6285 = vmatprep.subr.mxu0 0.0
    %6286 = vmatpush1.msra.mxu0 %v6199
    %6287 = vmatprep.subr.mxu0 0.0
    %6288 = vmatpush1.msra.mxu0 %v6200
    %6289 = vmatprep.subr.mxu0 0.0
    %6290 = vmatpush1.msra.mxu0 %v6201
    %6291 = vmatprep.subr.mxu0 0.0
    %6292 = vmatpush1.msra.mxu0 %v6202
    %6293 = vmatprep.subr.mxu0 0.0
    %6294 = vmatpush1.msra.mxu0 %v6203
    %6295 = vmatprep.subr.mxu0 0.0
    %6296 = vmatpush1.msra.mxu0 %v6204
    %6297 = vmatprep.subr.mxu0 0.0
    %6298 = vmatpush1.msra.mxu0 %v6205
    %6299 = vmatprep.subr.mxu0 0.0
    %6300 = vmatpush1.msra.mxu0 %v6206
    %6301 = vmatprep.subr.mxu0 0.0
    %6302 = vmatpush1.msra.mxu0 %v6207
    %6303 = vmatprep.subr.mxu0 0.0
    %6304 = vmatpush1.msra.mxu0 %v6208
    %6305 = vmatprep.subr.mxu0 0.0
    %6306 = vmatpush1.msra.mxu0 %v6209
    %6307 = vmatprep.subr.mxu0 0.0
    %6308 = vmatpush1.msra.mxu0 %v6210
    %6309 = vmatprep.subr.mxu0 0.0
    %6310 = vmatpush1.msra.mxu0 %v6211
    %6311 = vmatprep.subr.mxu0 0.0
    %6312 = vmatpush1.msra.mxu0 %v6212
    %6313 = vmatprep.subr.mxu0 0.0
    %6314 = vmatpush1.msra.mxu0 %v6213
    %6315 = vmatprep.subr.mxu0 0.0
    %6316 = vmatpush1.msra.mxu0 %v6214
    %6317 = vmatprep.subr.mxu0 0.0
    %6318 = vmatpush1.msra.mxu0 %v6215
    %6319 = vmatprep.subr.mxu0 0.0
    %6320 = vmatpush1.msra.mxu0 %v6216
    %6321 = vmatprep.subr.mxu0 0.0
    %6322 = vmatpush1.msra.mxu0 %v6217
    %6323 = vmatprep.subr.mxu0 0.0
    %6324 = vmatpush1.msra.mxu0 %v6218
    %6325 = vmatprep.subr.mxu0 0.0
    %6326 = vmatpush1.msra.mxu0 %v6219
    %6327 = vmatprep.subr.mxu0 0.0
    %6328 = vmatpush1.msra.mxu0 %v6220
    %6329 = vmatprep.subr.mxu0 0.0
    %6330 = vmatpush1.msra.mxu0 %v6221
    %6331 = vmatprep.subr.mxu0 0.0
    %6332 = vmatpush1.msra.mxu0 %v6222
    %6333 = vmatprep.subr.mxu0 0.0
    %6334 = vmatpush1.msra.mxu0 %v6223
    %6335 = vmatprep.subr.mxu0 0.0
    %6336 = vmatpush1.msra.mxu0 %v6224
    %6337 = vmatprep.subr.mxu0 0.0
    %6338 = vmatpush1.msra.mxu0 %v6225
    %6339 = vmatprep.mubr.f32.mxu0 %v5561
    %6340 = vmatmul.mubr.f32.gmra.mrb[0].mxu0 %v5560
    %v6341 = vpop.f32.mrb[0].mxu0
    %v6342 = vadd.f32 0.0, %v6341
    %v6343 = vpop.f32.mrb[0].mxu0
    %6344 = vmatprep.mubr.f32.mxu0 %v5567
    %6345 = vmatmul.mubr.f32.gmra.mrb[0].mxu0 %v5566
    %v6346 = vpop.f32.mrb[0].mxu0
    %v6347 = vadd.f32 0.0, %v6346
    %v6348 = vpop.f32.mrb[0].mxu0
    %6349 = vdwg.mxu0
    %6350 = vmatprep.subr.mxu0 0.0
    %6351 = vmatpush1.msra.mxu0 %v6226
    %6352 = vmatprep.subr.mxu0 0.0
    %6353 = vmatpush1.msra.mxu0 %v6227
    %6354 = vmatprep.subr.mxu0 0.0
    %6355 = vmatpush1.msra.mxu0 %v6228
    %6356 = vmatprep.subr.mxu0 0.0
    %6357 = vmatpush1.msra.mxu0 %v6229
    %6358 = vmatprep.subr.mxu0 0.0
    %6359 = vmatpush1.msra.mxu0 %v6230
    %6360 = vmatprep.subr.mxu0 0.0
    %6361 = vmatpush1.msra.mxu0 %v6231
    %6362 = vmatprep.subr.mxu0 0.0
    %6363 = vmatpush1.msra.mxu0 %v6232
    %6364 = vmatprep.subr.mxu0 0.0
    %6365 = vmatpush1.msra.mxu0 %v6233
    %6366 = vmatprep.subr.mxu0 0.0
    %6367 = vmatpush1.msra.mxu0 %v6234
    %6368 = vmatprep.subr.mxu0 0.0
    %6369 = vmatpush1.msra.mxu0 %v6235
    %6370 = vmatprep.subr.mxu0 0.0
    %6371 = vmatpush1.msra.mxu0 %v6236
    %6372 = vmatprep.subr.mxu0 0.0
    %6373 = vmatpush1.msra.mxu0 %v6237
    %6374 = vmatprep.subr.mxu0 0.0
    %6375 = vmatpush1.msra.mxu0 %v6238
    %6376 = vmatprep.subr.mxu0 0.0
    %6377 = vmatpush1.msra.mxu0 %v6239
    %6378 = vmatprep.subr.mxu0 0.0
    %6379 = vmatpush1.msra.mxu0 %v6240
    %6380 = vmatprep.subr.mxu0 0.0
    %6381 = vmatpush1.msra.mxu0 %v6241
    %6382 = vmatprep.subr.mxu0 0.0
    %6383 = vmatpush1.msra.mxu0 %v6242
    %6384 = vmatprep.subr.mxu0 0.0
    %6385 = vmatpush1.msra.mxu0 %v6243
    %6386 = vmatprep.subr.mxu0 0.0
    %6387 = vmatpush1.msra.mxu0 %v6244
    %6388 = vmatprep.subr.mxu0 0.0
    %6389 = vmatpush1.msra.mxu0 %v6245
    %6390 = vmatprep.subr.mxu0 0.0
    %6391 = vmatpush1.msra.mxu0 %v6246
    %6392 = vmatprep.subr.mxu0 0.0
    %6393 = vmatpush1.msra.mxu0 %v6247
    %6394 = vmatprep.subr.mxu0 0.0
    %6395 = vmatpush1.msra.mxu0 %v6248
    %6396 = vmatprep.subr.mxu0 0.0
    %6397 = vmatpush1.msra.mxu0 %v6249
    %6398 = vmatprep.subr.mxu0 0.0
    %6399 = vmatpush1.msra.mxu0 %v6250
    %6400 = vmatprep.subr.mxu0 0.0
    %6401 = vmatpush1.msra.mxu0 %v6251
    %6402 = vmatprep.subr.mxu0 0.0
    %6403 = vmatpush1.msra.mxu0 %v6252
    %6404 = vmatprep.subr.mxu0 0.0
    %6405 = vmatpush1.msra.mxu0 %v6253
    %6406 = vmatprep.subr.mxu0 0.0
    %6407 = vmatpush1.msra.mxu0 %v6254
    %6408 = vmatprep.subr.mxu0 0.0
    %6409 = vmatpush1.msra.mxu0 %v6255
    %6410 = vmatprep.subr.mxu0 0.0
    %6411 = vmatpush1.msra.mxu0 %v6256
    %6412 = vmatprep.subr.mxu0 0.0
    %6413 = vmatpush1.msra.mxu0 %v6257
    %6414 = vmatprep.mubr.f32.mxu0 %v5563
    %6415 = vmatmul.mubr.f32.gmra.mrb[0].mxu0 %v5562
    %v6416 = vpop.f32.mrb[0].mxu0
    %v6417 = vadd.f32 %v6342, %v6416
    %v6418 = vpop.f32.mrb[0].mxu0
    %6419 = vmatprep.mubr.f32.mxu0 %v5569
    %6420 = vmatmul.mubr.f32.gmra.mrb[0].mxu0 %v5568
    %v6421 = vpop.f32.mrb[0].mxu0
    %v6422 = vadd.f32 %v6347, %v6421
    %v6423 = vpop.f32.mrb[0].mxu0
    %6424 = vdwg.mxu0
    %6425 = vmatprep.subr.mxu0 0.0
    %6426 = vmatpush1.msra.mxu0 %v6258
    %6427 = vmatprep.subr.mxu0 0.0
    %6428 = vmatpush1.msra.mxu0 %v6259
    %6429 = vmatprep.subr.mxu0 0.0
    %6430 = vmatpush1.msra.mxu0 %v6260
    %6431 = vmatprep.subr.mxu0 0.0
    %6432 = vmatpush1.msra.mxu0 %v6261
    %6433 = vmatprep.subr.mxu0 0.0
    %6434 = vmatpush1.msra.mxu0 %v6262
    %6435 = vmatprep.subr.mxu0 0.0
    %6436 = vmatpush1.msra.mxu0 %v6263
    %6437 = vmatprep.subr.mxu0 0.0
    %6438 = vmatpush1.msra.mxu0 %v6264
    %6439 = vmatprep.subr.mxu0 0.0
    %6440 = vmatpush1.msra.mxu0 %v6265
    %6441 = vmatprep.subr.mxu0 0.0
    %6442 = vmatpush1.msra.mxu0 %v6266
    %6443 = vmatprep.subr.mxu0 0.0
    %6444 = vmatpush1.msra.mxu0 %v6267
    %6445 = vmatprep.subr.mxu0 0.0
    %6446 = vmatpush1.msra.mxu0 %v6268
    %6447 = vmatprep.subr.mxu0 0.0
    %6448 = vmatpush1.msra.mxu0 %v6269
    %6449 = vmatprep.subr.mxu0 0.0
    %6450 = vmatpush1.msra.mxu0 %v6270
    %6451 = vmatprep.subr.mxu0 0.0
    %6452 = vmatpush1.msra.mxu0 %v6271
    %6453 = vmatprep.subr.mxu0 0.0
    %6454 = vmatpush1.msra.mxu0 %v6272
    %6455 = vmatprep.subr.mxu0 0.0
    %6456 = vmatpush1.msra.mxu0 %v6273
    %6457 = vmatprep.subr.mxu0 0.0
    %6458 = vmatpush1.msra.mxu0 %v6274
    %6459 = vmatprep.subr.mxu0 0.0
    %6460 = vmatpush1.msra.mxu0 0.0
    %6461 = vmatprep.subr.mxu0 0.0
    %6462 = vmatpush1.msra.mxu0 0.0
    %6463 = vmatprep.subr.mxu0 0.0
    %6464 = vmatpush1.msra.mxu0 0.0
    %6465 = vmatprep.subr.mxu0 0.0
    %6466 = vmatpush1.msra.mxu0 0.0
    %6467 = vmatprep.subr.mxu0 0.0
    %6468 = vmatpush1.msra.mxu0 0.0
    %6469 = vmatprep.subr.mxu0 0.0
    %6470 = vmatpush1.msra.mxu0 0.0
    %6471 = vmatprep.subr.mxu0 0.0
    %6472 = vmatpush1.msra.mxu0 0.0
    %6473 = vmatprep.subr.mxu0 0.0
    %6474 = vmatpush1.msra.mxu0 0.0
    %6475 = vmatprep.subr.mxu0 0.0
    %6476 = vmatpush1.msra.mxu0 0.0
    %6477 = vmatprep.subr.mxu0 0.0
    %6478 = vmatpush1.msra.mxu0 0.0
    %6479 = vmatprep.subr.mxu0 0.0
    %6480 = vmatpush1.msra.mxu0 0.0
    %6481 = vmatprep.subr.mxu0 0.0
    %6482 = vmatpush1.msra.mxu0 0.0
    %6483 = vmatprep.subr.mxu0 0.0
    %6484 = vmatpush1.msra.mxu0 0.0
    %6485 = vmatprep.subr.mxu0 0.0
    %6486 = vmatpush1.msra.mxu0 0.0
    %6487 = vmatprep.subr.mxu0 0.0
    %6488 = vmatpush1.msra.mxu0 0.0
    %6489 = vmatprep.mubr.f32.mxu0 %v5654
    %6490 = vmatmul.mubr.f32.gmra.mrb[0].mxu0 %v5564
    %v6491 = vpop.f32.mrb[0].mxu0
    %v6492 = vadd.f32 %v6417, %v6491
    %v6493 = vpop.f32.mrb[0].mxu0
    %6494 = vmatprep.mubr.f32.mxu0 %v5657
    %6495 = vmatmul.mubr.f32.gmra.mrb[0].mxu0 %v5570
    %v6496 = vpop.f32.mrb[0].mxu0
    %v6497 = vadd.f32 %v6422, %v6496
    %v6498 = vpop.f32.mrb[0].mxu0
    %6499 = vdwg.mxu0
    %v6500 = vmax.f32 %v6191, %v6492
    %v6501 = vmax.f32 %v6192, %v6497
    %s6502 = scalar_lea.vmem %s6, 1944
    %v6503 = vld [vmem:[%s6502] sm:$0xff]
    %v6504 = vld [vmem:[%s6502 + $0x8] sm:$0xff]
    %v6505 = vld [vmem:[%s6502 + $0x10] sm:$0xff]
    %v6506 = vld [vmem:[%s6502 + $0x18] sm:$0xff]
    %v6507 = vld [vmem:[%s6502 + $0x20] sm:$0xff]
    %v6508 = vld [vmem:[%s6502 + $0x28] sm:$0xff]
    %v6509 = vld [vmem:[%s6502 + $0x30] sm:$0xff]
    %v6510 = vld [vmem:[%s6502 + $0x38] sm:$0xff]
    %v6511 = vld [vmem:[%s6502 + $0x40] sm:$0xff]
    %v6512 = vld [vmem:[%s6502 + $0x48] sm:$0xff]
    %v6513 = vld [vmem:[%s6502 + $0x50] sm:$0xff]
    %v6514 = vld [vmem:[%s6502 + $0x58] sm:$0xff]
    %v6515 = vld [vmem:[%s6502 + $0x60] sm:$0xff]
    %v6516 = vld [vmem:[%s6502 + $0x68] sm:$0xff]
    %v6517 = vld [vmem:[%s6502 + $0x70] sm:$0xff]
    %v6518 = vld [vmem:[%s6502 + $0x78] sm:$0xff]
    %v6519 = vld [vmem:[%s6502 + $0x80] sm:$0xff]
    %v6520 = vld [vmem:[%s6502 + $0x88] sm:$0xff]
    %v6521 = vld [vmem:[%s6502 + $0x90] sm:$0xff]
    %v6522 = vld [vmem:[%s6502 + $0x98] sm:$0xff]
    %v6523 = vld [vmem:[%s6502 + $0xa0] sm:$0xff]
    %v6524 = vld [vmem:[%s6502 + $0xa8] sm:$0xff]
    %v6525 = vld [vmem:[%s6502 + $0xb0] sm:$0xff]
    %v6526 = vld [vmem:[%s6502 + $0xb8] sm:$0xff]
    %v6527 = vld [vmem:[%s6502 + $0xc0] sm:$0xff]
    %v6528 = vld [vmem:[%s6502 + $0xc8] sm:$0xff]
    %v6529 = vld [vmem:[%s6502 + $0xd0] sm:$0xff]
    %v6530 = vld [vmem:[%s6502 + $0xd8] sm:$0xff]
    %v6531 = vld [vmem:[%s6502 + $0xe0] sm:$0xff]
    %v6532 = vld [vmem:[%s6502 + $0xe8] sm:$0xff]
    %v6533 = vld [vmem:[%s6502 + $0xf0] sm:$0xff]
    %v6534 = vld [vmem:[%s6502 + $0xf8] sm:$0xff]
    %v6535 = vld [vmem:[%s6502 + $0x100] sm:$0xff]
    %v6536 = vld [vmem:[%s6502 + $0x108] sm:$0xff]
    %v6537 = vld [vmem:[%s6502 + $0x110] sm:$0xff]
    %v6538 = vld [vmem:[%s6502 + $0x118] sm:$0xff]
    %v6539 = vld [vmem:[%s6502 + $0x120] sm:$0xff]
    %v6540 = vld [vmem:[%s6502 + $0x128] sm:$0xff]
    %v6541 = vld [vmem:[%s6502 + $0x130] sm:$0xff]
    %v6542 = vld [vmem:[%s6502 + $0x138] sm:$0xff]
    %v6543 = vld [vmem:[%s6502 + $0x140] sm:$0xff]
    %v6544 = vld [vmem:[%s6502 + $0x148] sm:$0xff]
    %v6545 = vld [vmem:[%s6502 + $0x150] sm:$0xff]
    %v6546 = vld [vmem:[%s6502 + $0x158] sm:$0xff]
    %v6547 = vld [vmem:[%s6502 + $0x160] sm:$0xff]
    %v6548 = vld [vmem:[%s6502 + $0x168] sm:$0xff]
    %v6549 = vld [vmem:[%s6502 + $0x170] sm:$0xff]
    %v6550 = vld [vmem:[%s6502 + $0x178] sm:$0xff]
    %v6551 = vld [vmem:[%s6502 + $0x180] sm:$0xff]
    %v6552 = vld [vmem:[%s6502 + $0x188] sm:$0xff]
    %v6553 = vld [vmem:[%s6502 + $0x190] sm:$0xff]
    %v6554 = vld [vmem:[%s6502 + $0x198] sm:$0xff]
    %v6555 = vld [vmem:[%s6502 + $0x1a0] sm:$0xff]
    %v6556 = vld [vmem:[%s6502 + $0x1a8] sm:$0xff]
    %v6557 = vld [vmem:[%s6502 + $0x1b0] sm:$0xff]
    %v6558 = vld [vmem:[%s6502 + $0x1b8] sm:$0xff]
    %v6559 = vld [vmem:[%s6502 + $0x1c0] sm:$0xff]
    %v6560 = vld [vmem:[%s6502 + $0x1c8] sm:$0xff]
    %v6561 = vld [vmem:[%s6502 + $0x1d0] sm:$0xff]
    %v6562 = vld [vmem:[%s6502 + $0x1d8] sm:$0xff]
    %v6563 = vld [vmem:[%s6502 + $0x1e0] sm:$0xff]
    %v6564 = vld [vmem:[%s6502 + $0x1e8] sm:$0xff]
    %v6565 = vld [vmem:[%s6502 + $0x1f0] sm:$0xff]
    %v6566 = vld [vmem:[%s6502 + $0x1f8] sm:$0xff]
    %v6567 = vld [vmem:[%s6502 + $0x200] sm:$0xff]
    %v6568 = vld [vmem:[%s6502 + $0x208] sm:$0xff]
    %v6569 = vld [vmem:[%s6502 + $0x210] sm:$0xff]
    %v6570 = vld [vmem:[%s6502 + $0x218] sm:$0xff]
    %v6571 = vld [vmem:[%s6502 + $0x220] sm:$0xff]
    %v6572 = vld [vmem:[%s6502 + $0x228] sm:$0xff]
    %v6573 = vld [vmem:[%s6502 + $0x230] sm:$0xff]
    %v6574 = vld [vmem:[%s6502 + $0x238] sm:$0xff]
    %v6575 = vld [vmem:[%s6502 + $0x240] sm:$0xff]
    %v6576 = vld [vmem:[%s6502 + $0x248] sm:$0xff]
    %v6577 = vld [vmem:[%s6502 + $0x250] sm:$0xff]
    %v6578 = vld [vmem:[%s6502 + $0x258] sm:$0xff]
    %v6579 = vld [vmem:[%s6502 + $0x260] sm:$0xff]
    %v6580 = vld [vmem:[%s6502 + $0x268] sm:$0xff]
    %v6581 = vld [vmem:[%s6502 + $0x270] sm:$0xff]
    %v6582 = vld [vmem:[%s6502 + $0x278] sm:$0xff]
    %v6583 = vld [vmem:[%s6502 + $0x280] sm:$0xff]
    %6584 = vmatprep.subr.mxu0 0.0
    %6585 = vmatpush1.msra.mxu0 %v6503
    %6586 = vmatprep.subr.mxu0 0.0
    %6587 = vmatpush1.msra.mxu0 %v6504
    %6588 = vmatprep.subr.mxu0 0.0
    %6589 = vmatpush1.msra.mxu0 %v6505
    %6590 = vmatprep.subr.mxu0 0.0
    %6591 = vmatpush1.msra.mxu0 %v6506
    %6592 = vmatprep.subr.mxu0 0.0
    %6593 = vmatpush1.msra.mxu0 %v6507
    %6594 = vmatprep.subr.mxu0 0.0
    %6595 = vmatpush1.msra.mxu0 %v6508
    %6596 = vmatprep.subr.mxu0 0.0
    %6597 = vmatpush1.msra.mxu0 %v6509
    %6598 = vmatprep.subr.mxu0 0.0
    %6599 = vmatpush1.msra.mxu0 %v6510
    %6600 = vmatprep.subr.mxu0 0.0
    %6601 = vmatpush1.msra.mxu0 %v6511
    %6602 = vmatprep.subr.mxu0 0.0
    %6603 = vmatpush1.msra.mxu0 %v6512
    %6604 = vmatprep.subr.mxu0 0.0
    %6605 = vmatpush1.msra.mxu0 %v6513
    %6606 = vmatprep.subr.mxu0 0.0
    %6607 = vmatpush1.msra.mxu0 %v6514
    %6608 = vmatprep.subr.mxu0 0.0
    %6609 = vmatpush1.msra.mxu0 %v6515
    %6610 = vmatprep.subr.mxu0 0.0
    %6611 = vmatpush1.msra.mxu0 %v6516
    %6612 = vmatprep.subr.mxu0 0.0
    %6613 = vmatpush1.msra.mxu0 %v6517
    %6614 = vmatprep.subr.mxu0 0.0
    %6615 = vmatpush1.msra.mxu0 %v6518
    %6616 = vmatprep.subr.mxu0 0.0
    %6617 = vmatpush1.msra.mxu0 %v6519
    %6618 = vmatprep.subr.mxu0 0.0
    %6619 = vmatpush1.msra.mxu0 %v6520
    %6620 = vmatprep.subr.mxu0 0.0
    %6621 = vmatpush1.msra.mxu0 %v6521
    %6622 = vmatprep.subr.mxu0 0.0
    %6623 = vmatpush1.msra.mxu0 %v6522
    %6624 = vmatprep.subr.mxu0 0.0
    %6625 = vmatpush1.msra.mxu0 %v6523
    %6626 = vmatprep.subr.mxu0 0.0
    %6627 = vmatpush1.msra.mxu0 %v6524
    %6628 = vmatprep.subr.mxu0 0.0
    %6629 = vmatpush1.msra.mxu0 %v6525
    %6630 = vmatprep.subr.mxu0 0.0
    %6631 = vmatpush1.msra.mxu0 %v6526
    %6632 = vmatprep.subr.mxu0 0.0
    %6633 = vmatpush1.msra.mxu0 %v6527
    %6634 = vmatprep.subr.mxu0 0.0
    %6635 = vmatpush1.msra.mxu0 %v6528
    %6636 = vmatprep.subr.mxu0 0.0
    %6637 = vmatpush1.msra.mxu0 %v6529
    %6638 = vmatprep.subr.mxu0 0.0
    %6639 = vmatpush1.msra.mxu0 %v6530
    %6640 = vmatprep.subr.mxu0 0.0
    %6641 = vmatpush1.msra.mxu0 %v6531
    %6642 = vmatprep.subr.mxu0 0.0
    %6643 = vmatpush1.msra.mxu0 %v6532
    %6644 = vmatprep.subr.mxu0 0.0
    %6645 = vmatpush1.msra.mxu0 %v6533
    %6646 = vmatprep.subr.mxu0 0.0
    %6647 = vmatpush1.msra.mxu0 %v6534
    %6648 = vmatprep.mubr.f32.mxu0 %v5561
    %6649 = vmatmul.mubr.f32.gmra.mrb[0].mxu0 %v5560
    %v6650 = vpop.f32.mrb[0].mxu0
    %v6651 = vadd.f32 0.0, %v6650
    %v6652 = vpop.f32.mrb[0].mxu0
    %6653 = vmatprep.mubr.f32.mxu0 %v5567
    %6654 = vmatmul.mubr.f32.gmra.mrb[0].mxu0 %v5566
    %v6655 = vpop.f32.mrb[0].mxu0
    %v6656 = vadd.f32 0.0, %v6655
    %v6657 = vpop.f32.mrb[0].mxu0
    %6658 = vdwg.mxu0
    %6659 = vmatprep.subr.mxu0 0.0
    %6660 = vmatpush1.msra.mxu0 %v6535
    %6661 = vmatprep.subr.mxu0 0.0
    %6662 = vmatpush1.msra.mxu0 %v6536
    %6663 = vmatprep.subr.mxu0 0.0
    %6664 = vmatpush1.msra.mxu0 %v6537
    %6665 = vmatprep.subr.mxu0 0.0
    %6666 = vmatpush1.msra.mxu0 %v6538
    %6667 = vmatprep.subr.mxu0 0.0
    %6668 = vmatpush1.msra.mxu0 %v6539
    %6669 = vmatprep.subr.mxu0 0.0
    %6670 = vmatpush1.msra.mxu0 %v6540
    %6671 = vmatprep.subr.mxu0 0.0
    %6672 = vmatpush1.msra.mxu0 %v6541
    %6673 = vmatprep.subr.mxu0 0.0
    %6674 = vmatpush1.msra.mxu0 %v6542
    %6675 = vmatprep.subr.mxu0 0.0
    %6676 = vmatpush1.msra.mxu0 %v6543
    %6677 = vmatprep.subr.mxu0 0.0
    %6678 = vmatpush1.msra.mxu0 %v6544
    %6679 = vmatprep.subr.mxu0 0.0
    %6680 = vmatpush1.msra.mxu0 %v6545
    %6681 = vmatprep.subr.mxu0 0.0
    %6682 = vmatpush1.msra.mxu0 %v6546
    %6683 = vmatprep.subr.mxu0 0.0
    %6684 = vmatpush1.msra.mxu0 %v6547
    %6685 = vmatprep.subr.mxu0 0.0
    %6686 = vmatpush1.msra.mxu0 %v6548
    %6687 = vmatprep.subr.mxu0 0.0
    %6688 = vmatpush1.msra.mxu0 %v6549
    %6689 = vmatprep.subr.mxu0 0.0
    %6690 = vmatpush1.msra.mxu0 %v6550
    %6691 = vmatprep.subr.mxu0 0.0
    %6692 = vmatpush1.msra.mxu0 %v6551
    %6693 = vmatprep.subr.mxu0 0.0
    %6694 = vmatpush1.msra.mxu0 %v6552
    %6695 = vmatprep.subr.mxu0 0.0
    %6696 = vmatpush1.msra.mxu0 %v6553
    %6697 = vmatprep.subr.mxu0 0.0
    %6698 = vmatpush1.msra.mxu0 %v6554
    %6699 = vmatprep.subr.mxu0 0.0
    %6700 = vmatpush1.msra.mxu0 %v6555
    %6701 = vmatprep.subr.mxu0 0.0
    %6702 = vmatpush1.msra.mxu0 %v6556
    %6703 = vmatprep.subr.mxu0 0.0
    %6704 = vmatpush1.msra.mxu0 %v6557
    %6705 = vmatprep.subr.mxu0 0.0
    %6706 = vmatpush1.msra.mxu0 %v6558
    %6707 = vmatprep.subr.mxu0 0.0
    %6708 = vmatpush1.msra.mxu0 %v6559
    %6709 = vmatprep.subr.mxu0 0.0
    %6710 = vmatpush1.msra.mxu0 %v6560
    %6711 = vmatprep.subr.mxu0 0.0
    %6712 = vmatpush1.msra.mxu0 %v6561
    %6713 = vmatprep.subr.mxu0 0.0
    %6714 = vmatpush1.msra.mxu0 %v6562
    %6715 = vmatprep.subr.mxu0 0.0
    %6716 = vmatpush1.msra.mxu0 %v6563
    %6717 = vmatprep.subr.mxu0 0.0
    %6718 = vmatpush1.msra.mxu0 %v6564
    %6719 = vmatprep.subr.mxu0 0.0
    %6720 = vmatpush1.msra.mxu0 %v6565
    %6721 = vmatprep.subr.mxu0 0.0
    %6722 = vmatpush1.msra.mxu0 %v6566
    %6723 = vmatprep.mubr.f32.mxu0 %v5563
    %6724 = vmatmul.mubr.f32.gmra.mrb[0].mxu0 %v5562
    %v6725 = vpop.f32.mrb[0].mxu0
    %v6726 = vadd.f32 %v6651, %v6725
    %v6727 = vpop.f32.mrb[0].mxu0
    %6728 = vmatprep.mubr.f32.mxu0 %v5569
    %6729 = vmatmul.mubr.f32.gmra.mrb[0].mxu0 %v5568
    %v6730 = vpop.f32.mrb[0].mxu0
    %v6731 = vadd.f32 %v6656, %v6730
    %v6732 = vpop.f32.mrb[0].mxu0
    %6733 = vdwg.mxu0
    %6734 = vmatprep.subr.mxu0 0.0
    %6735 = vmatpush1.msra.mxu0 %v6567
    %6736 = vmatprep.subr.mxu0 0.0
    %6737 = vmatpush1.msra.mxu0 %v6568
    %6738 = vmatprep.subr.mxu0 0.0
    %6739 = vmatpush1.msra.mxu0 %v6569
    %6740 = vmatprep.subr.mxu0 0.0
    %6741 = vmatpush1.msra.mxu0 %v6570
    %6742 = vmatprep.subr.mxu0 0.0
    %6743 = vmatpush1.msra.mxu0 %v6571
    %6744 = vmatprep.subr.mxu0 0.0
    %6745 = vmatpush1.msra.mxu0 %v6572
    %6746 = vmatprep.subr.mxu0 0.0
    %6747 = vmatpush1.msra.mxu0 %v6573
    %6748 = vmatprep.subr.mxu0 0.0
    %6749 = vmatpush1.msra.mxu0 %v6574
    %6750 = vmatprep.subr.mxu0 0.0
    %6751 = vmatpush1.msra.mxu0 %v6575
    %6752 = vmatprep.subr.mxu0 0.0
    %6753 = vmatpush1.msra.mxu0 %v6576
    %6754 = vmatprep.subr.mxu0 0.0
    %6755 = vmatpush1.msra.mxu0 %v6577
    %6756 = vmatprep.subr.mxu0 0.0
    %6757 = vmatpush1.msra.mxu0 %v6578
    %6758 = vmatprep.subr.mxu0 0.0
    %6759 = vmatpush1.msra.mxu0 %v6579
    %6760 = vmatprep.subr.mxu0 0.0
    %6761 = vmatpush1.msra.mxu0 %v6580
    %6762 = vmatprep.subr.mxu0 0.0
    %6763 = vmatpush1.msra.mxu0 %v6581
    %6764 = vmatprep.subr.mxu0 0.0
    %6765 = vmatpush1.msra.mxu0 %v6582
    %6766 = vmatprep.subr.mxu0 0.0
    %6767 = vmatpush1.msra.mxu0 %v6583
    %6768 = vmatprep.subr.mxu0 0.0
    %6769 = vmatpush1.msra.mxu0 0.0
    %6770 = vmatprep.subr.mxu0 0.0
    %6771 = vmatpush1.msra.mxu0 0.0
    %6772 = vmatprep.subr.mxu0 0.0
    %6773 = vmatpush1.msra.mxu0 0.0
    %6774 = vmatprep.subr.mxu0 0.0
    %6775 = vmatpush1.msra.mxu0 0.0
    %6776 = vmatprep.subr.mxu0 0.0
    %6777 = vmatpush1.msra.mxu0 0.0
    %6778 = vmatprep.subr.mxu0 0.0
    %6779 = vmatpush1.msra.mxu0 0.0
    %6780 = vmatprep.subr.mxu0 0.0
    %6781 = vmatpush1.msra.mxu0 0.0
    %6782 = vmatprep.subr.mxu0 0.0
    %6783 = vmatpush1.msra.mxu0 0.0
    %6784 = vmatprep.subr.mxu0 0.0
    %6785 = vmatpush1.msra.mxu0 0.0
    %6786 = vmatprep.subr.mxu0 0.0
    %6787 = vmatpush1.msra.mxu0 0.0
    %6788 = vmatprep.subr.mxu0 0.0
    %6789 = vmatpush1.msra.mxu0 0.0
    %6790 = vmatprep.subr.mxu0 0.0
    %6791 = vmatpush1.msra.mxu0 0.0
    %6792 = vmatprep.subr.mxu0 0.0
    %6793 = vmatpush1.msra.mxu0 0.0
    %6794 = vmatprep.subr.mxu0 0.0
    %6795 = vmatpush1.msra.mxu0 0.0
    %6796 = vmatprep.subr.mxu0 0.0
    %6797 = vmatpush1.msra.mxu0 0.0
    %6798 = vmatprep.mubr.f32.mxu0 %v5654
    %6799 = vmatmul.mubr.f32.gmra.mrb[0].mxu0 %v5564
    %v6800 = vpop.f32.mrb[0].mxu0
    %v6801 = vadd.f32 %v6726, %v6800
    %v6802 = vpop.f32.mrb[0].mxu0
    %6803 = vmatprep.mubr.f32.mxu0 %v5657
    %6804 = vmatmul.mubr.f32.gmra.mrb[0].mxu0 %v5570
    %v6805 = vpop.f32.mrb[0].mxu0
    %v6806 = vadd.f32 %v6731, %v6805
    %v6807 = vpop.f32.mrb[0].mxu0
    %6808 = vdwg.mxu0
    %v6809 = vmax.f32 %v6500, %v6801
    %v6810 = vmax.f32 %v6501, %v6806
    %v6811 = vld [vmem:[%s7] sm:$0xff]
    %v6812 = vld [vmem:[%s7 + $0x8] sm:$0xff]
    %v6813 = vld [vmem:[%s7 + $0x10] sm:$0xff]
    %v6814 = vld [vmem:[%s7 + $0x18] sm:$0xff]
    %v6815 = vld [vmem:[%s7 + $0x20] sm:$0xff]
    %v6816 = vld [vmem:[%s7 + $0x28] sm:$0xff]
    %v6817 = vld [vmem:[%s7 + $0x30] sm:$0xff]
    %v6818 = vld [vmem:[%s7 + $0x38] sm:$0xff]
    %v6819 = vld [vmem:[%s7 + $0x40] sm:$0xff]
    %v6820 = vld [vmem:[%s7 + $0x48] sm:$0xff]
    %v6821 = vld [vmem:[%s7 + $0x50] sm:$0xff]
    %v6822 = vld [vmem:[%s7 + $0x58] sm:$0xff]
    %v6823 = vld [vmem:[%s7 + $0x60] sm:$0xff]
    %v6824 = vld [vmem:[%s7 + $0x68] sm:$0xff]
    %v6825 = vld [vmem:[%s7 + $0x70] sm:$0xff]
    %v6826 = vld [vmem:[%s7 + $0x78] sm:$0xff]
    %v6827 = vld [vmem:[%s7 + $0x80] sm:$0xff]
    %v6828 = vld [vmem:[%s7 + $0x88] sm:$0xff]
    %v6829 = vld [vmem:[%s7 + $0x90] sm:$0xff]
    %v6830 = vld [vmem:[%s7 + $0x98] sm:$0xff]
    %v6831 = vld [vmem:[%s7 + $0xa0] sm:$0xff]
    %v6832 = vld [vmem:[%s7 + $0xa8] sm:$0xff]
    %v6833 = vld [vmem:[%s7 + $0xb0] sm:$0xff]
    %v6834 = vld [vmem:[%s7 + $0xb8] sm:$0xff]
    %v6835 = vld [vmem:[%s7 + $0xc0] sm:$0xff]
    %v6836 = vld [vmem:[%s7 + $0xc8] sm:$0xff]
    %v6837 = vld [vmem:[%s7 + $0xd0] sm:$0xff]
    %v6838 = vld [vmem:[%s7 + $0xd8] sm:$0xff]
    %v6839 = vld [vmem:[%s7 + $0xe0] sm:$0xff]
    %v6840 = vld [vmem:[%s7 + $0xe8] sm:$0xff]
    %v6841 = vld [vmem:[%s7 + $0xf0] sm:$0xff]
    %v6842 = vld [vmem:[%s7 + $0xf8] sm:$0xff]
    %v6843 = vld [vmem:[%s7 + $0x100] sm:$0xff]
    %v6844 = vld [vmem:[%s7 + $0x108] sm:$0xff]
    %v6845 = vld [vmem:[%s7 + $0x110] sm:$0xff]
    %v6846 = vld [vmem:[%s7 + $0x118] sm:$0xff]
    %v6847 = vld [vmem:[%s7 + $0x120] sm:$0xff]
    %v6848 = vld [vmem:[%s7 + $0x128] sm:$0xff]
    %v6849 = vld [vmem:[%s7 + $0x130] sm:$0xff]
    %v6850 = vld [vmem:[%s7 + $0x138] sm:$0xff]
    %v6851 = vld [vmem:[%s7 + $0x140] sm:$0xff]
    %v6852 = vld [vmem:[%s7 + $0x148] sm:$0xff]
    %v6853 = vld [vmem:[%s7 + $0x150] sm:$0xff]
    %v6854 = vld [vmem:[%s7 + $0x158] sm:$0xff]
    %v6855 = vld [vmem:[%s7 + $0x160] sm:$0xff]
    %v6856 = vld [vmem:[%s7 + $0x168] sm:$0xff]
    %v6857 = vld [vmem:[%s7 + $0x170] sm:$0xff]
    %v6858 = vld [vmem:[%s7 + $0x178] sm:$0xff]
    %v6859 = vld [vmem:[%s7 + $0x180] sm:$0xff]
    %v6860 = vld [vmem:[%s7 + $0x188] sm:$0xff]
    %v6861 = vld [vmem:[%s7 + $0x190] sm:$0xff]
    %v6862 = vld [vmem:[%s7 + $0x198] sm:$0xff]
    %v6863 = vld [vmem:[%s7 + $0x1a0] sm:$0xff]
    %v6864 = vld [vmem:[%s7 + $0x1a8] sm:$0xff]
    %v6865 = vld [vmem:[%s7 + $0x1b0] sm:$0xff]
    %v6866 = vld [vmem:[%s7 + $0x1b8] sm:$0xff]
    %v6867 = vld [vmem:[%s7 + $0x1c0] sm:$0xff]
    %v6868 = vld [vmem:[%s7 + $0x1c8] sm:$0xff]
    %v6869 = vld [vmem:[%s7 + $0x1d0] sm:$0xff]
    %v6870 = vld [vmem:[%s7 + $0x1d8] sm:$0xff]
    %v6871 = vld [vmem:[%s7 + $0x1e0] sm:$0xff]
    %v6872 = vld [vmem:[%s7 + $0x1e8] sm:$0xff]
    %v6873 = vld [vmem:[%s7 + $0x1f0] sm:$0xff]
    %v6874 = vld [vmem:[%s7 + $0x1f8] sm:$0xff]
    %v6875 = vld [vmem:[%s7 + $0x200] sm:$0xff]
    %v6876 = vld [vmem:[%s7 + $0x208] sm:$0xff]
    %v6877 = vld [vmem:[%s7 + $0x210] sm:$0xff]
    %v6878 = vld [vmem:[%s7 + $0x218] sm:$0xff]
    %v6879 = vld [vmem:[%s7 + $0x220] sm:$0xff]
    %v6880 = vld [vmem:[%s7 + $0x228] sm:$0xff]
    %v6881 = vld [vmem:[%s7 + $0x230] sm:$0xff]
    %v6882 = vld [vmem:[%s7 + $0x238] sm:$0xff]
    %v6883 = vld [vmem:[%s7 + $0x240] sm:$0xff]
    %v6884 = vld [vmem:[%s7 + $0x248] sm:$0xff]
    %v6885 = vld [vmem:[%s7 + $0x250] sm:$0xff]
    %v6886 = vld [vmem:[%s7 + $0x258] sm:$0xff]
    %v6887 = vld [vmem:[%s7 + $0x260] sm:$0xff]
    %v6888 = vld [vmem:[%s7 + $0x268] sm:$0xff]
    %v6889 = vld [vmem:[%s7 + $0x270] sm:$0xff]
    %v6890 = vld [vmem:[%s7 + $0x278] sm:$0xff]
    %v6891 = vld [vmem:[%s7 + $0x280] sm:$0xff]
    %v6892 = vld [vmem:[%s7 + $0x288] sm:$0xff]
    %v6893 = vld [vmem:[%s7 + $0x290] sm:$0xff]
    %v6894 = vld [vmem:[%s7 + $0x298] sm:$0xff]
    %v6895 = vld [vmem:[%s7 + $0x2a0] sm:$0xff]
    %v6896 = vld [vmem:[%s7 + $0x2a8] sm:$0xff]
    %v6897 = vld [vmem:[%s7 + $0x2b0] sm:$0xff]
    %v6898 = vld [vmem:[%s7 + $0x2b8] sm:$0xff]
    %v6899 = vld [vmem:[%s7 + $0x2c0] sm:$0xff]
    %v6900 = vld [vmem:[%s7 + $0x2c8] sm:$0xff]
    %v6901 = vld [vmem:[%s7 + $0x2d0] sm:$0xff]
    %v6902 = vld [vmem:[%s7 + $0x2d8] sm:$0xff]
    %v6903 = vld [vmem:[%s7 + $0x2e0] sm:$0xff]
    %v6904 = vld [vmem:[%s7 + $0x2e8] sm:$0xff]
    %v6905 = vld [vmem:[%s7 + $0x2f0] sm:$0xff]
    %v6906 = vld [vmem:[%s7 + $0x2f8] sm:$0xff]
    %v6907 = vld [vmem:[%s7 + $0x300] sm:$0xff]
    %v6908 = vld [vmem:[%s7 + $0x308] sm:$0xff]
    %vm6909 = vcmask 130048
    %v6911 = vsel %vm6909, %v6811, 0
    %v6914 = vsel %vm6909, %v6812, 0
    %v6917 = vsel %vm6909, %v6813, 0
    %v6920 = vsel %vm6909, %v6814, 0
    %v6923 = vsel %vm6909, %v6815, 0
    %v6926 = vsel %vm6909, %v6816, 0
    %v6929 = vsel %vm6909, %v6817, 0
    %v6932 = vsel %vm6909, %v6818, 0
    %v6935 = vsel %vm6909, %v6819, 0
    %v6938 = vsel %vm6909, %v6820, 0
    %v6941 = vsel %vm6909, %v6821, 0
    %v6944 = vsel %vm6909, %v6822, 0
    %v6947 = vsel %vm6909, %v6823, 0
    %v6950 = vsel %vm6909, %v6824, 0
    %v6953 = vsel %vm6909, %v6825, 0
    %v6956 = vsel %vm6909, %v6826, 0
    %v6959 = vsel %vm6909, %v6827, 0
    %v6962 = vsel %vm6909, %v6828, 0
    %v6965 = vsel %vm6909, %v6829, 0
    %v6968 = vsel %vm6909, %v6830, 0
    %v6971 = vsel %vm6909, %v6831, 0
    %v6974 = vsel %vm6909, %v6832, 0
    %v6977 = vsel %vm6909, %v6833, 0
    %v6980 = vsel %vm6909, %v6834, 0
    %v6983 = vsel %vm6909, %v6835, 0
    %v6986 = vsel %vm6909, %v6836, 0
    %v6989 = vsel %vm6909, %v6837, 0
    %v6992 = vsel %vm6909, %v6838, 0
    %v6995 = vsel %vm6909, %v6839, 0
    %v6998 = vsel %vm6909, %v6840, 0
    %v7001 = vsel %vm6909, %v6841, 0
    %v7004 = vsel %vm6909, %v6842, 0
    %v7007 = vsel %vm6909, %v6843, 0
    %v7010 = vsel %vm6909, %v6844, 0
    %v7013 = vsel %vm6909, %v6845, 0
    %v7016 = vsel %vm6909, %v6846, 0
    %v7019 = vsel %vm6909, %v6847, 0
    %v7022 = vsel %vm6909, %v6848, 0
    %v7025 = vsel %vm6909, %v6849, 0
    %v7028 = vsel %vm6909, %v6850, 0
    %v7031 = vsel %vm6909, %v6851, 0
    %v7034 = vsel %vm6909, %v6852, 0
    %v7037 = vsel %vm6909, %v6853, 0
    %v7040 = vsel %vm6909, %v6854, 0
    %v7043 = vsel %vm6909, %v6855, 0
    %v7046 = vsel %vm6909, %v6856, 0
    %v7049 = vsel %vm6909, %v6857, 0
    %v7052 = vsel %vm6909, %v6858, 0
    %v7055 = vsel %vm6909, %v6859, 0
    %v7058 = vsel %vm6909, %v6860, 0
    %v7061 = vsel %vm6909, %v6861, 0
    %v7064 = vsel %vm6909, %v6862, 0
    %v7067 = vsel %vm6909, %v6863, 0
    %v7070 = vsel %vm6909, %v6864, 0
    %v7073 = vsel %vm6909, %v6865, 0
    %v7076 = vsel %vm6909, %v6866, 0
    %v7079 = vsel %vm6909, %v6867, 0
    %v7082 = vsel %vm6909, %v6868, 0
    %v7085 = vsel %vm6909, %v6869, 0
    %v7088 = vsel %vm6909, %v6870, 0
    %v7091 = vsel %vm6909, %v6871, 0
    %v7094 = vsel %vm6909, %v6872, 0
    %v7097 = vsel %vm6909, %v6873, 0
    %v7100 = vsel %vm6909, %v6874, 0
    %v7103 = vsel %vm6909, %v6875, 0
    %v7106 = vsel %vm6909, %v6876, 0
    %v7109 = vsel %vm6909, %v6877, 0
    %v7112 = vsel %vm6909, %v6878, 0
    %v7115 = vsel %vm6909, %v6879, 0
    %v7118 = vsel %vm6909, %v6880, 0
    %v7121 = vsel %vm6909, %v6881, 0
    %v7124 = vsel %vm6909, %v6882, 0
    %v7127 = vsel %vm6909, %v6883, 0
    %v7130 = vsel %vm6909, %v6884, 0
    %v7133 = vsel %vm6909, %v6885, 0
    %v7136 = vsel %vm6909, %v6886, 0
    %v7139 = vsel %vm6909, %v6887, 0
    %v7142 = vsel %vm6909, %v6888, 0
    %v7145 = vsel %vm6909, %v6889, 0
    %v7148 = vsel %vm6909, %v6890, 0
    %v7151 = vsel %vm6909, %v6891, 0
    %v7154 = vsel %vm6909, %v6892, 0
    %v7157 = vsel %vm6909, %v6893, 0
    %v7160 = vsel %vm6909, %v6894, 0
    %v7163 = vsel %vm6909, %v6895, 0
    %v7166 = vsel %vm6909, %v6896, 0
    %v7169 = vsel %vm6909, %v6897, 0
    %v7172 = vsel %vm6909, %v6898, 0
    %v7175 = vsel %vm6909, %v6899, 0
    %v7178 = vsel %vm6909, %v6900, 0
    %v7181 = vsel %vm6909, %v6901, 0
    %v7184 = vsel %vm6909, %v6902, 0
    %v7187 = vsel %vm6909, %v6903, 0
    %v7190 = vsel %vm6909, %v6904, 0
    %v7193 = vsel %vm6909, %v6905, 0
    %v7196 = vsel %vm6909, %v6906, 0
    %v7199 = vsel %vm6909, %v6907, 0
    %v7202 = vsel %vm6909, %v6908, 0
    %7204 = vmatprep.subr.mxu0 0.0
    %7205 = vmatpush1.msra.mxu0 %v6809
    %7206 = vmatprep.subr.mxu0 0.0
    %7207 = vmatpush1.msra.mxu0 %v6810
    %7208 = vmatprep.subr.mxu0 0.0
    %7209 = vmatpush1.msra.mxu0 0.0
    %7210 = vmatprep.subr.mxu0 0.0
    %7211 = vmatpush1.msra.mxu0 0.0
    %7212 = vmatprep.subr.mxu0 0.0
    %7213 = vmatpush1.msra.mxu0 0.0
    %7214 = vmatprep.subr.mxu0 0.0
    %7215 = vmatpush1.msra.mxu0 0.0
    %7216 = vmatprep.subr.mxu0 0.0
    %7217 = vmatpush1.msra.mxu0 0.0
    %7218 = vmatprep.subr.mxu0 0.0
    %7219 = vmatpush1.msra.mxu0 0.0
    %7220 = vmatprep.subr.mxu0 0.0
    %7221 = vmatpush1.msra.mxu0 0.0
    %7222 = vmatprep.subr.mxu0 0.0
    %7223 = vmatpush1.msra.mxu0 0.0
    %7224 = vmatprep.subr.mxu0 0.0
    %7225 = vmatpush1.msra.mxu0 0.0
    %7226 = vmatprep.subr.mxu0 0.0
    %7227 = vmatpush1.msra.mxu0 0.0
    %7228 = vmatprep.subr.mxu0 0.0
    %7229 = vmatpush1.msra.mxu0 0.0
    %7230 = vmatprep.subr.mxu0 0.0
    %7231 = vmatpush1.msra.mxu0 0.0
    %7232 = vmatprep.subr.mxu0 0.0
    %7233 = vmatpush1.msra.mxu0 0.0
    %7234 = vmatprep.subr.mxu0 0.0
    %7235 = vmatpush1.msra.mxu0 0.0
    %7236 = vmatprep.subr.mxu0 0.0
    %7237 = vmatpush1.msra.mxu0 0.0
    %7238 = vmatprep.subr.mxu0 0.0
    %7239 = vmatpush1.msra.mxu0 0.0
    %7240 = vmatprep.subr.mxu0 0.0
    %7241 = vmatpush1.msra.mxu0 0.0
    %7242 = vmatprep.subr.mxu0 0.0
    %7243 = vmatpush1.msra.mxu0 0.0
    %7244 = vmatprep.subr.mxu0 0.0
    %7245 = vmatpush1.msra.mxu0 0.0
    %7246 = vmatprep.subr.mxu0 0.0
    %7247 = vmatpush1.msra.mxu0 0.0
    %7248 = vmatprep.subr.mxu0 0.0
    %7249 = vmatpush1.msra.mxu0 0.0
    %7250 = vmatprep.subr.mxu0 0.0
    %7251 = vmatpush1.msra.mxu0 0.0
    %7252 = vmatprep.subr.mxu0 0.0
    %7253 = vmatpush1.msra.mxu0 0.0
    %7254 = vmatprep.subr.mxu0 0.0
    %7255 = vmatpush1.msra.mxu0 0.0
    %7256 = vmatprep.subr.mxu0 0.0
    %7257 = vmatpush1.msra.mxu0 0.0
    %7258 = vmatprep.subr.mxu0 0.0
    %7259 = vmatpush1.msra.mxu0 0.0
    %7260 = vmatprep.subr.mxu0 0.0
    %7261 = vmatpush1.msra.mxu0 0.0
    %7262 = vmatprep.subr.mxu0 0.0
    %7263 = vmatpush1.msra.mxu0 0.0
    %7264 = vmatprep.subr.mxu0 0.0
    %7265 = vmatpush1.msra.mxu0 0.0
    %7266 = vmatprep.subr.mxu0 0.0
    %7267 = vmatpush1.msra.mxu0 0.0
    %7268 = vmatprep.mubr.f32.mxu0 0.0
    %7269 = vmatmul.mubr.f32.gmra.mrb[0].mxu0 %v6911
    %v7270 = vpop.f32.mrb[0].mxu0
    %v7271 = vadd.f32 0.0, %v7270
    %v7272 = vpop.f32.mrb[0].mxu0
    %7273 = vmatprep.mubr.f32.mxu0 0.0
    %7274 = vmatmul.mubr.f32.gmra.mrb[0].mxu0 %v6914
    %v7275 = vpop.f32.mrb[0].mxu0
    %v7276 = vadd.f32 0.0, %v7275
    %v7277 = vpop.f32.mrb[0].mxu0
    %7278 = vmatprep.mubr.f32.mxu0 0.0
    %7279 = vmatmul.mubr.f32.gmra.mrb[0].mxu0 %v6917
    %v7280 = vpop.f32.mrb[0].mxu0
    %v7281 = vadd.f32 0.0, %v7280
    %v7282 = vpop.f32.mrb[0].mxu0
    %7283 = vmatprep.mubr.f32.mxu0 0.0
    %7284 = vmatmul.mubr.f32.gmra.mrb[0].mxu0 %v6920
    %v7285 = vpop.f32.mrb[0].mxu0
    %v7286 = vadd.f32 0.0, %v7285
    %v7287 = vpop.f32.mrb[0].mxu0
    %7288 = vmatprep.mubr.f32.mxu0 0.0
    %7289 = vmatmul.mubr.f32.gmra.mrb[0].mxu0 %v6923
    %v7290 = vpop.f32.mrb[0].mxu0
    %v7291 = vadd.f32 0.0, %v7290
    %v7292 = vpop.f32.mrb[0].mxu0
    %7293 = vmatprep.mubr.f32.mxu0 0.0
    %7294 = vmatmul.mubr.f32.gmra.mrb[0].mxu0 %v6926
    %v7295 = vpop.f32.mrb[0].mxu0
    %v7296 = vadd.f32 0.0, %v7295
    %v7297 = vpop.f32.mrb[0].mxu0
    %7298 = vmatprep.mubr.f32.mxu0 0.0
    %7299 = vmatmul.mubr.f32.gmra.mrb[0].mxu0 %v6929
    %v7300 = vpop.f32.mrb[0].mxu0
    %v7301 = vadd.f32 0.0, %v7300
    %v7302 = vpop.f32.mrb[0].mxu0
    %7303 = vmatprep.mubr.f32.mxu0 0.0
    %7304 = vmatmul.mubr.f32.gmra.mrb[0].mxu0 %v6932
    %v7305 = vpop.f32.mrb[0].mxu0
    %v7306 = vadd.f32 0.0, %v7305
    %v7307 = vpop.f32.mrb[0].mxu0
    %7308 = vmatprep.mubr.f32.mxu0 0.0
    %7309 = vmatmul.mubr.f32.gmra.mrb[0].mxu0 %v6935
    %v7310 = vpop.f32.mrb[0].mxu0
    %v7311 = vadd.f32 0.0, %v7310
    %v7312 = vpop.f32.mrb[0].mxu0
    %7313 = vmatprep.mubr.f32.mxu0 0.0
    %7314 = vmatmul.mubr.f32.gmra.mrb[0].mxu0 %v6938
    %v7315 = vpop.f32.mrb[0].mxu0
    %v7316 = vadd.f32 0.0, %v7315
    %v7317 = vpop.f32.mrb[0].mxu0
    %7318 = vmatprep.mubr.f32.mxu0 0.0
    %7319 = vmatmul.mubr.f32.gmra.mrb[0].mxu0 %v6941
    %v7320 = vpop.f32.mrb[0].mxu0
    %v7321 = vadd.f32 0.0, %v7320
    %v7322 = vpop.f32.mrb[0].mxu0
    %7323 = vmatprep.mubr.f32.mxu0 0.0
    %7324 = vmatmul.mubr.f32.gmra.mrb[0].mxu0 %v6944
    %v7325 = vpop.f32.mrb[0].mxu0
    %v7326 = vadd.f32 0.0, %v7325
    %v7327 = vpop.f32.mrb[0].mxu0
    %7328 = vmatprep.mubr.f32.mxu0 0.0
    %7329 = vmatmul.mubr.f32.gmra.mrb[0].mxu0 %v6947
    %v7330 = vpop.f32.mrb[0].mxu0
    %v7331 = vadd.f32 0.0, %v7330
    %v7332 = vpop.f32.mrb[0].mxu0
    %7333 = vmatprep.mubr.f32.mxu0 0.0
    %7334 = vmatmul.mubr.f32.gmra.mrb[0].mxu0 %v6950
    %v7335 = vpop.f32.mrb[0].mxu0
    %v7336 = vadd.f32 0.0, %v7335
    %v7337 = vpop.f32.mrb[0].mxu0
    %7338 = vmatprep.mubr.f32.mxu0 0.0
    %7339 = vmatmul.mubr.f32.gmra.mrb[0].mxu0 %v6953
    %v7340 = vpop.f32.mrb[0].mxu0
    %v7341 = vadd.f32 0.0, %v7340
    %v7342 = vpop.f32.mrb[0].mxu0
    %7343 = vmatprep.mubr.f32.mxu0 0.0
    %7344 = vmatmul.mubr.f32.gmra.mrb[0].mxu0 %v6956
    %v7345 = vpop.f32.mrb[0].mxu0
    %v7346 = vadd.f32 0.0, %v7345
    %v7347 = vpop.f32.mrb[0].mxu0
    %7348 = vmatprep.mubr.f32.mxu0 0.0
    %7349 = vmatmul.mubr.f32.gmra.mrb[0].mxu0 %v6959
    %v7350 = vpop.f32.mrb[0].mxu0
    %v7351 = vadd.f32 0.0, %v7350
    %v7352 = vpop.f32.mrb[0].mxu0
    %7353 = vmatprep.mubr.f32.mxu0 0.0
    %7354 = vmatmul.mubr.f32.gmra.mrb[0].mxu0 %v6962
    %v7355 = vpop.f32.mrb[0].mxu0
    %v7356 = vadd.f32 0.0, %v7355
    %v7357 = vpop.f32.mrb[0].mxu0
    %7358 = vmatprep.mubr.f32.mxu0 0.0
    %7359 = vmatmul.mubr.f32.gmra.mrb[0].mxu0 %v6965
    %v7360 = vpop.f32.mrb[0].mxu0
    %v7361 = vadd.f32 0.0, %v7360
    %v7362 = vpop.f32.mrb[0].mxu0
    %7363 = vmatprep.mubr.f32.mxu0 0.0
    %7364 = vmatmul.mubr.f32.gmra.mrb[0].mxu0 %v6968
    %v7365 = vpop.f32.mrb[0].mxu0
    %v7366 = vadd.f32 0.0, %v7365
    %v7367 = vpop.f32.mrb[0].mxu0
    %7368 = vmatprep.mubr.f32.mxu0 0.0
    %7369 = vmatmul.mubr.f32.gmra.mrb[0].mxu0 %v6971
    %v7370 = vpop.f32.mrb[0].mxu0
    %v7371 = vadd.f32 0.0, %v7370
    %v7372 = vpop.f32.mrb[0].mxu0
    %7373 = vmatprep.mubr.f32.mxu0 0.0
    %7374 = vmatmul.mubr.f32.gmra.mrb[0].mxu0 %v6974
    %v7375 = vpop.f32.mrb[0].mxu0
    %v7376 = vadd.f32 0.0, %v7375
    %v7377 = vpop.f32.mrb[0].mxu0
    %7378 = vmatprep.mubr.f32.mxu0 0.0
    %7379 = vmatmul.mubr.f32.gmra.mrb[0].mxu0 %v6977
    %v7380 = vpop.f32.mrb[0].mxu0
    %v7381 = vadd.f32 0.0, %v7380
    %v7382 = vpop.f32.mrb[0].mxu0
    %7383 = vmatprep.mubr.f32.mxu0 0.0
    %7384 = vmatmul.mubr.f32.gmra.mrb[0].mxu0 %v6980
    %v7385 = vpop.f32.mrb[0].mxu0
    %v7386 = vadd.f32 0.0, %v7385
    %v7387 = vpop.f32.mrb[0].mxu0
    %7388 = vmatprep.mubr.f32.mxu0 0.0
    %7389 = vmatmul.mubr.f32.gmra.mrb[0].mxu0 %v6983
    %v7390 = vpop.f32.mrb[0].mxu0
    %v7391 = vadd.f32 0.0, %v7390
    %v7392 = vpop.f32.mrb[0].mxu0
    %7393 = vmatprep.mubr.f32.mxu0 0.0
    %7394 = vmatmul.mubr.f32.gmra.mrb[0].mxu0 %v6986
    %v7395 = vpop.f32.mrb[0].mxu0
    %v7396 = vadd.f32 0.0, %v7395
    %v7397 = vpop.f32.mrb[0].mxu0
    %7398 = vmatprep.mubr.f32.mxu0 0.0
    %7399 = vmatmul.mubr.f32.gmra.mrb[0].mxu0 %v6989
    %v7400 = vpop.f32.mrb[0].mxu0
    %v7401 = vadd.f32 0.0, %v7400
    %v7402 = vpop.f32.mrb[0].mxu0
    %7403 = vmatprep.mubr.f32.mxu0 0.0
    %7404 = vmatmul.mubr.f32.gmra.mrb[0].mxu0 %v6992
    %v7405 = vpop.f32.mrb[0].mxu0
    %v7406 = vadd.f32 0.0, %v7405
    %v7407 = vpop.f32.mrb[0].mxu0
    %7408 = vmatprep.mubr.f32.mxu0 0.0
    %7409 = vmatmul.mubr.f32.gmra.mrb[0].mxu0 %v6995
    %v7410 = vpop.f32.mrb[0].mxu0
    %v7411 = vadd.f32 0.0, %v7410
    %v7412 = vpop.f32.mrb[0].mxu0
    %7413 = vmatprep.mubr.f32.mxu0 0.0
    %7414 = vmatmul.mubr.f32.gmra.mrb[0].mxu0 %v6998
    %v7415 = vpop.f32.mrb[0].mxu0
    %v7416 = vadd.f32 0.0, %v7415
    %v7417 = vpop.f32.mrb[0].mxu0
    %7418 = vmatprep.mubr.f32.mxu0 0.0
    %7419 = vmatmul.mubr.f32.gmra.mrb[0].mxu0 %v7001
    %v7420 = vpop.f32.mrb[0].mxu0
    %v7421 = vadd.f32 0.0, %v7420
    %v7422 = vpop.f32.mrb[0].mxu0
    %7423 = vmatprep.mubr.f32.mxu0 0.0
    %7424 = vmatmul.mubr.f32.gmra.mrb[0].mxu0 %v7004
    %v7425 = vpop.f32.mrb[0].mxu0
    %v7426 = vadd.f32 0.0, %v7425
    %v7427 = vpop.f32.mrb[0].mxu0
    %7428 = vmatprep.mubr.f32.mxu0 0.0
    %7429 = vmatmul.mubr.f32.gmra.mrb[0].mxu0 %v7007
    %v7430 = vpop.f32.mrb[0].mxu0
    %v7431 = vadd.f32 0.0, %v7430
    %v7432 = vpop.f32.mrb[0].mxu0
    %7433 = vmatprep.mubr.f32.mxu0 0.0
    %7434 = vmatmul.mubr.f32.gmra.mrb[0].mxu0 %v7010
    %v7435 = vpop.f32.mrb[0].mxu0
    %v7436 = vadd.f32 0.0, %v7435
    %v7437 = vpop.f32.mrb[0].mxu0
    %7438 = vmatprep.mubr.f32.mxu0 0.0
    %7439 = vmatmul.mubr.f32.gmra.mrb[0].mxu0 %v7013
    %v7440 = vpop.f32.mrb[0].mxu0
    %v7441 = vadd.f32 0.0, %v7440
    %v7442 = vpop.f32.mrb[0].mxu0
    %7443 = vmatprep.mubr.f32.mxu0 0.0
    %7444 = vmatmul.mubr.f32.gmra.mrb[0].mxu0 %v7016
    %v7445 = vpop.f32.mrb[0].mxu0
    %v7446 = vadd.f32 0.0, %v7445
    %v7447 = vpop.f32.mrb[0].mxu0
    %7448 = vmatprep.mubr.f32.mxu0 0.0
    %7449 = vmatmul.mubr.f32.gmra.mrb[0].mxu0 %v7019
    %v7450 = vpop.f32.mrb[0].mxu0
    %v7451 = vadd.f32 0.0, %v7450
    %v7452 = vpop.f32.mrb[0].mxu0
    %7453 = vmatprep.mubr.f32.mxu0 0.0
    %7454 = vmatmul.mubr.f32.gmra.mrb[0].mxu0 %v7022
    %v7455 = vpop.f32.mrb[0].mxu0
    %v7456 = vadd.f32 0.0, %v7455
    %v7457 = vpop.f32.mrb[0].mxu0
    %7458 = vmatprep.mubr.f32.mxu0 0.0
    %7459 = vmatmul.mubr.f32.gmra.mrb[0].mxu0 %v7025
    %v7460 = vpop.f32.mrb[0].mxu0
    %v7461 = vadd.f32 0.0, %v7460
    %v7462 = vpop.f32.mrb[0].mxu0
    %7463 = vmatprep.mubr.f32.mxu0 0.0
    %7464 = vmatmul.mubr.f32.gmra.mrb[0].mxu0 %v7028
    %v7465 = vpop.f32.mrb[0].mxu0
    %v7466 = vadd.f32 0.0, %v7465
    %v7467 = vpop.f32.mrb[0].mxu0
    %7468 = vmatprep.mubr.f32.mxu0 0.0
    %7469 = vmatmul.mubr.f32.gmra.mrb[0].mxu0 %v7031
    %v7470 = vpop.f32.mrb[0].mxu0
    %v7471 = vadd.f32 0.0, %v7470
    %v7472 = vpop.f32.mrb[0].mxu0
    %7473 = vmatprep.mubr.f32.mxu0 0.0
    %7474 = vmatmul.mubr.f32.gmra.mrb[0].mxu0 %v7034
    %v7475 = vpop.f32.mrb[0].mxu0
    %v7476 = vadd.f32 0.0, %v7475
    %v7477 = vpop.f32.mrb[0].mxu0
    %7478 = vmatprep.mubr.f32.mxu0 0.0
    %7479 = vmatmul.mubr.f32.gmra.mrb[0].mxu0 %v7037
    %v7480 = vpop.f32.mrb[0].mxu0
    %v7481 = vadd.f32 0.0, %v7480
    %v7482 = vpop.f32.mrb[0].mxu0
    %7483 = vmatprep.mubr.f32.mxu0 0.0
    %7484 = vmatmul.mubr.f32.gmra.mrb[0].mxu0 %v7040
    %v7485 = vpop.f32.mrb[0].mxu0
    %v7486 = vadd.f32 0.0, %v7485
    %v7487 = vpop.f32.mrb[0].mxu0
    %7488 = vmatprep.mubr.f32.mxu0 0.0
    %7489 = vmatmul.mubr.f32.gmra.mrb[0].mxu0 %v7043
    %v7490 = vpop.f32.mrb[0].mxu0
    %v7491 = vadd.f32 0.0, %v7490
    %v7492 = vpop.f32.mrb[0].mxu0
    %7493 = vmatprep.mubr.f32.mxu0 0.0
    %7494 = vmatmul.mubr.f32.gmra.mrb[0].mxu0 %v7046
    %v7495 = vpop.f32.mrb[0].mxu0
    %v7496 = vadd.f32 0.0, %v7495
    %v7497 = vpop.f32.mrb[0].mxu0
    %7498 = vmatprep.mubr.f32.mxu0 0.0
    %7499 = vmatmul.mubr.f32.gmra.mrb[0].mxu0 %v7049
    %v7500 = vpop.f32.mrb[0].mxu0
    %v7501 = vadd.f32 0.0, %v7500
    %v7502 = vpop.f32.mrb[0].mxu0
    %7503 = vmatprep.mubr.f32.mxu0 0.0
    %7504 = vmatmul.mubr.f32.gmra.mrb[0].mxu0 %v7052
    %v7505 = vpop.f32.mrb[0].mxu0
    %v7506 = vadd.f32 0.0, %v7505
    %v7507 = vpop.f32.mrb[0].mxu0
    %7508 = vmatprep.mubr.f32.mxu0 0.0
    %7509 = vmatmul.mubr.f32.gmra.mrb[0].mxu0 %v7055
    %v7510 = vpop.f32.mrb[0].mxu0
    %v7511 = vadd.f32 0.0, %v7510
    %v7512 = vpop.f32.mrb[0].mxu0
    %7513 = vmatprep.mubr.f32.mxu0 0.0
    %7514 = vmatmul.mubr.f32.gmra.mrb[0].mxu0 %v7058
    %v7515 = vpop.f32.mrb[0].mxu0
    %v7516 = vadd.f32 0.0, %v7515
    %v7517 = vpop.f32.mrb[0].mxu0
    %7518 = vmatprep.mubr.f32.mxu0 0.0
    %7519 = vmatmul.mubr.f32.gmra.mrb[0].mxu0 %v7061
    %v7520 = vpop.f32.mrb[0].mxu0
    %v7521 = vadd.f32 0.0, %v7520
    %v7522 = vpop.f32.mrb[0].mxu0
    %7523 = vmatprep.mubr.f32.mxu0 0.0
    %7524 = vmatmul.mubr.f32.gmra.mrb[0].mxu0 %v7064
    %v7525 = vpop.f32.mrb[0].mxu0
    %v7526 = vadd.f32 0.0, %v7525
    %v7527 = vpop.f32.mrb[0].mxu0
    %7528 = vmatprep.mubr.f32.mxu0 0.0
    %7529 = vmatmul.mubr.f32.gmra.mrb[0].mxu0 %v7067
    %v7530 = vpop.f32.mrb[0].mxu0
    %v7531 = vadd.f32 0.0, %v7530
    %v7532 = vpop.f32.mrb[0].mxu0
    %7533 = vmatprep.mubr.f32.mxu0 0.0
    %7534 = vmatmul.mubr.f32.gmra.mrb[0].mxu0 %v7070
    %v7535 = vpop.f32.mrb[0].mxu0
    %v7536 = vadd.f32 0.0, %v7535
    %v7537 = vpop.f32.mrb[0].mxu0
    %7538 = vmatprep.mubr.f32.mxu0 0.0
    %7539 = vmatmul.mubr.f32.gmra.mrb[0].mxu0 %v7073
    %v7540 = vpop.f32.mrb[0].mxu0
    %v7541 = vadd.f32 0.0, %v7540
    %v7542 = vpop.f32.mrb[0].mxu0
    %7543 = vmatprep.mubr.f32.mxu0 0.0
    %7544 = vmatmul.mubr.f32.gmra.mrb[0].mxu0 %v7076
    %v7545 = vpop.f32.mrb[0].mxu0
    %v7546 = vadd.f32 0.0, %v7545
    %v7547 = vpop.f32.mrb[0].mxu0
    %7548 = vmatprep.mubr.f32.mxu0 0.0
    %7549 = vmatmul.mubr.f32.gmra.mrb[0].mxu0 %v7079
    %v7550 = vpop.f32.mrb[0].mxu0
    %v7551 = vadd.f32 0.0, %v7550
    %v7552 = vpop.f32.mrb[0].mxu0
    %7553 = vmatprep.mubr.f32.mxu0 0.0
    %7554 = vmatmul.mubr.f32.gmra.mrb[0].mxu0 %v7082
    %v7555 = vpop.f32.mrb[0].mxu0
    %v7556 = vadd.f32 0.0, %v7555
    %v7557 = vpop.f32.mrb[0].mxu0
    %7558 = vmatprep.mubr.f32.mxu0 0.0
    %7559 = vmatmul.mubr.f32.gmra.mrb[0].mxu0 %v7085
    %v7560 = vpop.f32.mrb[0].mxu0
    %v7561 = vadd.f32 0.0, %v7560
    %v7562 = vpop.f32.mrb[0].mxu0
    %7563 = vmatprep.mubr.f32.mxu0 0.0
    %7564 = vmatmul.mubr.f32.gmra.mrb[0].mxu0 %v7088
    %v7565 = vpop.f32.mrb[0].mxu0
    %v7566 = vadd.f32 0.0, %v7565
    %v7567 = vpop.f32.mrb[0].mxu0
    %7568 = vmatprep.mubr.f32.mxu0 0.0
    %7569 = vmatmul.mubr.f32.gmra.mrb[0].mxu0 %v7091
    %v7570 = vpop.f32.mrb[0].mxu0
    %v7571 = vadd.f32 0.0, %v7570
    %v7572 = vpop.f32.mrb[0].mxu0
    %7573 = vmatprep.mubr.f32.mxu0 0.0
    %7574 = vmatmul.mubr.f32.gmra.mrb[0].mxu0 %v7094
    %v7575 = vpop.f32.mrb[0].mxu0
    %v7576 = vadd.f32 0.0, %v7575
    %v7577 = vpop.f32.mrb[0].mxu0
    %7578 = vmatprep.mubr.f32.mxu0 0.0
    %7579 = vmatmul.mubr.f32.gmra.mrb[0].mxu0 %v7097
    %v7580 = vpop.f32.mrb[0].mxu0
    %v7581 = vadd.f32 0.0, %v7580
    %v7582 = vpop.f32.mrb[0].mxu0
    %7583 = vmatprep.mubr.f32.mxu0 0.0
    %7584 = vmatmul.mubr.f32.gmra.mrb[0].mxu0 %v7100
    %v7585 = vpop.f32.mrb[0].mxu0
    %v7586 = vadd.f32 0.0, %v7585
    %v7587 = vpop.f32.mrb[0].mxu0
    %7588 = vmatprep.mubr.f32.mxu0 0.0
    %7589 = vmatmul.mubr.f32.gmra.mrb[0].mxu0 %v7103
    %v7590 = vpop.f32.mrb[0].mxu0
    %v7591 = vadd.f32 0.0, %v7590
    %v7592 = vpop.f32.mrb[0].mxu0
    %7593 = vmatprep.mubr.f32.mxu0 0.0
    %7594 = vmatmul.mubr.f32.gmra.mrb[0].mxu0 %v7106
    %v7595 = vpop.f32.mrb[0].mxu0
    %v7596 = vadd.f32 0.0, %v7595
    %v7597 = vpop.f32.mrb[0].mxu0
    %7598 = vmatprep.mubr.f32.mxu0 0.0
    %7599 = vmatmul.mubr.f32.gmra.mrb[0].mxu0 %v7109
    %v7600 = vpop.f32.mrb[0].mxu0
    %v7601 = vadd.f32 0.0, %v7600
    %v7602 = vpop.f32.mrb[0].mxu0
    %7603 = vmatprep.mubr.f32.mxu0 0.0
    %7604 = vmatmul.mubr.f32.gmra.mrb[0].mxu0 %v7112
    %v7605 = vpop.f32.mrb[0].mxu0
    %v7606 = vadd.f32 0.0, %v7605
    %v7607 = vpop.f32.mrb[0].mxu0
    %7608 = vmatprep.mubr.f32.mxu0 0.0
    %7609 = vmatmul.mubr.f32.gmra.mrb[0].mxu0 %v7115
    %v7610 = vpop.f32.mrb[0].mxu0
    %v7611 = vadd.f32 0.0, %v7610
    %v7612 = vpop.f32.mrb[0].mxu0
    %7613 = vmatprep.mubr.f32.mxu0 0.0
    %7614 = vmatmul.mubr.f32.gmra.mrb[0].mxu0 %v7118
    %v7615 = vpop.f32.mrb[0].mxu0
    %v7616 = vadd.f32 0.0, %v7615
    %v7617 = vpop.f32.mrb[0].mxu0
    %7618 = vmatprep.mubr.f32.mxu0 0.0
    %7619 = vmatmul.mubr.f32.gmra.mrb[0].mxu0 %v7121
    %v7620 = vpop.f32.mrb[0].mxu0
    %v7621 = vadd.f32 0.0, %v7620
    %v7622 = vpop.f32.mrb[0].mxu0
    %7623 = vmatprep.mubr.f32.mxu0 0.0
    %7624 = vmatmul.mubr.f32.gmra.mrb[0].mxu0 %v7124
    %v7625 = vpop.f32.mrb[0].mxu0
    %v7626 = vadd.f32 0.0, %v7625
    %v7627 = vpop.f32.mrb[0].mxu0
    %7628 = vmatprep.mubr.f32.mxu0 0.0
    %7629 = vmatmul.mubr.f32.gmra.mrb[0].mxu0 %v7127
    %v7630 = vpop.f32.mrb[0].mxu0
    %v7631 = vadd.f32 0.0, %v7630
    %v7632 = vpop.f32.mrb[0].mxu0
    %7633 = vmatprep.mubr.f32.mxu0 0.0
    %7634 = vmatmul.mubr.f32.gmra.mrb[0].mxu0 %v7130
    %v7635 = vpop.f32.mrb[0].mxu0
    %v7636 = vadd.f32 0.0, %v7635
    %v7637 = vpop.f32.mrb[0].mxu0
    %7638 = vmatprep.mubr.f32.mxu0 0.0
    %7639 = vmatmul.mubr.f32.gmra.mrb[0].mxu0 %v7133
    %v7640 = vpop.f32.mrb[0].mxu0
    %v7641 = vadd.f32 0.0, %v7640
    %v7642 = vpop.f32.mrb[0].mxu0
    %7643 = vmatprep.mubr.f32.mxu0 0.0
    %7644 = vmatmul.mubr.f32.gmra.mrb[0].mxu0 %v7136
    %v7645 = vpop.f32.mrb[0].mxu0
    %v7646 = vadd.f32 0.0, %v7645
    %v7647 = vpop.f32.mrb[0].mxu0
    %7648 = vmatprep.mubr.f32.mxu0 0.0
    %7649 = vmatmul.mubr.f32.gmra.mrb[0].mxu0 %v7139
    %v7650 = vpop.f32.mrb[0].mxu0
    %v7651 = vadd.f32 0.0, %v7650
    %v7652 = vpop.f32.mrb[0].mxu0
    %7653 = vmatprep.mubr.f32.mxu0 0.0
    %7654 = vmatmul.mubr.f32.gmra.mrb[0].mxu0 %v7142
    %v7655 = vpop.f32.mrb[0].mxu0
    %v7656 = vadd.f32 0.0, %v7655
    %v7657 = vpop.f32.mrb[0].mxu0
    %7658 = vmatprep.mubr.f32.mxu0 0.0
    %7659 = vmatmul.mubr.f32.gmra.mrb[0].mxu0 %v7145
    %v7660 = vpop.f32.mrb[0].mxu0
    %v7661 = vadd.f32 0.0, %v7660
    %v7662 = vpop.f32.mrb[0].mxu0
    %7663 = vmatprep.mubr.f32.mxu0 0.0
    %7664 = vmatmul.mubr.f32.gmra.mrb[0].mxu0 %v7148
    %v7665 = vpop.f32.mrb[0].mxu0
    %v7666 = vadd.f32 0.0, %v7665
    %v7667 = vpop.f32.mrb[0].mxu0
    %7668 = vmatprep.mubr.f32.mxu0 0.0
    %7669 = vmatmul.mubr.f32.gmra.mrb[0].mxu0 %v7151
    %v7670 = vpop.f32.mrb[0].mxu0
    %v7671 = vadd.f32 0.0, %v7670
    %v7672 = vpop.f32.mrb[0].mxu0
    %7673 = vmatprep.mubr.f32.mxu0 0.0
    %7674 = vmatmul.mubr.f32.gmra.mrb[0].mxu0 %v7154
    %v7675 = vpop.f32.mrb[0].mxu0
    %v7676 = vadd.f32 0.0, %v7675
    %v7677 = vpop.f32.mrb[0].mxu0
    %7678 = vmatprep.mubr.f32.mxu0 0.0
    %7679 = vmatmul.mubr.f32.gmra.mrb[0].mxu0 %v7157
    %v7680 = vpop.f32.mrb[0].mxu0
    %v7681 = vadd.f32 0.0, %v7680
    %v7682 = vpop.f32.mrb[0].mxu0
    %7683 = vmatprep.mubr.f32.mxu0 0.0
    %7684 = vmatmul.mubr.f32.gmra.mrb[0].mxu0 %v7160
    %v7685 = vpop.f32.mrb[0].mxu0
    %v7686 = vadd.f32 0.0, %v7685
    %v7687 = vpop.f32.mrb[0].mxu0
    %7688 = vmatprep.mubr.f32.mxu0 0.0
    %7689 = vmatmul.mubr.f32.gmra.mrb[0].mxu0 %v7163
    %v7690 = vpop.f32.mrb[0].mxu0
    %v7691 = vadd.f32 0.0, %v7690
    %v7692 = vpop.f32.mrb[0].mxu0
    %7693 = vmatprep.mubr.f32.mxu0 0.0
    %7694 = vmatmul.mubr.f32.gmra.mrb[0].mxu0 %v7166
    %v7695 = vpop.f32.mrb[0].mxu0
    %v7696 = vadd.f32 0.0, %v7695
    %v7697 = vpop.f32.mrb[0].mxu0
    %7698 = vmatprep.mubr.f32.mxu0 0.0
    %7699 = vmatmul.mubr.f32.gmra.mrb[0].mxu0 %v7169
    %v7700 = vpop.f32.mrb[0].mxu0
    %v7701 = vadd.f32 0.0, %v7700
    %v7702 = vpop.f32.mrb[0].mxu0
    %7703 = vmatprep.mubr.f32.mxu0 0.0
    %7704 = vmatmul.mubr.f32.gmra.mrb[0].mxu0 %v7172
    %v7705 = vpop.f32.mrb[0].mxu0
    %v7706 = vadd.f32 0.0, %v7705
    %v7707 = vpop.f32.mrb[0].mxu0
    %7708 = vmatprep.mubr.f32.mxu0 0.0
    %7709 = vmatmul.mubr.f32.gmra.mrb[0].mxu0 %v7175
    %v7710 = vpop.f32.mrb[0].mxu0
    %v7711 = vadd.f32 0.0, %v7710
    %v7712 = vpop.f32.mrb[0].mxu0
    %7713 = vmatprep.mubr.f32.mxu0 0.0
    %7714 = vmatmul.mubr.f32.gmra.mrb[0].mxu0 %v7178
    %v7715 = vpop.f32.mrb[0].mxu0
    %v7716 = vadd.f32 0.0, %v7715
    %v7717 = vpop.f32.mrb[0].mxu0
    %7718 = vmatprep.mubr.f32.mxu0 0.0
    %7719 = vmatmul.mubr.f32.gmra.mrb[0].mxu0 %v7181
    %v7720 = vpop.f32.mrb[0].mxu0
    %v7721 = vadd.f32 0.0, %v7720
    %v7722 = vpop.f32.mrb[0].mxu0
    %7723 = vmatprep.mubr.f32.mxu0 0.0
    %7724 = vmatmul.mubr.f32.gmra.mrb[0].mxu0 %v7184
    %v7725 = vpop.f32.mrb[0].mxu0
    %v7726 = vadd.f32 0.0, %v7725
    %v7727 = vpop.f32.mrb[0].mxu0
    %7728 = vmatprep.mubr.f32.mxu0 0.0
    %7729 = vmatmul.mubr.f32.gmra.mrb[0].mxu0 %v7187
    %v7730 = vpop.f32.mrb[0].mxu0
    %v7731 = vadd.f32 0.0, %v7730
    %v7732 = vpop.f32.mrb[0].mxu0
    %7733 = vmatprep.mubr.f32.mxu0 0.0
    %7734 = vmatmul.mubr.f32.gmra.mrb[0].mxu0 %v7190
    %v7735 = vpop.f32.mrb[0].mxu0
    %v7736 = vadd.f32 0.0, %v7735
    %v7737 = vpop.f32.mrb[0].mxu0
    %7738 = vmatprep.mubr.f32.mxu0 0.0
    %7739 = vmatmul.mubr.f32.gmra.mrb[0].mxu0 %v7193
    %v7740 = vpop.f32.mrb[0].mxu0
    %v7741 = vadd.f32 0.0, %v7740
    %v7742 = vpop.f32.mrb[0].mxu0
    %7743 = vmatprep.mubr.f32.mxu0 0.0
    %7744 = vmatmul.mubr.f32.gmra.mrb[0].mxu0 %v7196
    %v7745 = vpop.f32.mrb[0].mxu0
    %v7746 = vadd.f32 0.0, %v7745
    %v7747 = vpop.f32.mrb[0].mxu0
    %7748 = vmatprep.mubr.f32.mxu0 0.0
    %7749 = vmatmul.mubr.f32.gmra.mrb[0].mxu0 %v7199
    %v7750 = vpop.f32.mrb[0].mxu0
    %v7751 = vadd.f32 0.0, %v7750
    %v7752 = vpop.f32.mrb[0].mxu0
    %7753 = vmatprep.mubr.f32.mxu0 0.0
    %7754 = vmatmul.mubr.f32.gmra.mrb[0].mxu0 %v7202
    %v7755 = vpop.f32.mrb[0].mxu0
    %v7756 = vadd.f32 0.0, %v7755
    %v7757 = vpop.f32.mrb[0].mxu0
    %7758 = vdwg.mxu0
    %v7759 = vld [vmem:[%s8] sm:$0xff]
    %v7760 = vld [vmem:[%s8 + $0x8] sm:$0xff]
    %v7761 = vld [vmem:[%s8 + $0x10] sm:$0xff]
    %v7762 = vld [vmem:[%s8 + $0x18] sm:$0xff]
    %v7763 = vld [vmem:[%s8 + $0x20] sm:$0xff]
    %v7764 = vld [vmem:[%s8 + $0x28] sm:$0xff]
    %v7765 = vld [vmem:[%s8 + $0x30] sm:$0xff]
    %v7766 = vld [vmem:[%s8 + $0x38] sm:$0xff]
    %v7767 = vld [vmem:[%s8 + $0x40] sm:$0xff]
    %v7768 = vld [vmem:[%s8 + $0x48] sm:$0xff]
    %v7769 = vld [vmem:[%s8 + $0x50] sm:$0xff]
    %v7770 = vld [vmem:[%s8 + $0x58] sm:$0xff]
    %v7771 = vld [vmem:[%s8 + $0x60] sm:$0xff]
    %v7772 = vld [vmem:[%s8 + $0x68] sm:$0xff]
    %v7773 = vld [vmem:[%s8 + $0x70] sm:$0xff]
    %v7774 = vld [vmem:[%s8 + $0x78] sm:$0xff]
    %v7775 = vld [vmem:[%s8 + $0x80] sm:$0xff]
    %v7776 = vld [vmem:[%s8 + $0x88] sm:$0xff]
    %v7777 = vld [vmem:[%s8 + $0x90] sm:$0xff]
    %v7778 = vld [vmem:[%s8 + $0x98] sm:$0xff]
    %v7779 = vld [vmem:[%s8 + $0xa0] sm:$0xff]
    %v7780 = vld [vmem:[%s8 + $0xa8] sm:$0xff]
    %v7781 = vld [vmem:[%s8 + $0xb0] sm:$0xff]
    %v7782 = vld [vmem:[%s8 + $0xb8] sm:$0xff]
    %v7783 = vld [vmem:[%s8 + $0xc0] sm:$0xff]
    %v7784 = vld [vmem:[%s8 + $0xc8] sm:$0xff]
    %v7785 = vld [vmem:[%s8 + $0xd0] sm:$0xff]
    %v7786 = vld [vmem:[%s8 + $0xd8] sm:$0xff]
    %v7787 = vld [vmem:[%s8 + $0xe0] sm:$0xff]
    %v7788 = vld [vmem:[%s8 + $0xe8] sm:$0xff]
    %v7789 = vld [vmem:[%s8 + $0xf0] sm:$0xff]
    %v7790 = vld [vmem:[%s8 + $0xf8] sm:$0xff]
    %v7791 = vld [vmem:[%s8 + $0x100] sm:$0xff]
    %v7792 = vld [vmem:[%s8 + $0x108] sm:$0xff]
    %v7793 = vld [vmem:[%s8 + $0x110] sm:$0xff]
    %v7794 = vld [vmem:[%s8 + $0x118] sm:$0xff]
    %v7795 = vld [vmem:[%s8 + $0x120] sm:$0xff]
    %v7796 = vld [vmem:[%s8 + $0x128] sm:$0xff]
    %v7797 = vld [vmem:[%s8 + $0x130] sm:$0xff]
    %v7798 = vld [vmem:[%s8 + $0x138] sm:$0xff]
    %v7799 = vld [vmem:[%s8 + $0x140] sm:$0xff]
    %v7800 = vld [vmem:[%s8 + $0x148] sm:$0xff]
    %v7801 = vld [vmem:[%s8 + $0x150] sm:$0xff]
    %v7802 = vld [vmem:[%s8 + $0x158] sm:$0xff]
    %v7803 = vld [vmem:[%s8 + $0x160] sm:$0xff]
    %v7804 = vld [vmem:[%s8 + $0x168] sm:$0xff]
    %v7805 = vld [vmem:[%s8 + $0x170] sm:$0xff]
    %v7806 = vld [vmem:[%s8 + $0x178] sm:$0xff]
    %v7807 = vld [vmem:[%s8 + $0x180] sm:$0xff]
    %v7808 = vld [vmem:[%s8 + $0x188] sm:$0xff]
    %v7809 = vld [vmem:[%s8 + $0x190] sm:$0xff]
    %v7810 = vld [vmem:[%s8 + $0x198] sm:$0xff]
    %v7811 = vld [vmem:[%s8 + $0x1a0] sm:$0xff]
    %v7812 = vld [vmem:[%s8 + $0x1a8] sm:$0xff]
    %v7813 = vld [vmem:[%s8 + $0x1b0] sm:$0xff]
    %v7814 = vld [vmem:[%s8 + $0x1b8] sm:$0xff]
    %v7815 = vld [vmem:[%s8 + $0x1c0] sm:$0xff]
    %v7816 = vld [vmem:[%s8 + $0x1c8] sm:$0xff]
    %v7817 = vld [vmem:[%s8 + $0x1d0] sm:$0xff]
    %v7818 = vld [vmem:[%s8 + $0x1d8] sm:$0xff]
    %v7819 = vld [vmem:[%s8 + $0x1e0] sm:$0xff]
    %v7820 = vld [vmem:[%s8 + $0x1e8] sm:$0xff]
    %v7821 = vld [vmem:[%s8 + $0x1f0] sm:$0xff]
    %v7822 = vld [vmem:[%s8 + $0x1f8] sm:$0xff]
    %v7823 = vld [vmem:[%s8 + $0x200] sm:$0xff]
    %v7824 = vld [vmem:[%s8 + $0x208] sm:$0xff]
    %v7825 = vld [vmem:[%s8 + $0x210] sm:$0xff]
    %v7826 = vld [vmem:[%s8 + $0x218] sm:$0xff]
    %v7827 = vld [vmem:[%s8 + $0x220] sm:$0xff]
    %v7828 = vld [vmem:[%s8 + $0x228] sm:$0xff]
    %v7829 = vld [vmem:[%s8 + $0x230] sm:$0xff]
    %v7830 = vld [vmem:[%s8 + $0x238] sm:$0xff]
    %v7831 = vld [vmem:[%s8 + $0x240] sm:$0xff]
    %v7832 = vld [vmem:[%s8 + $0x248] sm:$0xff]
    %v7833 = vld [vmem:[%s8 + $0x250] sm:$0xff]
    %v7834 = vld [vmem:[%s8 + $0x258] sm:$0xff]
    %v7835 = vld [vmem:[%s8 + $0x260] sm:$0xff]
    %v7836 = vld [vmem:[%s8 + $0x268] sm:$0xff]
    %v7837 = vld [vmem:[%s8 + $0x270] sm:$0xff]
    %v7838 = vld [vmem:[%s8 + $0x278] sm:$0xff]
    %v7839 = vld [vmem:[%s8 + $0x280] sm:$0xff]
    %v7840 = vld [vmem:[%s8 + $0x288] sm:$0xff]
    %v7841 = vld [vmem:[%s8 + $0x290] sm:$0xff]
    %v7842 = vld [vmem:[%s8 + $0x298] sm:$0xff]
    %v7843 = vld [vmem:[%s8 + $0x2a0] sm:$0xff]
    %v7844 = vld [vmem:[%s8 + $0x2a8] sm:$0xff]
    %v7845 = vld [vmem:[%s8 + $0x2b0] sm:$0xff]
    %v7846 = vld [vmem:[%s8 + $0x2b8] sm:$0xff]
    %v7847 = vld [vmem:[%s8 + $0x2c0] sm:$0xff]
    %v7848 = vld [vmem:[%s8 + $0x2c8] sm:$0xff]
    %v7849 = vld [vmem:[%s8 + $0x2d0] sm:$0xff]
    %v7850 = vld [vmem:[%s8 + $0x2d8] sm:$0xff]
    %v7851 = vld [vmem:[%s8 + $0x2e0] sm:$0xff]
    %v7852 = vld [vmem:[%s8 + $0x2e8] sm:$0xff]
    %v7853 = vld [vmem:[%s8 + $0x2f0] sm:$0xff]
    %v7854 = vld [vmem:[%s8 + $0x2f8] sm:$0xff]
    %v7855 = vld [vmem:[%s8 + $0x300] sm:$0xff]
    %v7856 = vld [vmem:[%s8 + $0x308] sm:$0xff]
    %v7857 = vmul.f32 %v7271, %v7759
    %v7858 = vmul.f32 %v7276, %v7760
    %v7859 = vmul.f32 %v7281, %v7761
    %v7860 = vmul.f32 %v7286, %v7762
    %v7861 = vmul.f32 %v7291, %v7763
    %v7862 = vmul.f32 %v7296, %v7764
    %v7863 = vmul.f32 %v7301, %v7765
    %v7864 = vmul.f32 %v7306, %v7766
    %v7865 = vmul.f32 %v7311, %v7767
    %v7866 = vmul.f32 %v7316, %v7768
    %v7867 = vmul.f32 %v7321, %v7769
    %v7868 = vmul.f32 %v7326, %v7770
    %v7869 = vmul.f32 %v7331, %v7771
    %v7870 = vmul.f32 %v7336, %v7772
    %v7871 = vmul.f32 %v7341, %v7773
    %v7872 = vmul.f32 %v7346, %v7774
    %v7873 = vmul.f32 %v7351, %v7775
    %v7874 = vmul.f32 %v7356, %v7776
    %v7875 = vmul.f32 %v7361, %v7777
    %v7876 = vmul.f32 %v7366, %v7778
    %v7877 = vmul.f32 %v7371, %v7779
    %v7878 = vmul.f32 %v7376, %v7780
    %v7879 = vmul.f32 %v7381, %v7781
    %v7880 = vmul.f32 %v7386, %v7782
    %v7881 = vmul.f32 %v7391, %v7783
    %v7882 = vmul.f32 %v7396, %v7784
    %v7883 = vmul.f32 %v7401, %v7785
    %v7884 = vmul.f32 %v7406, %v7786
    %v7885 = vmul.f32 %v7411, %v7787
    %v7886 = vmul.f32 %v7416, %v7788
    %v7887 = vmul.f32 %v7421, %v7789
    %v7888 = vmul.f32 %v7426, %v7790
    %v7889 = vmul.f32 %v7431, %v7791
    %v7890 = vmul.f32 %v7436, %v7792
    %v7891 = vmul.f32 %v7441, %v7793
    %v7892 = vmul.f32 %v7446, %v7794
    %v7893 = vmul.f32 %v7451, %v7795
    %v7894 = vmul.f32 %v7456, %v7796
    %v7895 = vmul.f32 %v7461, %v7797
    %v7896 = vmul.f32 %v7466, %v7798
    %v7897 = vmul.f32 %v7471, %v7799
    %v7898 = vmul.f32 %v7476, %v7800
    %v7899 = vmul.f32 %v7481, %v7801
    %v7900 = vmul.f32 %v7486, %v7802
    %v7901 = vmul.f32 %v7491, %v7803
    %v7902 = vmul.f32 %v7496, %v7804
    %v7903 = vmul.f32 %v7501, %v7805
    %v7904 = vmul.f32 %v7506, %v7806
    %v7905 = vmul.f32 %v7511, %v7807
    %v7906 = vmul.f32 %v7516, %v7808
    %v7907 = vmul.f32 %v7521, %v7809
    %v7908 = vmul.f32 %v7526, %v7810
    %v7909 = vmul.f32 %v7531, %v7811
    %v7910 = vmul.f32 %v7536, %v7812
    %v7911 = vmul.f32 %v7541, %v7813
    %v7912 = vmul.f32 %v7546, %v7814
    %v7913 = vmul.f32 %v7551, %v7815
    %v7914 = vmul.f32 %v7556, %v7816
    %v7915 = vmul.f32 %v7561, %v7817
    %v7916 = vmul.f32 %v7566, %v7818
    %v7917 = vmul.f32 %v7571, %v7819
    %v7918 = vmul.f32 %v7576, %v7820
    %v7919 = vmul.f32 %v7581, %v7821
    %v7920 = vmul.f32 %v7586, %v7822
    %v7921 = vmul.f32 %v7591, %v7823
    %v7922 = vmul.f32 %v7596, %v7824
    %v7923 = vmul.f32 %v7601, %v7825
    %v7924 = vmul.f32 %v7606, %v7826
    %v7925 = vmul.f32 %v7611, %v7827
    %v7926 = vmul.f32 %v7616, %v7828
    %v7927 = vmul.f32 %v7621, %v7829
    %v7928 = vmul.f32 %v7626, %v7830
    %v7929 = vmul.f32 %v7631, %v7831
    %v7930 = vmul.f32 %v7636, %v7832
    %v7931 = vmul.f32 %v7641, %v7833
    %v7932 = vmul.f32 %v7646, %v7834
    %v7933 = vmul.f32 %v7651, %v7835
    %v7934 = vmul.f32 %v7656, %v7836
    %v7935 = vmul.f32 %v7661, %v7837
    %v7936 = vmul.f32 %v7666, %v7838
    %v7937 = vmul.f32 %v7671, %v7839
    %v7938 = vmul.f32 %v7676, %v7840
    %v7939 = vmul.f32 %v7681, %v7841
    %v7940 = vmul.f32 %v7686, %v7842
    %v7941 = vmul.f32 %v7691, %v7843
    %v7942 = vmul.f32 %v7696, %v7844
    %v7943 = vmul.f32 %v7701, %v7845
    %v7944 = vmul.f32 %v7706, %v7846
    %v7945 = vmul.f32 %v7711, %v7847
    %v7946 = vmul.f32 %v7716, %v7848
    %v7947 = vmul.f32 %v7721, %v7849
    %v7948 = vmul.f32 %v7726, %v7850
    %v7949 = vmul.f32 %v7731, %v7851
    %v7950 = vmul.f32 %v7736, %v7852
    %v7951 = vmul.f32 %v7741, %v7853
    %v7952 = vmul.f32 %v7746, %v7854
    %v7953 = vmul.f32 %v7751, %v7855
    %v7954 = vmul.f32 %v7756, %v7856
    %v7955 = vld [vmem:[%s9] sm:$0x3]
    %vm7956 = vcmask 801792
    %v7958 = vsel %vm7956, %v7955, 0
    %v7961 = vsel %vm7956, %v7857, 0
    %v7964 = vsel %vm7956, %v7858, 0
    %v7967 = vsel %vm7956, %v7859, 0
    %v7970 = vsel %vm7956, %v7860, 0
    %v7973 = vsel %vm7956, %v7861, 0
    %v7976 = vsel %vm7956, %v7862, 0
    %v7979 = vsel %vm7956, %v7863, 0
    %v7982 = vsel %vm7956, %v7864, 0
    %v7985 = vsel %vm7956, %v7865, 0
    %v7988 = vsel %vm7956, %v7866, 0
    %v7991 = vsel %vm7956, %v7867, 0
    %v7994 = vsel %vm7956, %v7868, 0
    %v7997 = vsel %vm7956, %v7869, 0
    %v8000 = vsel %vm7956, %v7870, 0
    %v8003 = vsel %vm7956, %v7871, 0
    %v8006 = vsel %vm7956, %v7872, 0
    %v8009 = vsel %vm7956, %v7873, 0
    %v8012 = vsel %vm7956, %v7874, 0
    %v8015 = vsel %vm7956, %v7875, 0
    %v8018 = vsel %vm7956, %v7876, 0
    %v8021 = vsel %vm7956, %v7877, 0
    %v8024 = vsel %vm7956, %v7878, 0
    %v8027 = vsel %vm7956, %v7879, 0
    %v8030 = vsel %vm7956, %v7880, 0
    %v8033 = vsel %vm7956, %v7881, 0
    %v8036 = vsel %vm7956, %v7882, 0
    %v8039 = vsel %vm7956, %v7883, 0
    %v8042 = vsel %vm7956, %v7884, 0
    %v8045 = vsel %vm7956, %v7885, 0
    %v8048 = vsel %vm7956, %v7886, 0
    %v8051 = vsel %vm7956, %v7887, 0
    %v8054 = vsel %vm7956, %v7888, 0
    %v8057 = vsel %vm7956, %v7889, 0
    %v8060 = vsel %vm7956, %v7890, 0
    %v8063 = vsel %vm7956, %v7891, 0
    %v8066 = vsel %vm7956, %v7892, 0
    %v8069 = vsel %vm7956, %v7893, 0
    %v8072 = vsel %vm7956, %v7894, 0
    %v8075 = vsel %vm7956, %v7895, 0
    %v8078 = vsel %vm7956, %v7896, 0
    %v8081 = vsel %vm7956, %v7897, 0
    %v8084 = vsel %vm7956, %v7898, 0
    %v8087 = vsel %vm7956, %v7899, 0
    %v8090 = vsel %vm7956, %v7900, 0
    %v8093 = vsel %vm7956, %v7901, 0
    %v8096 = vsel %vm7956, %v7902, 0
    %v8099 = vsel %vm7956, %v7903, 0
    %v8102 = vsel %vm7956, %v7904, 0
    %v8105 = vsel %vm7956, %v7905, 0
    %v8108 = vsel %vm7956, %v7906, 0
    %v8111 = vsel %vm7956, %v7907, 0
    %v8114 = vsel %vm7956, %v7908, 0
    %v8117 = vsel %vm7956, %v7909, 0
    %v8120 = vsel %vm7956, %v7910, 0
    %v8123 = vsel %vm7956, %v7911, 0
    %v8126 = vsel %vm7956, %v7912, 0
    %v8129 = vsel %vm7956, %v7913, 0
    %v8132 = vsel %vm7956, %v7914, 0
    %v8135 = vsel %vm7956, %v7915, 0
    %v8138 = vsel %vm7956, %v7916, 0
    %v8141 = vsel %vm7956, %v7917, 0
    %v8144 = vsel %vm7956, %v7918, 0
    %v8147 = vsel %vm7956, %v7919, 0
    %v8150 = vsel %vm7956, %v7920, 0
    %v8153 = vsel %vm7956, %v7921, 0
    %v8156 = vsel %vm7956, %v7922, 0
    %v8159 = vsel %vm7956, %v7923, 0
    %v8162 = vsel %vm7956, %v7924, 0
    %v8165 = vsel %vm7956, %v7925, 0
    %v8168 = vsel %vm7956, %v7926, 0
    %v8171 = vsel %vm7956, %v7927, 0
    %v8174 = vsel %vm7956, %v7928, 0
    %v8177 = vsel %vm7956, %v7929, 0
    %v8180 = vsel %vm7956, %v7930, 0
    %v8183 = vsel %vm7956, %v7931, 0
    %v8186 = vsel %vm7956, %v7932, 0
    %v8189 = vsel %vm7956, %v7933, 0
    %v8192 = vsel %vm7956, %v7934, 0
    %v8195 = vsel %vm7956, %v7935, 0
    %v8198 = vsel %vm7956, %v7936, 0
    %v8201 = vsel %vm7956, %v7937, 0
    %v8204 = vsel %vm7956, %v7938, 0
    %v8207 = vsel %vm7956, %v7939, 0
    %v8210 = vsel %vm7956, %v7940, 0
    %v8213 = vsel %vm7956, %v7941, 0
    %v8216 = vsel %vm7956, %v7942, 0
    %v8219 = vsel %vm7956, %v7943, 0
    %v8222 = vsel %vm7956, %v7944, 0
    %v8225 = vsel %vm7956, %v7945, 0
    %v8228 = vsel %vm7956, %v7946, 0
    %v8231 = vsel %vm7956, %v7947, 0
    %v8234 = vsel %vm7956, %v7948, 0
    %v8237 = vsel %vm7956, %v7949, 0
    %v8240 = vsel %vm7956, %v7950, 0
    %v8243 = vsel %vm7956, %v7951, 0
    %v8246 = vsel %vm7956, %v7952, 0
    %v8249 = vsel %vm7956, %v7953, 0
    %v8252 = vsel %vm7956, %v7954, 0
    %8254 = vmatprep.subr.mxu0 0.0
    %8255 = vmatpush1.xpose.msra.mxu0 %v7961
    %8256 = vmatprep.subr.mxu0 0.0
    %8257 = vmatpush1.xpose.msra.mxu0 %v7964
    %8258 = vmatprep.subr.mxu0 0.0
    %8259 = vmatpush1.xpose.msra.mxu0 %v7967
    %8260 = vmatprep.subr.mxu0 0.0
    %8261 = vmatpush1.xpose.msra.mxu0 %v7970
    %8262 = vmatprep.subr.mxu0 0.0
    %8263 = vmatpush1.xpose.msra.mxu0 %v7973
    %8264 = vmatprep.subr.mxu0 0.0
    %8265 = vmatpush1.xpose.msra.mxu0 %v7976
    %8266 = vmatprep.subr.mxu0 0.0
    %8267 = vmatpush1.xpose.msra.mxu0 %v7979
    %8268 = vmatprep.subr.mxu0 0.0
    %8269 = vmatpush1.xpose.msra.mxu0 %v7982
    %8270 = vmatprep.subr.mxu0 0.0
    %8271 = vmatpush1.xpose.msra.mxu0 %v7985
    %8272 = vmatprep.subr.mxu0 0.0
    %8273 = vmatpush1.xpose.msra.mxu0 %v7988
    %8274 = vmatprep.subr.mxu0 0.0
    %8275 = vmatpush1.xpose.msra.mxu0 %v7991
    %8276 = vmatprep.subr.mxu0 0.0
    %8277 = vmatpush1.xpose.msra.mxu0 %v7994
    %8278 = vmatprep.subr.mxu0 0.0
    %8279 = vmatpush1.xpose.msra.mxu0 %v7997
    %8280 = vmatprep.subr.mxu0 0.0
    %8281 = vmatpush1.xpose.msra.mxu0 %v8000
    %8282 = vmatprep.subr.mxu0 0.0
    %8283 = vmatpush1.xpose.msra.mxu0 %v8003
    %8284 = vmatprep.subr.mxu0 0.0
    %8285 = vmatpush1.xpose.msra.mxu0 %v8006
    %8286 = vmatprep.subr.mxu0 0.0
    %8287 = vmatpush1.xpose.msra.mxu0 %v8009
    %8288 = vmatprep.subr.mxu0 0.0
    %8289 = vmatpush1.xpose.msra.mxu0 %v8012
    %8290 = vmatprep.subr.mxu0 0.0
    %8291 = vmatpush1.xpose.msra.mxu0 %v8015
    %8292 = vmatprep.subr.mxu0 0.0
    %8293 = vmatpush1.xpose.msra.mxu0 %v8018
    %8294 = vmatprep.subr.mxu0 0.0
    %8295 = vmatpush1.xpose.msra.mxu0 %v8021
    %8296 = vmatprep.subr.mxu0 0.0
    %8297 = vmatpush1.xpose.msra.mxu0 %v8024
    %8298 = vmatprep.subr.mxu0 0.0
    %8299 = vmatpush1.xpose.msra.mxu0 %v8027
    %8300 = vmatprep.subr.mxu0 0.0
    %8301 = vmatpush1.xpose.msra.mxu0 %v8030
    %8302 = vmatprep.subr.mxu0 0.0
    %8303 = vmatpush1.xpose.msra.mxu0 %v8033
    %8304 = vmatprep.subr.mxu0 0.0
    %8305 = vmatpush1.xpose.msra.mxu0 %v8036
    %8306 = vmatprep.subr.mxu0 0.0
    %8307 = vmatpush1.xpose.msra.mxu0 %v8039
    %8308 = vmatprep.subr.mxu0 0.0
    %8309 = vmatpush1.xpose.msra.mxu0 %v8042
    %8310 = vmatprep.subr.mxu0 0.0
    %8311 = vmatpush1.xpose.msra.mxu0 %v8045
    %8312 = vmatprep.subr.mxu0 0.0
    %8313 = vmatpush1.xpose.msra.mxu0 %v8048
    %8314 = vmatprep.subr.mxu0 0.0
    %8315 = vmatpush1.xpose.msra.mxu0 %v8051
    %8316 = vmatprep.subr.mxu0 0.0
    %8317 = vmatpush1.xpose.msra.mxu0 %v8054
    %8318 = vmatprep.mubr.f32.mxu0 0.0
    %8319 = vmatmul.mubr.f32.gmra.mrb[0].mxu0 %v7958
    %v8320 = vpop.f32.mrb[0].mxu0
    %v8321 = vadd.f32 0.0, %v8320
    %v8322 = vpop.f32.mrb[0].mxu0
    %v8323 = vadd.f32 0.0, %v8322
    %8324 = vdwg.mxu0
    %8325 = vmatprep.subr.mxu0 0.0
    %8326 = vmatpush1.xpose.msra.mxu0 %v8057
    %8327 = vmatprep.subr.mxu0 0.0
    %8328 = vmatpush1.xpose.msra.mxu0 %v8060
    %8329 = vmatprep.subr.mxu0 0.0
    %8330 = vmatpush1.xpose.msra.mxu0 %v8063
    %8331 = vmatprep.subr.mxu0 0.0
    %8332 = vmatpush1.xpose.msra.mxu0 %v8066
    %8333 = vmatprep.subr.mxu0 0.0
    %8334 = vmatpush1.xpose.msra.mxu0 %v8069
    %8335 = vmatprep.subr.mxu0 0.0
    %8336 = vmatpush1.xpose.msra.mxu0 %v8072
    %8337 = vmatprep.subr.mxu0 0.0
    %8338 = vmatpush1.xpose.msra.mxu0 %v8075
    %8339 = vmatprep.subr.mxu0 0.0
    %8340 = vmatpush1.xpose.msra.mxu0 %v8078
    %8341 = vmatprep.subr.mxu0 0.0
    %8342 = vmatpush1.xpose.msra.mxu0 %v8081
    %8343 = vmatprep.subr.mxu0 0.0
    %8344 = vmatpush1.xpose.msra.mxu0 %v8084
    %8345 = vmatprep.subr.mxu0 0.0
    %8346 = vmatpush1.xpose.msra.mxu0 %v8087
    %8347 = vmatprep.subr.mxu0 0.0
    %8348 = vmatpush1.xpose.msra.mxu0 %v8090
    %8349 = vmatprep.subr.mxu0 0.0
    %8350 = vmatpush1.xpose.msra.mxu0 %v8093
    %8351 = vmatprep.subr.mxu0 0.0
    %8352 = vmatpush1.xpose.msra.mxu0 %v8096
    %8353 = vmatprep.subr.mxu0 0.0
    %8354 = vmatpush1.xpose.msra.mxu0 %v8099
    %8355 = vmatprep.subr.mxu0 0.0
    %8356 = vmatpush1.xpose.msra.mxu0 %v8102
    %8357 = vmatprep.subr.mxu0 0.0
    %8358 = vmatpush1.xpose.msra.mxu0 %v8105
    %8359 = vmatprep.subr.mxu0 0.0
    %8360 = vmatpush1.xpose.msra.mxu0 %v8108
    %8361 = vmatprep.subr.mxu0 0.0
    %8362 = vmatpush1.xpose.msra.mxu0 %v8111
    %8363 = vmatprep.subr.mxu0 0.0
    %8364 = vmatpush1.xpose.msra.mxu0 %v8114
    %8365 = vmatprep.subr.mxu0 0.0
    %8366 = vmatpush1.xpose.msra.mxu0 %v8117
    %8367 = vmatprep.subr.mxu0 0.0
    %8368 = vmatpush1.xpose.msra.mxu0 %v8120
    %8369 = vmatprep.subr.mxu0 0.0
    %8370 = vmatpush1.xpose.msra.mxu0 %v8123
    %8371 = vmatprep.subr.mxu0 0.0
    %8372 = vmatpush1.xpose.msra.mxu0 %v8126
    %8373 = vmatprep.subr.mxu0 0.0
    %8374 = vmatpush1.xpose.msra.mxu0 %v8129
    %8375 = vmatprep.subr.mxu0 0.0
    %8376 = vmatpush1.xpose.msra.mxu0 %v8132
    %8377 = vmatprep.subr.mxu0 0.0
    %8378 = vmatpush1.xpose.msra.mxu0 %v8135
    %8379 = vmatprep.subr.mxu0 0.0
    %8380 = vmatpush1.xpose.msra.mxu0 %v8138
    %8381 = vmatprep.subr.mxu0 0.0
    %8382 = vmatpush1.xpose.msra.mxu0 %v8141
    %8383 = vmatprep.subr.mxu0 0.0
    %8384 = vmatpush1.xpose.msra.mxu0 %v8144
    %8385 = vmatprep.subr.mxu0 0.0
    %8386 = vmatpush1.xpose.msra.mxu0 %v8147
    %8387 = vmatprep.subr.mxu0 0.0
    %8388 = vmatpush1.xpose.msra.mxu0 %v8150
    %8389 = vmatprep.mubr.f32.mxu0 0.0
    %8390 = vmatmul.mubr.f32.gmra.mrb[0].mxu0 %v7958
    %v8391 = vpop.f32.mrb[0].mxu0
    %v8392 = vadd.f32 0.0, %v8391
    %v8393 = vpop.f32.mrb[0].mxu0
    %v8394 = vadd.f32 0.0, %v8393
    %8395 = vdwg.mxu0
    %8396 = vmatprep.subr.mxu0 0.0
    %8397 = vmatpush1.xpose.msra.mxu0 %v8153
    %8398 = vmatprep.subr.mxu0 0.0
    %8399 = vmatpush1.xpose.msra.mxu0 %v8156
    %8400 = vmatprep.subr.mxu0 0.0
    %8401 = vmatpush1.xpose.msra.mxu0 %v8159
    %8402 = vmatprep.subr.mxu0 0.0
    %8403 = vmatpush1.xpose.msra.mxu0 %v8162
    %8404 = vmatprep.subr.mxu0 0.0
    %8405 = vmatpush1.xpose.msra.mxu0 %v8165
    %8406 = vmatprep.subr.mxu0 0.0
    %8407 = vmatpush1.xpose.msra.mxu0 %v8168
    %8408 = vmatprep.subr.mxu0 0.0
    %8409 = vmatpush1.xpose.msra.mxu0 %v8171
    %8410 = vmatprep.subr.mxu0 0.0
    %8411 = vmatpush1.xpose.msra.mxu0 %v8174
    %8412 = vmatprep.subr.mxu0 0.0
    %8413 = vmatpush1.xpose.msra.mxu0 %v8177
    %8414 = vmatprep.subr.mxu0 0.0
    %8415 = vmatpush1.xpose.msra.mxu0 %v8180
    %8416 = vmatprep.subr.mxu0 0.0
    %8417 = vmatpush1.xpose.msra.mxu0 %v8183
    %8418 = vmatprep.subr.mxu0 0.0
    %8419 = vmatpush1.xpose.msra.mxu0 %v8186
    %8420 = vmatprep.subr.mxu0 0.0
    %8421 = vmatpush1.xpose.msra.mxu0 %v8189
    %8422 = vmatprep.subr.mxu0 0.0
    %8423 = vmatpush1.xpose.msra.mxu0 %v8192
    %8424 = vmatprep.subr.mxu0 0.0
    %8425 = vmatpush1.xpose.msra.mxu0 %v8195
    %8426 = vmatprep.subr.mxu0 0.0
    %8427 = vmatpush1.xpose.msra.mxu0 %v8198
    %8428 = vmatprep.subr.mxu0 0.0
    %8429 = vmatpush1.xpose.msra.mxu0 %v8201
    %8430 = vmatprep.subr.mxu0 0.0
    %8431 = vmatpush1.xpose.msra.mxu0 %v8204
    %8432 = vmatprep.subr.mxu0 0.0
    %8433 = vmatpush1.xpose.msra.mxu0 %v8207
    %8434 = vmatprep.subr.mxu0 0.0
    %8435 = vmatpush1.xpose.msra.mxu0 %v8210
    %8436 = vmatprep.subr.mxu0 0.0
    %8437 = vmatpush1.xpose.msra.mxu0 %v8213
    %8438 = vmatprep.subr.mxu0 0.0
    %8439 = vmatpush1.xpose.msra.mxu0 %v8216
    %8440 = vmatprep.subr.mxu0 0.0
    %8441 = vmatpush1.xpose.msra.mxu0 %v8219
    %8442 = vmatprep.subr.mxu0 0.0
    %8443 = vmatpush1.xpose.msra.mxu0 %v8222
    %8444 = vmatprep.subr.mxu0 0.0
    %8445 = vmatpush1.xpose.msra.mxu0 %v8225
    %8446 = vmatprep.subr.mxu0 0.0
    %8447 = vmatpush1.xpose.msra.mxu0 %v8228
    %8448 = vmatprep.subr.mxu0 0.0
    %8449 = vmatpush1.xpose.msra.mxu0 %v8231
    %8450 = vmatprep.subr.mxu0 0.0
    %8451 = vmatpush1.xpose.msra.mxu0 %v8234
    %8452 = vmatprep.subr.mxu0 0.0
    %8453 = vmatpush1.xpose.msra.mxu0 %v8237
    %8454 = vmatprep.subr.mxu0 0.0
    %8455 = vmatpush1.xpose.msra.mxu0 %v8240
    %8456 = vmatprep.subr.mxu0 0.0
    %8457 = vmatpush1.xpose.msra.mxu0 %v8243
    %8458 = vmatprep.subr.mxu0 0.0
    %8459 = vmatpush1.xpose.msra.mxu0 %v8246
    %8460 = vmatprep.mubr.f32.mxu0 0.0
    %8461 = vmatmul.mubr.f32.gmra.mrb[0].mxu0 %v7958
    %v8462 = vpop.f32.mrb[0].mxu0
    %v8463 = vadd.f32 0.0, %v8462
    %v8464 = vpop.f32.mrb[0].mxu0
    %v8465 = vadd.f32 0.0, %v8464
    %8466 = vdwg.mxu0
    %8467 = vmatprep.subr.mxu0 0.0
    %8468 = vmatpush1.xpose.msra.mxu0 %v8249
    %8469 = vmatprep.subr.mxu0 0.0
    %8470 = vmatpush1.xpose.msra.mxu0 %v8252
    %8471 = vmatprep.subr.mxu0 0.0
    %8472 = vmatpush1.xpose.msra.mxu0 0.0
    %8473 = vmatprep.subr.mxu0 0.0
    %8474 = vmatpush1.xpose.msra.mxu0 0.0
    %8475 = vmatprep.subr.mxu0 0.0
    %8476 = vmatpush1.xpose.msra.mxu0 0.0
    %8477 = vmatprep.subr.mxu0 0.0
    %8478 = vmatpush1.xpose.msra.mxu0 0.0
    %8479 = vmatprep.subr.mxu0 0.0
    %8480 = vmatpush1.xpose.msra.mxu0 0.0
    %8481 = vmatprep.subr.mxu0 0.0
    %8482 = vmatpush1.xpose.msra.mxu0 0.0
    %8483 = vmatprep.subr.mxu0 0.0
    %8484 = vmatpush1.xpose.msra.mxu0 0.0
    %8485 = vmatprep.subr.mxu0 0.0
    %8486 = vmatpush1.xpose.msra.mxu0 0.0
    %8487 = vmatprep.subr.mxu0 0.0
    %8488 = vmatpush1.xpose.msra.mxu0 0.0
    %8489 = vmatprep.subr.mxu0 0.0
    %8490 = vmatpush1.xpose.msra.mxu0 0.0
    %8491 = vmatprep.subr.mxu0 0.0
    %8492 = vmatpush1.xpose.msra.mxu0 0.0
    %8493 = vmatprep.subr.mxu0 0.0
    %8494 = vmatpush1.xpose.msra.mxu0 0.0
    %8495 = vmatprep.subr.mxu0 0.0
    %8496 = vmatpush1.xpose.msra.mxu0 0.0
    %8497 = vmatprep.subr.mxu0 0.0
    %8498 = vmatpush1.xpose.msra.mxu0 0.0
    %8499 = vmatprep.subr.mxu0 0.0
    %8500 = vmatpush1.xpose.msra.mxu0 0.0
    %8501 = vmatprep.subr.mxu0 0.0
    %8502 = vmatpush1.xpose.msra.mxu0 0.0
    %8503 = vmatprep.subr.mxu0 0.0
    %8504 = vmatpush1.xpose.msra.mxu0 0.0
    %8505 = vmatprep.subr.mxu0 0.0
    %8506 = vmatpush1.xpose.msra.mxu0 0.0
    %8507 = vmatprep.subr.mxu0 0.0
    %8508 = vmatpush1.xpose.msra.mxu0 0.0
    %8509 = vmatprep.subr.mxu0 0.0
    %8510 = vmatpush1.xpose.msra.mxu0 0.0
    %8511 = vmatprep.subr.mxu0 0.0
    %8512 = vmatpush1.xpose.msra.mxu0 0.0
    %8513 = vmatprep.subr.mxu0 0.0
    %8514 = vmatpush1.xpose.msra.mxu0 0.0
    %8515 = vmatprep.subr.mxu0 0.0
    %8516 = vmatpush1.xpose.msra.mxu0 0.0
    %8517 = vmatprep.subr.mxu0 0.0
    %8518 = vmatpush1.xpose.msra.mxu0 0.0
    %8519 = vmatprep.subr.mxu0 0.0
    %8520 = vmatpush1.xpose.msra.mxu0 0.0
    %8521 = vmatprep.subr.mxu0 0.0
    %8522 = vmatpush1.xpose.msra.mxu0 0.0
    %8523 = vmatprep.subr.mxu0 0.0
    %8524 = vmatpush1.xpose.msra.mxu0 0.0
    %8525 = vmatprep.subr.mxu0 0.0
    %8526 = vmatpush1.xpose.msra.mxu0 0.0
    %8527 = vmatprep.subr.mxu0 0.0
    %8528 = vmatpush1.xpose.msra.mxu0 0.0
    %8529 = vmatprep.subr.mxu0 0.0
    %8530 = vmatpush1.xpose.msra.mxu0 0.0
    %8531 = vmatprep.mubr.f32.mxu0 0.0
    %8532 = vmatmul.mubr.f32.gmra.mrb[0].mxu0 %v7958
    %v8533 = vpop.f32.mrb[0].mxu0
    %v8534 = vadd.f32 0.0, %v8533
    %v8535 = vpop.f32.mrb[0].mxu0
    %8536 = vdwg.mxu0
    %v8537 = vpack.c.bf16 %v8321, %v8321
    %v8538 = vpack.c.bf16 %v8323, %v8323
    %v8539 = vpack.c.bf16 %v8392, %v8392
    %v8540 = vpack.c.bf16 %v8394, %v8394
    %v8541 = vpack.c.bf16 %v8463, %v8463
    %v8542 = vpack.c.bf16 %v8465, %v8465
    %v8543 = vpack.c.bf16 %v8534, %v8534
    %v8544 = vld [vmem:[%s10] sm:$0xff]
    %v8545 = vld [vmem:[%s10 + $0x8] sm:$0xff]
    %v8546 = vld [vmem:[%s10 + $0x10] sm:$0xff]
    %v8547 = vld [vmem:[%s10 + $0x18] sm:$0xff]
    %v8548 = vld [vmem:[%s10 + $0x20] sm:$0xff]
    %v8549 = vld [vmem:[%s10 + $0x28] sm:$0xff]
    %v8550 = vld [vmem:[%s10 + $0x30] sm:$0xff]
    %v8551 = vld [vmem:[%s10 + $0x38] sm:$0xff]
    %v8552 = vld [vmem:[%s10 + $0x40] sm:$0xff]
    %v8553 = vld [vmem:[%s10 + $0x48] sm:$0xff]
    %v8554 = vld [vmem:[%s10 + $0x50] sm:$0xff]
    %v8555 = vld [vmem:[%s10 + $0x58] sm:$0xff]
    %v8556 = vld [vmem:[%s10 + $0x60] sm:$0xff]
    %v8557 = vld [vmem:[%s10 + $0x68] sm:$0xff]
    %v8558 = vld [vmem:[%s10 + $0x70] sm:$0xff]
    %v8559 = vld [vmem:[%s10 + $0x78] sm:$0xff]
    %v8560 = vld [vmem:[%s10 + $0x80] sm:$0xff]
    %v8561 = vld [vmem:[%s10 + $0x88] sm:$0xff]
    %v8562 = vld [vmem:[%s10 + $0x90] sm:$0xff]
    %v8563 = vld [vmem:[%s10 + $0x98] sm:$0xff]
    %v8564 = vld [vmem:[%s10 + $0xa0] sm:$0xff]
    %v8565 = vld [vmem:[%s10 + $0xa8] sm:$0xff]
    %v8566 = vld [vmem:[%s10 + $0xb0] sm:$0xff]
    %v8567 = vld [vmem:[%s10 + $0xb8] sm:$0xff]
    %v8568 = vld [vmem:[%s10 + $0xc0] sm:$0xff]
    %v8569 = vld [vmem:[%s10 + $0xc8] sm:$0xff]
    %v8570 = vld [vmem:[%s10 + $0xd0] sm:$0xff]
    %v8571 = vld [vmem:[%s10 + $0xd8] sm:$0xff]
    %v8572 = vld [vmem:[%s10 + $0xe0] sm:$0xff]
    %v8573 = vld [vmem:[%s10 + $0xe8] sm:$0xff]
    %v8574 = vld [vmem:[%s10 + $0xf0] sm:$0xff]
    %v8575 = vld [vmem:[%s10 + $0xf8] sm:$0xff]
    %v8576 = vld [vmem:[%s10 + $0x100] sm:$0xff]
    %v8577 = vld [vmem:[%s10 + $0x108] sm:$0xff]
    %v8578 = vld [vmem:[%s10 + $0x110] sm:$0xff]
    %v8579 = vld [vmem:[%s10 + $0x118] sm:$0xff]
    %v8580 = vld [vmem:[%s10 + $0x120] sm:$0xff]
    %v8581 = vld [vmem:[%s10 + $0x128] sm:$0xff]
    %v8582 = vld [vmem:[%s10 + $0x130] sm:$0xff]
    %v8583 = vld [vmem:[%s10 + $0x138] sm:$0xff]
    %v8584 = vld [vmem:[%s10 + $0x140] sm:$0xff]
    %v8585 = vld [vmem:[%s10 + $0x148] sm:$0xff]
    %v8586 = vld [vmem:[%s10 + $0x150] sm:$0xff]
    %v8587 = vld [vmem:[%s10 + $0x158] sm:$0xff]
    %v8588 = vld [vmem:[%s10 + $0x160] sm:$0xff]
    %v8589 = vld [vmem:[%s10 + $0x168] sm:$0xff]
    %v8590 = vld [vmem:[%s10 + $0x170] sm:$0xff]
    %v8591 = vld [vmem:[%s10 + $0x178] sm:$0xff]
    %v8592 = vld [vmem:[%s10 + $0x180] sm:$0xff]
    %v8593 = vld [vmem:[%s10 + $0x188] sm:$0xff]
    %v8594 = vld [vmem:[%s10 + $0x190] sm:$0xff]
    %v8595 = vld [vmem:[%s10 + $0x198] sm:$0xff]
    %v8596 = vld [vmem:[%s10 + $0x1a0] sm:$0xff]
    %v8597 = vld [vmem:[%s10 + $0x1a8] sm:$0xff]
    %v8598 = vld [vmem:[%s10 + $0x1b0] sm:$0xff]
    %v8599 = vld [vmem:[%s10 + $0x1b8] sm:$0xff]
    %v8600 = vld [vmem:[%s10 + $0x1c0] sm:$0xff]
    %v8601 = vld [vmem:[%s10 + $0x1c8] sm:$0xff]
    %v8602 = vld [vmem:[%s10 + $0x1d0] sm:$0xff]
    %v8603 = vld [vmem:[%s10 + $0x1d8] sm:$0xff]
    %v8604 = vld [vmem:[%s10 + $0x1e0] sm:$0xff]
    %v8605 = vld [vmem:[%s10 + $0x1e8] sm:$0xff]
    %v8606 = vld [vmem:[%s10 + $0x1f0] sm:$0xff]
    %v8607 = vld [vmem:[%s10 + $0x1f8] sm:$0xff]
    %v8608 = vld [vmem:[%s10 + $0x200] sm:$0xff]
    %v8609 = vld [vmem:[%s10 + $0x208] sm:$0xff]
    %v8610 = vld [vmem:[%s10 + $0x210] sm:$0xff]
    %v8611 = vld [vmem:[%s10 + $0x218] sm:$0xff]
    %v8612 = vld [vmem:[%s10 + $0x220] sm:$0xff]
    %v8613 = vld [vmem:[%s10 + $0x228] sm:$0xff]
    %v8614 = vld [vmem:[%s10 + $0x230] sm:$0xff]
    %v8615 = vld [vmem:[%s10 + $0x238] sm:$0xff]
    %v8616 = vld [vmem:[%s10 + $0x240] sm:$0xff]
    %v8617 = vld [vmem:[%s10 + $0x248] sm:$0xff]
    %v8618 = vld [vmem:[%s10 + $0x250] sm:$0xff]
    %v8619 = vld [vmem:[%s10 + $0x258] sm:$0xff]
    %v8620 = vld [vmem:[%s10 + $0x260] sm:$0xff]
    %v8621 = vld [vmem:[%s10 + $0x268] sm:$0xff]
    %v8622 = vld [vmem:[%s10 + $0x270] sm:$0xff]
    %v8623 = vld [vmem:[%s10 + $0x278] sm:$0xff]
    %v8624 = vld [vmem:[%s10 + $0x280] sm:$0xff]
    %v8625 = vld [vmem:[%s10 + $0x288] sm:$0xff]
    %v8626 = vld [vmem:[%s10 + $0x290] sm:$0xff]
    %v8627 = vld [vmem:[%s10 + $0x298] sm:$0xff]
    %v8628 = vld [vmem:[%s10 + $0x2a0] sm:$0xff]
    %v8629 = vld [vmem:[%s10 + $0x2a8] sm:$0xff]
    %v8630 = vld [vmem:[%s10 + $0x2b0] sm:$0xff]
    %v8631 = vld [vmem:[%s10 + $0x2b8] sm:$0xff]
    %v8632 = vld [vmem:[%s10 + $0x2c0] sm:$0xff]
    %v8633 = vld [vmem:[%s10 + $0x2c8] sm:$0xff]
    %v8634 = vld [vmem:[%s10 + $0x2d0] sm:$0xff]
    %v8635 = vld [vmem:[%s10 + $0x2d8] sm:$0xff]
    %v8636 = vld [vmem:[%s10 + $0x2e0] sm:$0xff]
    %v8637 = vld [vmem:[%s10 + $0x2e8] sm:$0xff]
    %v8638 = vld [vmem:[%s10 + $0x2f0] sm:$0xff]
    %v8639 = vld [vmem:[%s10 + $0x2f8] sm:$0xff]
    %v8640 = vld [vmem:[%s10 + $0x300] sm:$0xff]
    %v8641 = vld [vmem:[%s10 + $0x308] sm:$0xff]
    %v8642 = vld [vmem:[%s10 + $0x310] sm:$0xff]
    %v8643 = vld [vmem:[%s10 + $0x318] sm:$0xff]
    %v8644 = vld [vmem:[%s10 + $0x320] sm:$0xff]
    %v8645 = vld [vmem:[%s10 + $0x328] sm:$0xff]
    %v8646 = vld [vmem:[%s10 + $0x330] sm:$0xff]
    %v8647 = vld [vmem:[%s10 + $0x338] sm:$0xff]
    %v8648 = vld [vmem:[%s10 + $0x340] sm:$0xff]
    %v8649 = vld [vmem:[%s10 + $0x348] sm:$0xff]
    %v8650 = vld [vmem:[%s10 + $0x350] sm:$0xff]
    %v8651 = vld [vmem:[%s10 + $0x358] sm:$0xff]
    %v8652 = vld [vmem:[%s10 + $0x360] sm:$0xff]
    %v8653 = vld [vmem:[%s10 + $0x368] sm:$0xff]
    %v8654 = vld [vmem:[%s10 + $0x370] sm:$0xff]
    %v8655 = vld [vmem:[%s10 + $0x378] sm:$0xff]
    %v8656 = vld [vmem:[%s10 + $0x380] sm:$0xff]
    %v8657 = vld [vmem:[%s10 + $0x388] sm:$0xff]
    %v8658 = vld [vmem:[%s10 + $0x390] sm:$0xff]
    %v8659 = vld [vmem:[%s10 + $0x398] sm:$0xff]
    %v8660 = vld [vmem:[%s10 + $0x3a0] sm:$0xff]
    %v8661 = vld [vmem:[%s10 + $0x3a8] sm:$0xff]
    %v8662 = vld [vmem:[%s10 + $0x3b0] sm:$0xff]
    %v8663 = vld [vmem:[%s10 + $0x3b8] sm:$0xff]
    %v8664 = vld [vmem:[%s10 + $0x3c0] sm:$0xff]
    %v8665 = vld [vmem:[%s10 + $0x3c8] sm:$0xff]
    %v8666 = vld [vmem:[%s10 + $0x3d0] sm:$0xff]
    %v8667 = vld [vmem:[%s10 + $0x3d8] sm:$0xff]
    %v8668 = vld [vmem:[%s10 + $0x3e0] sm:$0xff]
    %v8669 = vld [vmem:[%s10 + $0x3e8] sm:$0xff]
    %v8670 = vld [vmem:[%s10 + $0x3f0] sm:$0xff]
    %v8671 = vld [vmem:[%s10 + $0x3f8] sm:$0xff]
    %v8672 = vld [vmem:[%s10 + $0x400] sm:$0xff]
    %v8673 = vld [vmem:[%s10 + $0x408] sm:$0xff]
    %v8674 = vld [vmem:[%s10 + $0x410] sm:$0xff]
    %v8675 = vld [vmem:[%s10 + $0x418] sm:$0xff]
    %v8676 = vld [vmem:[%s10 + $0x420] sm:$0xff]
    %v8677 = vld [vmem:[%s10 + $0x428] sm:$0xff]
    %v8678 = vld [vmem:[%s10 + $0x430] sm:$0xff]
    %v8679 = vld [vmem:[%s10 + $0x438] sm:$0xff]
    %v8680 = vld [vmem:[%s10 + $0x440] sm:$0xff]
    %v8681 = vld [vmem:[%s10 + $0x448] sm:$0xff]
    %v8682 = vld [vmem:[%s10 + $0x450] sm:$0xff]
    %v8683 = vld [vmem:[%s10 + $0x458] sm:$0xff]
    %v8684 = vld [vmem:[%s10 + $0x460] sm:$0xff]
    %v8685 = vld [vmem:[%s10 + $0x468] sm:$0xff]
    %v8686 = vld [vmem:[%s10 + $0x470] sm:$0xff]
    %v8687 = vld [vmem:[%s10 + $0x478] sm:$0xff]
    %v8688 = vld [vmem:[%s10 + $0x480] sm:$0xff]
    %v8689 = vld [vmem:[%s10 + $0x488] sm:$0xff]
    %v8690 = vld [vmem:[%s10 + $0x490] sm:$0xff]
    %v8691 = vld [vmem:[%s10 + $0x498] sm:$0xff]
    %v8692 = vld [vmem:[%s10 + $0x4a0] sm:$0xff]
    %v8693 = vld [vmem:[%s10 + $0x4a8] sm:$0xff]
    %v8694 = vld [vmem:[%s10 + $0x4b0] sm:$0xff]
    %v8695 = vld [vmem:[%s10 + $0x4b8] sm:$0xff]
    %v8696 = vld [vmem:[%s10 + $0x4c0] sm:$0xff]
    %v8697 = vld [vmem:[%s10 + $0x4c8] sm:$0xff]
    %v8698 = vld [vmem:[%s10 + $0x4d0] sm:$0xff]
    %v8699 = vld [vmem:[%s10 + $0x4d8] sm:$0xff]
    %v8700 = vld [vmem:[%s10 + $0x4e0] sm:$0xff]
    %v8701 = vld [vmem:[%s10 + $0x4e8] sm:$0xff]
    %v8702 = vld [vmem:[%s10 + $0x4f0] sm:$0xff]
    %v8703 = vld [vmem:[%s10 + $0x4f8] sm:$0xff]
    %v8704 = vld [vmem:[%s10 + $0x500] sm:$0xff]
    %v8705 = vld [vmem:[%s10 + $0x508] sm:$0xff]
    %v8706 = vld [vmem:[%s10 + $0x510] sm:$0xff]
    %v8707 = vld [vmem:[%s10 + $0x518] sm:$0xff]
    %v8708 = vld [vmem:[%s10 + $0x520] sm:$0xff]
    %v8709 = vld [vmem:[%s10 + $0x528] sm:$0xff]
    %v8710 = vld [vmem:[%s10 + $0x530] sm:$0xff]
    %v8711 = vld [vmem:[%s10 + $0x538] sm:$0xff]
    %v8712 = vld [vmem:[%s10 + $0x540] sm:$0xff]
    %v8713 = vld [vmem:[%s10 + $0x548] sm:$0xff]
    %v8714 = vld [vmem:[%s10 + $0x550] sm:$0xff]
    %v8715 = vld [vmem:[%s10 + $0x558] sm:$0xff]
    %v8716 = vld [vmem:[%s10 + $0x560] sm:$0xff]
    %v8717 = vld [vmem:[%s10 + $0x568] sm:$0xff]
    %v8718 = vld [vmem:[%s10 + $0x570] sm:$0xff]
    %v8719 = vld [vmem:[%s10 + $0x578] sm:$0xff]
    %v8720 = vld [vmem:[%s10 + $0x580] sm:$0xff]
    %v8721 = vld [vmem:[%s10 + $0x588] sm:$0xff]
    %v8722 = vld [vmem:[%s10 + $0x590] sm:$0xff]
    %v8723 = vld [vmem:[%s10 + $0x598] sm:$0xff]
    %v8724 = vld [vmem:[%s10 + $0x5a0] sm:$0xff]
    %v8725 = vld [vmem:[%s10 + $0x5a8] sm:$0xff]
    %v8726 = vld [vmem:[%s10 + $0x5b0] sm:$0xff]
    %v8727 = vld [vmem:[%s10 + $0x5b8] sm:$0xff]
    %v8728 = vld [vmem:[%s10 + $0x5c0] sm:$0xff]
    %v8729 = vld [vmem:[%s10 + $0x5c8] sm:$0xff]
    %v8730 = vld [vmem:[%s10 + $0x5d0] sm:$0xff]
    %v8731 = vld [vmem:[%s10 + $0x5d8] sm:$0xff]
    %v8732 = vld [vmem:[%s10 + $0x5e0] sm:$0xff]
    %v8733 = vld [vmem:[%s10 + $0x5e8] sm:$0xff]
    %v8734 = vld [vmem:[%s10 + $0x5f0] sm:$0xff]
    %v8735 = vld [vmem:[%s10 + $0x5f8] sm:$0xff]
    %v8736 = vld [vmem:[%s10 + $0x600] sm:$0xff]
    %v8737 = vld [vmem:[%s10 + $0x608] sm:$0xff]
    %v8738 = vld [vmem:[%s10 + $0x610] sm:$0xff]
    %v8739 = vld [vmem:[%s10 + $0x618] sm:$0xff]
    %v8740 = vld [vmem:[%s11] sm:$0xf]
    %v8742 = vlaneseq
    %v8743 = vshrl.u32 %v8742, 7
    %v8744 = vsub.s32 0, %v8743
    %v8745 = vrot.slane %v8740, %v8744
    %v8746 = vlaneseq
    %v8747 = vshrl.u32 %v8746, 7
    %v8748 = vsub.s32 1, %v8747
    %v8749 = vrot.slane %v8740, %v8748
    %v8750 = vlaneseq
    %v8751 = vshrl.u32 %v8750, 7
    %v8752 = vsub.s32 2, %v8751
    %v8753 = vrot.slane %v8740, %v8752
    %v8754 = vlaneseq
    %v8755 = vshrl.u32 %v8754, 7
    %v8756 = vsub.s32 3, %v8755
    %v8757 = vrot.slane %v8740, %v8756
    %v8958 = vunpack.c.l.b16 %v8544
    %v8959 = vunpack.c.h.b16 %v8544
    %v8960 = vunpack.c.l.b16 %v8545
    %v8961 = vunpack.c.h.b16 %v8545
    %v8962 = vunpack.c.l.b16 %v8546
    %v8963 = vunpack.c.h.b16 %v8546
    %v8964 = vunpack.c.l.b16 %v8547
    %v8965 = vunpack.c.h.b16 %v8547
    %v8966 = vunpack.c.l.b16 %v8548
    %v8967 = vunpack.c.h.b16 %v8548
    %v8968 = vunpack.c.l.b16 %v8549
    %v8969 = vunpack.c.h.b16 %v8549
    %v8970 = vunpack.c.l.b16 %v8550
    %v8971 = vunpack.c.h.b16 %v8550
    %v8972 = vunpack.c.l.b16 %v8551
    %v8973 = vunpack.c.h.b16 %v8551
    %v8974 = vunpack.c.l.b16 %v8552
    %v8975 = vunpack.c.h.b16 %v8552
    %v8976 = vunpack.c.l.b16 %v8553
    %v8977 = vunpack.c.h.b16 %v8553
    %v8978 = vunpack.c.l.b16 %v8554
    %v8979 = vunpack.c.h.b16 %v8554
    %v8980 = vunpack.c.l.b16 %v8555
    %v8981 = vunpack.c.h.b16 %v8555
    %v8982 = vunpack.c.l.b16 %v8556
    %v8983 = vunpack.c.h.b16 %v8556
    %v8984 = vunpack.c.l.b16 %v8557
    %v8985 = vunpack.c.h.b16 %v8557
    %v8986 = vunpack.c.l.b16 %v8558
    %v8987 = vunpack.c.h.b16 %v8558
    %v8988 = vunpack.c.l.b16 %v8559
    %v8989 = vunpack.c.h.b16 %v8559
    %v8990 = vunpack.c.l.b16 %v8560
    %v8991 = vunpack.c.h.b16 %v8560
    %v8992 = vunpack.c.l.b16 %v8561
    %v8993 = vunpack.c.h.b16 %v8561
    %v8994 = vunpack.c.l.b16 %v8562
    %v8995 = vunpack.c.h.b16 %v8562
    %v8996 = vunpack.c.l.b16 %v8563
    %v8997 = vunpack.c.h.b16 %v8563
    %v8998 = vunpack.c.l.b16 %v8564
    %v8999 = vunpack.c.h.b16 %v8564
    %v9000 = vunpack.c.l.b16 %v8565
    %v9001 = vunpack.c.h.b16 %v8565
    %v9002 = vunpack.c.l.b16 %v8566
    %v9003 = vunpack.c.h.b16 %v8566
    %v9004 = vunpack.c.l.b16 %v8567
    %v9005 = vunpack.c.h.b16 %v8567
    %v9006 = vunpack.c.l.b16 %v8568
    %v9007 = vunpack.c.h.b16 %v8568
    %v9008 = vunpack.c.l.b16 %v8569
    %v9009 = vunpack.c.h.b16 %v8569
    %v9010 = vunpack.c.l.b16 %v8570
    %v9011 = vunpack.c.h.b16 %v8570
    %v9012 = vunpack.c.l.b16 %v8571
    %v9013 = vunpack.c.h.b16 %v8571
    %v9014 = vunpack.c.l.b16 %v8572
    %v9015 = vunpack.c.h.b16 %v8572
    %v9016 = vunpack.c.l.b16 %v8573
    %v9017 = vunpack.c.h.b16 %v8573
    %v9018 = vunpack.c.l.b16 %v8574
    %v9019 = vunpack.c.h.b16 %v8574
    %v9020 = vunpack.c.l.b16 %v8575
    %v9021 = vunpack.c.h.b16 %v8575
    %v9022 = vunpack.c.l.b16 %v8576
    %v9023 = vunpack.c.h.b16 %v8576
    %v9024 = vunpack.c.l.b16 %v8577
    %v9025 = vunpack.c.h.b16 %v8577
    %v9026 = vunpack.c.l.b16 %v8578
    %v9027 = vunpack.c.h.b16 %v8578
    %v9028 = vunpack.c.l.b16 %v8579
    %v9029 = vunpack.c.h.b16 %v8579
    %v9030 = vunpack.c.l.b16 %v8580
    %v9031 = vunpack.c.h.b16 %v8580
    %v9032 = vunpack.c.l.b16 %v8581
    %v9033 = vunpack.c.h.b16 %v8581
    %v9034 = vunpack.c.l.b16 %v8582
    %v9035 = vunpack.c.h.b16 %v8582
    %v9036 = vunpack.c.l.b16 %v8583
    %v9037 = vunpack.c.h.b16 %v8583
    %v9038 = vunpack.c.l.b16 %v8584
    %v9039 = vunpack.c.h.b16 %v8584
    %v9040 = vunpack.c.l.b16 %v8585
    %v9041 = vunpack.c.h.b16 %v8585
    %v9042 = vunpack.c.l.b16 %v8586
    %v9043 = vunpack.c.h.b16 %v8586
    %v9044 = vunpack.c.l.b16 %v8587
    %v9045 = vunpack.c.h.b16 %v8587
    %v9046 = vunpack.c.l.b16 %v8588
    %v9047 = vunpack.c.h.b16 %v8588
    %v9048 = vunpack.c.l.b16 %v8589
    %v9049 = vunpack.c.h.b16 %v8589
    %v9050 = vunpack.c.l.b16 %v8590
    %v9051 = vunpack.c.h.b16 %v8590
    %v9052 = vunpack.c.l.b16 %v8591
    %v9053 = vunpack.c.h.b16 %v8591
    %v9054 = vunpack.c.l.b16 %v8592
    %v9055 = vunpack.c.h.b16 %v8592
    %v9056 = vunpack.c.l.b16 %v8593
    %v9057 = vunpack.c.h.b16 %v8593
    %v9058 = vunpack.c.l.b16 %v8594
    %v9059 = vunpack.c.h.b16 %v8594
    %v9060 = vunpack.c.l.b16 %v8595
    %v9061 = vunpack.c.h.b16 %v8595
    %v9062 = vunpack.c.l.b16 %v8596
    %v9063 = vunpack.c.h.b16 %v8596
    %v9064 = vunpack.c.l.b16 %v8597
    %v9065 = vunpack.c.h.b16 %v8597
    %v9066 = vunpack.c.l.b16 %v8598
    %v9067 = vunpack.c.h.b16 %v8598
    %v9068 = vunpack.c.l.b16 %v8599
    %v9069 = vunpack.c.h.b16 %v8599
    %v9070 = vunpack.c.l.b16 %v8600
    %v9071 = vunpack.c.h.b16 %v8600
    %v9072 = vunpack.c.l.b16 %v8601
    %v9073 = vunpack.c.h.b16 %v8601
    %v9074 = vunpack.c.l.b16 %v8602
    %v9075 = vunpack.c.h.b16 %v8602
    %v9076 = vunpack.c.l.b16 %v8603
    %v9077 = vunpack.c.h.b16 %v8603
    %v9078 = vunpack.c.l.b16 %v8604
    %v9079 = vunpack.c.h.b16 %v8604
    %v9080 = vunpack.c.l.b16 %v8605
    %v9081 = vunpack.c.h.b16 %v8605
    %v9082 = vunpack.c.l.b16 %v8606
    %v9083 = vunpack.c.h.b16 %v8606
    %v9084 = vunpack.c.l.b16 %v8607
    %v9085 = vunpack.c.h.b16 %v8607
    %v9086 = vunpack.c.l.b16 %v8608
    %v9087 = vunpack.c.h.b16 %v8608
    %v9088 = vunpack.c.l.b16 %v8609
    %v9089 = vunpack.c.h.b16 %v8609
    %v9090 = vunpack.c.l.b16 %v8610
    %v9091 = vunpack.c.h.b16 %v8610
    %v9092 = vunpack.c.l.b16 %v8611
    %v9093 = vunpack.c.h.b16 %v8611
    %v9094 = vunpack.c.l.b16 %v8612
    %v9095 = vunpack.c.h.b16 %v8612
    %v9096 = vunpack.c.l.b16 %v8613
    %v9097 = vunpack.c.h.b16 %v8613
    %v9098 = vunpack.c.l.b16 %v8614
    %v9099 = vunpack.c.h.b16 %v8614
    %v9100 = vunpack.c.l.b16 %v8615
    %v9101 = vunpack.c.h.b16 %v8615
    %v9102 = vunpack.c.l.b16 %v8616
    %v9103 = vunpack.c.h.b16 %v8616
    %v9104 = vunpack.c.l.b16 %v8617
    %v9105 = vunpack.c.h.b16 %v8617
    %v9106 = vunpack.c.l.b16 %v8618
    %v9107 = vunpack.c.h.b16 %v8618
    %v9108 = vunpack.c.l.b16 %v8619
    %v9109 = vunpack.c.h.b16 %v8619
    %v9110 = vunpack.c.l.b16 %v8620
    %v9111 = vunpack.c.h.b16 %v8620
    %v9112 = vunpack.c.l.b16 %v8621
    %v9113 = vunpack.c.h.b16 %v8621
    %v9114 = vunpack.c.l.b16 %v8622
    %v9115 = vunpack.c.h.b16 %v8622
    %v9116 = vunpack.c.l.b16 %v8623
    %v9117 = vunpack.c.h.b16 %v8623
    %v9118 = vunpack.c.l.b16 %v8624
    %v9119 = vunpack.c.h.b16 %v8624
    %v9120 = vunpack.c.l.b16 %v8625
    %v9121 = vunpack.c.h.b16 %v8625
    %v9122 = vunpack.c.l.b16 %v8626
    %v9123 = vunpack.c.h.b16 %v8626
    %v9124 = vunpack.c.l.b16 %v8627
    %v9125 = vunpack.c.h.b16 %v8627
    %v9126 = vunpack.c.l.b16 %v8628
    %v9127 = vunpack.c.h.b16 %v8628
    %v9128 = vunpack.c.l.b16 %v8629
    %v9129 = vunpack.c.h.b16 %v8629
    %v9130 = vunpack.c.l.b16 %v8630
    %v9131 = vunpack.c.h.b16 %v8630
    %v9132 = vunpack.c.l.b16 %v8631
    %v9133 = vunpack.c.h.b16 %v8631
    %v9134 = vunpack.c.l.b16 %v8632
    %v9135 = vunpack.c.h.b16 %v8632
    %v9136 = vunpack.c.l.b16 %v8633
    %v9137 = vunpack.c.h.b16 %v8633
    %v9138 = vunpack.c.l.b16 %v8634
    %v9139 = vunpack.c.h.b16 %v8634
    %v9140 = vunpack.c.l.b16 %v8635
    %v9141 = vunpack.c.h.b16 %v8635
    %v9142 = vunpack.c.l.b16 %v8636
    %v9143 = vunpack.c.h.b16 %v8636
    %v9144 = vunpack.c.l.b16 %v8637
    %v9145 = vunpack.c.h.b16 %v8637
    %v9146 = vunpack.c.l.b16 %v8638
    %v9147 = vunpack.c.h.b16 %v8638
    %v9148 = vunpack.c.l.b16 %v8639
    %v9149 = vunpack.c.h.b16 %v8639
    %v9150 = vunpack.c.l.b16 %v8640
    %v9151 = vunpack.c.h.b16 %v8640
    %v9152 = vunpack.c.l.b16 %v8641
    %v9153 = vunpack.c.h.b16 %v8641
    %v9154 = vunpack.c.l.b16 %v8642
    %v9155 = vunpack.c.h.b16 %v8642
    %v9156 = vunpack.c.l.b16 %v8643
    %v9157 = vunpack.c.h.b16 %v8643
    %v9158 = vunpack.c.l.b16 %v8644
    %v9159 = vunpack.c.h.b16 %v8644
    %v9160 = vunpack.c.l.b16 %v8645
    %v9161 = vunpack.c.h.b16 %v8645
    %v9162 = vunpack.c.l.b16 %v8646
    %v9163 = vunpack.c.h.b16 %v8646
    %v9164 = vunpack.c.l.b16 %v8647
    %v9165 = vunpack.c.h.b16 %v8647
    %v9166 = vunpack.c.l.b16 %v8648
    %v9167 = vunpack.c.h.b16 %v8648
    %v9168 = vunpack.c.l.b16 %v8649
    %v9169 = vunpack.c.h.b16 %v8649
    %v9170 = vunpack.c.l.b16 %v8650
    %v9171 = vunpack.c.h.b16 %v8650
    %v9172 = vunpack.c.l.b16 %v8651
    %v9173 = vunpack.c.h.b16 %v8651
    %v9174 = vunpack.c.l.b16 %v8652
    %v9175 = vunpack.c.h.b16 %v8652
    %v9176 = vunpack.c.l.b16 %v8653
    %v9177 = vunpack.c.h.b16 %v8653
    %v9178 = vunpack.c.l.b16 %v8654
    %v9179 = vunpack.c.h.b16 %v8654
    %v9180 = vunpack.c.l.b16 %v8655
    %v9181 = vunpack.c.h.b16 %v8655
    %v9182 = vunpack.c.l.b16 %v8656
    %v9183 = vunpack.c.h.b16 %v8656
    %v9184 = vunpack.c.l.b16 %v8657
    %v9185 = vunpack.c.h.b16 %v8657
    %v9186 = vunpack.c.l.b16 %v8658
    %v9187 = vunpack.c.h.b16 %v8658
    %v9188 = vunpack.c.l.b16 %v8659
    %v9189 = vunpack.c.h.b16 %v8659
    %v9190 = vunpack.c.l.b16 %v8660
    %v9191 = vunpack.c.h.b16 %v8660
    %v9192 = vunpack.c.l.b16 %v8661
    %v9193 = vunpack.c.h.b16 %v8661
    %v9194 = vunpack.c.l.b16 %v8662
    %v9195 = vunpack.c.h.b16 %v8662
    %v9196 = vunpack.c.l.b16 %v8663
    %v9197 = vunpack.c.h.b16 %v8663
    %v9198 = vunpack.c.l.b16 %v8664
    %v9199 = vunpack.c.h.b16 %v8664
    %v9200 = vunpack.c.l.b16 %v8665
    %v9201 = vunpack.c.h.b16 %v8665
    %v9202 = vunpack.c.l.b16 %v8666
    %v9203 = vunpack.c.h.b16 %v8666
    %v9204 = vunpack.c.l.b16 %v8667
    %v9205 = vunpack.c.h.b16 %v8667
    %v9206 = vunpack.c.l.b16 %v8668
    %v9207 = vunpack.c.h.b16 %v8668
    %v9208 = vunpack.c.l.b16 %v8669
    %v9209 = vunpack.c.h.b16 %v8669
    %v9210 = vunpack.c.l.b16 %v8670
    %v9211 = vunpack.c.h.b16 %v8670
    %v9212 = vunpack.c.l.b16 %v8671
    %v9213 = vunpack.c.h.b16 %v8671
    %v9214 = vunpack.c.l.b16 %v8672
    %v9215 = vunpack.c.h.b16 %v8672
    %v9216 = vunpack.c.l.b16 %v8673
    %v9217 = vunpack.c.h.b16 %v8673
    %v9218 = vunpack.c.l.b16 %v8674
    %v9219 = vunpack.c.h.b16 %v8674
    %v9220 = vunpack.c.l.b16 %v8675
    %v9221 = vunpack.c.h.b16 %v8675
    %v9222 = vunpack.c.l.b16 %v8676
    %v9223 = vunpack.c.h.b16 %v8676
    %v9224 = vunpack.c.l.b16 %v8677
    %v9225 = vunpack.c.h.b16 %v8677
    %v9226 = vunpack.c.l.b16 %v8678
    %v9227 = vunpack.c.h.b16 %v8678
    %v9228 = vunpack.c.l.b16 %v8679
    %v9229 = vunpack.c.h.b16 %v8679
    %v9230 = vunpack.c.l.b16 %v8680
    %v9231 = vunpack.c.h.b16 %v8680
    %v9232 = vunpack.c.l.b16 %v8681
    %v9233 = vunpack.c.h.b16 %v8681
    %v9234 = vunpack.c.l.b16 %v8682
    %v9235 = vunpack.c.h.b16 %v8682
    %v9236 = vunpack.c.l.b16 %v8683
    %v9237 = vunpack.c.h.b16 %v8683
    %v9238 = vunpack.c.l.b16 %v8684
    %v9239 = vunpack.c.h.b16 %v8684
    %v9240 = vunpack.c.l.b16 %v8685
    %v9241 = vunpack.c.h.b16 %v8685
    %v9242 = vunpack.c.l.b16 %v8686
    %v9243 = vunpack.c.h.b16 %v8686
    %v9244 = vunpack.c.l.b16 %v8687
    %v9245 = vunpack.c.h.b16 %v8687
    %v9246 = vunpack.c.l.b16 %v8688
    %v9247 = vunpack.c.h.b16 %v8688
    %v9248 = vunpack.c.l.b16 %v8689
    %v9249 = vunpack.c.h.b16 %v8689
    %v9250 = vunpack.c.l.b16 %v8690
    %v9251 = vunpack.c.h.b16 %v8690
    %v9252 = vunpack.c.l.b16 %v8691
    %v9253 = vunpack.c.h.b16 %v8691
    %v9254 = vunpack.c.l.b16 %v8692
    %v9255 = vunpack.c.h.b16 %v8692
    %v9256 = vunpack.c.l.b16 %v8693
    %v9257 = vunpack.c.h.b16 %v8693
    %v9258 = vunpack.c.l.b16 %v8694
    %v9259 = vunpack.c.h.b16 %v8694
    %v9260 = vunpack.c.l.b16 %v8695
    %v9261 = vunpack.c.h.b16 %v8695
    %v9262 = vunpack.c.l.b16 %v8696
    %v9263 = vunpack.c.h.b16 %v8696
    %v9264 = vunpack.c.l.b16 %v8697
    %v9265 = vunpack.c.h.b16 %v8697
    %v9266 = vunpack.c.l.b16 %v8698
    %v9267 = vunpack.c.h.b16 %v8698
    %v9268 = vunpack.c.l.b16 %v8699
    %v9269 = vunpack.c.h.b16 %v8699
    %v9270 = vunpack.c.l.b16 %v8700
    %v9271 = vunpack.c.h.b16 %v8700
    %v9272 = vunpack.c.l.b16 %v8701
    %v9273 = vunpack.c.h.b16 %v8701
    %v9274 = vunpack.c.l.b16 %v8702
    %v9275 = vunpack.c.h.b16 %v8702
    %v9276 = vunpack.c.l.b16 %v8703
    %v9277 = vunpack.c.h.b16 %v8703
    %v9278 = vunpack.c.l.b16 %v8704
    %v9279 = vunpack.c.h.b16 %v8704
    %v9280 = vunpack.c.l.b16 %v8705
    %v9281 = vunpack.c.h.b16 %v8705
    %v9282 = vunpack.c.l.b16 %v8706
    %v9283 = vunpack.c.h.b16 %v8706
    %v9284 = vunpack.c.l.b16 %v8707
    %v9285 = vunpack.c.h.b16 %v8707
    %v9286 = vunpack.c.l.b16 %v8708
    %v9287 = vunpack.c.h.b16 %v8708
    %v9288 = vunpack.c.l.b16 %v8709
    %v9289 = vunpack.c.h.b16 %v8709
    %v9290 = vunpack.c.l.b16 %v8710
    %v9291 = vunpack.c.h.b16 %v8710
    %v9292 = vunpack.c.l.b16 %v8711
    %v9293 = vunpack.c.h.b16 %v8711
    %v9294 = vunpack.c.l.b16 %v8712
    %v9295 = vunpack.c.h.b16 %v8712
    %v9296 = vunpack.c.l.b16 %v8713
    %v9297 = vunpack.c.h.b16 %v8713
    %v9298 = vunpack.c.l.b16 %v8714
    %v9299 = vunpack.c.h.b16 %v8714
    %v9300 = vunpack.c.l.b16 %v8715
    %v9301 = vunpack.c.h.b16 %v8715
    %v9302 = vunpack.c.l.b16 %v8716
    %v9303 = vunpack.c.h.b16 %v8716
    %v9304 = vunpack.c.l.b16 %v8717
    %v9305 = vunpack.c.h.b16 %v8717
    %v9306 = vunpack.c.l.b16 %v8718
    %v9307 = vunpack.c.h.b16 %v8718
    %v9308 = vunpack.c.l.b16 %v8719
    %v9309 = vunpack.c.h.b16 %v8719
    %v9310 = vunpack.c.l.b16 %v8720
    %v9311 = vunpack.c.h.b16 %v8720
    %v9312 = vunpack.c.l.b16 %v8721
    %v9313 = vunpack.c.h.b16 %v8721
    %v9314 = vunpack.c.l.b16 %v8722
    %v9315 = vunpack.c.h.b16 %v8722
    %v9316 = vunpack.c.l.b16 %v8723
    %v9317 = vunpack.c.h.b16 %v8723
    %v9318 = vunpack.c.l.b16 %v8724
    %v9319 = vunpack.c.h.b16 %v8724
    %v9320 = vunpack.c.l.b16 %v8725
    %v9321 = vunpack.c.h.b16 %v8725
    %v9322 = vunpack.c.l.b16 %v8726
    %v9323 = vunpack.c.h.b16 %v8726
    %v9324 = vunpack.c.l.b16 %v8727
    %v9325 = vunpack.c.h.b16 %v8727
    %v9326 = vunpack.c.l.b16 %v8728
    %v9327 = vunpack.c.h.b16 %v8728
    %v9328 = vunpack.c.l.b16 %v8729
    %v9329 = vunpack.c.h.b16 %v8729
    %v9330 = vunpack.c.l.b16 %v8730
    %v9331 = vunpack.c.h.b16 %v8730
    %v9332 = vunpack.c.l.b16 %v8731
    %v9333 = vunpack.c.h.b16 %v8731
    %v9334 = vunpack.c.l.b16 %v8732
    %v9335 = vunpack.c.h.b16 %v8732
    %v9336 = vunpack.c.l.b16 %v8733
    %v9337 = vunpack.c.h.b16 %v8733
    %v9338 = vunpack.c.l.b16 %v8734
    %v9339 = vunpack.c.h.b16 %v8734
    %v9340 = vunpack.c.l.b16 %v8735
    %v9341 = vunpack.c.h.b16 %v8735
    %v9342 = vunpack.c.l.b16 %v8736
    %v9343 = vunpack.c.h.b16 %v8736
    %v9344 = vunpack.c.l.b16 %v8737
    %v9345 = vunpack.c.h.b16 %v8737
    %v9346 = vunpack.c.l.b16 %v8738
    %v9347 = vunpack.c.h.b16 %v8738
    %v9348 = vunpack.c.l.b16 %v8739
    %v9349 = vunpack.c.h.b16 %v8739
    %v9350 = vpack.c.b16 %v8962, %v8958
    %v9351 = vpack.c.b16 %v8963, %v8959
    %v9352 = vpack.c.b16 %v8964, %v8960
    %v9353 = vpack.c.b16 %v8965, %v8961
    %v9354 = vpack.c.b16 %v8970, %v8966
    %v9355 = vpack.c.b16 %v8971, %v8967
    %v9356 = vpack.c.b16 %v8972, %v8968
    %v9357 = vpack.c.b16 %v8973, %v8969
    %v9358 = vpack.c.b16 %v8978, %v8974
    %v9359 = vpack.c.b16 %v8979, %v8975
    %v9360 = vpack.c.b16 %v8980, %v8976
    %v9361 = vpack.c.b16 %v8981, %v8977
    %v9362 = vpack.c.b16 %v8986, %v8982
    %v9363 = vpack.c.b16 %v8987, %v8983
    %v9364 = vpack.c.b16 %v8988, %v8984
    %v9365 = vpack.c.b16 %v8989, %v8985
    %v9366 = vpack.c.b16 %v8994, %v8990
    %v9367 = vpack.c.b16 %v8995, %v8991
    %v9368 = vpack.c.b16 %v8996, %v8992
    %v9369 = vpack.c.b16 %v8997, %v8993
    %v9370 = vpack.c.b16 %v9002, %v8998
    %v9371 = vpack.c.b16 %v9003, %v8999
    %v9372 = vpack.c.b16 %v9004, %v9000
    %v9373 = vpack.c.b16 %v9005, %v9001
    %v9374 = vpack.c.b16 %v9010, %v9006
    %v9375 = vpack.c.b16 %v9011, %v9007
    %v9376 = vpack.c.b16 %v9012, %v9008
    %v9377 = vpack.c.b16 %v9013, %v9009
    %v9378 = vpack.c.b16 %v9018, %v9014
    %v9379 = vpack.c.b16 %v9019, %v9015
    %v9380 = vpack.c.b16 %v9020, %v9016
    %v9381 = vpack.c.b16 %v9021, %v9017
    %v9382 = vpack.c.b16 %v9026, %v9022
    %v9383 = vpack.c.b16 %v9027, %v9023
    %v9384 = vpack.c.b16 %v9028, %v9024
    %v9385 = vpack.c.b16 %v9029, %v9025
    %v9386 = vpack.c.b16 %v9034, %v9030
    %v9387 = vpack.c.b16 %v9035, %v9031
    %v9388 = vpack.c.b16 %v9036, %v9032
    %v9389 = vpack.c.b16 %v9037, %v9033
    %v9390 = vpack.c.b16 %v9042, %v9038
    %v9391 = vpack.c.b16 %v9043, %v9039
    %v9392 = vpack.c.b16 %v9044, %v9040
    %v9393 = vpack.c.b16 %v9045, %v9041
    %v9394 = vpack.c.b16 %v9050, %v9046
    %v9395 = vpack.c.b16 %v9051, %v9047
    %v9396 = vpack.c.b16 %v9052, %v9048
    %v9397 = vpack.c.b16 %v9053, %v9049
    %v9398 = vpack.c.b16 %v9058, %v9054
    %v9399 = vpack.c.b16 %v9059, %v9055
    %v9400 = vpack.c.b16 %v9060, %v9056
    %v9401 = vpack.c.b16 %v9061, %v9057
    %v9402 = vpack.c.b16 %v9066, %v9062
    %v9403 = vpack.c.b16 %v9067, %v9063
    %v9404 = vpack.c.b16 %v9068, %v9064
    %v9405 = vpack.c.b16 %v9069, %v9065
    %v9406 = vpack.c.b16 %v9074, %v9070
    %v9407 = vpack.c.b16 %v9075, %v9071
    %v9408 = vpack.c.b16 %v9076, %v9072
    %v9409 = vpack.c.b16 %v9077, %v9073
    %v9410 = vpack.c.b16 %v9082, %v9078
    %v9411 = vpack.c.b16 %v9083, %v9079
    %v9412 = vpack.c.b16 %v9084, %v9080
    %v9413 = vpack.c.b16 %v9085, %v9081
    %v9414 = vpack.c.b16 %v9090, %v9086
    %v9415 = vpack.c.b16 %v9091, %v9087
    %v9416 = vpack.c.b16 %v9092, %v9088
    %v9417 = vpack.c.b16 %v9093, %v9089
    %v9418 = vpack.c.b16 %v9098, %v9094
    %v9419 = vpack.c.b16 %v9099, %v9095
    %v9420 = vpack.c.b16 %v9100, %v9096
    %v9421 = vpack.c.b16 %v9101, %v9097
    %v9422 = vpack.c.b16 %v9106, %v9102
    %v9423 = vpack.c.b16 %v9107, %v9103
    %v9424 = vpack.c.b16 %v9108, %v9104
    %v9425 = vpack.c.b16 %v9109, %v9105
    %v9426 = vpack.c.b16 %v9114, %v9110
    %v9427 = vpack.c.b16 %v9115, %v9111
    %v9428 = vpack.c.b16 %v9116, %v9112
    %v9429 = vpack.c.b16 %v9117, %v9113
    %v9430 = vpack.c.b16 %v9122, %v9118
    %v9431 = vpack.c.b16 %v9123, %v9119
    %v9432 = vpack.c.b16 %v9124, %v9120
    %v9433 = vpack.c.b16 %v9125, %v9121
    %v9434 = vpack.c.b16 %v9130, %v9126
    %v9435 = vpack.c.b16 %v9131, %v9127
    %v9436 = vpack.c.b16 %v9132, %v9128
    %v9437 = vpack.c.b16 %v9133, %v9129
    %v9438 = vpack.c.b16 %v9138, %v9134
    %v9439 = vpack.c.b16 %v9139, %v9135
    %v9440 = vpack.c.b16 %v9140, %v9136
    %v9441 = vpack.c.b16 %v9141, %v9137
    %v9442 = vpack.c.b16 %v9146, %v9142
    %v9443 = vpack.c.b16 %v9147, %v9143
    %v9444 = vpack.c.b16 %v9148, %v9144
    %v9445 = vpack.c.b16 %v9149, %v9145
    %v9446 = vpack.c.b16 %v9154, %v9150
    %v9447 = vpack.c.b16 %v9155, %v9151
    %v9448 = vpack.c.b16 %v9156, %v9152
    %v9449 = vpack.c.b16 %v9157, %v9153
    %v9450 = vpack.c.b16 %v9162, %v9158
    %v9451 = vpack.c.b16 %v9163, %v9159
    %v9452 = vpack.c.b16 %v9164, %v9160
    %v9453 = vpack.c.b16 %v9165, %v9161
    %v9454 = vpack.c.b16 %v9170, %v9166
    %v9455 = vpack.c.b16 %v9171, %v9167
    %v9456 = vpack.c.b16 %v9172, %v9168
    %v9457 = vpack.c.b16 %v9173, %v9169
    %v9458 = vpack.c.b16 %v9178, %v9174
    %v9459 = vpack.c.b16 %v9179, %v9175
    %v9460 = vpack.c.b16 %v9180, %v9176
    %v9461 = vpack.c.b16 %v9181, %v9177
    %v9462 = vpack.c.b16 %v9186, %v9182
    %v9463 = vpack.c.b16 %v9187, %v9183
    %v9464 = vpack.c.b16 %v9188, %v9184
    %v9465 = vpack.c.b16 %v9189, %v9185
    %v9466 = vpack.c.b16 %v9194, %v9190
    %v9467 = vpack.c.b16 %v9195, %v9191
    %v9468 = vpack.c.b16 %v9196, %v9192
    %v9469 = vpack.c.b16 %v9197, %v9193
    %v9470 = vpack.c.b16 %v9202, %v9198
    %v9471 = vpack.c.b16 %v9203, %v9199
    %v9472 = vpack.c.b16 %v9204, %v9200
    %v9473 = vpack.c.b16 %v9205, %v9201
    %v9474 = vpack.c.b16 %v9210, %v9206
    %v9475 = vpack.c.b16 %v9211, %v9207
    %v9476 = vpack.c.b16 %v9212, %v9208
    %v9477 = vpack.c.b16 %v9213, %v9209
    %v9478 = vpack.c.b16 %v9218, %v9214
    %v9479 = vpack.c.b16 %v9219, %v9215
    %v9480 = vpack.c.b16 %v9220, %v9216
    %v9481 = vpack.c.b16 %v9221, %v9217
    %v9482 = vpack.c.b16 %v9226, %v9222
    %v9483 = vpack.c.b16 %v9227, %v9223
    %v9484 = vpack.c.b16 %v9228, %v9224
    %v9485 = vpack.c.b16 %v9229, %v9225
    %v9486 = vpack.c.b16 %v9234, %v9230
    %v9487 = vpack.c.b16 %v9235, %v9231
    %v9488 = vpack.c.b16 %v9236, %v9232
    %v9489 = vpack.c.b16 %v9237, %v9233
    %v9490 = vpack.c.b16 %v9242, %v9238
    %v9491 = vpack.c.b16 %v9243, %v9239
    %v9492 = vpack.c.b16 %v9244, %v9240
    %v9493 = vpack.c.b16 %v9245, %v9241
    %v9494 = vpack.c.b16 %v9250, %v9246
    %v9495 = vpack.c.b16 %v9251, %v9247
    %v9496 = vpack.c.b16 %v9252, %v9248
    %v9497 = vpack.c.b16 %v9253, %v9249
    %v9498 = vpack.c.b16 %v9258, %v9254
    %v9499 = vpack.c.b16 %v9259, %v9255
    %v9500 = vpack.c.b16 %v9260, %v9256
    %v9501 = vpack.c.b16 %v9261, %v9257
    %v9502 = vpack.c.b16 %v9266, %v9262
    %v9503 = vpack.c.b16 %v9267, %v9263
    %v9504 = vpack.c.b16 %v9268, %v9264
    %v9505 = vpack.c.b16 %v9269, %v9265
    %v9506 = vpack.c.b16 %v9274, %v9270
    %v9507 = vpack.c.b16 %v9275, %v9271
    %v9508 = vpack.c.b16 %v9276, %v9272
    %v9509 = vpack.c.b16 %v9277, %v9273
    %v9510 = vpack.c.b16 %v9282, %v9278
    %v9511 = vpack.c.b16 %v9283, %v9279
    %v9512 = vpack.c.b16 %v9284, %v9280
    %v9513 = vpack.c.b16 %v9285, %v9281
    %v9514 = vpack.c.b16 %v9290, %v9286
    %v9515 = vpack.c.b16 %v9291, %v9287
    %v9516 = vpack.c.b16 %v9292, %v9288
    %v9517 = vpack.c.b16 %v9293, %v9289
    %v9518 = vpack.c.b16 %v9298, %v9294
    %v9519 = vpack.c.b16 %v9299, %v9295
    %v9520 = vpack.c.b16 %v9300, %v9296
    %v9521 = vpack.c.b16 %v9301, %v9297
    %v9522 = vpack.c.b16 %v9306, %v9302
    %v9523 = vpack.c.b16 %v9307, %v9303
    %v9524 = vpack.c.b16 %v9308, %v9304
    %v9525 = vpack.c.b16 %v9309, %v9305
    %v9526 = vpack.c.b16 %v9314, %v9310
    %v9527 = vpack.c.b16 %v9315, %v9311
    %v9528 = vpack.c.b16 %v9316, %v9312
    %v9529 = vpack.c.b16 %v9317, %v9313
    %v9530 = vpack.c.b16 %v9322, %v9318
    %v9531 = vpack.c.b16 %v9323, %v9319
    %v9532 = vpack.c.b16 %v9324, %v9320
    %v9533 = vpack.c.b16 %v9325, %v9321
    %v9534 = vpack.c.b16 %v9330, %v9326
    %v9535 = vpack.c.b16 %v9331, %v9327
    %v9536 = vpack.c.b16 %v9332, %v9328
    %v9537 = vpack.c.b16 %v9333, %v9329
    %v9538 = vpack.c.b16 %v9338, %v9334
    %v9539 = vpack.c.b16 %v9339, %v9335
    %v9540 = vpack.c.b16 %v9340, %v9336
    %v9541 = vpack.c.b16 %v9341, %v9337
    %v9542 = vpack.c.b16 %v9346, %v9342
    %v9543 = vpack.c.b16 %v9347, %v9343
    %v9544 = vpack.c.b16 %v9348, %v9344
    %v9545 = vpack.c.b16 %v9349, %v9345
    %v9743 = vsel %vm6909, %v8543, 0
    %9745 = vmatprep.subr.bf16.mxu0 %v9351
    %9746 = vmatpush1.bf16.msra.mxu0 %v9350
    %9747 = vmatprep.subr.bf16.mxu0 %v9355
    %9748 = vmatpush1.bf16.msra.mxu0 %v9354
    %9749 = vmatprep.subr.bf16.mxu0 %v9359
    %9750 = vmatpush1.bf16.msra.mxu0 %v9358
    %9751 = vmatprep.subr.bf16.mxu0 %v9363
    %9752 = vmatpush1.bf16.msra.mxu0 %v9362
    %9753 = vmatprep.subr.bf16.mxu0 %v9367
    %9754 = vmatpush1.bf16.msra.mxu0 %v9366
    %9755 = vmatprep.subr.bf16.mxu0 %v9371
    %9756 = vmatpush1.bf16.msra.mxu0 %v9370
    %9757 = vmatprep.subr.bf16.mxu0 %v9375
    %9758 = vmatpush1.bf16.msra.mxu0 %v9374
    %9759 = vmatprep.subr.bf16.mxu0 %v9379
    %9760 = vmatpush1.bf16.msra.mxu0 %v9378
    %9761 = vmatprep.subr.bf16.mxu0 %v9383
    %9762 = vmatpush1.bf16.msra.mxu0 %v9382
    %9763 = vmatprep.subr.bf16.mxu0 %v9387
    %9764 = vmatpush1.bf16.msra.mxu0 %v9386
    %9765 = vmatprep.subr.bf16.mxu0 %v9391
    %9766 = vmatpush1.bf16.msra.mxu0 %v9390
    %9767 = vmatprep.subr.bf16.mxu0 %v9395
    %9768 = vmatpush1.bf16.msra.mxu0 %v9394
    %9769 = vmatprep.subr.bf16.mxu0 %v9399
    %9770 = vmatpush1.bf16.msra.mxu0 %v9398
    %9771 = vmatprep.subr.bf16.mxu0 %v9403
    %9772 = vmatpush1.bf16.msra.mxu0 %v9402
    %9773 = vmatprep.subr.bf16.mxu0 %v9407
    %9774 = vmatpush1.bf16.msra.mxu0 %v9406
    %9775 = vmatprep.subr.bf16.mxu0 %v9411
    %9776 = vmatpush1.bf16.msra.mxu0 %v9410
    %9777 = vmatprep.mubr.bf16.mxu0 %v8538
    %9778 = vmatmul.mubr.bf16.gmra.mrb[0].mxu0 %v8537
    %v9779 = vpop.f32.mrb[0].mxu0
    %v9780 = vadd.f32 %v8745, %v9779
    %v9781 = vpop.f32.mrb[0].mxu0
    %v9782 = vadd.f32 %v8749, %v9781
    %v9783 = vpop.f32.mrb[0].mxu0
    %v9784 = vpop.f32.mrb[0].mxu0
    %9785 = vdwg.mxu0
    %9786 = vmatprep.subr.bf16.mxu0 %v9415
    %9787 = vmatpush1.bf16.msra.mxu0 %v9414
    %9788 = vmatprep.subr.bf16.mxu0 %v9419
    %9789 = vmatpush1.bf16.msra.mxu0 %v9418
    %9790 = vmatprep.subr.bf16.mxu0 %v9423
    %9791 = vmatpush1.bf16.msra.mxu0 %v9422
    %9792 = vmatprep.subr.bf16.mxu0 %v9427
    %9793 = vmatpush1.bf16.msra.mxu0 %v9426
    %9794 = vmatprep.subr.bf16.mxu0 %v9431
    %9795 = vmatpush1.bf16.msra.mxu0 %v9430
    %9796 = vmatprep.subr.bf16.mxu0 %v9435
    %9797 = vmatpush1.bf16.msra.mxu0 %v9434
    %9798 = vmatprep.subr.bf16.mxu0 %v9439
    %9799 = vmatpush1.bf16.msra.mxu0 %v9438
    %9800 = vmatprep.subr.bf16.mxu0 %v9443
    %9801 = vmatpush1.bf16.msra.mxu0 %v9442
    %9802 = vmatprep.subr.bf16.mxu0 %v9447
    %9803 = vmatpush1.bf16.msra.mxu0 %v9446
    %9804 = vmatprep.subr.bf16.mxu0 %v9451
    %9805 = vmatpush1.bf16.msra.mxu0 %v9450
    %9806 = vmatprep.subr.bf16.mxu0 %v9455
    %9807 = vmatpush1.bf16.msra.mxu0 %v9454
    %9808 = vmatprep.subr.bf16.mxu0 %v9459
    %9809 = vmatpush1.bf16.msra.mxu0 %v9458
    %9810 = vmatprep.subr.bf16.mxu0 %v9463
    %9811 = vmatpush1.bf16.msra.mxu0 %v9462
    %9812 = vmatprep.subr.bf16.mxu0 %v9467
    %9813 = vmatpush1.bf16.msra.mxu0 %v9466
    %9814 = vmatprep.subr.bf16.mxu0 %v9471
    %9815 = vmatpush1.bf16.msra.mxu0 %v9470
    %9816 = vmatprep.subr.bf16.mxu0 %v9475
    %9817 = vmatpush1.bf16.msra.mxu0 %v9474
    %9818 = vmatprep.mubr.bf16.mxu0 %v8540
    %9819 = vmatmul.mubr.bf16.gmra.mrb[0].mxu0 %v8539
    %v9820 = vpop.f32.mrb[0].mxu0
    %v9821 = vadd.f32 %v9780, %v9820
    %v9822 = vpop.f32.mrb[0].mxu0
    %v9823 = vadd.f32 %v9782, %v9822
    %v9824 = vpop.f32.mrb[0].mxu0
    %v9825 = vpop.f32.mrb[0].mxu0
    %9826 = vdwg.mxu0
    %9827 = vmatprep.subr.bf16.mxu0 %v9479
    %9828 = vmatpush1.bf16.msra.mxu0 %v9478
    %9829 = vmatprep.subr.bf16.mxu0 %v9483
    %9830 = vmatpush1.bf16.msra.mxu0 %v9482
    %9831 = vmatprep.subr.bf16.mxu0 %v9487
    %9832 = vmatpush1.bf16.msra.mxu0 %v9486
    %9833 = vmatprep.subr.bf16.mxu0 %v9491
    %9834 = vmatpush1.bf16.msra.mxu0 %v9490
    %9835 = vmatprep.subr.bf16.mxu0 %v9495
    %9836 = vmatpush1.bf16.msra.mxu0 %v9494
    %9837 = vmatprep.subr.bf16.mxu0 %v9499
    %9838 = vmatpush1.bf16.msra.mxu0 %v9498
    %9839 = vmatprep.subr.bf16.mxu0 %v9503
    %9840 = vmatpush1.bf16.msra.mxu0 %v9502
    %9841 = vmatprep.subr.bf16.mxu0 %v9507
    %9842 = vmatpush1.bf16.msra.mxu0 %v9506
    %9843 = vmatprep.subr.bf16.mxu0 %v9511
    %9844 = vmatpush1.bf16.msra.mxu0 %v9510
    %9845 = vmatprep.subr.bf16.mxu0 %v9515
    %9846 = vmatpush1.bf16.msra.mxu0 %v9514
    %9847 = vmatprep.subr.bf16.mxu0 %v9519
    %9848 = vmatpush1.bf16.msra.mxu0 %v9518
    %9849 = vmatprep.subr.bf16.mxu0 %v9523
    %9850 = vmatpush1.bf16.msra.mxu0 %v9522
    %9851 = vmatprep.subr.bf16.mxu0 %v9527
    %9852 = vmatpush1.bf16.msra.mxu0 %v9526
    %9853 = vmatprep.subr.bf16.mxu0 %v9531
    %9854 = vmatpush1.bf16.msra.mxu0 %v9530
    %9855 = vmatprep.subr.bf16.mxu0 %v9535
    %9856 = vmatpush1.bf16.msra.mxu0 %v9534
    %9857 = vmatprep.subr.bf16.mxu0 %v9539
    %9858 = vmatpush1.bf16.msra.mxu0 %v9538
    %9859 = vmatprep.mubr.bf16.mxu0 %v8542
    %9860 = vmatmul.mubr.bf16.gmra.mrb[0].mxu0 %v8541
    %v9861 = vpop.f32.mrb[0].mxu0
    %v9862 = vadd.f32 %v9821, %v9861
    %v9863 = vpop.f32.mrb[0].mxu0
    %v9864 = vadd.f32 %v9823, %v9863
    %v9865 = vpop.f32.mrb[0].mxu0
    %v9866 = vpop.f32.mrb[0].mxu0
    %9867 = vdwg.mxu0
    %9868 = vmatprep.subr.bf16.mxu0 %v9543
    %9869 = vmatpush1.bf16.msra.mxu0 %v9542
    %9870 = vmatprep.subr.bf16.mxu0 0
    %9871 = vmatpush1.bf16.msra.mxu0 0
    %9872 = vmatprep.subr.bf16.mxu0 0
    %9873 = vmatpush1.bf16.msra.mxu0 0
    %9874 = vmatprep.subr.bf16.mxu0 0
    %9875 = vmatpush1.bf16.msra.mxu0 0
    %9876 = vmatprep.subr.bf16.mxu0 0
    %9877 = vmatpush1.bf16.msra.mxu0 0
    %9878 = vmatprep.subr.bf16.mxu0 0
    %9879 = vmatpush1.bf16.msra.mxu0 0
    %9880 = vmatprep.subr.bf16.mxu0 0
    %9881 = vmatpush1.bf16.msra.mxu0 0
    %9882 = vmatprep.subr.bf16.mxu0 0
    %9883 = vmatpush1.bf16.msra.mxu0 0
    %9884 = vmatprep.subr.bf16.mxu0 0
    %9885 = vmatpush1.bf16.msra.mxu0 0
    %9886 = vmatprep.subr.bf16.mxu0 0
    %9887 = vmatpush1.bf16.msra.mxu0 0
    %9888 = vmatprep.subr.bf16.mxu0 0
    %9889 = vmatpush1.bf16.msra.mxu0 0
    %9890 = vmatprep.subr.bf16.mxu0 0
    %9891 = vmatpush1.bf16.msra.mxu0 0
    %9892 = vmatprep.subr.bf16.mxu0 0
    %9893 = vmatpush1.bf16.msra.mxu0 0
    %9894 = vmatprep.subr.bf16.mxu0 0
    %9895 = vmatpush1.bf16.msra.mxu0 0
    %9896 = vmatprep.subr.bf16.mxu0 0
    %9897 = vmatpush1.bf16.msra.mxu0 0
    %9898 = vmatprep.subr.bf16.mxu0 0
    %9899 = vmatpush1.bf16.msra.mxu0 0
    %9900 = vmatprep.mubr.bf16.mxu0 0
    %9901 = vmatmul.mubr.bf16.gmra.mrb[0].mxu0 %v9743
    %v9902 = vpop.f32.mrb[0].mxu0
    %v9903 = vadd.f32 %v9862, %v9902
    %v9904 = vpop.f32.mrb[0].mxu0
    %v9905 = vadd.f32 %v9864, %v9904
    %v9906 = vpop.f32.mrb[0].mxu0
    %v9907 = vpop.f32.mrb[0].mxu0
    %9908 = vdwg.mxu0
    %9909 = vmatprep.subr.bf16.mxu0 %v9353
    %9910 = vmatpush1.bf16.msra.mxu0 %v9352
    %9911 = vmatprep.subr.bf16.mxu0 %v9357
    %9912 = vmatpush1.bf16.msra.mxu0 %v9356
    %9913 = vmatprep.subr.bf16.mxu0 %v9361
    %9914 = vmatpush1.bf16.msra.mxu0 %v9360
    %9915 = vmatprep.subr.bf16.mxu0 %v9365
    %9916 = vmatpush1.bf16.msra.mxu0 %v9364
    %9917 = vmatprep.subr.bf16.mxu0 %v9369
    %9918 = vmatpush1.bf16.msra.mxu0 %v9368
    %9919 = vmatprep.subr.bf16.mxu0 %v9373
    %9920 = vmatpush1.bf16.msra.mxu0 %v9372
    %9921 = vmatprep.subr.bf16.mxu0 %v9377
    %9922 = vmatpush1.bf16.msra.mxu0 %v9376
    %9923 = vmatprep.subr.bf16.mxu0 %v9381
    %9924 = vmatpush1.bf16.msra.mxu0 %v9380
    %9925 = vmatprep.subr.bf16.mxu0 %v9385
    %9926 = vmatpush1.bf16.msra.mxu0 %v9384
    %9927 = vmatprep.subr.bf16.mxu0 %v9389
    %9928 = vmatpush1.bf16.msra.mxu0 %v9388
    %9929 = vmatprep.subr.bf16.mxu0 %v9393
    %9930 = vmatpush1.bf16.msra.mxu0 %v9392
    %9931 = vmatprep.subr.bf16.mxu0 %v9397
    %9932 = vmatpush1.bf16.msra.mxu0 %v9396
    %9933 = vmatprep.subr.bf16.mxu0 %v9401
    %9934 = vmatpush1.bf16.msra.mxu0 %v9400
    %9935 = vmatprep.subr.bf16.mxu0 %v9405
    %9936 = vmatpush1.bf16.msra.mxu0 %v9404
    %9937 = vmatprep.subr.bf16.mxu0 %v9409
    %9938 = vmatpush1.bf16.msra.mxu0 %v9408
    %9939 = vmatprep.subr.bf16.mxu0 %v9413
    %9940 = vmatpush1.bf16.msra.mxu0 %v9412
    %9941 = vmatprep.mubr.bf16.mxu0 %v8538
    %9942 = vmatmul.mubr.bf16.gmra.mrb[0].mxu0 %v8537
    %v9943 = vpop.f32.mrb[0].mxu0
    %v9944 = vadd.f32 %v8753, %v9943
    %v9945 = vpop.f32.mrb[0].mxu0
    %v9946 = vadd.f32 %v8757, %v9945
    %v9947 = vpop.f32.mrb[0].mxu0
    %v9948 = vpop.f32.mrb[0].mxu0
    %9949 = vdwg.mxu0
    %9950 = vmatprep.subr.bf16.mxu0 %v9417
    %9951 = vmatpush1.bf16.msra.mxu0 %v9416
    %9952 = vmatprep.subr.bf16.mxu0 %v9421
    %9953 = vmatpush1.bf16.msra.mxu0 %v9420
    %9954 = vmatprep.subr.bf16.mxu0 %v9425
    %9955 = vmatpush1.bf16.msra.mxu0 %v9424
    %9956 = vmatprep.subr.bf16.mxu0 %v9429
    %9957 = vmatpush1.bf16.msra.mxu0 %v9428
    %9958 = vmatprep.subr.bf16.mxu0 %v9433
    %9959 = vmatpush1.bf16.msra.mxu0 %v9432
    %9960 = vmatprep.subr.bf16.mxu0 %v9437
    %9961 = vmatpush1.bf16.msra.mxu0 %v9436
    %9962 = vmatprep.subr.bf16.mxu0 %v9441
    %9963 = vmatpush1.bf16.msra.mxu0 %v9440
    %9964 = vmatprep.subr.bf16.mxu0 %v9445
    %9965 = vmatpush1.bf16.msra.mxu0 %v9444
    %9966 = vmatprep.subr.bf16.mxu0 %v9449
    %9967 = vmatpush1.bf16.msra.mxu0 %v9448
    %9968 = vmatprep.subr.bf16.mxu0 %v9453
    %9969 = vmatpush1.bf16.msra.mxu0 %v9452
    %9970 = vmatprep.subr.bf16.mxu0 %v9457
    %9971 = vmatpush1.bf16.msra.mxu0 %v9456
    %9972 = vmatprep.subr.bf16.mxu0 %v9461
    %9973 = vmatpush1.bf16.msra.mxu0 %v9460
    %9974 = vmatprep.subr.bf16.mxu0 %v9465
    %9975 = vmatpush1.bf16.msra.mxu0 %v9464
    %9976 = vmatprep.subr.bf16.mxu0 %v9469
    %9977 = vmatpush1.bf16.msra.mxu0 %v9468
    %9978 = vmatprep.subr.bf16.mxu0 %v9473
    %9979 = vmatpush1.bf16.msra.mxu0 %v9472
    %9980 = vmatprep.subr.bf16.mxu0 %v9477
    %9981 = vmatpush1.bf16.msra.mxu0 %v9476
    %9982 = vmatprep.mubr.bf16.mxu0 %v8540
    %9983 = vmatmul.mubr.bf16.gmra.mrb[0].mxu0 %v8539
    %v9984 = vpop.f32.mrb[0].mxu0
    %v9985 = vadd.f32 %v9944, %v9984
    %v9986 = vpop.f32.mrb[0].mxu0
    %v9987 = vadd.f32 %v9946, %v9986
    %v9988 = vpop.f32.mrb[0].mxu0
    %v9989 = vpop.f32.mrb[0].mxu0
    %9990 = vdwg.mxu0
    %9991 = vmatprep.subr.bf16.mxu0 %v9481
    %9992 = vmatpush1.bf16.msra.mxu0 %v9480
    %9993 = vmatprep.subr.bf16.mxu0 %v9485
    %9994 = vmatpush1.bf16.msra.mxu0 %v9484
    %9995 = vmatprep.subr.bf16.mxu0 %v9489
    %9996 = vmatpush1.bf16.msra.mxu0 %v9488
    %9997 = vmatprep.subr.bf16.mxu0 %v9493
    %9998 = vmatpush1.bf16.msra.mxu0 %v9492
    %9999 = vmatprep.subr.bf16.mxu0 %v9497
    %10000 = vmatpush1.bf16.msra.mxu0 %v9496
    %10001 = vmatprep.subr.bf16.mxu0 %v9501
    %10002 = vmatpush1.bf16.msra.mxu0 %v9500
    %10003 = vmatprep.subr.bf16.mxu0 %v9505
    %10004 = vmatpush1.bf16.msra.mxu0 %v9504
    %10005 = vmatprep.subr.bf16.mxu0 %v9509
    %10006 = vmatpush1.bf16.msra.mxu0 %v9508
    %10007 = vmatprep.subr.bf16.mxu0 %v9513
    %10008 = vmatpush1.bf16.msra.mxu0 %v9512
    %10009 = vmatprep.subr.bf16.mxu0 %v9517
    %10010 = vmatpush1.bf16.msra.mxu0 %v9516
    %10011 = vmatprep.subr.bf16.mxu0 %v9521
    %10012 = vmatpush1.bf16.msra.mxu0 %v9520
    %10013 = vmatprep.subr.bf16.mxu0 %v9525
    %10014 = vmatpush1.bf16.msra.mxu0 %v9524
    %10015 = vmatprep.subr.bf16.mxu0 %v9529
    %10016 = vmatpush1.bf16.msra.mxu0 %v9528
    %10017 = vmatprep.subr.bf16.mxu0 %v9533
    %10018 = vmatpush1.bf16.msra.mxu0 %v9532
    %10019 = vmatprep.subr.bf16.mxu0 %v9537
    %10020 = vmatpush1.bf16.msra.mxu0 %v9536
    %10021 = vmatprep.subr.bf16.mxu0 %v9541
    %10022 = vmatpush1.bf16.msra.mxu0 %v9540
    %10023 = vmatprep.mubr.bf16.mxu0 %v8542
    %10024 = vmatmul.mubr.bf16.gmra.mrb[0].mxu0 %v8541
    %v10025 = vpop.f32.mrb[0].mxu0
    %v10026 = vadd.f32 %v9985, %v10025
    %v10027 = vpop.f32.mrb[0].mxu0
    %v10028 = vadd.f32 %v9987, %v10027
    %v10029 = vpop.f32.mrb[0].mxu0
    %v10030 = vpop.f32.mrb[0].mxu0
    %10031 = vdwg.mxu0
    %10032 = vmatprep.subr.bf16.mxu0 %v9545
    %10033 = vmatpush1.bf16.msra.mxu0 %v9544
    %10034 = vmatprep.subr.bf16.mxu0 0
    %10035 = vmatpush1.bf16.msra.mxu0 0
    %10036 = vmatprep.subr.bf16.mxu0 0
    %10037 = vmatpush1.bf16.msra.mxu0 0
    %10038 = vmatprep.subr.bf16.mxu0 0
    %10039 = vmatpush1.bf16.msra.mxu0 0
    %10040 = vmatprep.subr.bf16.mxu0 0
    %10041 = vmatpush1.bf16.msra.mxu0 0
    %10042 = vmatprep.subr.bf16.mxu0 0
    %10043 = vmatpush1.bf16.msra.mxu0 0
    %10044 = vmatprep.subr.bf16.mxu0 0
    %10045 = vmatpush1.bf16.msra.mxu0 0
    %10046 = vmatprep.subr.bf16.mxu0 0
    %10047 = vmatpush1.bf16.msra.mxu0 0
    %10048 = vmatprep.subr.bf16.mxu0 0
    %10049 = vmatpush1.bf16.msra.mxu0 0
    %10050 = vmatprep.subr.bf16.mxu0 0
    %10051 = vmatpush1.bf16.msra.mxu0 0
    %10052 = vmatprep.subr.bf16.mxu0 0
    %10053 = vmatpush1.bf16.msra.mxu0 0
    %10054 = vmatprep.subr.bf16.mxu0 0
    %10055 = vmatpush1.bf16.msra.mxu0 0
    %10056 = vmatprep.subr.bf16.mxu0 0
    %10057 = vmatpush1.bf16.msra.mxu0 0
    %10058 = vmatprep.subr.bf16.mxu0 0
    %10059 = vmatpush1.bf16.msra.mxu0 0
    %10060 = vmatprep.subr.bf16.mxu0 0
    %10061 = vmatpush1.bf16.msra.mxu0 0
    %10062 = vmatprep.subr.bf16.mxu0 0
    %10063 = vmatpush1.bf16.msra.mxu0 0
    %10064 = vmatprep.mubr.bf16.mxu0 0
    %10065 = vmatmul.mubr.bf16.gmra.mrb[0].mxu0 %v9743
    %v10066 = vpop.f32.mrb[0].mxu0
    %v10067 = vadd.f32 %v10026, %v10066
    %v10068 = vpop.f32.mrb[0].mxu0
    %v10069 = vadd.f32 %v10028, %v10068
    %v10070 = vpop.f32.mrb[0].mxu0
    %v10071 = vpop.f32.mrb[0].mxu0
    %10072 = vdwg.mxu0
    %v10073 = vmax.f32 %v9903, 0.0
    %v10074 = vmax.f32 %v9905, 0.0
    %v10075 = vmax.f32 %v10067, 0.0
    %v10076 = vmax.f32 %v10069, 0.0
    %v10077 = vpack.c.bf16 %v10073, %v10073
    %v10078 = vpack.c.bf16 %v10074, %v10074
    %v10079 = vpack.c.bf16 %v10075, %v10075
    %v10080 = vpack.c.bf16 %v10076, %v10076
    %v10081 = vld [vmem:[%s12] sm:$0xf]
    %v10082 = vld [vmem:[%s12 + $0x4] sm:$0xf]
    %v10083 = vld [vmem:[%s12 + $0x8] sm:$0xf]
    %v10084 = vld [vmem:[%s12 + $0xc] sm:$0xf]
    %v10085 = vld [vmem:[%s12 + $0x10] sm:$0xf]
    %v10086 = vld [vmem:[%s12 + $0x14] sm:$0xf]
    %v10087 = vld [vmem:[%s12 + $0x18] sm:$0xf]
    %v10088 = vld [vmem:[%s12 + $0x1c] sm:$0xf]
    %v10089 = vld [vmem:[%s12 + $0x20] sm:$0xf]
    %v10090 = vld [vmem:[%s12 + $0x24] sm:$0xf]
    %v10091 = vld [vmem:[%s12 + $0x28] sm:$0xf]
    %v10092 = vld [vmem:[%s12 + $0x2c] sm:$0xf]
    %v10093 = vld [vmem:[%s12 + $0x30] sm:$0xf]
    %v10094 = vld [vmem:[%s12 + $0x34] sm:$0xf]
    %v10095 = vld [vmem:[%s12 + $0x38] sm:$0xf]
    %v10096 = vld [vmem:[%s12 + $0x3c] sm:$0xf]
    %v10097 = vld [vmem:[%s12 + $0x40] sm:$0xf]
    %v10098 = vld [vmem:[%s12 + $0x44] sm:$0xf]
    %v10099 = vld [vmem:[%s12 + $0x48] sm:$0xf]
    %v10100 = vld [vmem:[%s12 + $0x4c] sm:$0xf]
    %v10101 = vld [vmem:[%s12 + $0x50] sm:$0xf]
    %v10102 = vld [vmem:[%s12 + $0x54] sm:$0xf]
    %v10103 = vld [vmem:[%s12 + $0x58] sm:$0xf]
    %v10104 = vld [vmem:[%s12 + $0x5c] sm:$0xf]
    %v10105 = vld [vmem:[%s12 + $0x60] sm:$0xf]
    %v10106 = vld [vmem:[%s12 + $0x64] sm:$0xf]
    %v10107 = vld [vmem:[%s12 + $0x68] sm:$0xf]
    %v10108 = vld [vmem:[%s12 + $0x6c] sm:$0xf]
    %v10109 = vld [vmem:[%s12 + $0x70] sm:$0xf]
    %v10110 = vld [vmem:[%s12 + $0x74] sm:$0xf]
    %v10111 = vld [vmem:[%s12 + $0x78] sm:$0xf]
    %v10112 = vld [vmem:[%s12 + $0x7c] sm:$0xf]
    %v10113 = vld [vmem:[%s12 + $0x80] sm:$0xf]
    %v10114 = vld [vmem:[%s12 + $0x84] sm:$0xf]
    %v10115 = vld [vmem:[%s12 + $0x88] sm:$0xf]
    %v10116 = vld [vmem:[%s12 + $0x8c] sm:$0xf]
    %v10117 = vld [vmem:[%s12 + $0x90] sm:$0xf]
    %v10118 = vld [vmem:[%s12 + $0x94] sm:$0xf]
    %v10119 = vld [vmem:[%s12 + $0x98] sm:$0xf]
    %v10120 = vld [vmem:[%s12 + $0x9c] sm:$0xf]
    %v10121 = vld [vmem:[%s12 + $0xa0] sm:$0xf]
    %v10122 = vld [vmem:[%s12 + $0xa4] sm:$0xf]
    %v10123 = vld [vmem:[%s12 + $0xa8] sm:$0xf]
    %v10124 = vld [vmem:[%s12 + $0xac] sm:$0xf]
    %v10125 = vld [vmem:[%s12 + $0xb0] sm:$0xf]
    %v10126 = vld [vmem:[%s12 + $0xb4] sm:$0xf]
    %v10127 = vld [vmem:[%s12 + $0xb8] sm:$0xf]
    %v10128 = vld [vmem:[%s12 + $0xbc] sm:$0xf]
    %v10129 = vld [vmem:[%s12 + $0xc0] sm:$0xf]
    %v10130 = vld [vmem:[%s12 + $0xc4] sm:$0xf]
    %v10131 = vld [vmem:[%s12 + $0xc8] sm:$0xf]
    %v10132 = vld [vmem:[%s12 + $0xcc] sm:$0xf]
    %v10133 = vld [vmem:[%s12 + $0xd0] sm:$0xf]
    %v10134 = vld [vmem:[%s12 + $0xd4] sm:$0xf]
    %v10135 = vld [vmem:[%s12 + $0xd8] sm:$0xf]
    %v10136 = vld [vmem:[%s12 + $0xdc] sm:$0xf]
    %v10137 = vld [vmem:[%s12 + $0xe0] sm:$0xf]
    %v10138 = vld [vmem:[%s12 + $0xe4] sm:$0xf]
    %v10139 = vld [vmem:[%s12 + $0xe8] sm:$0xf]
    %v10140 = vld [vmem:[%s12 + $0xec] sm:$0xf]
    %v10141 = vld [vmem:[%s12 + $0xf0] sm:$0xf]
    %v10142 = vld [vmem:[%s12 + $0xf4] sm:$0xf]
    %v10143 = vld [vmem:[%s12 + $0xf8] sm:$0xf]
    %v10144 = vld [vmem:[%s12 + $0xfc] sm:$0xf]
    %v10145 = vld [vmem:[%s13] sm:$0x1]
    %v10147 = vlaneseq
    %v10148 = vshrl.u32 %v10147, 7
    %v10149 = vsub.s32 0, %v10148
    %v10150 = vrot.slane %v10145, %v10149
    %v10216 = vunpack.c.l.b16 %v10081
    %v10217 = vunpack.c.l.b16 %v10082
    %v10218 = vunpack.c.l.b16 %v10083
    %v10219 = vunpack.c.l.b16 %v10084
    %v10220 = vunpack.c.l.b16 %v10085
    %v10221 = vunpack.c.l.b16 %v10086
    %v10222 = vunpack.c.l.b16 %v10087
    %v10223 = vunpack.c.l.b16 %v10088
    %v10224 = vunpack.c.l.b16 %v10089
    %v10225 = vunpack.c.l.b16 %v10090
    %v10226 = vunpack.c.l.b16 %v10091
    %v10227 = vunpack.c.l.b16 %v10092
    %v10228 = vunpack.c.l.b16 %v10093
    %v10229 = vunpack.c.l.b16 %v10094
    %v10230 = vunpack.c.l.b16 %v10095
    %v10231 = vunpack.c.l.b16 %v10096
    %v10232 = vunpack.c.l.b16 %v10097
    %v10233 = vunpack.c.l.b16 %v10098
    %v10234 = vunpack.c.l.b16 %v10099
    %v10235 = vunpack.c.l.b16 %v10100
    %v10236 = vunpack.c.l.b16 %v10101
    %v10237 = vunpack.c.l.b16 %v10102
    %v10238 = vunpack.c.l.b16 %v10103
    %v10239 = vunpack.c.l.b16 %v10104
    %v10240 = vunpack.c.l.b16 %v10105
    %v10241 = vunpack.c.l.b16 %v10106
    %v10242 = vunpack.c.l.b16 %v10107
    %v10243 = vunpack.c.l.b16 %v10108
    %v10244 = vunpack.c.l.b16 %v10109
    %v10245 = vunpack.c.l.b16 %v10110
    %v10246 = vunpack.c.l.b16 %v10111
    %v10247 = vunpack.c.l.b16 %v10112
    %v10248 = vunpack.c.l.b16 %v10113
    %v10249 = vunpack.c.l.b16 %v10114
    %v10250 = vunpack.c.l.b16 %v10115
    %v10251 = vunpack.c.l.b16 %v10116
    %v10252 = vunpack.c.l.b16 %v10117
    %v10253 = vunpack.c.l.b16 %v10118
    %v10254 = vunpack.c.l.b16 %v10119
    %v10255 = vunpack.c.l.b16 %v10120
    %v10256 = vunpack.c.l.b16 %v10121
    %v10257 = vunpack.c.l.b16 %v10122
    %v10258 = vunpack.c.l.b16 %v10123
    %v10259 = vunpack.c.l.b16 %v10124
    %v10260 = vunpack.c.l.b16 %v10125
    %v10261 = vunpack.c.l.b16 %v10126
    %v10262 = vunpack.c.l.b16 %v10127
    %v10263 = vunpack.c.l.b16 %v10128
    %v10264 = vunpack.c.l.b16 %v10129
    %v10265 = vunpack.c.l.b16 %v10130
    %v10266 = vunpack.c.l.b16 %v10131
    %v10267 = vunpack.c.l.b16 %v10132
    %v10268 = vunpack.c.l.b16 %v10133
    %v10269 = vunpack.c.l.b16 %v10134
    %v10270 = vunpack.c.l.b16 %v10135
    %v10271 = vunpack.c.l.b16 %v10136
    %v10272 = vunpack.c.l.b16 %v10137
    %v10273 = vunpack.c.l.b16 %v10138
    %v10274 = vunpack.c.l.b16 %v10139
    %v10275 = vunpack.c.l.b16 %v10140
    %v10276 = vunpack.c.l.b16 %v10141
    %v10277 = vunpack.c.l.b16 %v10142
    %v10278 = vunpack.c.l.b16 %v10143
    %v10279 = vunpack.c.l.b16 %v10144
    %v10280 = vpack.c.b16 %v10217, %v10216
    %v10281 = vpack.c.b16 %v10219, %v10218
    %v10282 = vpack.c.b16 %v10221, %v10220
    %v10283 = vpack.c.b16 %v10223, %v10222
    %v10284 = vpack.c.b16 %v10225, %v10224
    %v10285 = vpack.c.b16 %v10227, %v10226
    %v10286 = vpack.c.b16 %v10229, %v10228
    %v10287 = vpack.c.b16 %v10231, %v10230
    %v10288 = vpack.c.b16 %v10233, %v10232
    %v10289 = vpack.c.b16 %v10235, %v10234
    %v10290 = vpack.c.b16 %v10237, %v10236
    %v10291 = vpack.c.b16 %v10239, %v10238
    %v10292 = vpack.c.b16 %v10241, %v10240
    %v10293 = vpack.c.b16 %v10243, %v10242
    %v10294 = vpack.c.b16 %v10245, %v10244
    %v10295 = vpack.c.b16 %v10247, %v10246
    %v10296 = vpack.c.b16 %v10249, %v10248
    %v10297 = vpack.c.b16 %v10251, %v10250
    %v10298 = vpack.c.b16 %v10253, %v10252
    %v10299 = vpack.c.b16 %v10255, %v10254
    %v10300 = vpack.c.b16 %v10257, %v10256
    %v10301 = vpack.c.b16 %v10259, %v10258
    %v10302 = vpack.c.b16 %v10261, %v10260
    %v10303 = vpack.c.b16 %v10263, %v10262
    %v10304 = vpack.c.b16 %v10265, %v10264
    %v10305 = vpack.c.b16 %v10267, %v10266
    %v10306 = vpack.c.b16 %v10269, %v10268
    %v10307 = vpack.c.b16 %v10271, %v10270
    %v10308 = vpack.c.b16 %v10273, %v10272
    %v10309 = vpack.c.b16 %v10275, %v10274
    %v10310 = vpack.c.b16 %v10277, %v10276
    %v10311 = vpack.c.b16 %v10279, %v10278
    %10344 = vmatprep.subr.bf16.mxu0 0
    %10345 = vmatpush1.bf16.msra.mxu0 %v10280
    %10346 = vmatprep.subr.bf16.mxu0 0
    %10347 = vmatpush1.bf16.msra.mxu0 %v10281
    %10348 = vmatprep.subr.bf16.mxu0 0
    %10349 = vmatpush1.bf16.msra.mxu0 %v10282
    %10350 = vmatprep.subr.bf16.mxu0 0
    %10351 = vmatpush1.bf16.msra.mxu0 %v10283
    %10352 = vmatprep.subr.bf16.mxu0 0
    %10353 = vmatpush1.bf16.msra.mxu0 %v10284
    %10354 = vmatprep.subr.bf16.mxu0 0
    %10355 = vmatpush1.bf16.msra.mxu0 %v10285
    %10356 = vmatprep.subr.bf16.mxu0 0
    %10357 = vmatpush1.bf16.msra.mxu0 %v10286
    %10358 = vmatprep.subr.bf16.mxu0 0
    %10359 = vmatpush1.bf16.msra.mxu0 %v10287
    %10360 = vmatprep.subr.bf16.mxu0 0
    %10361 = vmatpush1.bf16.msra.mxu0 %v10288
    %10362 = vmatprep.subr.bf16.mxu0 0
    %10363 = vmatpush1.bf16.msra.mxu0 %v10289
    %10364 = vmatprep.subr.bf16.mxu0 0
    %10365 = vmatpush1.bf16.msra.mxu0 %v10290
    %10366 = vmatprep.subr.bf16.mxu0 0
    %10367 = vmatpush1.bf16.msra.mxu0 %v10291
    %10368 = vmatprep.subr.bf16.mxu0 0
    %10369 = vmatpush1.bf16.msra.mxu0 %v10292
    %10370 = vmatprep.subr.bf16.mxu0 0
    %10371 = vmatpush1.bf16.msra.mxu0 %v10293
    %10372 = vmatprep.subr.bf16.mxu0 0
    %10373 = vmatpush1.bf16.msra.mxu0 %v10294
    %10374 = vmatprep.subr.bf16.mxu0 0
    %10375 = vmatpush1.bf16.msra.mxu0 %v10295
    %10376 = vmatprep.mubr.bf16.mxu0 %v10078
    %10377 = vmatmul.mubr.bf16.gmra.mrb[0].mxu0 %v10077
    %v10378 = vpop.f32.mrb[0].mxu0
    %v10379 = vadd.f32 %v10150, %v10378
    %v10380 = vpop.f32.mrb[0].mxu0
    %v10381 = vpop.f32.mrb[0].mxu0
    %v10382 = vpop.f32.mrb[0].mxu0
    %10383 = vdwg.mxu0
    %10384 = vmatprep.subr.bf16.mxu0 0
    %10385 = vmatpush1.bf16.msra.mxu0 %v10296
    %10386 = vmatprep.subr.bf16.mxu0 0
    %10387 = vmatpush1.bf16.msra.mxu0 %v10297
    %10388 = vmatprep.subr.bf16.mxu0 0
    %10389 = vmatpush1.bf16.msra.mxu0 %v10298
    %10390 = vmatprep.subr.bf16.mxu0 0
    %10391 = vmatpush1.bf16.msra.mxu0 %v10299
    %10392 = vmatprep.subr.bf16.mxu0 0
    %10393 = vmatpush1.bf16.msra.mxu0 %v10300
    %10394 = vmatprep.subr.bf16.mxu0 0
    %10395 = vmatpush1.bf16.msra.mxu0 %v10301
    %10396 = vmatprep.subr.bf16.mxu0 0
    %10397 = vmatpush1.bf16.msra.mxu0 %v10302
    %10398 = vmatprep.subr.bf16.mxu0 0
    %10399 = vmatpush1.bf16.msra.mxu0 %v10303
    %10400 = vmatprep.subr.bf16.mxu0 0
    %10401 = vmatpush1.bf16.msra.mxu0 %v10304
    %10402 = vmatprep.subr.bf16.mxu0 0
    %10403 = vmatpush1.bf16.msra.mxu0 %v10305
    %10404 = vmatprep.subr.bf16.mxu0 0
    %10405 = vmatpush1.bf16.msra.mxu0 %v10306
    %10406 = vmatprep.subr.bf16.mxu0 0
    %10407 = vmatpush1.bf16.msra.mxu0 %v10307
    %10408 = vmatprep.subr.bf16.mxu0 0
    %10409 = vmatpush1.bf16.msra.mxu0 %v10308
    %10410 = vmatprep.subr.bf16.mxu0 0
    %10411 = vmatpush1.bf16.msra.mxu0 %v10309
    %10412 = vmatprep.subr.bf16.mxu0 0
    %10413 = vmatpush1.bf16.msra.mxu0 %v10310
    %10414 = vmatprep.subr.bf16.mxu0 0
    %10415 = vmatpush1.bf16.msra.mxu0 %v10311
    %10416 = vmatprep.mubr.bf16.mxu0 %v10080
    %10417 = vmatmul.mubr.bf16.gmra.mrb[0].mxu0 %v10079
    %v10418 = vpop.f32.mrb[0].mxu0
    %v10419 = vadd.f32 %v10379, %v10418
    %v10420 = vpop.f32.mrb[0].mxu0
    %v10421 = vpop.f32.mrb[0].mxu0
    %v10422 = vpop.f32.mrb[0].mxu0
    %10423 = vdwg.mxu0
    %vm10424 = vcmask 74752
    %10425 = vst.msk [vmem:[#allocation3] sm:$0x3] %vm10424, %v10419
    // Predicated region
    $region58: #{_forward.1} parent=1 // pred_check
      _
    $region59: #{_forward.1} parent=1 // pred_check_branch
      %10427 = sbr.rel (0) target = $region61
    $region60: #{_forward.1} parent=1 // pred_region
      %s10429 = ssub.s32 32, 32
      %10430 = vsyncadd [#allocation4], %s10429
      %s10432 = sshll.u32 [#allocation3], 4
      %s10433 = int_to_ptr.vmem [resolvable:$true] %s10432
      %10435 = dma.vmem_to_hbm [thread:$0]  %s10433, 32, %s14, [#allocation4]
    $region61: #{_forward.1} parent=1 // pred_fallthru
      _
    // Predicated region
    $region62: #{_forward.1} parent=1 // pred_check
      _
    $region63: #{_forward.1} parent=1 // pred_check_branch
      %10437 = sbr.rel (0) target = $region65
    $region64: #{_forward.1} parent=1 // pred_region
      %10438 = dma.done [#allocation4], 32
    $region65: #{_forward.1} parent=1 // pred_fallthru
      _
    %10439 = vsyncpa [#allocation4], 1

</llo_original>
